<compile_context>
chip_gen: v7x
topology: tpu7x:2x2x1
jax: 0.10.0
libtpu: 0.0.40
codegen_flags: <defaults>
</compile_context>

<pallas_src>
import functools

import jax
import jax.numpy as jnp
from jax import lax
from jax.experimental import pallas as pl
from jax.experimental.pallas import tpu as pltpu


# ----------------------------------------------------------------------------
# Generation-aware VMEM budget
# ----------------------------------------------------------------------------
def _round_up(x, m):
    return ((x + m - 1) // m) * m


def _detect_vmem_cap():
    try:
        info = pltpu.get_tpu_info()
        for name in ("vmem_capacity_bytes", "vmem_size_bytes", "vmem_bytes"):
            v = getattr(info, name, None)
            if v:
                return int(v)
    except Exception:
        pass
    return 64 * 1024 * 1024          # conservative (v7x-sized) fallback


_VMEM_CAP = _detect_vmem_cap()                                        # 64 or 128 MiB
_VMEM_LIMIT = int(min(max(_VMEM_CAP - 32 * 2**20, 32 * 2**20), 96 * 2**20))
_TILE_BUDGET = int(min(_VMEM_CAP * 3 // 8, 40 * 2**20))               # matmul work-set


# ----------------------------------------------------------------------------
# Pallas kernel 1: one-shot matmul with fused bias + ReLU (im2col path)
#   A (M,Kp) bf16, B (Kp,Np) bf16, bias (1,Np) f32 -> out (M,Np) bf16
#   Grid over M only (K panel fully resident); ragged last M block.
# ----------------------------------------------------------------------------
def _mm_bias_kernel(a_ref, b_ref, bias_ref, o_ref, *, relu):
    r = jnp.dot(a_ref[...], b_ref[...], preferred_element_type=jnp.float32)
    r = r + bias_ref[...]
    if relu:
        r = jnp.maximum(r, 0.0)
    o_ref[...] = r.astype(o_ref.dtype)


def _choose_tm_im2col(M, K, N):
    Kl = _round_up(K, 128)
    Nl = _round_up(N, 128)
    # dbuf A + dbuf B + f32 dot result + dbuf out  <=  budget
    tm = (_TILE_BUDGET - 4 * Kl * Nl) // (4 * Kl + 8 * Nl)
    tm = max(tm, 256)
    tm = min(tm, 4096, _round_up(M, 8))
    if M >= 16 and pl.cdiv(M, tm) < 2:          # >=2 blocks: pipelining + megacore
        tm = _round_up(pl.cdiv(M, 2), 8)
    if tm >= 512:                               # MXU row-group alignment (v6e/v7x)
        tm = (tm // 256) * 256
    return max(_round_up(tm, 8), 8)


def pallas_matmul_bias(a, b, bias, relu=False, out_dtype=jnp.bfloat16):
    M, K = a.shape
    _, N = b.shape
    TM = _choose_tm_im2col(M, K, N)
    return pl.pallas_call(
        functools.partial(_mm_bias_kernel, relu=relu),
        out_shape=jax.ShapeDtypeStruct((M, N), out_dtype),
        grid_spec=pltpu.PrefetchScalarGridSpec(
            num_scalar_prefetch=0,
            grid=(pl.cdiv(M, TM),),
            in_specs=[
                pl.BlockSpec((TM, K), lambda i: (i, 0)),
                pl.BlockSpec((K, N), lambda i: (0, 0)),
                pl.BlockSpec((1, N), lambda i: (0, 0)),
            ],
            out_specs=pl.BlockSpec((TM, N), lambda i: (i, 0)),
        ),
        compiler_params=pltpu.CompilerParams(
            dimension_semantics=("parallel",),
            vmem_limit_bytes=_VMEM_LIMIT),
    )(a, b, bias.reshape(1, N))


# ----------------------------------------------------------------------------
# Pallas kernel 2: direct conv (stride 1), taps accumulated in-kernel.
#   x  : (N, Hp*Wp, C)   flattened, spatially zero-padded NHWC image (bf16)
#   wt : (k*k, C, Np)    per-tap weight slabs (bf16)
#   out: (N, nblk*TMr, Np) row-major over (Ho, Wp); cols >= Wo are garbage.
# ----------------------------------------------------------------------------
def _dconv_kernel(x_ref, w_ref, b_ref, o_ref, *, taps, relu):
    tm = o_ref.shape[1]
    npad = o_ref.shape[2]
    base = pl.multiple_of(pl.program_id(1) * tm, 8)
    acc = jnp.zeros((tm, npad), jnp.float32)
    for t, off in enumerate(taps):
        a = x_ref[0, pl.ds(base + off, tm), :]          # (tm, C) bf16, shifted window
        acc = acc + jnp.dot(a, w_ref[t], preferred_element_type=jnp.float32)
    acc = acc + b_ref[...]
    if relu:
        acc = jnp.maximum(acc, 0.0)
    o_ref[0] = acc.astype(o_ref.dtype)


def _conv_direct_nhwc(x, layer, padding, dilation, relu):
    wt, bias = layer['wt'], layer['b']
    k, Np, cin = layer['k'], layer['np'], layer['cin']
    N, H, W, C = x.shape
    assert C == cin
    d = dilation
    Ho = H + 2 * padding - d * (k - 1)
    Wo = W + 2 * padding - d * (k - 1)
    Wp = _round_up(W + 2 * padding, 8)                  # lane-friendly padded width
    Lo = Ho * Wp
    off_max = d * (k - 1) * Wp + d * (k - 1)

    # Output-row tiling: a few big tiles; force >=2 when batch==1 (megacore).
    nblk = max(1, -(-Lo // 4096))
    if N == 1 and Lo >= 16:
        nblk = max(nblk, 2)
    TMr = _round_up(-(-Lo // nblk), 8)
    Lo_pad = nblk * TMr
    Hp = max(H + 2 * padding, -(-(Lo_pad + off_max) // Wp))   # all in-kernel reads in bounds

    xp = jnp.pad(x, ((0, 0),
                     (padding, Hp - H - padding),
                     (padding, Wp - W - padding),
                     (0, 0)))
    xf = xp.reshape(N, Hp * Wp, C)
    taps = tuple(kh * d * Wp + kw * d for kh in range(k) for kw in range(k))

    out = pl.pallas_call(
        functools.partial(_dconv_kernel, taps=taps, relu=relu),
        out_shape=jax.ShapeDtypeStruct((N, Lo_pad, Np), jnp.bfloat16),
        grid_spec=pltpu.PrefetchScalarGridSpec(
            num_scalar_prefetch=0,
            grid=(N, nblk),
            in_specs=[
                pl.BlockSpec((1, Hp * Wp, C), lambda n, i: (n, 0, 0)),   # whole image resident
                pl.BlockSpec((k * k, C, Np), lambda n, i: (0, 0, 0)),
                pl.BlockSpec((1, Np), lambda n, i: (0, 0)),
            ],
            out_specs=pl.BlockSpec((1, TMr, Np), lambda n, i: (n, i, 0)),
        ),
        compiler_params=pltpu.CompilerParams(
            dimension_semantics=("parallel", "parallel"),
            vmem_limit_bytes=_VMEM_LIMIT),
    )(xf, wt, bias.reshape(1, Np))

    out = out[:, :Lo].reshape(N, Ho, Wp, Np)[:, :, :Wo, :]
    return out


# ----------------------------------------------------------------------------
# im2col path (first convs with Cin=4, strided convs, 257-channel 8x8 decoder)
# ----------------------------------------------------------------------------
def _conv_im2col_nhwc(x, layer, stride, padding, dilation, relu):
    wmat, bias = layer['wmat'], layer['b']
    k = layer['k']
    N, H, W, Cin = x.shape
    Ho = (H + 2 * padding - dilation * (k - 1) - 1) // stride + 1
    Wo = (W + 2 * padding - dilation * (k - 1) - 1) // stride + 1
    xp = jnp.pad(x, ((0, 0), (padding, padding), (padding, padding), (0, 0)))
    cols = []
    for i in range(k):
        for j in range(k):
            hi, wj = i * dilation, j * dilation
            cols.append(xp[:, hi:hi + stride * (Ho - 1) + 1:stride,
                              wj:wj + stride * (Wo - 1) + 1:stride, :])
    K = k * k * Cin
    Kp = wmat.shape[0]
    if Kp > K:                                   # fold K-padding into the concat
        cols.append(jnp.zeros((N, Ho, Wo, Kp - K), jnp.bfloat16))
    col = jnp.concatenate(cols, axis=-1).reshape(N * Ho * Wo, Kp)
    out = pallas_matmul_bias(col, wmat, bias, relu=relu)        # (M, Np) bf16
    return out.reshape(N, Ho, Wo, wmat.shape[1])


def conv2d_nhwc(x, layer, stride=1, padding=0, dilation=1, relu=False):
    x = x.astype(jnp.bfloat16)
    if layer['route'] == 'direct':
        assert stride == 1
        out = _conv_direct_nhwc(x, layer, padding, dilation, relu)
    else:
        out = _conv_im2col_nhwc(x, layer, stride, padding, dilation, relu)
    if layer['np'] != layer['cout']:
        out = out[..., :layer['cout']]
    return out


def run_convs_nhwc(x, layers, specs):
    for layer, (_, _, _, s, pad, dil, relu) in zip(layers, specs):
        x = conv2d_nhwc(x, layer, stride=s, padding=pad, dilation=dil, relu=relu)
    return x


# ----------------------------------------------------------------------------
# Finalize kernel: de-normalize, clamp, mask-composite (broadcast in-kernel)
# ----------------------------------------------------------------------------
def _finalize_kernel(dec_ref, m_ref, y_ref, std_ref, mean_ref,
                     yhat_ref, ycomp_ref):
    d = dec_ref[...].astype(jnp.float32)
    yh = jnp.clip(d * std_ref[...] + mean_ref[...], 0.0, 1.0)
    m = m_ref[...]
    yhat_ref[...] = yh
    ycomp_ref[...] = yh * m + y_ref[...] * (1.0 - m)


def pallas_finalize(dec_nhwc, m_t, y_t, std3, mean3):
    b, H, W, c = dec_nhwc.shape
    dec = dec_nhwc.transpose(0, 3, 1, 2).reshape(b, c, H * W)      # tiny
    y2 = y_t.reshape(b, c, H * W)
    m2 = m_t.reshape(b, 1, H * W)
    std2 = std3.reshape(1, c, 1).astype(jnp.float32)
    mean2 = mean3.reshape(1, c, 1).astype(jnp.float32)
    y_hat, y_comp = pl.pallas_call(
        _finalize_kernel,
        out_shape=(jax.ShapeDtypeStruct((b, c, H * W), jnp.float32),
                   jax.ShapeDtypeStruct((b, c, H * W), jnp.float32)),
    )(dec, m2, y2, std2, mean2)
    return y_hat.reshape(b, c, H, W), y_comp.reshape(b, c, H, W)


# ----------------------------------------------------------------------------
# JAX glue ops matching PyTorch semantics
# ----------------------------------------------------------------------------
def bilinear_resize(x, out_h, out_w):
    """F.interpolate(mode='bilinear', align_corners=False) on NCHW."""
    N, C, H, W = x.shape
    if H == out_h and W == out_w:
        return x
    sy = jnp.maximum((jnp.arange(out_h, dtype=jnp.float32) + 0.5) * (H / out_h) - 0.5, 0.0)
    sx = jnp.maximum((jnp.arange(out_w, dtype=jnp.float32) + 0.5) * (W / out_w) - 0.5, 0.0)
    y0 = jnp.floor(sy).astype(jnp.int32)
    x0 = jnp.floor(sx).astype(jnp.int32)
    y1 = jnp.minimum(y0 + 1, H - 1)
    x1 = jnp.minimum(x0 + 1, W - 1)
    wy1 = sy - y0.astype(jnp.float32)
    wx1 = sx - x0.astype(jnp.float32)
    wy0, wx0 = 1.0 - wy1, 1.0 - wx1
    top = (x[:, :, y0, :] * wy0[None, None, :, None] +
           x[:, :, y1, :] * wy1[None, None, :, None])
    return (top[:, :, :, x0] * wx0[None, None, None, :] +
            top[:, :, :, x1] * wx1[None, None, None, :])


def nearest_upsample_nhwc(x, factor):
    return jnp.repeat(jnp.repeat(x, factor, axis=1), factor, axis=2)


def dilate3x3(x):
    # TODO(synk): external utils.transforms.ImageTransforms.dilatate assumed to be
    # a 3x3 morphological dilation with 1 iteration (implemented as 3x3 max pool).
    return lax.reduce_window(x, -jnp.inf, lax.max,
                             (1, 1, 3, 3), (1, 1, 1, 1), 'SAME')


def affine_grid(theta, H, W):
    xs = (jnp.arange(W, dtype=jnp.float32) * 2 + 1) / W - 1.0
    ys = (jnp.arange(H, dtype=jnp.float32) * 2 + 1) / H - 1.0
    X, Y = jnp.meshgrid(xs, ys, indexing='xy')
    base = jnp.stack([X, Y, jnp.ones((H, W), jnp.float32)], axis=-1)
    return jnp.einsum('hwk,nck->nhwc', base, theta)


def grid_sample_bilinear(img, grid):
    N, C, H, W = img.shape
    ix = ((grid[..., 0] + 1.0) * W - 1.0) / 2.0
    iy = ((grid[..., 1] + 1.0) * H - 1.0) / 2.0
    x0f, y0f = jnp.floor(ix), jnp.floor(iy)
    x1f, y1f = x0f + 1.0, y0f + 1.0
    wx1, wy1 = ix - x0f, iy - y0f
    wx0, wy0 = 1.0 - wx1, 1.0 - wy1

    def gather(xf, yf):
        valid = (xf >= 0) & (xf <= W - 1) & (yf >= 0) & (yf <= H - 1)
        xi = jnp.clip(xf, 0, W - 1).astype(jnp.int32)
        yi = jnp.clip(yf, 0, H - 1).astype(jnp.int32)
        n_idx = jnp.arange(N)[:, None, None, None]
        c_idx = jnp.arange(C)[None, :, None, None]
        vals = img[n_idx, c_idx, yi[:, None, :, :], xi[:, None, :, :]]
        return vals * valid[:, None, :, :].astype(img.dtype)

    return (gather(x0f, y0f) * (wx0 * wy0)[:, None] +
            gather(x1f, y0f) * (wx1 * wy0)[:, None] +
            gather(x0f, y1f) * (wx0 * wy1)[:, None] +
            gather(x1f, y1f) * (wx1 * wy1)[:, None])


def masked_softmax(vec, mask, axis):
    masked_vec = vec * mask
    max_vec = jnp.max(masked_vec, axis=axis, keepdims=True)
    exps = jnp.exp(masked_vec - max_vec)
    masked_exps = exps * mask
    masked_sums = jnp.sum(masked_exps, axis=axis, keepdims=True)
    masked_sums = masked_sums + (masked_sums < 1e-4).astype(jnp.float32)
    return masked_exps / masked_sums


def add_match_border(v_t, c_match):
    b, _, H, W = v_t.shape
    inv = 1.0 - v_t
    v_t_border = ((dilate3x3(inv) - inv) > 0).astype(jnp.float32)
    ri = bilinear_resize(c_match[:, 0], H, W)
    half = c_match.shape[2] // 2
    ri = jnp.concatenate([ri[:, :half],
                          jnp.zeros((b, 1, H, W), jnp.float32),
                          ri[:, half:]], axis=1)
    ri = jnp.repeat(ri[:, None], 3, axis=1)
    b1 = ri * (1.0 - v_t_border[:, :, None])
    red = jnp.array([1.0, 0.0, 0.0], jnp.float32).reshape(1, 3, 1, 1, 1)
    b2 = jnp.repeat(v_t_border[:, :, None], 3, axis=1) * red
    return b1 + b2


# ----------------------------------------------------------------------------
# Module specs and deterministic parameter init (weights pre-laid-out)
# ----------------------------------------------------------------------------
# spec = (cin, cout, k, stride, pad, dilation, relu)
AE_SPECS = [(4, 64, 5, 2, 2, 1, True), (64, 64, 3, 1, 1, 1, True),
            (64, 128, 3, 2, 1, 1, True), (128, 128, 3, 1, 1, 1, True),
            (128, 256, 3, 2, 1, 1, True), (256, 256, 3, 1, 1, 1, True),
            (256, 256, 3, 1, 1, 1, True)]
AR_SPECS = [(512, 512, 3, 2, 1, 1, True), (512, 512, 3, 1, 1, 1, True),
            (512, 512, 3, 1, 1, 1, True), (512, 512, 3, 2, 1, 1, True),
            (512, 512, 3, 1, 1, 1, True), (512, 512, 3, 1, 1, 1, True)]
ENC_SPECS = [(4, 64, 5, 2, 2, 1, True), (64, 64, 3, 1, 1, 1, True),
             (64, 128, 3, 4, 1, 1, True), (128, 128, 3, 1, 1, 1, True),
             (128, 128, 3, 1, 1, 1, False)]
DEC1_SPECS = [(257, 257, 3, 1, 1, 1, True)] * 3 + \
             [(257, 257, 3, 1, 2, 2, True), (257, 257, 3, 1, 4, 4, True),
              (257, 257, 3, 1, 8, 8, True), (257, 257, 3, 1, 16, 16, True),
              (257, 257, 3, 1, 1, 1, True), (257, 128, 3, 1, 1, 1, True),
              (128, 128, 3, 1, 1, 1, True)]
DEC2_SPECS = [(128, 64, 3, 1, 1, 1, True), (64, 64, 3, 1, 1, 1, True)]
DEC3_SPEC = (64, 3, 5, 1, 2, 1, False)


def _pad_cout(cout):
    if cout % 8 == 0:
        return cout
    if cout < 128:
        return _round_up(cout, 8)
    return _round_up(cout, 128)


def init_conv(key, spec):
    cin, cout, k, stride, pad, dil, relu = spec
    kw_, kb_ = jax.random.split(key)
    std = (2.0 / (cout * k * k)) ** 0.5            # kaiming_normal_, fan_out, relu
    w = jax.random.normal(kw_, (cout, cin, k, k), jnp.float32) * std
    bound = 1.0 / (cin * k * k) ** 0.5
    b = jax.random.uniform(kb_, (cout,), jnp.float32, minval=-bound, maxval=bound)
    Np = _pad_cout(cout)
    w_t = w.transpose(2, 3, 1, 0)                  # (kh, kw, cin, cout)
    direct = (stride == 1 and cin % 8 == 0 and cin >= 32)
    layer = {'cout': cout, 'np': Np, 'k': k, 'cin': cin,
             'route': 'direct' if direct else 'im2col',
             'b': jnp.pad(b, (0, Np - cout)).astype(jnp.float32)}
    if direct:
        wt = w_t.reshape(k * k, cin, cout)
        layer['wt'] = jnp.pad(wt, ((0, 0), (0, 0), (0, Np - cout))).astype(jnp.bfloat16)
    else:
        K = cin * k * k
        Kp = _round_up(K, 128)
        wm = w_t.reshape(K, cout)
        layer['wmat'] = jnp.pad(wm, ((0, Kp - K), (0, Np - cout))).astype(jnp.bfloat16)
    return layer


def build_params(key):
    n = len(AE_SPECS) + len(AR_SPECS) + len(ENC_SPECS) + \
        len(DEC1_SPECS) + len(DEC2_SPECS) + 2
    keys = iter(jax.random.split(key, n))
    params = {
        'align_enc': [init_conv(next(keys), s) for s in AE_SPECS],
        'align_reg': {'convs': [init_conv(next(keys), s) for s in AR_SPECS]},
        'enc': [init_conv(next(keys), s) for s in ENC_SPECS],
        'dec': {'convs': [init_conv(next(keys), s) for s in DEC1_SPECS],
                'convs_2': [init_conv(next(keys), s) for s in DEC2_SPECS],
                'convs_3': init_conv(next(keys), DEC3_SPEC)},
    }
    bound = 1.0 / (512 ** 0.5)
    # fc weight scaled down so theta stays near identity (synthetic init).
    params['align_reg']['fc_w'] = jax.random.uniform(
        next(keys), (6, 512), jnp.float32, minval=-bound, maxval=bound) * 0.01
    params['align_reg']['fc_b'] = jnp.array([1., 0., 0., 0., 1., 0.], jnp.float32)
    return params


# ----------------------------------------------------------------------------
# Sub-module forwards (internally NHWC / bf16)
# ----------------------------------------------------------------------------
def alignment_encoder_fw(p, in_f, in_v):
    x = jnp.concatenate([in_f, in_v], axis=1)                 # NCHW f32
    x = bilinear_resize(x, 224, 224)
    x = x.astype(jnp.bfloat16).transpose(0, 2, 3, 1)          # -> NHWC bf16
    return run_convs_nhwc(x, p, AE_SPECS)                     # (B, 28, 28, 256)


def alignment_regressor_fw(p, feat1, feat2):
    x = jnp.concatenate([feat1, feat2], axis=-1)              # NHWC, 512 ch
    x = run_convs_nhwc(x, p['convs'], AR_SPECS)               # (B, 7, 7, 512)
    x = jnp.mean(x.astype(jnp.float32), axis=(1, 2))          # avg_pool2d + view
    # Tiny 2x512 @ 512x6 matmul -> plain jnp.dot (padding to MXU tiles wastes >60x).
    out = x @ p['fc_w'].T + p['fc_b']
    return out.reshape(-1, 2, 3)


def encoder_fw(p, x, v):
    xin = jnp.concatenate([x, v], axis=1)                     # NCHW f32
    xin = xin.astype(jnp.bfloat16).transpose(0, 2, 3, 1)      # -> NHWC bf16
    return run_convs_nhwc(xin, p, ENC_SPECS), None            # (B, 8, 8, 128)


def decoder_fw(p, x_nhwc):
    x = run_convs_nhwc(x_nhwc, p['convs'], DEC1_SPECS)
    x = nearest_upsample_nhwc(x, 4)
    x = run_convs_nhwc(x, p['convs_2'], DEC2_SPECS)
    x = nearest_upsample_nhwc(x, 2)
    return conv2d_nhwc(x, p['convs_3'], stride=1, padding=2, dilation=1,
                       relu=False)                            # (B, H, W, 3) bf16


def context_matching(c_feats, v_t, v_aligned, normalize=True):
    b, c_c, f, h, w = c_feats.shape
    v_t_res = (bilinear_resize(v_t, h, w) > 0.5).astype(jnp.float32)
    cos_sim, vr_map = [], []
    for r in range(f - 1):
        v_r = (bilinear_resize(v_aligned[:, :, r], h, w) > 0.5).astype(jnp.float32)
        vr_map.append(v_r)
        vmap = v_t_res * v_r
        v_sum = jnp.sum(vmap[:, 0], axis=(-1, -2))
        v_sum_zeros = v_sum < 1e-4
        v_sum = v_sum + v_sum_zeros.astype(jnp.float32)
        gs_norm = v_sum * c_c if normalize else 1.0
        gs = jnp.sum(vmap * c_feats[:, :, 0] * c_feats[:, :, r + 1],
                     axis=(-1, -2, -3)) / gs_norm
        gs = jnp.where(v_sum_zeros, 0.0, gs)
        cos_sim.append(jnp.ones((b, c_c, h, w), jnp.float32) * gs.reshape(b, 1, 1, 1))
    cos_sim = jnp.stack(cos_sim, axis=2)
    vr_map = jnp.stack(vr_map, axis=2)
    c_match = masked_softmax(cos_sim, vr_map, axis=2)
    c_out = jnp.sum(c_feats[:, :, 1:] * c_match, axis=2)
    ref_importance = add_match_border(v_t, c_match)
    c_mask = jnp.sum(c_match * vr_map, axis=2)
    c_mask = 1.0 - jnp.mean(c_mask, axis=1, keepdims=True)
    return (jnp.concatenate([c_feats[:, :, 0], c_out, c_mask], axis=1),
            c_mask, ref_importance)


# ----------------------------------------------------------------------------
# CPNet forward ('full' mode, utils_alignment=None, eval-style)
# ----------------------------------------------------------------------------
def align(params, x, m, t, r_list):
    b, c, f, h, w = x.shape
    r_idx = jnp.asarray(r_list)
    x_flat = x.transpose(0, 2, 1, 3, 4).reshape(-1, c, h, w)
    m_flat = m.transpose(0, 2, 1, 3, 4).reshape(-1, 1, h, w)
    r_feats = alignment_encoder_fw(params['align_enc'], x_flat, m_flat)  # NHWC
    hr, wr, cr = r_feats.shape[1:]
    r_feats = r_feats.reshape(b, f, hr, wr, cr)
    feat_r = r_feats[:, r_idx].reshape(-1, hr, wr, cr)
    feat_t = jnp.repeat(r_feats[:, t][:, None], len(r_list), axis=1)
    feat_t = feat_t.reshape(-1, hr, wr, cr)
    theta_rt = alignment_regressor_fw(params['align_reg'], feat_r, feat_t)
    grid_rt = affine_grid(theta_rt, h, w)
    x_r = x[:, :, r_idx].transpose(0, 2, 1, 3, 4).reshape(-1, c, h, w)
    x_aligned = grid_sample_bilinear(x_r, grid_rt)
    x_aligned = x_aligned.reshape(b, len(r_list), c, h, w).transpose(0, 2, 1, 3, 4)
    m_r = (1.0 - m[:, :, r_idx]).transpose(0, 2, 1, 3, 4).reshape(-1, 1, h, w)
    v_aligned = grid_sample_bilinear(m_r, grid_rt)
    v_aligned = (v_aligned.reshape(b, len(r_list), 1, h, w).transpose(0, 2, 1, 3, 4)
                 > 0.5).astype(jnp.float32)
    return x_aligned, v_aligned, None    # y_aligned skipped (training-mode branch)


def copy_and_paste(params, x_t, m_t, y_t, x_aligned, v_aligned, mean, std):
    b, c, f_ref, h, w = x_aligned.shape
    enc_x = jnp.concatenate([x_t[:, :, None], x_aligned], axis=2)
    enc_x = enc_x.transpose(0, 2, 1, 3, 4).reshape(-1, c, h, w)
    enc_v = jnp.concatenate([1.0 - m_t[:, :, None], v_aligned], axis=2)
    enc_v = enc_v.transpose(0, 2, 1, 3, 4).reshape(-1, 1, h, w)
    c_feats_nhwc, c_feats_mid = encoder_fw(params['enc'], enc_x, enc_v)
    hh, ww, cc = c_feats_nhwc.shape[1:]
    c_feats = (c_feats_nhwc.astype(jnp.float32).transpose(0, 3, 1, 2)
               .reshape(b, f_ref + 1, cc, hh, ww).transpose(0, 2, 1, 3, 4))
    p_in, c_mask, ref_importance = context_matching(
        c_feats, 1.0 - m_t, v_aligned, normalize=False)
    c_mask = bilinear_resize(c_mask, h, w)
    dec = decoder_fw(params['dec'], p_in.transpose(0, 2, 3, 1))    # NHWC bf16
    y_hat, y_hat_comp = pallas_finalize(dec, m_t, y_t,
                                        std.reshape(3), mean.reshape(3))
    return y_hat, y_hat_comp, c_mask, ref_importance


def cpnet_forward(params, x, m, y, t, r_list, mean, std):
    x = (x - mean) / std
    x_aligned, v_aligned, _ = align(params, x, m, t, r_list)
    y_hat, y_hat_comp, c_mask, ref_importance = copy_and_paste(
        params, x[:, :, t], m[:, :, t], y[:, :, t], x_aligned, v_aligned, mean, std)
    x_aligned = x_aligned * std + mean
    return y_hat, y_hat_comp, c_mask, ref_importance, (x_aligned, v_aligned)


# ----------------------------------------------------------------------------
if __name__ == "__main__":
    key = jax.random.PRNGKey(0)
    kp, kx, ky = jax.random.split(key, 3)
    params = build_params(kp)

    b, c, f, h, w = 1, 3, 3, 64, 64
    x = jax.random.uniform(kx, (b, c, f, h, w), jnp.float32)
    y = jax.random.uniform(ky, (b, c, f, h, w), jnp.float32)
    m = jnp.zeros((b, 1, f, h, w), jnp.float32)
    m = m.at[:, :, :, 20:44, 20:44].set(1.0)          # binary inpainting mask
    t = 0
    r_list = [1, 2]

    mean = jnp.array([0.485, 0.456, 0.406], jnp.float32).reshape(1, 3, 1, 1, 1)
    std = jnp.array([0.229, 0.224, 0.225], jnp.float32).reshape(1, 3, 1, 1, 1)

    outs = cpnet_forward(params, x, m, y, t, r_list, mean, std)
    jax.block_until_ready(outs)
    print("KERNEL_OK")
</pallas_src>

<mosaic_0001>
module attributes {stable_mosaic.version = 11 : i64} {
  func.func @_mm_bias_kernel(%arg0: i32, %arg1: memref<4096x128xbf16, #tpu.memory_space<vmem>>, %arg2: memref<128x64xbf16, #tpu.memory_space<vmem>>, %arg3: memref<1x64xf32, #tpu.memory_space<vmem>>, %arg4: memref<4096x64xbf16, #tpu.memory_space<vmem>>) attributes {dimension_semantics = [#tpu.dimension_semantics<parallel>], iteration_bounds = array<i64: 10>, scalar_prefetch = 0 : i64, scratch_operands = 0 : i64, tpu.core_type = #tpu.core_type<tc>, window_params = [{transform_indices = @transform_0, window_bounds = array<i64: 4096, 128>}, {pipeline_mode = #tpu.pipeline_mode<synchronous>, transform_indices = @transform_1, window_bounds = array<i64: 128, 64>}, {pipeline_mode = #tpu.pipeline_mode<synchronous>, transform_indices = @transform_2, window_bounds = array<i64: 1, 64>}, {transform_indices = @transform_3, window_bounds = array<i64: 4096, 64>}]} {
    %c0 = arith.constant 0 : index
    %c0_0 = arith.constant 0 : index
    %0 = vector.load %arg1[%c0, %c0_0] : memref<4096x128xbf16, #tpu.memory_space<vmem>>, vector<4096x128xbf16>
    %c0_1 = arith.constant 0 : index
    %c0_2 = arith.constant 0 : index
    %1 = vector.load %arg2[%c0_1, %c0_2] : memref<128x64xbf16, #tpu.memory_space<vmem>>, vector<128x64xbf16>
    %cst = arith.constant dense<0.000000e+00> : vector<4096x64xf32>
    %2 = tpu.matmul %0, %1, %cst {dimension_numbers = #tpu.dot_dimension_numbers<[1], [0], [0], [1], [0, 0, 1, 1], [], []>} : vector<4096x128xbf16>, vector<128x64xbf16>, vector<4096x64xf32> -> vector<4096x64xf32>
    %c0_3 = arith.constant 0 : index
    %c0_4 = arith.constant 0 : index
    %3 = vector.load %arg3[%c0_3, %c0_4] : memref<1x64xf32, #tpu.memory_space<vmem>>, vector<1x64xf32>
    %4 = vector.broadcast %3 : vector<1x64xf32> to vector<4096x64xf32>
    %5 = arith.addf %2, %4 : vector<4096x64xf32>
    %cst_5 = arith.constant 0.000000e+00 : f32
    %6 = vector.broadcast %cst_5 : f32 to vector<4096x64xf32>
    %7 = arith.maximumf %5, %6 : vector<4096x64xf32>
    %8 = arith.truncf %7 : vector<4096x64xf32> to vector<4096x64xbf16>
    %c0_6 = arith.constant 0 : index
    %c0_7 = arith.constant 0 : index
    %9 = vector.load %arg4[%c0_6, %c0_7] : memref<4096x64xbf16, #tpu.memory_space<vmem>>, vector<4096x64xbf16>
    tpu.vector_store %arg4[%c0_6, %c0_7], %8 {strides = array<i32>} : memref<4096x64xbf16, #tpu.memory_space<vmem>>, vector<4096x64xbf16>,
    return
  }
  func.func @transform_0(%arg0: i32) -> (i32, i32) {
    %c0_i32 = arith.constant 0 : i32
    %c0_i32_0 = arith.constant 0 : i32
    return %arg0, %c0_i32 : i32, i32
  }
  func.func @transform_1(%arg0: i32) -> (i32, i32) {
    %c0_i32 = arith.constant 0 : i32
    %c0_i32_0 = arith.constant 0 : i32
    %c0_i32_1 = arith.constant 0 : i32
    return %c0_i32, %c0_i32_0 : i32, i32
  }
  func.func @transform_2(%arg0: i32) -> (i32, i32) {
    %c0_i32 = arith.constant 0 : i32
    %c0_i32_0 = arith.constant 0 : i32
    %c0_i32_1 = arith.constant 0 : i32
    return %c0_i32, %c0_i32_0 : i32, i32
  }
  func.func @transform_3(%arg0: i32) -> (i32, i32) {
    %c0_i32 = arith.constant 0 : i32
    %c0_i32_0 = arith.constant 0 : i32
    return %arg0, %c0_i32 : i32, i32
  }
}

</mosaic_0001>

<llo_original>
// kernel: tpu_custom_call.1
$region0: #{tpu_custom_call.1}
  #allocation0 [shape = 'u32[]', space=smem, size = 0x4, offset = 0x4, fixed_abs, tag = 'smem constant byte address 0x4 - core index']
  #allocation1 [shape = 'u32[144,128]{1,0:T(1,128)}', space=vmem, size = 0x12000, scoped, tag = 'internal scratch']
  %s0 = inlined_call_operand.hbm [shape: bf16[37632,128], index: 0, kind: input, shape index: {}]
  %s1 = inlined_call_operand.vmem [shape: bf16[128,64], index: 1, kind: input, shape index: {}]
  %s2 = inlined_call_operand.hbm [shape: f32[1,64], index: 2, kind: input, shape index: {}]
  %s3 = inlined_call_operand.vmem [shape: bf16[37632,64], index: 3, kind: output, shape index: {}]
  %s4 = sld [smem:[#allocation0]]
  $region97: #{tpu_custom_call.1} parent=0
    _
  %s6 = ssub.s32 1, %s4
  %s7 = scalar_select 0, %s6, %s4
  $region1: #{tpu_custom_call.1} parent=0
    #allocation2 [shape = 'u8[2097152]{0}', space=vmem, size = 0x200000, scoped, tag = 'input window, operand 0']
    #allocation3 [shape = 's32[2]{0}', space=sflag, size = 0x8, scoped, tag = 'scoped memory for tpu_custom_call.1']
    #allocation4 [shape = 'u8[512]{0}', space=vmem, size = 0x400, scoped, tag = 'input window, operand 2, single buffered']
    #allocation5 [shape = 's32[1]{0}', space=sflag, size = 0x4, scoped, tag = 'scoped memory for tpu_custom_call.1']
    #allocation6 [shape = 'u8[2097152]{0}', space=vmem, size = 0x200000, scoped, tag = 'output window, operand 0']
    %8 = vsyncpa [#allocation3], 0
    %s9 = scalar_lea.sflag [#allocation3], 1
    %10 = vsyncpa %s9, 0
    %11 = vsyncpa [#allocation5], 0
    loop: start=0, step=1, limit=12
    $region2: #{tpu_custom_call.1} parent=1 // loop_pre_header
      _
    $region3: #{tpu_custom_call.1} parent=1 // loop_header
      %s13 = sphi 0, %s17
      %p14 = scmp.ge.s32.totalorder %s13, 12
      %s23 = sphi 0, %s25
      %s26 = sphi 0, %s23
      %s27 = sphi 0, %s26
      %s43 = sphi 0, %s27
      %s47 = sphi 0, %s47
      %s49 = sphi 0, %s47
      %s50 = sphi 0, %s49
      %s64 = sphi 0, %s50
      %s68 = sphi 0, %s68
      %s70 = sphi 0, %s68
      %s71 = sphi 0, %s70
      %s85 = sphi 0, %s71
      %s91 = sphi 0, %s93
      %s94 = sphi 0, %s91
      %s95 = sphi 0, %s94
      %s111 = sphi 0, %s95
    $region4: #{tpu_custom_call.1} parent=1 // loop_header_branch
      %16 = sbr.rel (%p14) target = $region8
    $region5: #{tpu_custom_call.1} parent=1 // loop_body
      %s18 = ssub.s32 %s13, 1
      %s19 = ssub.s32 %s13, 2
      %s20 = sadd.s32 %s13, 1
      %s21 = ssub.s32 %s13, %s20
      %p22 = scmp.eq.s32.totalorder %s21, 0
      %s24 = sadd.s32 %s23, 1
      %s25 = scalar_select %p22, %s23, %s24
      %p28 = pneg %p22
      %p29 = scmp.eq.s32.totalorder %s13, 9
      %p30 = por %p28, %p29
      %p31 = scmp.ne.s32.totalorder %s23, %s26
      %p32 = scmp.eq.s32.totalorder %s13, 0
      %p33 = por %p31, %p32
      %p34 = scmp.ne.s32.totalorder %s23, %s26
      %p35 = scmp.eq.s32.totalorder %s18, 9
      %p36 = por %p34, %p35
      %p37 = scmp.ne.s32.totalorder %s26, %s27
      %p38 = scmp.eq.s32.totalorder %s18, 0
      %p39 = por %p37, %p38
      %p40 = scmp.ne.s32.totalorder %s26, %s27
      %p41 = scmp.eq.s32.totalorder %s19, 9
      %p42 = por %p40, %p41
      %p44 = scmp.ne.s32.totalorder %s27, %s43
      %p45 = scmp.eq.s32.totalorder %s19, 0
      %p46 = por %p44, %p45
      %s48 = sadd.s32 %s47, 1
      %p51 = scmp.eq.s32.totalorder %s13, 9
      %p52 = scmp.ne.s32.totalorder %s47, %s49
      %p53 = scmp.eq.s32.totalorder %s13, 0
      %p54 = por %p52, %p53
      %p55 = scmp.ne.s32.totalorder %s47, %s49
      %p56 = scmp.eq.s32.totalorder %s18, 9
      %p57 = por %p55, %p56
      %p58 = scmp.ne.s32.totalorder %s49, %s50
      %p59 = scmp.eq.s32.totalorder %s18, 0
      %p60 = por %p58, %p59
      %p61 = scmp.ne.s32.totalorder %s49, %s50
      %p62 = scmp.eq.s32.totalorder %s19, 9
      %p63 = por %p61, %p62
      %p65 = scmp.ne.s32.totalorder %s50, %s64
      %p66 = scmp.eq.s32.totalorder %s19, 0
      %p67 = por %p65, %p66
      %s69 = sadd.s32 %s68, 1
      %p72 = scmp.eq.s32.totalorder %s13, 9
      %p73 = scmp.ne.s32.totalorder %s68, %s70
      %p74 = scmp.eq.s32.totalorder %s13, 0
      %p75 = por %p73, %p74
      %p76 = scmp.ne.s32.totalorder %s68, %s70
      %p77 = scmp.eq.s32.totalorder %s18, 9
      %p78 = por %p76, %p77
      %p79 = scmp.ne.s32.totalorder %s70, %s71
      %p80 = scmp.eq.s32.totalorder %s18, 0
      %p81 = por %p79, %p80
      %p82 = scmp.ne.s32.totalorder %s70, %s71
      %p83 = scmp.eq.s32.totalorder %s19, 9
      %p84 = por %p82, %p83
      %p86 = scmp.ne.s32.totalorder %s71, %s85
      %p87 = scmp.eq.s32.totalorder %s19, 0
      %p88 = por %p86, %p87
      %s89 = ssub.s32 %s13, %s20
      %p90 = scmp.eq.s32.totalorder %s89, 0
      %s92 = sadd.s32 %s91, 1
      %s93 = scalar_select %p90, %s91, %s92
      %p96 = pneg %p90
      %p97 = scmp.eq.s32.totalorder %s13, 9
      %p98 = por %p96, %p97
      %p99 = scmp.ne.s32.totalorder %s91, %s94
      %p100 = scmp.eq.s32.totalorder %s13, 0
      %p101 = por %p99, %p100
      %p102 = scmp.ne.s32.totalorder %s91, %s94
      %p103 = scmp.eq.s32.totalorder %s18, 9
      %p104 = por %p102, %p103
      %p105 = scmp.ne.s32.totalorder %s94, %s95
      %p106 = scmp.eq.s32.totalorder %s18, 0
      %p107 = por %p105, %p106
      %p108 = scmp.ne.s32.totalorder %s94, %s95
      %p109 = scmp.eq.s32.totalorder %s19, 9
      %p110 = por %p108, %p109
      %p112 = scmp.ne.s32.totalorder %s95, %s111
      %p113 = scmp.eq.s32.totalorder %s19, 0
      %p114 = por %p112, %p113
      %p115 = scmp.le.s32.totalorder 1, %s13
      %p116 = scmp.lt.s32.totalorder %s13, 11
      %p117 = pnand %p115, %p116
      %p118 = pneg %p117
      // Predicated region
      $region9: #{tpu_custom_call.1} parent=5 // pred_check
        _
      $region10: #{tpu_custom_call.1} parent=5 // pred_check_branch
        %120 = sbr.rel (%p117) target = $region12
      $region11: #{tpu_custom_call.1} parent=5 // pred_region
        %s121 = ssub.s32 %s13, 1
        // Predicated region
        $region13: #{tpu_custom_call.1} parent=11 // pred_check
          %p122 = pneg %p60
        $region14: #{tpu_custom_call.1} parent=11 // pred_check_branch
          %124 = sbr.rel (%p122) target = $region16
        $region15: #{tpu_custom_call.1} parent=11 // pred_region
          _
        $region16: #{tpu_custom_call.1} parent=11 // pred_fallthru
          _
        // Predicated region
        $region17: #{tpu_custom_call.1} parent=11 // pred_check
          %p125 = pneg %p81
        $region18: #{tpu_custom_call.1} parent=11 // pred_check_branch
          %127 = sbr.rel (%p125) target = $region20
        $region19: #{tpu_custom_call.1} parent=11 // pred_region
          %s129 = ssub.s32 16, 16
          %130 = vsyncadd [#allocation5], %s129
          %s132 = sshll.u32 [#allocation4], 4
          %s133 = int_to_ptr.vmem [resolvable:$true] %s132
          %135 = dma.hbm_to_vmem [thread:$0]  %s2, 16, %s133, [#allocation5]
        $region20: #{tpu_custom_call.1} parent=11 // pred_fallthru
          _
      $region12: #{tpu_custom_call.1} parent=5 // pred_fallthru
        _
      %p136 = scmp.lt.s32.totalorder %s13, 10
      // Predicated region
      $region21: #{tpu_custom_call.1} parent=5 // pred_check
        %p137 = pneg %p136
      $region22: #{tpu_custom_call.1} parent=5 // pred_check_branch
        %139 = sbr.rel (%p137) target = $region24
      $region23: #{tpu_custom_call.1} parent=5 // pred_region
        // Predicated region
        $region25: #{tpu_custom_call.1} parent=23 // pred_check
          %p140 = pneg %p33
        $region26: #{tpu_custom_call.1} parent=23 // pred_check_branch
          %142 = sbr.rel (%p140) target = $region28
        $region27: #{tpu_custom_call.1} parent=23 // pred_region
          %s143 = sand.u32 %s23, 1
          %s144 = scalar_lea.sflag [#allocation3], %s143
          %s145 = sand.u32 %s23, 1
          %s146 = smul.addr %s145, 2048
          %s147 = scalar_lea.vmem [#allocation2], %s146
          %s148 = smul.u32 512, %s13
          %s149 = ssub.s32 4704, %s148
          %p150 = scmp.lt.s32.totalorder %s149, 512
          %s151 = scalar_select %p150, %s149, 512
          %s152 = smul.u32 64, %s151
          %s154 = ssub.s32 32768, %s152
          %155 = vsyncadd %s144, %s154
          %p156 = scmp.ne.s32.totalorder 0, %s152
          %s157 = smul.addr %s148, 64
          %s158 = scalar_lea.hbm %s0, %s157
          %s159 = smul.u32 4, %s151
          %s160 = sshll.u32 %s147, 4
          %s161 = int_to_ptr.vmem [resolvable:$true] %s160
          %s162 = sshll.u32 %s159, 4
          %166 = dma.hbm_to_vmem [thread:$0]  (%p156), %s158, %s162, %s161, %s144, 64, 64, 4
        $region28: #{tpu_custom_call.1} parent=23 // pred_fallthru
          _
      $region24: #{tpu_custom_call.1} parent=5 // pred_fallthru
        _
      %p167 = scmp.le.s32.totalorder 1, %s13
      %p168 = scmp.lt.s32.totalorder %s13, 11
      %p169 = pnand %p167, %p168
      %p170 = pneg %p169
      // Predicated region
      $region29: #{tpu_custom_call.1} parent=5 // pred_check
        _
      $region30: #{tpu_custom_call.1} parent=5 // pred_check_branch
        %172 = sbr.rel (%p169) target = $region32
      $region31: #{tpu_custom_call.1} parent=5 // pred_region
        %s173 = ssub.s32 %s13, 1
        %s174 = sand.u32 %s26, 1
        %s175 = scalar_lea.sflag [#allocation3], %s174
        %s176 = sand.u32 %s26, 1
        %s177 = smul.addr %s176, 2048
        %s178 = scalar_lea.vmem [#allocation2], %s177
        // Predicated region
        $region33: #{tpu_custom_call.1} parent=31 // pred_check
          %p179 = pneg %p39
        $region34: #{tpu_custom_call.1} parent=31 // pred_check_branch
          %181 = sbr.rel (%p179) target = $region36
        $region35: #{tpu_custom_call.1} parent=31 // pred_region
          %182 = dma.done %s175, 32768
        $region36: #{tpu_custom_call.1} parent=31 // pred_fallthru
          _
        // Predicated region
        $region37: #{tpu_custom_call.1} parent=31 // pred_check
          %p183 = pneg %p81
        $region38: #{tpu_custom_call.1} parent=31 // pred_check_branch
          %185 = sbr.rel (%p183) target = $region40
        $region39: #{tpu_custom_call.1} parent=31 // pred_region
          %186 = dma.done [#allocation5], 16
        $region40: #{tpu_custom_call.1} parent=31 // pred_fallthru
          _
        %s187 = sand.u32 %s26, 1
        %s188 = scalar_lea.sflag [#allocation3], %s187
        %s189 = sand.u32 %s26, 1
        %s190 = smul.addr %s189, 2048
        %s191 = scalar_lea.vmem [#allocation2], %s190
        %p192 = pneg %p39
        %p193 = pneg %p36
        %p194 = pneg %p60
        %p195 = pneg %p57
        %p196 = pneg %p81
        %p197 = pneg %p78
        %p198 = pneg %p107
        %p199 = pneg %p104
        %s200 = sand.u32 %s94, 1
        %s201 = sand.u32 %s94, 1
        %s202 = smul.addr %s201, 2048
        %s203 = scalar_lea.vmem [#allocation6], %s202
        %s204 = smul.u32 512, %s18
        %s205 = ssub.s32 4704, %s204
        %p206 = scmp.lt.s32.totalorder %s205, 512
        %s207 = scalar_select %p206, %s205, 512
        %s208 = smul.u32 64, %s207
        %s209 = smul.u32 512, %s18
        %s210 = ssub.s32 4704, %s209
        %p211 = scmp.lt.s32.totalorder %s210, 512
        %s212 = scalar_select %p211, %s210, 512
        %s213 = smul.u32 64, %s212
        %v215 = vld [vmem:[%s178] sm:$0xf]
        %v216 = vld [vmem:[%s178 + $0x4] sm:$0xf]
        %v217 = vld [vmem:[%s178 + $0x8] sm:$0xf]
        %v218 = vld [vmem:[%s178 + $0xc] sm:$0xf]
        %v219 = vld [vmem:[%s178 + $0x10] sm:$0xf]
        %v220 = vld [vmem:[%s178 + $0x14] sm:$0xf]
        %v221 = vld [vmem:[%s178 + $0x18] sm:$0xf]
        %v222 = vld [vmem:[%s178 + $0x1c] sm:$0xf]
        %v223 = vld [vmem:[%s178 + $0x20] sm:$0xf]
        %v224 = vld [vmem:[%s178 + $0x24] sm:$0xf]
        %v225 = vld [vmem:[%s178 + $0x28] sm:$0xf]
        %v226 = vld [vmem:[%s178 + $0x2c] sm:$0xf]
        %v227 = vld [vmem:[%s178 + $0x30] sm:$0xf]
        %v228 = vld [vmem:[%s178 + $0x34] sm:$0xf]
        %v229 = vld [vmem:[%s178 + $0x38] sm:$0xf]
        %v230 = vld [vmem:[%s178 + $0x3c] sm:$0xf]
        %v231 = vld [vmem:[%s178 + $0x40] sm:$0xf]
        %v232 = vld [vmem:[%s178 + $0x44] sm:$0xf]
        %v233 = vld [vmem:[%s178 + $0x48] sm:$0xf]
        %v234 = vld [vmem:[%s178 + $0x4c] sm:$0xf]
        %v235 = vld [vmem:[%s178 + $0x50] sm:$0xf]
        %v236 = vld [vmem:[%s178 + $0x54] sm:$0xf]
        %v237 = vld [vmem:[%s178 + $0x58] sm:$0xf]
        %v238 = vld [vmem:[%s178 + $0x5c] sm:$0xf]
        %v239 = vld [vmem:[%s178 + $0x60] sm:$0xf]
        %v240 = vld [vmem:[%s178 + $0x64] sm:$0xf]
        %v241 = vld [vmem:[%s178 + $0x68] sm:$0xf]
        %v242 = vld [vmem:[%s178 + $0x6c] sm:$0xf]
        %v243 = vld [vmem:[%s178 + $0x70] sm:$0xf]
        %v244 = vld [vmem:[%s178 + $0x74] sm:$0xf]
        %v245 = vld [vmem:[%s178 + $0x78] sm:$0xf]
        %v246 = vld [vmem:[%s178 + $0x7c] sm:$0xf]
        %v247 = vld [vmem:[%s178 + $0x80] sm:$0xf]
        %v248 = vld [vmem:[%s178 + $0x84] sm:$0xf]
        %v249 = vld [vmem:[%s178 + $0x88] sm:$0xf]
        %v250 = vld [vmem:[%s178 + $0x8c] sm:$0xf]
        %v251 = vld [vmem:[%s178 + $0x90] sm:$0xf]
        %v252 = vld [vmem:[%s178 + $0x94] sm:$0xf]
        %v253 = vld [vmem:[%s178 + $0x98] sm:$0xf]
        %v254 = vld [vmem:[%s178 + $0x9c] sm:$0xf]
        %v255 = vld [vmem:[%s178 + $0xa0] sm:$0xf]
        %v256 = vld [vmem:[%s178 + $0xa4] sm:$0xf]
        %v257 = vld [vmem:[%s178 + $0xa8] sm:$0xf]
        %v258 = vld [vmem:[%s178 + $0xac] sm:$0xf]
        %v259 = vld [vmem:[%s178 + $0xb0] sm:$0xf]
        %v260 = vld [vmem:[%s178 + $0xb4] sm:$0xf]
        %v261 = vld [vmem:[%s178 + $0xb8] sm:$0xf]
        %v262 = vld [vmem:[%s178 + $0xbc] sm:$0xf]
        %v263 = vld [vmem:[%s178 + $0xc0] sm:$0xf]
        %v264 = vld [vmem:[%s178 + $0xc4] sm:$0xf]
        %v265 = vld [vmem:[%s178 + $0xc8] sm:$0xf]
        %v266 = vld [vmem:[%s178 + $0xcc] sm:$0xf]
        %v267 = vld [vmem:[%s178 + $0xd0] sm:$0xf]
        %v268 = vld [vmem:[%s178 + $0xd4] sm:$0xf]
        %v269 = vld [vmem:[%s178 + $0xd8] sm:$0xf]
        %v270 = vld [vmem:[%s178 + $0xdc] sm:$0xf]
        %v271 = vld [vmem:[%s178 + $0xe0] sm:$0xf]
        %v272 = vld [vmem:[%s178 + $0xe4] sm:$0xf]
        %v273 = vld [vmem:[%s178 + $0xe8] sm:$0xf]
        %v274 = vld [vmem:[%s178 + $0xec] sm:$0xf]
        %v275 = vld [vmem:[%s178 + $0xf0] sm:$0xf]
        %v276 = vld [vmem:[%s178 + $0xf4] sm:$0xf]
        %v277 = vld [vmem:[%s178 + $0xf8] sm:$0xf]
        %v278 = vld [vmem:[%s178 + $0xfc] sm:$0xf]
        %v279 = vld [vmem:[%s178 + $0x100] sm:$0xf]
        %v280 = vld [vmem:[%s178 + $0x104] sm:$0xf]
        %v281 = vld [vmem:[%s178 + $0x108] sm:$0xf]
        %v282 = vld [vmem:[%s178 + $0x10c] sm:$0xf]
        %v283 = vld [vmem:[%s178 + $0x110] sm:$0xf]
        %v284 = vld [vmem:[%s178 + $0x114] sm:$0xf]
        %v285 = vld [vmem:[%s178 + $0x118] sm:$0xf]
        %v286 = vld [vmem:[%s178 + $0x11c] sm:$0xf]
        %v287 = vld [vmem:[%s178 + $0x120] sm:$0xf]
        %v288 = vld [vmem:[%s178 + $0x124] sm:$0xf]
        %v289 = vld [vmem:[%s178 + $0x128] sm:$0xf]
        %v290 = vld [vmem:[%s178 + $0x12c] sm:$0xf]
        %v291 = vld [vmem:[%s178 + $0x130] sm:$0xf]
        %v292 = vld [vmem:[%s178 + $0x134] sm:$0xf]
        %v293 = vld [vmem:[%s178 + $0x138] sm:$0xf]
        %v294 = vld [vmem:[%s178 + $0x13c] sm:$0xf]
        %v295 = vld [vmem:[%s178 + $0x140] sm:$0xf]
        %v296 = vld [vmem:[%s178 + $0x144] sm:$0xf]
        %v297 = vld [vmem:[%s178 + $0x148] sm:$0xf]
        %v298 = vld [vmem:[%s178 + $0x14c] sm:$0xf]
        %v299 = vld [vmem:[%s178 + $0x150] sm:$0xf]
        %v300 = vld [vmem:[%s178 + $0x154] sm:$0xf]
        %v301 = vld [vmem:[%s178 + $0x158] sm:$0xf]
        %v302 = vld [vmem:[%s178 + $0x15c] sm:$0xf]
        %v303 = vld [vmem:[%s178 + $0x160] sm:$0xf]
        %v304 = vld [vmem:[%s178 + $0x164] sm:$0xf]
        %v305 = vld [vmem:[%s178 + $0x168] sm:$0xf]
        %v306 = vld [vmem:[%s178 + $0x16c] sm:$0xf]
        %v307 = vld [vmem:[%s178 + $0x170] sm:$0xf]
        %v308 = vld [vmem:[%s178 + $0x174] sm:$0xf]
        %v309 = vld [vmem:[%s178 + $0x178] sm:$0xf]
        %v310 = vld [vmem:[%s178 + $0x17c] sm:$0xf]
        %v311 = vld [vmem:[%s178 + $0x180] sm:$0xf]
        %v312 = vld [vmem:[%s178 + $0x184] sm:$0xf]
        %v313 = vld [vmem:[%s178 + $0x188] sm:$0xf]
        %v314 = vld [vmem:[%s178 + $0x18c] sm:$0xf]
        %v315 = vld [vmem:[%s178 + $0x190] sm:$0xf]
        %v316 = vld [vmem:[%s178 + $0x194] sm:$0xf]
        %v317 = vld [vmem:[%s178 + $0x198] sm:$0xf]
        %v318 = vld [vmem:[%s178 + $0x19c] sm:$0xf]
        %v319 = vld [vmem:[%s178 + $0x1a0] sm:$0xf]
        %v320 = vld [vmem:[%s178 + $0x1a4] sm:$0xf]
        %v321 = vld [vmem:[%s178 + $0x1a8] sm:$0xf]
        %v322 = vld [vmem:[%s178 + $0x1ac] sm:$0xf]
        %v323 = vld [vmem:[%s178 + $0x1b0] sm:$0xf]
        %v324 = vld [vmem:[%s178 + $0x1b4] sm:$0xf]
        %v325 = vld [vmem:[%s178 + $0x1b8] sm:$0xf]
        %v326 = vld [vmem:[%s178 + $0x1bc] sm:$0xf]
        %v327 = vld [vmem:[%s178 + $0x1c0] sm:$0xf]
        %v328 = vld [vmem:[%s178 + $0x1c4] sm:$0xf]
        %v329 = vld [vmem:[%s178 + $0x1c8] sm:$0xf]
        %v330 = vld [vmem:[%s178 + $0x1cc] sm:$0xf]
        %v331 = vld [vmem:[%s178 + $0x1d0] sm:$0xf]
        %v332 = vld [vmem:[%s178 + $0x1d4] sm:$0xf]
        %v333 = vld [vmem:[%s178 + $0x1d8] sm:$0xf]
        %v334 = vld [vmem:[%s178 + $0x1dc] sm:$0xf]
        %v335 = vld [vmem:[%s178 + $0x1e0] sm:$0xf]
        %v336 = vld [vmem:[%s178 + $0x1e4] sm:$0xf]
        %v337 = vld [vmem:[%s178 + $0x1e8] sm:$0xf]
        %v338 = vld [vmem:[%s178 + $0x1ec] sm:$0xf]
        %v339 = vld [vmem:[%s178 + $0x1f0] sm:$0xf]
        %v340 = vld [vmem:[%s178 + $0x1f4] sm:$0xf]
        %v341 = vld [vmem:[%s178 + $0x1f8] sm:$0xf]
        %v342 = vld [vmem:[%s178 + $0x1fc] sm:$0xf]
        %v343 = vld [vmem:[%s178 + $0x200] sm:$0xf]
        %v344 = vld [vmem:[%s178 + $0x204] sm:$0xf]
        %v345 = vld [vmem:[%s178 + $0x208] sm:$0xf]
        %v346 = vld [vmem:[%s178 + $0x20c] sm:$0xf]
        %v347 = vld [vmem:[%s178 + $0x210] sm:$0xf]
        %v348 = vld [vmem:[%s178 + $0x214] sm:$0xf]
        %v349 = vld [vmem:[%s178 + $0x218] sm:$0xf]
        %v350 = vld [vmem:[%s178 + $0x21c] sm:$0xf]
        %v351 = vld [vmem:[%s178 + $0x220] sm:$0xf]
        %v352 = vld [vmem:[%s178 + $0x224] sm:$0xf]
        %v353 = vld [vmem:[%s178 + $0x228] sm:$0xf]
        %v354 = vld [vmem:[%s178 + $0x22c] sm:$0xf]
        %v355 = vld [vmem:[%s178 + $0x230] sm:$0xf]
        %v356 = vld [vmem:[%s178 + $0x234] sm:$0xf]
        %v357 = vld [vmem:[%s178 + $0x238] sm:$0xf]
        %v358 = vld [vmem:[%s178 + $0x23c] sm:$0xf]
        %v359 = vld [vmem:[%s178 + $0x240] sm:$0xf]
        %v360 = vld [vmem:[%s178 + $0x244] sm:$0xf]
        %v361 = vld [vmem:[%s178 + $0x248] sm:$0xf]
        %v362 = vld [vmem:[%s178 + $0x24c] sm:$0xf]
        %v363 = vld [vmem:[%s178 + $0x250] sm:$0xf]
        %v364 = vld [vmem:[%s178 + $0x254] sm:$0xf]
        %v365 = vld [vmem:[%s178 + $0x258] sm:$0xf]
        %v366 = vld [vmem:[%s178 + $0x25c] sm:$0xf]
        %v367 = vld [vmem:[%s178 + $0x260] sm:$0xf]
        %v368 = vld [vmem:[%s178 + $0x264] sm:$0xf]
        %v369 = vld [vmem:[%s178 + $0x268] sm:$0xf]
        %v370 = vld [vmem:[%s178 + $0x26c] sm:$0xf]
        %v371 = vld [vmem:[%s178 + $0x270] sm:$0xf]
        %v372 = vld [vmem:[%s178 + $0x274] sm:$0xf]
        %v373 = vld [vmem:[%s178 + $0x278] sm:$0xf]
        %v374 = vld [vmem:[%s178 + $0x27c] sm:$0xf]
        %v375 = vld [vmem:[%s178 + $0x280] sm:$0xf]
        %v376 = vld [vmem:[%s178 + $0x284] sm:$0xf]
        %v377 = vld [vmem:[%s178 + $0x288] sm:$0xf]
        %v378 = vld [vmem:[%s178 + $0x28c] sm:$0xf]
        %v379 = vld [vmem:[%s178 + $0x290] sm:$0xf]
        %v380 = vld [vmem:[%s178 + $0x294] sm:$0xf]
        %v381 = vld [vmem:[%s178 + $0x298] sm:$0xf]
        %v382 = vld [vmem:[%s178 + $0x29c] sm:$0xf]
        %v383 = vld [vmem:[%s178 + $0x2a0] sm:$0xf]
        %v384 = vld [vmem:[%s178 + $0x2a4] sm:$0xf]
        %v385 = vld [vmem:[%s178 + $0x2a8] sm:$0xf]
        %v386 = vld [vmem:[%s178 + $0x2ac] sm:$0xf]
        %v387 = vld [vmem:[%s178 + $0x2b0] sm:$0xf]
        %v388 = vld [vmem:[%s178 + $0x2b4] sm:$0xf]
        %v389 = vld [vmem:[%s178 + $0x2b8] sm:$0xf]
        %v390 = vld [vmem:[%s178 + $0x2bc] sm:$0xf]
        %v391 = vld [vmem:[%s178 + $0x2c0] sm:$0xf]
        %v392 = vld [vmem:[%s178 + $0x2c4] sm:$0xf]
        %v393 = vld [vmem:[%s178 + $0x2c8] sm:$0xf]
        %v394 = vld [vmem:[%s178 + $0x2cc] sm:$0xf]
        %v395 = vld [vmem:[%s178 + $0x2d0] sm:$0xf]
        %v396 = vld [vmem:[%s178 + $0x2d4] sm:$0xf]
        %v397 = vld [vmem:[%s178 + $0x2d8] sm:$0xf]
        %v398 = vld [vmem:[%s178 + $0x2dc] sm:$0xf]
        %v399 = vld [vmem:[%s178 + $0x2e0] sm:$0xf]
        %v400 = vld [vmem:[%s178 + $0x2e4] sm:$0xf]
        %v401 = vld [vmem:[%s178 + $0x2e8] sm:$0xf]
        %v402 = vld [vmem:[%s178 + $0x2ec] sm:$0xf]
        %v403 = vld [vmem:[%s178 + $0x2f0] sm:$0xf]
        %v404 = vld [vmem:[%s178 + $0x2f4] sm:$0xf]
        %v405 = vld [vmem:[%s178 + $0x2f8] sm:$0xf]
        %v406 = vld [vmem:[%s178 + $0x2fc] sm:$0xf]
        %v407 = vld [vmem:[%s178 + $0x300] sm:$0xf]
        %v408 = vld [vmem:[%s178 + $0x304] sm:$0xf]
        %v409 = vld [vmem:[%s178 + $0x308] sm:$0xf]
        %v410 = vld [vmem:[%s178 + $0x30c] sm:$0xf]
        %v411 = vld [vmem:[%s178 + $0x310] sm:$0xf]
        %v412 = vld [vmem:[%s178 + $0x314] sm:$0xf]
        %v413 = vld [vmem:[%s178 + $0x318] sm:$0xf]
        %v414 = vld [vmem:[%s178 + $0x31c] sm:$0xf]
        %v415 = vld [vmem:[%s178 + $0x320] sm:$0xf]
        %v416 = vld [vmem:[%s178 + $0x324] sm:$0xf]
        %v417 = vld [vmem:[%s178 + $0x328] sm:$0xf]
        %v418 = vld [vmem:[%s178 + $0x32c] sm:$0xf]
        %v419 = vld [vmem:[%s178 + $0x330] sm:$0xf]
        %v420 = vld [vmem:[%s178 + $0x334] sm:$0xf]
        %v421 = vld [vmem:[%s178 + $0x338] sm:$0xf]
        %v422 = vld [vmem:[%s178 + $0x33c] sm:$0xf]
        %v423 = vld [vmem:[%s178 + $0x340] sm:$0xf]
        %v424 = vld [vmem:[%s178 + $0x344] sm:$0xf]
        %v425 = vld [vmem:[%s178 + $0x348] sm:$0xf]
        %v426 = vld [vmem:[%s178 + $0x34c] sm:$0xf]
        %v427 = vld [vmem:[%s178 + $0x350] sm:$0xf]
        %v428 = vld [vmem:[%s178 + $0x354] sm:$0xf]
        %v429 = vld [vmem:[%s178 + $0x358] sm:$0xf]
        %v430 = vld [vmem:[%s178 + $0x35c] sm:$0xf]
        %v431 = vld [vmem:[%s178 + $0x360] sm:$0xf]
        %v432 = vld [vmem:[%s178 + $0x364] sm:$0xf]
        %v433 = vld [vmem:[%s178 + $0x368] sm:$0xf]
        %v434 = vld [vmem:[%s178 + $0x36c] sm:$0xf]
        %v435 = vld [vmem:[%s178 + $0x370] sm:$0xf]
        %v436 = vld [vmem:[%s178 + $0x374] sm:$0xf]
        %v437 = vld [vmem:[%s178 + $0x378] sm:$0xf]
        %v438 = vld [vmem:[%s178 + $0x37c] sm:$0xf]
        %v439 = vld [vmem:[%s178 + $0x380] sm:$0xf]
        %v440 = vld [vmem:[%s178 + $0x384] sm:$0xf]
        %v441 = vld [vmem:[%s178 + $0x388] sm:$0xf]
        %v442 = vld [vmem:[%s178 + $0x38c] sm:$0xf]
        %v443 = vld [vmem:[%s178 + $0x390] sm:$0xf]
        %v444 = vld [vmem:[%s178 + $0x394] sm:$0xf]
        %v445 = vld [vmem:[%s178 + $0x398] sm:$0xf]
        %v446 = vld [vmem:[%s178 + $0x39c] sm:$0xf]
        %v447 = vld [vmem:[%s178 + $0x3a0] sm:$0xf]
        %v448 = vld [vmem:[%s178 + $0x3a4] sm:$0xf]
        %v449 = vld [vmem:[%s178 + $0x3a8] sm:$0xf]
        %v450 = vld [vmem:[%s178 + $0x3ac] sm:$0xf]
        %v451 = vld [vmem:[%s178 + $0x3b0] sm:$0xf]
        %v452 = vld [vmem:[%s178 + $0x3b4] sm:$0xf]
        %v453 = vld [vmem:[%s178 + $0x3b8] sm:$0xf]
        %v454 = vld [vmem:[%s178 + $0x3bc] sm:$0xf]
        %v455 = vld [vmem:[%s178 + $0x3c0] sm:$0xf]
        %v456 = vld [vmem:[%s178 + $0x3c4] sm:$0xf]
        %v457 = vld [vmem:[%s178 + $0x3c8] sm:$0xf]
        %v458 = vld [vmem:[%s178 + $0x3cc] sm:$0xf]
        %v459 = vld [vmem:[%s178 + $0x3d0] sm:$0xf]
        %v460 = vld [vmem:[%s178 + $0x3d4] sm:$0xf]
        %v461 = vld [vmem:[%s178 + $0x3d8] sm:$0xf]
        %v462 = vld [vmem:[%s178 + $0x3dc] sm:$0xf]
        %v463 = vld [vmem:[%s178 + $0x3e0] sm:$0xf]
        %v464 = vld [vmem:[%s178 + $0x3e4] sm:$0xf]
        %v465 = vld [vmem:[%s178 + $0x3e8] sm:$0xf]
        %v466 = vld [vmem:[%s178 + $0x3ec] sm:$0xf]
        %v467 = vld [vmem:[%s178 + $0x3f0] sm:$0xf]
        %v468 = vld [vmem:[%s178 + $0x3f4] sm:$0xf]
        %v469 = vld [vmem:[%s178 + $0x3f8] sm:$0xf]
        %v470 = vld [vmem:[%s178 + $0x3fc] sm:$0xf]
        %v471 = vld [vmem:[%s178 + $0x400] sm:$0xf]
        %v472 = vld [vmem:[%s178 + $0x404] sm:$0xf]
        %v473 = vld [vmem:[%s178 + $0x408] sm:$0xf]
        %v474 = vld [vmem:[%s178 + $0x40c] sm:$0xf]
        %v475 = vld [vmem:[%s178 + $0x410] sm:$0xf]
        %v476 = vld [vmem:[%s178 + $0x414] sm:$0xf]
        %v477 = vld [vmem:[%s178 + $0x418] sm:$0xf]
        %v478 = vld [vmem:[%s178 + $0x41c] sm:$0xf]
        %v479 = vld [vmem:[%s178 + $0x420] sm:$0xf]
        %v480 = vld [vmem:[%s178 + $0x424] sm:$0xf]
        %v481 = vld [vmem:[%s178 + $0x428] sm:$0xf]
        %v482 = vld [vmem:[%s178 + $0x42c] sm:$0xf]
        %v483 = vld [vmem:[%s178 + $0x430] sm:$0xf]
        %v484 = vld [vmem:[%s178 + $0x434] sm:$0xf]
        %v485 = vld [vmem:[%s178 + $0x438] sm:$0xf]
        %v486 = vld [vmem:[%s178 + $0x43c] sm:$0xf]
        %v487 = vld [vmem:[%s178 + $0x440] sm:$0xf]
        %v488 = vld [vmem:[%s178 + $0x444] sm:$0xf]
        %v489 = vld [vmem:[%s178 + $0x448] sm:$0xf]
        %v490 = vld [vmem:[%s178 + $0x44c] sm:$0xf]
        %v491 = vld [vmem:[%s178 + $0x450] sm:$0xf]
        %v492 = vld [vmem:[%s178 + $0x454] sm:$0xf]
        %v493 = vld [vmem:[%s178 + $0x458] sm:$0xf]
        %v494 = vld [vmem:[%s178 + $0x45c] sm:$0xf]
        %v495 = vld [vmem:[%s178 + $0x460] sm:$0xf]
        %v496 = vld [vmem:[%s178 + $0x464] sm:$0xf]
        %v497 = vld [vmem:[%s178 + $0x468] sm:$0xf]
        %v498 = vld [vmem:[%s178 + $0x46c] sm:$0xf]
        %v499 = vld [vmem:[%s178 + $0x470] sm:$0xf]
        %v500 = vld [vmem:[%s178 + $0x474] sm:$0xf]
        %v501 = vld [vmem:[%s178 + $0x478] sm:$0xf]
        %v502 = vld [vmem:[%s178 + $0x47c] sm:$0xf]
        %v503 = vld [vmem:[%s178 + $0x480] sm:$0xf]
        %v504 = vld [vmem:[%s178 + $0x484] sm:$0xf]
        %v505 = vld [vmem:[%s178 + $0x488] sm:$0xf]
        %v506 = vld [vmem:[%s178 + $0x48c] sm:$0xf]
        %v507 = vld [vmem:[%s178 + $0x490] sm:$0xf]
        %v508 = vld [vmem:[%s178 + $0x494] sm:$0xf]
        %v509 = vld [vmem:[%s178 + $0x498] sm:$0xf]
        %v510 = vld [vmem:[%s178 + $0x49c] sm:$0xf]
        %v511 = vld [vmem:[%s178 + $0x4a0] sm:$0xf]
        %v512 = vld [vmem:[%s178 + $0x4a4] sm:$0xf]
        %v513 = vld [vmem:[%s178 + $0x4a8] sm:$0xf]
        %v514 = vld [vmem:[%s178 + $0x4ac] sm:$0xf]
        %v515 = vld [vmem:[%s178 + $0x4b0] sm:$0xf]
        %v516 = vld [vmem:[%s178 + $0x4b4] sm:$0xf]
        %v517 = vld [vmem:[%s178 + $0x4b8] sm:$0xf]
        %v518 = vld [vmem:[%s178 + $0x4bc] sm:$0xf]
        %v519 = vld [vmem:[%s178 + $0x4c0] sm:$0xf]
        %v520 = vld [vmem:[%s178 + $0x4c4] sm:$0xf]
        %v521 = vld [vmem:[%s178 + $0x4c8] sm:$0xf]
        %v522 = vld [vmem:[%s178 + $0x4cc] sm:$0xf]
        %v523 = vld [vmem:[%s178 + $0x4d0] sm:$0xf]
        %v524 = vld [vmem:[%s178 + $0x4d4] sm:$0xf]
        %v525 = vld [vmem:[%s178 + $0x4d8] sm:$0xf]
        %v526 = vld [vmem:[%s178 + $0x4dc] sm:$0xf]
        %v527 = vld [vmem:[%s178 + $0x4e0] sm:$0xf]
        %v528 = vld [vmem:[%s178 + $0x4e4] sm:$0xf]
        %v529 = vld [vmem:[%s178 + $0x4e8] sm:$0xf]
        %v530 = vld [vmem:[%s178 + $0x4ec] sm:$0xf]
        %v531 = vld [vmem:[%s178 + $0x4f0] sm:$0xf]
        %v532 = vld [vmem:[%s178 + $0x4f4] sm:$0xf]
        %v533 = vld [vmem:[%s178 + $0x4f8] sm:$0xf]
        %v534 = vld [vmem:[%s178 + $0x4fc] sm:$0xf]
        %v535 = vld [vmem:[%s178 + $0x500] sm:$0xf]
        %v536 = vld [vmem:[%s178 + $0x504] sm:$0xf]
        %v537 = vld [vmem:[%s178 + $0x508] sm:$0xf]
        %v538 = vld [vmem:[%s178 + $0x50c] sm:$0xf]
        %v539 = vld [vmem:[%s178 + $0x510] sm:$0xf]
        %v540 = vld [vmem:[%s178 + $0x514] sm:$0xf]
        %v541 = vld [vmem:[%s178 + $0x518] sm:$0xf]
        %v542 = vld [vmem:[%s178 + $0x51c] sm:$0xf]
        %v543 = vld [vmem:[%s178 + $0x520] sm:$0xf]
        %v544 = vld [vmem:[%s178 + $0x524] sm:$0xf]
        %v545 = vld [vmem:[%s178 + $0x528] sm:$0xf]
        %v546 = vld [vmem:[%s178 + $0x52c] sm:$0xf]
        %v547 = vld [vmem:[%s178 + $0x530] sm:$0xf]
        %v548 = vld [vmem:[%s178 + $0x534] sm:$0xf]
        %v549 = vld [vmem:[%s178 + $0x538] sm:$0xf]
        %v550 = vld [vmem:[%s178 + $0x53c] sm:$0xf]
        %v551 = vld [vmem:[%s178 + $0x540] sm:$0xf]
        %v552 = vld [vmem:[%s178 + $0x544] sm:$0xf]
        %v553 = vld [vmem:[%s178 + $0x548] sm:$0xf]
        %v554 = vld [vmem:[%s178 + $0x54c] sm:$0xf]
        %v555 = vld [vmem:[%s178 + $0x550] sm:$0xf]
        %v556 = vld [vmem:[%s178 + $0x554] sm:$0xf]
        %v557 = vld [vmem:[%s178 + $0x558] sm:$0xf]
        %v558 = vld [vmem:[%s178 + $0x55c] sm:$0xf]
        %v559 = vld [vmem:[%s178 + $0x560] sm:$0xf]
        %v560 = vld [vmem:[%s178 + $0x564] sm:$0xf]
        %v561 = vld [vmem:[%s178 + $0x568] sm:$0xf]
        %v562 = vld [vmem:[%s178 + $0x56c] sm:$0xf]
        %v563 = vld [vmem:[%s178 + $0x570] sm:$0xf]
        %v564 = vld [vmem:[%s178 + $0x574] sm:$0xf]
        %v565 = vld [vmem:[%s178 + $0x578] sm:$0xf]
        %v566 = vld [vmem:[%s178 + $0x57c] sm:$0xf]
        %v567 = vld [vmem:[%s178 + $0x580] sm:$0xf]
        %v568 = vld [vmem:[%s178 + $0x584] sm:$0xf]
        %v569 = vld [vmem:[%s178 + $0x588] sm:$0xf]
        %v570 = vld [vmem:[%s178 + $0x58c] sm:$0xf]
        %v571 = vld [vmem:[%s178 + $0x590] sm:$0xf]
        %v572 = vld [vmem:[%s178 + $0x594] sm:$0xf]
        %v573 = vld [vmem:[%s178 + $0x598] sm:$0xf]
        %v574 = vld [vmem:[%s178 + $0x59c] sm:$0xf]
        %v575 = vld [vmem:[%s178 + $0x5a0] sm:$0xf]
        %v576 = vld [vmem:[%s178 + $0x5a4] sm:$0xf]
        %v577 = vld [vmem:[%s178 + $0x5a8] sm:$0xf]
        %v578 = vld [vmem:[%s178 + $0x5ac] sm:$0xf]
        %v579 = vld [vmem:[%s178 + $0x5b0] sm:$0xf]
        %v580 = vld [vmem:[%s178 + $0x5b4] sm:$0xf]
        %v581 = vld [vmem:[%s178 + $0x5b8] sm:$0xf]
        %v582 = vld [vmem:[%s178 + $0x5bc] sm:$0xf]
        %v583 = vld [vmem:[%s178 + $0x5c0] sm:$0xf]
        %v584 = vld [vmem:[%s178 + $0x5c4] sm:$0xf]
        %v585 = vld [vmem:[%s178 + $0x5c8] sm:$0xf]
        %v586 = vld [vmem:[%s178 + $0x5cc] sm:$0xf]
        %v587 = vld [vmem:[%s178 + $0x5d0] sm:$0xf]
        %v588 = vld [vmem:[%s178 + $0x5d4] sm:$0xf]
        %v589 = vld [vmem:[%s178 + $0x5d8] sm:$0xf]
        %v590 = vld [vmem:[%s178 + $0x5dc] sm:$0xf]
        %v591 = vld [vmem:[%s178 + $0x5e0] sm:$0xf]
        %v592 = vld [vmem:[%s178 + $0x5e4] sm:$0xf]
        %v593 = vld [vmem:[%s178 + $0x5e8] sm:$0xf]
        %v594 = vld [vmem:[%s178 + $0x5ec] sm:$0xf]
        %v595 = vld [vmem:[%s178 + $0x5f0] sm:$0xf]
        %v596 = vld [vmem:[%s178 + $0x5f4] sm:$0xf]
        %v597 = vld [vmem:[%s178 + $0x5f8] sm:$0xf]
        %v598 = vld [vmem:[%s178 + $0x5fc] sm:$0xf]
        %v599 = vld [vmem:[%s178 + $0x600] sm:$0xf]
        %v600 = vld [vmem:[%s178 + $0x604] sm:$0xf]
        %v601 = vld [vmem:[%s178 + $0x608] sm:$0xf]
        %v602 = vld [vmem:[%s178 + $0x60c] sm:$0xf]
        %v603 = vld [vmem:[%s178 + $0x610] sm:$0xf]
        %v604 = vld [vmem:[%s178 + $0x614] sm:$0xf]
        %v605 = vld [vmem:[%s178 + $0x618] sm:$0xf]
        %v606 = vld [vmem:[%s178 + $0x61c] sm:$0xf]
        %v607 = vld [vmem:[%s178 + $0x620] sm:$0xf]
        %v608 = vld [vmem:[%s178 + $0x624] sm:$0xf]
        %v609 = vld [vmem:[%s178 + $0x628] sm:$0xf]
        %v610 = vld [vmem:[%s178 + $0x62c] sm:$0xf]
        %v611 = vld [vmem:[%s178 + $0x630] sm:$0xf]
        %v612 = vld [vmem:[%s178 + $0x634] sm:$0xf]
        %v613 = vld [vmem:[%s178 + $0x638] sm:$0xf]
        %v614 = vld [vmem:[%s178 + $0x63c] sm:$0xf]
        %v615 = vld [vmem:[%s178 + $0x640] sm:$0xf]
        %v616 = vld [vmem:[%s178 + $0x644] sm:$0xf]
        %v617 = vld [vmem:[%s178 + $0x648] sm:$0xf]
        %v618 = vld [vmem:[%s178 + $0x64c] sm:$0xf]
        %v619 = vld [vmem:[%s178 + $0x650] sm:$0xf]
        %v620 = vld [vmem:[%s178 + $0x654] sm:$0xf]
        %v621 = vld [vmem:[%s178 + $0x658] sm:$0xf]
        %v622 = vld [vmem:[%s178 + $0x65c] sm:$0xf]
        %v623 = vld [vmem:[%s178 + $0x660] sm:$0xf]
        %v624 = vld [vmem:[%s178 + $0x664] sm:$0xf]
        %v625 = vld [vmem:[%s178 + $0x668] sm:$0xf]
        %v626 = vld [vmem:[%s178 + $0x66c] sm:$0xf]
        %v627 = vld [vmem:[%s178 + $0x670] sm:$0xf]
        %v628 = vld [vmem:[%s178 + $0x674] sm:$0xf]
        %v629 = vld [vmem:[%s178 + $0x678] sm:$0xf]
        %v630 = vld [vmem:[%s178 + $0x67c] sm:$0xf]
        %v631 = vld [vmem:[%s178 + $0x680] sm:$0xf]
        %v632 = vld [vmem:[%s178 + $0x684] sm:$0xf]
        %v633 = vld [vmem:[%s178 + $0x688] sm:$0xf]
        %v634 = vld [vmem:[%s178 + $0x68c] sm:$0xf]
        %v635 = vld [vmem:[%s178 + $0x690] sm:$0xf]
        %v636 = vld [vmem:[%s178 + $0x694] sm:$0xf]
        %v637 = vld [vmem:[%s178 + $0x698] sm:$0xf]
        %v638 = vld [vmem:[%s178 + $0x69c] sm:$0xf]
        %v639 = vld [vmem:[%s178 + $0x6a0] sm:$0xf]
        %v640 = vld [vmem:[%s178 + $0x6a4] sm:$0xf]
        %v641 = vld [vmem:[%s178 + $0x6a8] sm:$0xf]
        %v642 = vld [vmem:[%s178 + $0x6ac] sm:$0xf]
        %v643 = vld [vmem:[%s178 + $0x6b0] sm:$0xf]
        %v644 = vld [vmem:[%s178 + $0x6b4] sm:$0xf]
        %v645 = vld [vmem:[%s178 + $0x6b8] sm:$0xf]
        %v646 = vld [vmem:[%s178 + $0x6bc] sm:$0xf]
        %v647 = vld [vmem:[%s178 + $0x6c0] sm:$0xf]
        %v648 = vld [vmem:[%s178 + $0x6c4] sm:$0xf]
        %v649 = vld [vmem:[%s178 + $0x6c8] sm:$0xf]
        %v650 = vld [vmem:[%s178 + $0x6cc] sm:$0xf]
        %v651 = vld [vmem:[%s178 + $0x6d0] sm:$0xf]
        %v652 = vld [vmem:[%s178 + $0x6d4] sm:$0xf]
        %v653 = vld [vmem:[%s178 + $0x6d8] sm:$0xf]
        %v654 = vld [vmem:[%s178 + $0x6dc] sm:$0xf]
        %v655 = vld [vmem:[%s178 + $0x6e0] sm:$0xf]
        %v656 = vld [vmem:[%s178 + $0x6e4] sm:$0xf]
        %v657 = vld [vmem:[%s178 + $0x6e8] sm:$0xf]
        %v658 = vld [vmem:[%s178 + $0x6ec] sm:$0xf]
        %v659 = vld [vmem:[%s178 + $0x6f0] sm:$0xf]
        %v660 = vld [vmem:[%s178 + $0x6f4] sm:$0xf]
        %v661 = vld [vmem:[%s178 + $0x6f8] sm:$0xf]
        %v662 = vld [vmem:[%s178 + $0x6fc] sm:$0xf]
        %v663 = vld [vmem:[%s178 + $0x700] sm:$0xf]
        %v664 = vld [vmem:[%s178 + $0x704] sm:$0xf]
        %v665 = vld [vmem:[%s178 + $0x708] sm:$0xf]
        %v666 = vld [vmem:[%s178 + $0x70c] sm:$0xf]
        %v667 = vld [vmem:[%s178 + $0x710] sm:$0xf]
        %v668 = vld [vmem:[%s178 + $0x714] sm:$0xf]
        %v669 = vld [vmem:[%s178 + $0x718] sm:$0xf]
        %v670 = vld [vmem:[%s178 + $0x71c] sm:$0xf]
        %v671 = vld [vmem:[%s178 + $0x720] sm:$0xf]
        %v672 = vld [vmem:[%s178 + $0x724] sm:$0xf]
        %v673 = vld [vmem:[%s178 + $0x728] sm:$0xf]
        %v674 = vld [vmem:[%s178 + $0x72c] sm:$0xf]
        %v675 = vld [vmem:[%s178 + $0x730] sm:$0xf]
        %v676 = vld [vmem:[%s178 + $0x734] sm:$0xf]
        %v677 = vld [vmem:[%s178 + $0x738] sm:$0xf]
        %v678 = vld [vmem:[%s178 + $0x73c] sm:$0xf]
        %v679 = vld [vmem:[%s178 + $0x740] sm:$0xf]
        %v680 = vld [vmem:[%s178 + $0x744] sm:$0xf]
        %v681 = vld [vmem:[%s178 + $0x748] sm:$0xf]
        %v682 = vld [vmem:[%s178 + $0x74c] sm:$0xf]
        %v683 = vld [vmem:[%s178 + $0x750] sm:$0xf]
        %v684 = vld [vmem:[%s178 + $0x754] sm:$0xf]
        %v685 = vld [vmem:[%s178 + $0x758] sm:$0xf]
        %v686 = vld [vmem:[%s178 + $0x75c] sm:$0xf]
        %v687 = vld [vmem:[%s178 + $0x760] sm:$0xf]
        %v688 = vld [vmem:[%s178 + $0x764] sm:$0xf]
        %v689 = vld [vmem:[%s178 + $0x768] sm:$0xf]
        %v690 = vld [vmem:[%s178 + $0x76c] sm:$0xf]
        %v691 = vld [vmem:[%s178 + $0x770] sm:$0xf]
        %v692 = vld [vmem:[%s178 + $0x774] sm:$0xf]
        %v693 = vld [vmem:[%s178 + $0x778] sm:$0xf]
        %v694 = vld [vmem:[%s178 + $0x77c] sm:$0xf]
        %v695 = vld [vmem:[%s178 + $0x780] sm:$0xf]
        %v696 = vld [vmem:[%s178 + $0x784] sm:$0xf]
        %v697 = vld [vmem:[%s178 + $0x788] sm:$0xf]
        %v698 = vld [vmem:[%s178 + $0x78c] sm:$0xf]
        %v699 = vld [vmem:[%s178 + $0x790] sm:$0xf]
        %v700 = vld [vmem:[%s178 + $0x794] sm:$0xf]
        %v701 = vld [vmem:[%s178 + $0x798] sm:$0xf]
        %v702 = vld [vmem:[%s178 + $0x79c] sm:$0xf]
        %v703 = vld [vmem:[%s178 + $0x7a0] sm:$0xf]
        %v704 = vld [vmem:[%s178 + $0x7a4] sm:$0xf]
        %v705 = vld [vmem:[%s178 + $0x7a8] sm:$0xf]
        %v706 = vld [vmem:[%s178 + $0x7ac] sm:$0xf]
        %v707 = vld [vmem:[%s178 + $0x7b0] sm:$0xf]
        %v708 = vld [vmem:[%s178 + $0x7b4] sm:$0xf]
        %v709 = vld [vmem:[%s178 + $0x7b8] sm:$0xf]
        %v710 = vld [vmem:[%s178 + $0x7bc] sm:$0xf]
        %v711 = vld [vmem:[%s178 + $0x7c0] sm:$0xf]
        %v712 = vld [vmem:[%s178 + $0x7c4] sm:$0xf]
        %v713 = vld [vmem:[%s178 + $0x7c8] sm:$0xf]
        %v714 = vld [vmem:[%s178 + $0x7cc] sm:$0xf]
        %v715 = vld [vmem:[%s178 + $0x7d0] sm:$0xf]
        %v716 = vld [vmem:[%s178 + $0x7d4] sm:$0xf]
        %v717 = vld [vmem:[%s178 + $0x7d8] sm:$0xf]
        %v718 = vld [vmem:[%s178 + $0x7dc] sm:$0xf]
        %v719 = vld [vmem:[%s178 + $0x7e0] sm:$0xf]
        %v720 = vld [vmem:[%s178 + $0x7e4] sm:$0xf]
        %v721 = vld [vmem:[%s178 + $0x7e8] sm:$0xf]
        %v722 = vld [vmem:[%s178 + $0x7ec] sm:$0xf]
        %v723 = vld [vmem:[%s178 + $0x7f0] sm:$0xf]
        %v724 = vld [vmem:[%s178 + $0x7f4] sm:$0xf]
        %v725 = vld [vmem:[%s178 + $0x7f8] sm:$0xf]
        %v726 = vld [vmem:[%s178 + $0x7fc] sm:$0xf]
        %v727 = vld [vmem:[%s1] sm:$0xf]
        %v728 = vld [vmem:[%s1 + $0x4] sm:$0xf]
        %v729 = vld [vmem:[%s1 + $0x8] sm:$0xf]
        %v730 = vld [vmem:[%s1 + $0xc] sm:$0xf]
        %v731 = vld [vmem:[%s1 + $0x10] sm:$0xf]
        %v732 = vld [vmem:[%s1 + $0x14] sm:$0xf]
        %v733 = vld [vmem:[%s1 + $0x18] sm:$0xf]
        %v734 = vld [vmem:[%s1 + $0x1c] sm:$0xf]
        %v735 = vld [vmem:[%s1 + $0x20] sm:$0xf]
        %v736 = vld [vmem:[%s1 + $0x24] sm:$0xf]
        %v737 = vld [vmem:[%s1 + $0x28] sm:$0xf]
        %v738 = vld [vmem:[%s1 + $0x2c] sm:$0xf]
        %v739 = vld [vmem:[%s1 + $0x30] sm:$0xf]
        %v740 = vld [vmem:[%s1 + $0x34] sm:$0xf]
        %v741 = vld [vmem:[%s1 + $0x38] sm:$0xf]
        %v742 = vld [vmem:[%s1 + $0x3c] sm:$0xf]
        %v743 = vld [vmem:[#allocation4] sm:$0x1]
        %v745 = vlaneseq
        %v746 = vshrl.u32 %v745, 7
        %v747 = vsub.s32 0, %v746
        %v748 = vrot.slane %v743, %v747
        %v1262 = vunpack.c.l.b16 %v215
        %v1263 = vunpack.c.l.b16 %v216
        %v1264 = vunpack.c.l.b16 %v217
        %v1265 = vunpack.c.l.b16 %v218
        %v1266 = vunpack.c.l.b16 %v219
        %v1267 = vunpack.c.l.b16 %v220
        %v1268 = vunpack.c.l.b16 %v221
        %v1269 = vunpack.c.l.b16 %v222
        %v1270 = vunpack.c.l.b16 %v223
        %v1271 = vunpack.c.l.b16 %v224
        %v1272 = vunpack.c.l.b16 %v225
        %v1273 = vunpack.c.l.b16 %v226
        %v1274 = vunpack.c.l.b16 %v227
        %v1275 = vunpack.c.l.b16 %v228
        %v1276 = vunpack.c.l.b16 %v229
        %v1277 = vunpack.c.l.b16 %v230
        %v1278 = vunpack.c.l.b16 %v231
        %v1279 = vunpack.c.l.b16 %v232
        %v1280 = vunpack.c.l.b16 %v233
        %v1281 = vunpack.c.l.b16 %v234
        %v1282 = vunpack.c.l.b16 %v235
        %v1283 = vunpack.c.l.b16 %v236
        %v1284 = vunpack.c.l.b16 %v237
        %v1285 = vunpack.c.l.b16 %v238
        %v1286 = vunpack.c.l.b16 %v239
        %v1287 = vunpack.c.l.b16 %v240
        %v1288 = vunpack.c.l.b16 %v241
        %v1289 = vunpack.c.l.b16 %v242
        %v1290 = vunpack.c.l.b16 %v243
        %v1291 = vunpack.c.l.b16 %v244
        %v1292 = vunpack.c.l.b16 %v245
        %v1293 = vunpack.c.l.b16 %v246
        %v1294 = vunpack.c.l.b16 %v247
        %v1295 = vunpack.c.l.b16 %v248
        %v1296 = vunpack.c.l.b16 %v249
        %v1297 = vunpack.c.l.b16 %v250
        %v1298 = vunpack.c.l.b16 %v251
        %v1299 = vunpack.c.l.b16 %v252
        %v1300 = vunpack.c.l.b16 %v253
        %v1301 = vunpack.c.l.b16 %v254
        %v1302 = vunpack.c.l.b16 %v255
        %v1303 = vunpack.c.l.b16 %v256
        %v1304 = vunpack.c.l.b16 %v257
        %v1305 = vunpack.c.l.b16 %v258
        %v1306 = vunpack.c.l.b16 %v259
        %v1307 = vunpack.c.l.b16 %v260
        %v1308 = vunpack.c.l.b16 %v261
        %v1309 = vunpack.c.l.b16 %v262
        %v1310 = vunpack.c.l.b16 %v263
        %v1311 = vunpack.c.l.b16 %v264
        %v1312 = vunpack.c.l.b16 %v265
        %v1313 = vunpack.c.l.b16 %v266
        %v1314 = vunpack.c.l.b16 %v267
        %v1315 = vunpack.c.l.b16 %v268
        %v1316 = vunpack.c.l.b16 %v269
        %v1317 = vunpack.c.l.b16 %v270
        %v1318 = vunpack.c.l.b16 %v271
        %v1319 = vunpack.c.l.b16 %v272
        %v1320 = vunpack.c.l.b16 %v273
        %v1321 = vunpack.c.l.b16 %v274
        %v1322 = vunpack.c.l.b16 %v275
        %v1323 = vunpack.c.l.b16 %v276
        %v1324 = vunpack.c.l.b16 %v277
        %v1325 = vunpack.c.l.b16 %v278
        %v1326 = vunpack.c.l.b16 %v279
        %v1327 = vunpack.c.l.b16 %v280
        %v1328 = vunpack.c.l.b16 %v281
        %v1329 = vunpack.c.l.b16 %v282
        %v1330 = vunpack.c.l.b16 %v283
        %v1331 = vunpack.c.l.b16 %v284
        %v1332 = vunpack.c.l.b16 %v285
        %v1333 = vunpack.c.l.b16 %v286
        %v1334 = vunpack.c.l.b16 %v287
        %v1335 = vunpack.c.l.b16 %v288
        %v1336 = vunpack.c.l.b16 %v289
        %v1337 = vunpack.c.l.b16 %v290
        %v1338 = vunpack.c.l.b16 %v291
        %v1339 = vunpack.c.l.b16 %v292
        %v1340 = vunpack.c.l.b16 %v293
        %v1341 = vunpack.c.l.b16 %v294
        %v1342 = vunpack.c.l.b16 %v295
        %v1343 = vunpack.c.l.b16 %v296
        %v1344 = vunpack.c.l.b16 %v297
        %v1345 = vunpack.c.l.b16 %v298
        %v1346 = vunpack.c.l.b16 %v299
        %v1347 = vunpack.c.l.b16 %v300
        %v1348 = vunpack.c.l.b16 %v301
        %v1349 = vunpack.c.l.b16 %v302
        %v1350 = vunpack.c.l.b16 %v303
        %v1351 = vunpack.c.l.b16 %v304
        %v1352 = vunpack.c.l.b16 %v305
        %v1353 = vunpack.c.l.b16 %v306
        %v1354 = vunpack.c.l.b16 %v307
        %v1355 = vunpack.c.l.b16 %v308
        %v1356 = vunpack.c.l.b16 %v309
        %v1357 = vunpack.c.l.b16 %v310
        %v1358 = vunpack.c.l.b16 %v311
        %v1359 = vunpack.c.l.b16 %v312
        %v1360 = vunpack.c.l.b16 %v313
        %v1361 = vunpack.c.l.b16 %v314
        %v1362 = vunpack.c.l.b16 %v315
        %v1363 = vunpack.c.l.b16 %v316
        %v1364 = vunpack.c.l.b16 %v317
        %v1365 = vunpack.c.l.b16 %v318
        %v1366 = vunpack.c.l.b16 %v319
        %v1367 = vunpack.c.l.b16 %v320
        %v1368 = vunpack.c.l.b16 %v321
        %v1369 = vunpack.c.l.b16 %v322
        %v1370 = vunpack.c.l.b16 %v323
        %v1371 = vunpack.c.l.b16 %v324
        %v1372 = vunpack.c.l.b16 %v325
        %v1373 = vunpack.c.l.b16 %v326
        %v1374 = vunpack.c.l.b16 %v327
        %v1375 = vunpack.c.l.b16 %v328
        %v1376 = vunpack.c.l.b16 %v329
        %v1377 = vunpack.c.l.b16 %v330
        %v1378 = vunpack.c.l.b16 %v331
        %v1379 = vunpack.c.l.b16 %v332
        %v1380 = vunpack.c.l.b16 %v333
        %v1381 = vunpack.c.l.b16 %v334
        %v1382 = vunpack.c.l.b16 %v335
        %v1383 = vunpack.c.l.b16 %v336
        %v1384 = vunpack.c.l.b16 %v337
        %v1385 = vunpack.c.l.b16 %v338
        %v1386 = vunpack.c.l.b16 %v339
        %v1387 = vunpack.c.l.b16 %v340
        %v1388 = vunpack.c.l.b16 %v341
        %v1389 = vunpack.c.l.b16 %v342
        %v1390 = vunpack.c.l.b16 %v343
        %v1391 = vunpack.c.l.b16 %v344
        %v1392 = vunpack.c.l.b16 %v345
        %v1393 = vunpack.c.l.b16 %v346
        %v1394 = vunpack.c.l.b16 %v347
        %v1395 = vunpack.c.l.b16 %v348
        %v1396 = vunpack.c.l.b16 %v349
        %v1397 = vunpack.c.l.b16 %v350
        %v1398 = vunpack.c.l.b16 %v351
        %v1399 = vunpack.c.l.b16 %v352
        %v1400 = vunpack.c.l.b16 %v353
        %v1401 = vunpack.c.l.b16 %v354
        %v1402 = vunpack.c.l.b16 %v355
        %v1403 = vunpack.c.l.b16 %v356
        %v1404 = vunpack.c.l.b16 %v357
        %v1405 = vunpack.c.l.b16 %v358
        %v1406 = vunpack.c.l.b16 %v359
        %v1407 = vunpack.c.l.b16 %v360
        %v1408 = vunpack.c.l.b16 %v361
        %v1409 = vunpack.c.l.b16 %v362
        %v1410 = vunpack.c.l.b16 %v363
        %v1411 = vunpack.c.l.b16 %v364
        %v1412 = vunpack.c.l.b16 %v365
        %v1413 = vunpack.c.l.b16 %v366
        %v1414 = vunpack.c.l.b16 %v367
        %v1415 = vunpack.c.l.b16 %v368
        %v1416 = vunpack.c.l.b16 %v369
        %v1417 = vunpack.c.l.b16 %v370
        %v1418 = vunpack.c.l.b16 %v371
        %v1419 = vunpack.c.l.b16 %v372
        %v1420 = vunpack.c.l.b16 %v373
        %v1421 = vunpack.c.l.b16 %v374
        %v1422 = vunpack.c.l.b16 %v375
        %v1423 = vunpack.c.l.b16 %v376
        %v1424 = vunpack.c.l.b16 %v377
        %v1425 = vunpack.c.l.b16 %v378
        %v1426 = vunpack.c.l.b16 %v379
        %v1427 = vunpack.c.l.b16 %v380
        %v1428 = vunpack.c.l.b16 %v381
        %v1429 = vunpack.c.l.b16 %v382
        %v1430 = vunpack.c.l.b16 %v383
        %v1431 = vunpack.c.l.b16 %v384
        %v1432 = vunpack.c.l.b16 %v385
        %v1433 = vunpack.c.l.b16 %v386
        %v1434 = vunpack.c.l.b16 %v387
        %v1435 = vunpack.c.l.b16 %v388
        %v1436 = vunpack.c.l.b16 %v389
        %v1437 = vunpack.c.l.b16 %v390
        %v1438 = vunpack.c.l.b16 %v391
        %v1439 = vunpack.c.l.b16 %v392
        %v1440 = vunpack.c.l.b16 %v393
        %v1441 = vunpack.c.l.b16 %v394
        %v1442 = vunpack.c.l.b16 %v395
        %v1443 = vunpack.c.l.b16 %v396
        %v1444 = vunpack.c.l.b16 %v397
        %v1445 = vunpack.c.l.b16 %v398
        %v1446 = vunpack.c.l.b16 %v399
        %v1447 = vunpack.c.l.b16 %v400
        %v1448 = vunpack.c.l.b16 %v401
        %v1449 = vunpack.c.l.b16 %v402
        %v1450 = vunpack.c.l.b16 %v403
        %v1451 = vunpack.c.l.b16 %v404
        %v1452 = vunpack.c.l.b16 %v405
        %v1453 = vunpack.c.l.b16 %v406
        %v1454 = vunpack.c.l.b16 %v407
        %v1455 = vunpack.c.l.b16 %v408
        %v1456 = vunpack.c.l.b16 %v409
        %v1457 = vunpack.c.l.b16 %v410
        %v1458 = vunpack.c.l.b16 %v411
        %v1459 = vunpack.c.l.b16 %v412
        %v1460 = vunpack.c.l.b16 %v413
        %v1461 = vunpack.c.l.b16 %v414
        %v1462 = vunpack.c.l.b16 %v415
        %v1463 = vunpack.c.l.b16 %v416
        %v1464 = vunpack.c.l.b16 %v417
        %v1465 = vunpack.c.l.b16 %v418
        %v1466 = vunpack.c.l.b16 %v419
        %v1467 = vunpack.c.l.b16 %v420
        %v1468 = vunpack.c.l.b16 %v421
        %v1469 = vunpack.c.l.b16 %v422
        %v1470 = vunpack.c.l.b16 %v423
        %v1471 = vunpack.c.l.b16 %v424
        %v1472 = vunpack.c.l.b16 %v425
        %v1473 = vunpack.c.l.b16 %v426
        %v1474 = vunpack.c.l.b16 %v427
        %v1475 = vunpack.c.l.b16 %v428
        %v1476 = vunpack.c.l.b16 %v429
        %v1477 = vunpack.c.l.b16 %v430
        %v1478 = vunpack.c.l.b16 %v431
        %v1479 = vunpack.c.l.b16 %v432
        %v1480 = vunpack.c.l.b16 %v433
        %v1481 = vunpack.c.l.b16 %v434
        %v1482 = vunpack.c.l.b16 %v435
        %v1483 = vunpack.c.l.b16 %v436
        %v1484 = vunpack.c.l.b16 %v437
        %v1485 = vunpack.c.l.b16 %v438
        %v1486 = vunpack.c.l.b16 %v439
        %v1487 = vunpack.c.l.b16 %v440
        %v1488 = vunpack.c.l.b16 %v441
        %v1489 = vunpack.c.l.b16 %v442
        %v1490 = vunpack.c.l.b16 %v443
        %v1491 = vunpack.c.l.b16 %v444
        %v1492 = vunpack.c.l.b16 %v445
        %v1493 = vunpack.c.l.b16 %v446
        %v1494 = vunpack.c.l.b16 %v447
        %v1495 = vunpack.c.l.b16 %v448
        %v1496 = vunpack.c.l.b16 %v449
        %v1497 = vunpack.c.l.b16 %v450
        %v1498 = vunpack.c.l.b16 %v451
        %v1499 = vunpack.c.l.b16 %v452
        %v1500 = vunpack.c.l.b16 %v453
        %v1501 = vunpack.c.l.b16 %v454
        %v1502 = vunpack.c.l.b16 %v455
        %v1503 = vunpack.c.l.b16 %v456
        %v1504 = vunpack.c.l.b16 %v457
        %v1505 = vunpack.c.l.b16 %v458
        %v1506 = vunpack.c.l.b16 %v459
        %v1507 = vunpack.c.l.b16 %v460
        %v1508 = vunpack.c.l.b16 %v461
        %v1509 = vunpack.c.l.b16 %v462
        %v1510 = vunpack.c.l.b16 %v463
        %v1511 = vunpack.c.l.b16 %v464
        %v1512 = vunpack.c.l.b16 %v465
        %v1513 = vunpack.c.l.b16 %v466
        %v1514 = vunpack.c.l.b16 %v467
        %v1515 = vunpack.c.l.b16 %v468
        %v1516 = vunpack.c.l.b16 %v469
        %v1517 = vunpack.c.l.b16 %v470
        %v1518 = vunpack.c.l.b16 %v471
        %v1519 = vunpack.c.l.b16 %v472
        %v1520 = vunpack.c.l.b16 %v473
        %v1521 = vunpack.c.l.b16 %v474
        %v1522 = vunpack.c.l.b16 %v475
        %v1523 = vunpack.c.l.b16 %v476
        %v1524 = vunpack.c.l.b16 %v477
        %v1525 = vunpack.c.l.b16 %v478
        %v1526 = vunpack.c.l.b16 %v479
        %v1527 = vunpack.c.l.b16 %v480
        %v1528 = vunpack.c.l.b16 %v481
        %v1529 = vunpack.c.l.b16 %v482
        %v1530 = vunpack.c.l.b16 %v483
        %v1531 = vunpack.c.l.b16 %v484
        %v1532 = vunpack.c.l.b16 %v485
        %v1533 = vunpack.c.l.b16 %v486
        %v1534 = vunpack.c.l.b16 %v487
        %v1535 = vunpack.c.l.b16 %v488
        %v1536 = vunpack.c.l.b16 %v489
        %v1537 = vunpack.c.l.b16 %v490
        %v1538 = vunpack.c.l.b16 %v491
        %v1539 = vunpack.c.l.b16 %v492
        %v1540 = vunpack.c.l.b16 %v493
        %v1541 = vunpack.c.l.b16 %v494
        %v1542 = vunpack.c.l.b16 %v495
        %v1543 = vunpack.c.l.b16 %v496
        %v1544 = vunpack.c.l.b16 %v497
        %v1545 = vunpack.c.l.b16 %v498
        %v1546 = vunpack.c.l.b16 %v499
        %v1547 = vunpack.c.l.b16 %v500
        %v1548 = vunpack.c.l.b16 %v501
        %v1549 = vunpack.c.l.b16 %v502
        %v1550 = vunpack.c.l.b16 %v503
        %v1551 = vunpack.c.l.b16 %v504
        %v1552 = vunpack.c.l.b16 %v505
        %v1553 = vunpack.c.l.b16 %v506
        %v1554 = vunpack.c.l.b16 %v507
        %v1555 = vunpack.c.l.b16 %v508
        %v1556 = vunpack.c.l.b16 %v509
        %v1557 = vunpack.c.l.b16 %v510
        %v1558 = vunpack.c.l.b16 %v511
        %v1559 = vunpack.c.l.b16 %v512
        %v1560 = vunpack.c.l.b16 %v513
        %v1561 = vunpack.c.l.b16 %v514
        %v1562 = vunpack.c.l.b16 %v515
        %v1563 = vunpack.c.l.b16 %v516
        %v1564 = vunpack.c.l.b16 %v517
        %v1565 = vunpack.c.l.b16 %v518
        %v1566 = vunpack.c.l.b16 %v519
        %v1567 = vunpack.c.l.b16 %v520
        %v1568 = vunpack.c.l.b16 %v521
        %v1569 = vunpack.c.l.b16 %v522
        %v1570 = vunpack.c.l.b16 %v523
        %v1571 = vunpack.c.l.b16 %v524
        %v1572 = vunpack.c.l.b16 %v525
        %v1573 = vunpack.c.l.b16 %v526
        %v1574 = vunpack.c.l.b16 %v527
        %v1575 = vunpack.c.l.b16 %v528
        %v1576 = vunpack.c.l.b16 %v529
        %v1577 = vunpack.c.l.b16 %v530
        %v1578 = vunpack.c.l.b16 %v531
        %v1579 = vunpack.c.l.b16 %v532
        %v1580 = vunpack.c.l.b16 %v533
        %v1581 = vunpack.c.l.b16 %v534
        %v1582 = vunpack.c.l.b16 %v535
        %v1583 = vunpack.c.l.b16 %v536
        %v1584 = vunpack.c.l.b16 %v537
        %v1585 = vunpack.c.l.b16 %v538
        %v1586 = vunpack.c.l.b16 %v539
        %v1587 = vunpack.c.l.b16 %v540
        %v1588 = vunpack.c.l.b16 %v541
        %v1589 = vunpack.c.l.b16 %v542
        %v1590 = vunpack.c.l.b16 %v543
        %v1591 = vunpack.c.l.b16 %v544
        %v1592 = vunpack.c.l.b16 %v545
        %v1593 = vunpack.c.l.b16 %v546
        %v1594 = vunpack.c.l.b16 %v547
        %v1595 = vunpack.c.l.b16 %v548
        %v1596 = vunpack.c.l.b16 %v549
        %v1597 = vunpack.c.l.b16 %v550
        %v1598 = vunpack.c.l.b16 %v551
        %v1599 = vunpack.c.l.b16 %v552
        %v1600 = vunpack.c.l.b16 %v553
        %v1601 = vunpack.c.l.b16 %v554
        %v1602 = vunpack.c.l.b16 %v555
        %v1603 = vunpack.c.l.b16 %v556
        %v1604 = vunpack.c.l.b16 %v557
        %v1605 = vunpack.c.l.b16 %v558
        %v1606 = vunpack.c.l.b16 %v559
        %v1607 = vunpack.c.l.b16 %v560
        %v1608 = vunpack.c.l.b16 %v561
        %v1609 = vunpack.c.l.b16 %v562
        %v1610 = vunpack.c.l.b16 %v563
        %v1611 = vunpack.c.l.b16 %v564
        %v1612 = vunpack.c.l.b16 %v565
        %v1613 = vunpack.c.l.b16 %v566
        %v1614 = vunpack.c.l.b16 %v567
        %v1615 = vunpack.c.l.b16 %v568
        %v1616 = vunpack.c.l.b16 %v569
        %v1617 = vunpack.c.l.b16 %v570
        %v1618 = vunpack.c.l.b16 %v571
        %v1619 = vunpack.c.l.b16 %v572
        %v1620 = vunpack.c.l.b16 %v573
        %v1621 = vunpack.c.l.b16 %v574
        %v1622 = vunpack.c.l.b16 %v575
        %v1623 = vunpack.c.l.b16 %v576
        %v1624 = vunpack.c.l.b16 %v577
        %v1625 = vunpack.c.l.b16 %v578
        %v1626 = vunpack.c.l.b16 %v579
        %v1627 = vunpack.c.l.b16 %v580
        %v1628 = vunpack.c.l.b16 %v581
        %v1629 = vunpack.c.l.b16 %v582
        %v1630 = vunpack.c.l.b16 %v583
        %v1631 = vunpack.c.l.b16 %v584
        %v1632 = vunpack.c.l.b16 %v585
        %v1633 = vunpack.c.l.b16 %v586
        %v1634 = vunpack.c.l.b16 %v587
        %v1635 = vunpack.c.l.b16 %v588
        %v1636 = vunpack.c.l.b16 %v589
        %v1637 = vunpack.c.l.b16 %v590
        %v1638 = vunpack.c.l.b16 %v591
        %v1639 = vunpack.c.l.b16 %v592
        %v1640 = vunpack.c.l.b16 %v593
        %v1641 = vunpack.c.l.b16 %v594
        %v1642 = vunpack.c.l.b16 %v595
        %v1643 = vunpack.c.l.b16 %v596
        %v1644 = vunpack.c.l.b16 %v597
        %v1645 = vunpack.c.l.b16 %v598
        %v1646 = vunpack.c.l.b16 %v599
        %v1647 = vunpack.c.l.b16 %v600
        %v1648 = vunpack.c.l.b16 %v601
        %v1649 = vunpack.c.l.b16 %v602
        %v1650 = vunpack.c.l.b16 %v603
        %v1651 = vunpack.c.l.b16 %v604
        %v1652 = vunpack.c.l.b16 %v605
        %v1653 = vunpack.c.l.b16 %v606
        %v1654 = vunpack.c.l.b16 %v607
        %v1655 = vunpack.c.l.b16 %v608
        %v1656 = vunpack.c.l.b16 %v609
        %v1657 = vunpack.c.l.b16 %v610
        %v1658 = vunpack.c.l.b16 %v611
        %v1659 = vunpack.c.l.b16 %v612
        %v1660 = vunpack.c.l.b16 %v613
        %v1661 = vunpack.c.l.b16 %v614
        %v1662 = vunpack.c.l.b16 %v615
        %v1663 = vunpack.c.l.b16 %v616
        %v1664 = vunpack.c.l.b16 %v617
        %v1665 = vunpack.c.l.b16 %v618
        %v1666 = vunpack.c.l.b16 %v619
        %v1667 = vunpack.c.l.b16 %v620
        %v1668 = vunpack.c.l.b16 %v621
        %v1669 = vunpack.c.l.b16 %v622
        %v1670 = vunpack.c.l.b16 %v623
        %v1671 = vunpack.c.l.b16 %v624
        %v1672 = vunpack.c.l.b16 %v625
        %v1673 = vunpack.c.l.b16 %v626
        %v1674 = vunpack.c.l.b16 %v627
        %v1675 = vunpack.c.l.b16 %v628
        %v1676 = vunpack.c.l.b16 %v629
        %v1677 = vunpack.c.l.b16 %v630
        %v1678 = vunpack.c.l.b16 %v631
        %v1679 = vunpack.c.l.b16 %v632
        %v1680 = vunpack.c.l.b16 %v633
        %v1681 = vunpack.c.l.b16 %v634
        %v1682 = vunpack.c.l.b16 %v635
        %v1683 = vunpack.c.l.b16 %v636
        %v1684 = vunpack.c.l.b16 %v637
        %v1685 = vunpack.c.l.b16 %v638
        %v1686 = vunpack.c.l.b16 %v639
        %v1687 = vunpack.c.l.b16 %v640
        %v1688 = vunpack.c.l.b16 %v641
        %v1689 = vunpack.c.l.b16 %v642
        %v1690 = vunpack.c.l.b16 %v643
        %v1691 = vunpack.c.l.b16 %v644
        %v1692 = vunpack.c.l.b16 %v645
        %v1693 = vunpack.c.l.b16 %v646
        %v1694 = vunpack.c.l.b16 %v647
        %v1695 = vunpack.c.l.b16 %v648
        %v1696 = vunpack.c.l.b16 %v649
        %v1697 = vunpack.c.l.b16 %v650
        %v1698 = vunpack.c.l.b16 %v651
        %v1699 = vunpack.c.l.b16 %v652
        %v1700 = vunpack.c.l.b16 %v653
        %v1701 = vunpack.c.l.b16 %v654
        %v1702 = vunpack.c.l.b16 %v655
        %v1703 = vunpack.c.l.b16 %v656
        %v1704 = vunpack.c.l.b16 %v657
        %v1705 = vunpack.c.l.b16 %v658
        %v1706 = vunpack.c.l.b16 %v659
        %v1707 = vunpack.c.l.b16 %v660
        %v1708 = vunpack.c.l.b16 %v661
        %v1709 = vunpack.c.l.b16 %v662
        %v1710 = vunpack.c.l.b16 %v663
        %v1711 = vunpack.c.l.b16 %v664
        %v1712 = vunpack.c.l.b16 %v665
        %v1713 = vunpack.c.l.b16 %v666
        %v1714 = vunpack.c.l.b16 %v667
        %v1715 = vunpack.c.l.b16 %v668
        %v1716 = vunpack.c.l.b16 %v669
        %v1717 = vunpack.c.l.b16 %v670
        %v1718 = vunpack.c.l.b16 %v671
        %v1719 = vunpack.c.l.b16 %v672
        %v1720 = vunpack.c.l.b16 %v673
        %v1721 = vunpack.c.l.b16 %v674
        %v1722 = vunpack.c.l.b16 %v675
        %v1723 = vunpack.c.l.b16 %v676
        %v1724 = vunpack.c.l.b16 %v677
        %v1725 = vunpack.c.l.b16 %v678
        %v1726 = vunpack.c.l.b16 %v679
        %v1727 = vunpack.c.l.b16 %v680
        %v1728 = vunpack.c.l.b16 %v681
        %v1729 = vunpack.c.l.b16 %v682
        %v1730 = vunpack.c.l.b16 %v683
        %v1731 = vunpack.c.l.b16 %v684
        %v1732 = vunpack.c.l.b16 %v685
        %v1733 = vunpack.c.l.b16 %v686
        %v1734 = vunpack.c.l.b16 %v687
        %v1735 = vunpack.c.l.b16 %v688
        %v1736 = vunpack.c.l.b16 %v689
        %v1737 = vunpack.c.l.b16 %v690
        %v1738 = vunpack.c.l.b16 %v691
        %v1739 = vunpack.c.l.b16 %v692
        %v1740 = vunpack.c.l.b16 %v693
        %v1741 = vunpack.c.l.b16 %v694
        %v1742 = vunpack.c.l.b16 %v695
        %v1743 = vunpack.c.l.b16 %v696
        %v1744 = vunpack.c.l.b16 %v697
        %v1745 = vunpack.c.l.b16 %v698
        %v1746 = vunpack.c.l.b16 %v699
        %v1747 = vunpack.c.l.b16 %v700
        %v1748 = vunpack.c.l.b16 %v701
        %v1749 = vunpack.c.l.b16 %v702
        %v1750 = vunpack.c.l.b16 %v703
        %v1751 = vunpack.c.l.b16 %v704
        %v1752 = vunpack.c.l.b16 %v705
        %v1753 = vunpack.c.l.b16 %v706
        %v1754 = vunpack.c.l.b16 %v707
        %v1755 = vunpack.c.l.b16 %v708
        %v1756 = vunpack.c.l.b16 %v709
        %v1757 = vunpack.c.l.b16 %v710
        %v1758 = vunpack.c.l.b16 %v711
        %v1759 = vunpack.c.l.b16 %v712
        %v1760 = vunpack.c.l.b16 %v713
        %v1761 = vunpack.c.l.b16 %v714
        %v1762 = vunpack.c.l.b16 %v715
        %v1763 = vunpack.c.l.b16 %v716
        %v1764 = vunpack.c.l.b16 %v717
        %v1765 = vunpack.c.l.b16 %v718
        %v1766 = vunpack.c.l.b16 %v719
        %v1767 = vunpack.c.l.b16 %v720
        %v1768 = vunpack.c.l.b16 %v721
        %v1769 = vunpack.c.l.b16 %v722
        %v1770 = vunpack.c.l.b16 %v723
        %v1771 = vunpack.c.l.b16 %v724
        %v1772 = vunpack.c.l.b16 %v725
        %v1773 = vunpack.c.l.b16 %v726
        %v1774 = vpack.c.b16 %v1263, %v1262
        %v1775 = vpack.c.b16 %v1265, %v1264
        %v1776 = vpack.c.b16 %v1267, %v1266
        %v1777 = vpack.c.b16 %v1269, %v1268
        %v1778 = vpack.c.b16 %v1271, %v1270
        %v1779 = vpack.c.b16 %v1273, %v1272
        %v1780 = vpack.c.b16 %v1275, %v1274
        %v1781 = vpack.c.b16 %v1277, %v1276
        %v1782 = vpack.c.b16 %v1279, %v1278
        %v1783 = vpack.c.b16 %v1281, %v1280
        %v1784 = vpack.c.b16 %v1283, %v1282
        %v1785 = vpack.c.b16 %v1285, %v1284
        %v1786 = vpack.c.b16 %v1287, %v1286
        %v1787 = vpack.c.b16 %v1289, %v1288
        %v1788 = vpack.c.b16 %v1291, %v1290
        %v1789 = vpack.c.b16 %v1293, %v1292
        %v1790 = vpack.c.b16 %v1295, %v1294
        %v1791 = vpack.c.b16 %v1297, %v1296
        %v1792 = vpack.c.b16 %v1299, %v1298
        %v1793 = vpack.c.b16 %v1301, %v1300
        %v1794 = vpack.c.b16 %v1303, %v1302
        %v1795 = vpack.c.b16 %v1305, %v1304
        %v1796 = vpack.c.b16 %v1307, %v1306
        %v1797 = vpack.c.b16 %v1309, %v1308
        %v1798 = vpack.c.b16 %v1311, %v1310
        %v1799 = vpack.c.b16 %v1313, %v1312
        %v1800 = vpack.c.b16 %v1315, %v1314
        %v1801 = vpack.c.b16 %v1317, %v1316
        %v1802 = vpack.c.b16 %v1319, %v1318
        %v1803 = vpack.c.b16 %v1321, %v1320
        %v1804 = vpack.c.b16 %v1323, %v1322
        %v1805 = vpack.c.b16 %v1325, %v1324
        %v1806 = vpack.c.b16 %v1327, %v1326
        %v1807 = vpack.c.b16 %v1329, %v1328
        %v1808 = vpack.c.b16 %v1331, %v1330
        %v1809 = vpack.c.b16 %v1333, %v1332
        %v1810 = vpack.c.b16 %v1335, %v1334
        %v1811 = vpack.c.b16 %v1337, %v1336
        %v1812 = vpack.c.b16 %v1339, %v1338
        %v1813 = vpack.c.b16 %v1341, %v1340
        %v1814 = vpack.c.b16 %v1343, %v1342
        %v1815 = vpack.c.b16 %v1345, %v1344
        %v1816 = vpack.c.b16 %v1347, %v1346
        %v1817 = vpack.c.b16 %v1349, %v1348
        %v1818 = vpack.c.b16 %v1351, %v1350
        %v1819 = vpack.c.b16 %v1353, %v1352
        %v1820 = vpack.c.b16 %v1355, %v1354
        %v1821 = vpack.c.b16 %v1357, %v1356
        %v1822 = vpack.c.b16 %v1359, %v1358
        %v1823 = vpack.c.b16 %v1361, %v1360
        %v1824 = vpack.c.b16 %v1363, %v1362
        %v1825 = vpack.c.b16 %v1365, %v1364
        %v1826 = vpack.c.b16 %v1367, %v1366
        %v1827 = vpack.c.b16 %v1369, %v1368
        %v1828 = vpack.c.b16 %v1371, %v1370
        %v1829 = vpack.c.b16 %v1373, %v1372
        %v1830 = vpack.c.b16 %v1375, %v1374
        %v1831 = vpack.c.b16 %v1377, %v1376
        %v1832 = vpack.c.b16 %v1379, %v1378
        %v1833 = vpack.c.b16 %v1381, %v1380
        %v1834 = vpack.c.b16 %v1383, %v1382
        %v1835 = vpack.c.b16 %v1385, %v1384
        %v1836 = vpack.c.b16 %v1387, %v1386
        %v1837 = vpack.c.b16 %v1389, %v1388
        %v1838 = vpack.c.b16 %v1391, %v1390
        %v1839 = vpack.c.b16 %v1393, %v1392
        %v1840 = vpack.c.b16 %v1395, %v1394
        %v1841 = vpack.c.b16 %v1397, %v1396
        %v1842 = vpack.c.b16 %v1399, %v1398
        %v1843 = vpack.c.b16 %v1401, %v1400
        %v1844 = vpack.c.b16 %v1403, %v1402
        %v1845 = vpack.c.b16 %v1405, %v1404
        %v1846 = vpack.c.b16 %v1407, %v1406
        %v1847 = vpack.c.b16 %v1409, %v1408
        %v1848 = vpack.c.b16 %v1411, %v1410
        %v1849 = vpack.c.b16 %v1413, %v1412
        %v1850 = vpack.c.b16 %v1415, %v1414
        %v1851 = vpack.c.b16 %v1417, %v1416
        %v1852 = vpack.c.b16 %v1419, %v1418
        %v1853 = vpack.c.b16 %v1421, %v1420
        %v1854 = vpack.c.b16 %v1423, %v1422
        %v1855 = vpack.c.b16 %v1425, %v1424
        %v1856 = vpack.c.b16 %v1427, %v1426
        %v1857 = vpack.c.b16 %v1429, %v1428
        %v1858 = vpack.c.b16 %v1431, %v1430
        %v1859 = vpack.c.b16 %v1433, %v1432
        %v1860 = vpack.c.b16 %v1435, %v1434
        %v1861 = vpack.c.b16 %v1437, %v1436
        %v1862 = vpack.c.b16 %v1439, %v1438
        %v1863 = vpack.c.b16 %v1441, %v1440
        %v1864 = vpack.c.b16 %v1443, %v1442
        %v1865 = vpack.c.b16 %v1445, %v1444
        %v1866 = vpack.c.b16 %v1447, %v1446
        %v1867 = vpack.c.b16 %v1449, %v1448
        %v1868 = vpack.c.b16 %v1451, %v1450
        %v1869 = vpack.c.b16 %v1453, %v1452
        %v1870 = vpack.c.b16 %v1455, %v1454
        %v1871 = vpack.c.b16 %v1457, %v1456
        %v1872 = vpack.c.b16 %v1459, %v1458
        %v1873 = vpack.c.b16 %v1461, %v1460
        %v1874 = vpack.c.b16 %v1463, %v1462
        %v1875 = vpack.c.b16 %v1465, %v1464
        %v1876 = vpack.c.b16 %v1467, %v1466
        %v1877 = vpack.c.b16 %v1469, %v1468
        %v1878 = vpack.c.b16 %v1471, %v1470
        %v1879 = vpack.c.b16 %v1473, %v1472
        %v1880 = vpack.c.b16 %v1475, %v1474
        %v1881 = vpack.c.b16 %v1477, %v1476
        %v1882 = vpack.c.b16 %v1479, %v1478
        %v1883 = vpack.c.b16 %v1481, %v1480
        %v1884 = vpack.c.b16 %v1483, %v1482
        %v1885 = vpack.c.b16 %v1485, %v1484
        %v1886 = vpack.c.b16 %v1487, %v1486
        %v1887 = vpack.c.b16 %v1489, %v1488
        %v1888 = vpack.c.b16 %v1491, %v1490
        %v1889 = vpack.c.b16 %v1493, %v1492
        %v1890 = vpack.c.b16 %v1495, %v1494
        %v1891 = vpack.c.b16 %v1497, %v1496
        %v1892 = vpack.c.b16 %v1499, %v1498
        %v1893 = vpack.c.b16 %v1501, %v1500
        %v1894 = vpack.c.b16 %v1503, %v1502
        %v1895 = vpack.c.b16 %v1505, %v1504
        %v1896 = vpack.c.b16 %v1507, %v1506
        %v1897 = vpack.c.b16 %v1509, %v1508
        %v1898 = vpack.c.b16 %v1511, %v1510
        %v1899 = vpack.c.b16 %v1513, %v1512
        %v1900 = vpack.c.b16 %v1515, %v1514
        %v1901 = vpack.c.b16 %v1517, %v1516
        %v1902 = vpack.c.b16 %v1519, %v1518
        %v1903 = vpack.c.b16 %v1521, %v1520
        %v1904 = vpack.c.b16 %v1523, %v1522
        %v1905 = vpack.c.b16 %v1525, %v1524
        %v1906 = vpack.c.b16 %v1527, %v1526
        %v1907 = vpack.c.b16 %v1529, %v1528
        %v1908 = vpack.c.b16 %v1531, %v1530
        %v1909 = vpack.c.b16 %v1533, %v1532
        %v1910 = vpack.c.b16 %v1535, %v1534
        %v1911 = vpack.c.b16 %v1537, %v1536
        %v1912 = vpack.c.b16 %v1539, %v1538
        %v1913 = vpack.c.b16 %v1541, %v1540
        %v1914 = vpack.c.b16 %v1543, %v1542
        %v1915 = vpack.c.b16 %v1545, %v1544
        %v1916 = vpack.c.b16 %v1547, %v1546
        %v1917 = vpack.c.b16 %v1549, %v1548
        %v1918 = vpack.c.b16 %v1551, %v1550
        %v1919 = vpack.c.b16 %v1553, %v1552
        %v1920 = vpack.c.b16 %v1555, %v1554
        %v1921 = vpack.c.b16 %v1557, %v1556
        %v1922 = vpack.c.b16 %v1559, %v1558
        %v1923 = vpack.c.b16 %v1561, %v1560
        %v1924 = vpack.c.b16 %v1563, %v1562
        %v1925 = vpack.c.b16 %v1565, %v1564
        %v1926 = vpack.c.b16 %v1567, %v1566
        %v1927 = vpack.c.b16 %v1569, %v1568
        %v1928 = vpack.c.b16 %v1571, %v1570
        %v1929 = vpack.c.b16 %v1573, %v1572
        %v1930 = vpack.c.b16 %v1575, %v1574
        %v1931 = vpack.c.b16 %v1577, %v1576
        %v1932 = vpack.c.b16 %v1579, %v1578
        %v1933 = vpack.c.b16 %v1581, %v1580
        %v1934 = vpack.c.b16 %v1583, %v1582
        %v1935 = vpack.c.b16 %v1585, %v1584
        %v1936 = vpack.c.b16 %v1587, %v1586
        %v1937 = vpack.c.b16 %v1589, %v1588
        %v1938 = vpack.c.b16 %v1591, %v1590
        %v1939 = vpack.c.b16 %v1593, %v1592
        %v1940 = vpack.c.b16 %v1595, %v1594
        %v1941 = vpack.c.b16 %v1597, %v1596
        %v1942 = vpack.c.b16 %v1599, %v1598
        %v1943 = vpack.c.b16 %v1601, %v1600
        %v1944 = vpack.c.b16 %v1603, %v1602
        %v1945 = vpack.c.b16 %v1605, %v1604
        %v1946 = vpack.c.b16 %v1607, %v1606
        %v1947 = vpack.c.b16 %v1609, %v1608
        %v1948 = vpack.c.b16 %v1611, %v1610
        %v1949 = vpack.c.b16 %v1613, %v1612
        %v1950 = vpack.c.b16 %v1615, %v1614
        %v1951 = vpack.c.b16 %v1617, %v1616
        %v1952 = vpack.c.b16 %v1619, %v1618
        %v1953 = vpack.c.b16 %v1621, %v1620
        %v1954 = vpack.c.b16 %v1623, %v1622
        %v1955 = vpack.c.b16 %v1625, %v1624
        %v1956 = vpack.c.b16 %v1627, %v1626
        %v1957 = vpack.c.b16 %v1629, %v1628
        %v1958 = vpack.c.b16 %v1631, %v1630
        %v1959 = vpack.c.b16 %v1633, %v1632
        %v1960 = vpack.c.b16 %v1635, %v1634
        %v1961 = vpack.c.b16 %v1637, %v1636
        %v1962 = vpack.c.b16 %v1639, %v1638
        %v1963 = vpack.c.b16 %v1641, %v1640
        %v1964 = vpack.c.b16 %v1643, %v1642
        %v1965 = vpack.c.b16 %v1645, %v1644
        %v1966 = vpack.c.b16 %v1647, %v1646
        %v1967 = vpack.c.b16 %v1649, %v1648
        %v1968 = vpack.c.b16 %v1651, %v1650
        %v1969 = vpack.c.b16 %v1653, %v1652
        %v1970 = vpack.c.b16 %v1655, %v1654
        %v1971 = vpack.c.b16 %v1657, %v1656
        %v1972 = vpack.c.b16 %v1659, %v1658
        %v1973 = vpack.c.b16 %v1661, %v1660
        %v1974 = vpack.c.b16 %v1663, %v1662
        %v1975 = vpack.c.b16 %v1665, %v1664
        %v1976 = vpack.c.b16 %v1667, %v1666
        %v1977 = vpack.c.b16 %v1669, %v1668
        %v1978 = vpack.c.b16 %v1671, %v1670
        %v1979 = vpack.c.b16 %v1673, %v1672
        %v1980 = vpack.c.b16 %v1675, %v1674
        %v1981 = vpack.c.b16 %v1677, %v1676
        %v1982 = vpack.c.b16 %v1679, %v1678
        %v1983 = vpack.c.b16 %v1681, %v1680
        %v1984 = vpack.c.b16 %v1683, %v1682
        %v1985 = vpack.c.b16 %v1685, %v1684
        %v1986 = vpack.c.b16 %v1687, %v1686
        %v1987 = vpack.c.b16 %v1689, %v1688
        %v1988 = vpack.c.b16 %v1691, %v1690
        %v1989 = vpack.c.b16 %v1693, %v1692
        %v1990 = vpack.c.b16 %v1695, %v1694
        %v1991 = vpack.c.b16 %v1697, %v1696
        %v1992 = vpack.c.b16 %v1699, %v1698
        %v1993 = vpack.c.b16 %v1701, %v1700
        %v1994 = vpack.c.b16 %v1703, %v1702
        %v1995 = vpack.c.b16 %v1705, %v1704
        %v1996 = vpack.c.b16 %v1707, %v1706
        %v1997 = vpack.c.b16 %v1709, %v1708
        %v1998 = vpack.c.b16 %v1711, %v1710
        %v1999 = vpack.c.b16 %v1713, %v1712
        %v2000 = vpack.c.b16 %v1715, %v1714
        %v2001 = vpack.c.b16 %v1717, %v1716
        %v2002 = vpack.c.b16 %v1719, %v1718
        %v2003 = vpack.c.b16 %v1721, %v1720
        %v2004 = vpack.c.b16 %v1723, %v1722
        %v2005 = vpack.c.b16 %v1725, %v1724
        %v2006 = vpack.c.b16 %v1727, %v1726
        %v2007 = vpack.c.b16 %v1729, %v1728
        %v2008 = vpack.c.b16 %v1731, %v1730
        %v2009 = vpack.c.b16 %v1733, %v1732
        %v2010 = vpack.c.b16 %v1735, %v1734
        %v2011 = vpack.c.b16 %v1737, %v1736
        %v2012 = vpack.c.b16 %v1739, %v1738
        %v2013 = vpack.c.b16 %v1741, %v1740
        %v2014 = vpack.c.b16 %v1743, %v1742
        %v2015 = vpack.c.b16 %v1745, %v1744
        %v2016 = vpack.c.b16 %v1747, %v1746
        %v2017 = vpack.c.b16 %v1749, %v1748
        %v2018 = vpack.c.b16 %v1751, %v1750
        %v2019 = vpack.c.b16 %v1753, %v1752
        %v2020 = vpack.c.b16 %v1755, %v1754
        %v2021 = vpack.c.b16 %v1757, %v1756
        %v2022 = vpack.c.b16 %v1759, %v1758
        %v2023 = vpack.c.b16 %v1761, %v1760
        %v2024 = vpack.c.b16 %v1763, %v1762
        %v2025 = vpack.c.b16 %v1765, %v1764
        %v2026 = vpack.c.b16 %v1767, %v1766
        %v2027 = vpack.c.b16 %v1769, %v1768
        %v2028 = vpack.c.b16 %v1771, %v1770
        %v2029 = vpack.c.b16 %v1773, %v1772
        %v2302 = vunpack.c.l.b16 %v727
        %v2303 = vunpack.c.l.b16 %v728
        %v2304 = vunpack.c.l.b16 %v729
        %v2305 = vunpack.c.l.b16 %v730
        %v2306 = vunpack.c.l.b16 %v731
        %v2307 = vunpack.c.l.b16 %v732
        %v2308 = vunpack.c.l.b16 %v733
        %v2309 = vunpack.c.l.b16 %v734
        %v2310 = vunpack.c.l.b16 %v735
        %v2311 = vunpack.c.l.b16 %v736
        %v2312 = vunpack.c.l.b16 %v737
        %v2313 = vunpack.c.l.b16 %v738
        %v2314 = vunpack.c.l.b16 %v739
        %v2315 = vunpack.c.l.b16 %v740
        %v2316 = vunpack.c.l.b16 %v741
        %v2317 = vunpack.c.l.b16 %v742
        %v2318 = vpack.c.b16 %v2303, %v2302
        %v2319 = vpack.c.b16 %v2305, %v2304
        %v2320 = vpack.c.b16 %v2307, %v2306
        %v2321 = vpack.c.b16 %v2309, %v2308
        %v2322 = vpack.c.b16 %v2311, %v2310
        %v2323 = vpack.c.b16 %v2313, %v2312
        %v2324 = vpack.c.b16 %v2315, %v2314
        %v2325 = vpack.c.b16 %v2317, %v2316
        %2334 = vmatprep.subr.bf16.mxu0 0
        %2335 = vmatpush1.bf16.msra.mxu0 %v2318
        %2336 = vmatprep.subr.bf16.mxu0 0
        %2337 = vmatpush1.bf16.msra.mxu0 %v2319
        %2338 = vmatprep.subr.bf16.mxu0 0
        %2339 = vmatpush1.bf16.msra.mxu0 %v2320
        %2340 = vmatprep.subr.bf16.mxu0 0
        %2341 = vmatpush1.bf16.msra.mxu0 %v2321
        %2342 = vmatprep.subr.bf16.mxu0 0
        %2343 = vmatpush1.bf16.msra.mxu0 %v2322
        %2344 = vmatprep.subr.bf16.mxu0 0
        %2345 = vmatpush1.bf16.msra.mxu0 %v2323
        %2346 = vmatprep.subr.bf16.mxu0 0
        %2347 = vmatpush1.bf16.msra.mxu0 %v2324
        %2348 = vmatprep.subr.bf16.mxu0 0
        %2349 = vmatpush1.bf16.msra.mxu0 %v2325
        %2350 = vmatprep.subr.bf16.mxu0 0
        %2351 = vmatpush1.bf16.msra.mxu0 0
        %2352 = vmatprep.subr.bf16.mxu0 0
        %2353 = vmatpush1.bf16.msra.mxu0 0
        %2354 = vmatprep.subr.bf16.mxu0 0
        %2355 = vmatpush1.bf16.msra.mxu0 0
        %2356 = vmatprep.subr.bf16.mxu0 0
        %2357 = vmatpush1.bf16.msra.mxu0 0
        %2358 = vmatprep.subr.bf16.mxu0 0
        %2359 = vmatpush1.bf16.msra.mxu0 0
        %2360 = vmatprep.subr.bf16.mxu0 0
        %2361 = vmatpush1.bf16.msra.mxu0 0
        %2362 = vmatprep.subr.bf16.mxu0 0
        %2363 = vmatpush1.bf16.msra.mxu0 0
        %2364 = vmatprep.subr.bf16.mxu0 0
        %2365 = vmatpush1.bf16.msra.mxu0 0
        %2366 = vmatprep.mubr.bf16.mxu0 0
        %2367 = vmatmul.mubr.bf16.gmra.mrb[0].mxu0 %v1774
        %v2368 = vpop.f32.mrb[0].mxu0
        %v2369 = vadd.f32 %v748, %v2368
        %v2370 = vpop.f32.mrb[0].mxu0
        %v2371 = vpop.f32.mrb[0].mxu0
        %v2372 = vadd.f32 %v748, %v2371
        %v2373 = vpop.f32.mrb[0].mxu0
        %2374 = vmatprep.mubr.bf16.mxu0 0
        %2375 = vmatmul.mubr.bf16.gmra.mrb[0].mxu0 %v1775
        %v2376 = vpop.f32.mrb[0].mxu0
        %v2377 = vadd.f32 %v748, %v2376
        %v2378 = vpop.f32.mrb[0].mxu0
        %v2379 = vpop.f32.mrb[0].mxu0
        %v2380 = vadd.f32 %v748, %v2379
        %v2381 = vpop.f32.mrb[0].mxu0
        %2382 = vmatprep.mubr.bf16.mxu0 0
        %2383 = vmatmul.mubr.bf16.gmra.mrb[0].mxu0 %v1776
        %v2384 = vpop.f32.mrb[0].mxu0
        %v2385 = vadd.f32 %v748, %v2384
        %v2386 = vpop.f32.mrb[0].mxu0
        %v2387 = vpop.f32.mrb[0].mxu0
        %v2388 = vadd.f32 %v748, %v2387
        %v2389 = vpop.f32.mrb[0].mxu0
        %2390 = vmatprep.mubr.bf16.mxu0 0
        %2391 = vmatmul.mubr.bf16.gmra.mrb[0].mxu0 %v1777
        %v2392 = vpop.f32.mrb[0].mxu0
        %v2393 = vadd.f32 %v748, %v2392
        %v2394 = vpop.f32.mrb[0].mxu0
        %v2395 = vpop.f32.mrb[0].mxu0
        %v2396 = vadd.f32 %v748, %v2395
        %v2397 = vpop.f32.mrb[0].mxu0
        %2398 = vmatprep.mubr.bf16.mxu0 0
        %2399 = vmatmul.mubr.bf16.gmra.mrb[0].mxu0 %v1778
        %v2400 = vpop.f32.mrb[0].mxu0
        %v2401 = vadd.f32 %v748, %v2400
        %v2402 = vpop.f32.mrb[0].mxu0
        %v2403 = vpop.f32.mrb[0].mxu0
        %v2404 = vadd.f32 %v748, %v2403
        %v2405 = vpop.f32.mrb[0].mxu0
        %2406 = vmatprep.mubr.bf16.mxu0 0
        %2407 = vmatmul.mubr.bf16.gmra.mrb[0].mxu0 %v1779
        %v2408 = vpop.f32.mrb[0].mxu0
        %v2409 = vadd.f32 %v748, %v2408
        %v2410 = vpop.f32.mrb[0].mxu0
        %v2411 = vpop.f32.mrb[0].mxu0
        %v2412 = vadd.f32 %v748, %v2411
        %v2413 = vpop.f32.mrb[0].mxu0
        %2414 = vmatprep.mubr.bf16.mxu0 0
        %2415 = vmatmul.mubr.bf16.gmra.mrb[0].mxu0 %v1780
        %v2416 = vpop.f32.mrb[0].mxu0
        %v2417 = vadd.f32 %v748, %v2416
        %v2418 = vpop.f32.mrb[0].mxu0
        %v2419 = vpop.f32.mrb[0].mxu0
        %v2420 = vadd.f32 %v748, %v2419
        %v2421 = vpop.f32.mrb[0].mxu0
        %2422 = vmatprep.mubr.bf16.mxu0 0
        %2423 = vmatmul.mubr.bf16.gmra.mrb[0].mxu0 %v1781
        %v2424 = vpop.f32.mrb[0].mxu0
        %v2425 = vadd.f32 %v748, %v2424
        %v2426 = vpop.f32.mrb[0].mxu0
        %v2427 = vpop.f32.mrb[0].mxu0
        %v2428 = vadd.f32 %v748, %v2427
        %v2429 = vpop.f32.mrb[0].mxu0
        %2430 = vmatprep.mubr.bf16.mxu0 0
        %2431 = vmatmul.mubr.bf16.gmra.mrb[0].mxu0 %v1782
        %v2432 = vpop.f32.mrb[0].mxu0
        %v2433 = vadd.f32 %v748, %v2432
        %v2434 = vpop.f32.mrb[0].mxu0
        %v2435 = vpop.f32.mrb[0].mxu0
        %v2436 = vadd.f32 %v748, %v2435
        %v2437 = vpop.f32.mrb[0].mxu0
        %2438 = vmatprep.mubr.bf16.mxu0 0
        %2439 = vmatmul.mubr.bf16.gmra.mrb[0].mxu0 %v1783
        %v2440 = vpop.f32.mrb[0].mxu0
        %v2441 = vadd.f32 %v748, %v2440
        %v2442 = vpop.f32.mrb[0].mxu0
        %v2443 = vpop.f32.mrb[0].mxu0
        %v2444 = vadd.f32 %v748, %v2443
        %v2445 = vpop.f32.mrb[0].mxu0
        %2446 = vmatprep.mubr.bf16.mxu0 0
        %2447 = vmatmul.mubr.bf16.gmra.mrb[0].mxu0 %v1784
        %v2448 = vpop.f32.mrb[0].mxu0
        %v2449 = vadd.f32 %v748, %v2448
        %v2450 = vpop.f32.mrb[0].mxu0
        %v2451 = vpop.f32.mrb[0].mxu0
        %v2452 = vadd.f32 %v748, %v2451
        %v2453 = vpop.f32.mrb[0].mxu0
        %2454 = vmatprep.mubr.bf16.mxu0 0
        %2455 = vmatmul.mubr.bf16.gmra.mrb[0].mxu0 %v1785
        %v2456 = vpop.f32.mrb[0].mxu0
        %v2457 = vadd.f32 %v748, %v2456
        %v2458 = vpop.f32.mrb[0].mxu0
        %v2459 = vpop.f32.mrb[0].mxu0
        %v2460 = vadd.f32 %v748, %v2459
        %v2461 = vpop.f32.mrb[0].mxu0
        %2462 = vmatprep.mubr.bf16.mxu0 0
        %2463 = vmatmul.mubr.bf16.gmra.mrb[0].mxu0 %v1786
        %v2464 = vpop.f32.mrb[0].mxu0
        %v2465 = vadd.f32 %v748, %v2464
        %v2466 = vpop.f32.mrb[0].mxu0
        %v2467 = vpop.f32.mrb[0].mxu0
        %v2468 = vadd.f32 %v748, %v2467
        %v2469 = vpop.f32.mrb[0].mxu0
        %2470 = vmatprep.mubr.bf16.mxu0 0
        %2471 = vmatmul.mubr.bf16.gmra.mrb[0].mxu0 %v1787
        %v2472 = vpop.f32.mrb[0].mxu0
        %v2473 = vadd.f32 %v748, %v2472
        %v2474 = vpop.f32.mrb[0].mxu0
        %v2475 = vpop.f32.mrb[0].mxu0
        %v2476 = vadd.f32 %v748, %v2475
        %v2477 = vpop.f32.mrb[0].mxu0
        %2478 = vmatprep.mubr.bf16.mxu0 0
        %2479 = vmatmul.mubr.bf16.gmra.mrb[0].mxu0 %v1788
        %v2480 = vpop.f32.mrb[0].mxu0
        %v2481 = vadd.f32 %v748, %v2480
        %v2482 = vpop.f32.mrb[0].mxu0
        %v2483 = vpop.f32.mrb[0].mxu0
        %v2484 = vadd.f32 %v748, %v2483
        %v2485 = vpop.f32.mrb[0].mxu0
        %2486 = vmatprep.mubr.bf16.mxu0 0
        %2487 = vmatmul.mubr.bf16.gmra.mrb[0].mxu0 %v1789
        %v2488 = vpop.f32.mrb[0].mxu0
        %v2489 = vadd.f32 %v748, %v2488
        %v2490 = vpop.f32.mrb[0].mxu0
        %v2491 = vpop.f32.mrb[0].mxu0
        %v2492 = vadd.f32 %v748, %v2491
        %v2493 = vpop.f32.mrb[0].mxu0
        %2494 = vmatprep.mubr.bf16.mxu0 0
        %2495 = vmatmul.mubr.bf16.gmra.mrb[0].mxu0 %v1790
        %v2496 = vpop.f32.mrb[0].mxu0
        %v2497 = vadd.f32 %v748, %v2496
        %v2498 = vpop.f32.mrb[0].mxu0
        %v2499 = vpop.f32.mrb[0].mxu0
        %v2500 = vadd.f32 %v748, %v2499
        %v2501 = vpop.f32.mrb[0].mxu0
        %2502 = vmatprep.mubr.bf16.mxu0 0
        %2503 = vmatmul.mubr.bf16.gmra.mrb[0].mxu0 %v1791
        %v2504 = vpop.f32.mrb[0].mxu0
        %v2505 = vadd.f32 %v748, %v2504
        %v2506 = vpop.f32.mrb[0].mxu0
        %v2507 = vpop.f32.mrb[0].mxu0
        %v2508 = vadd.f32 %v748, %v2507
        %v2509 = vpop.f32.mrb[0].mxu0
        %2510 = vmatprep.mubr.bf16.mxu0 0
        %2511 = vmatmul.mubr.bf16.gmra.mrb[0].mxu0 %v1792
        %v2512 = vpop.f32.mrb[0].mxu0
        %v2513 = vadd.f32 %v748, %v2512
        %v2514 = vpop.f32.mrb[0].mxu0
        %v2515 = vpop.f32.mrb[0].mxu0
        %v2516 = vadd.f32 %v748, %v2515
        %v2517 = vpop.f32.mrb[0].mxu0
        %2518 = vmatprep.mubr.bf16.mxu0 0
        %2519 = vmatmul.mubr.bf16.gmra.mrb[0].mxu0 %v1793
        %v2520 = vpop.f32.mrb[0].mxu0
        %v2521 = vadd.f32 %v748, %v2520
        %v2522 = vpop.f32.mrb[0].mxu0
        %v2523 = vpop.f32.mrb[0].mxu0
        %v2524 = vadd.f32 %v748, %v2523
        %v2525 = vpop.f32.mrb[0].mxu0
        %2526 = vmatprep.mubr.bf16.mxu0 0
        %2527 = vmatmul.mubr.bf16.gmra.mrb[0].mxu0 %v1794
        %v2528 = vpop.f32.mrb[0].mxu0
        %v2529 = vadd.f32 %v748, %v2528
        %v2530 = vpop.f32.mrb[0].mxu0
        %v2531 = vpop.f32.mrb[0].mxu0
        %v2532 = vadd.f32 %v748, %v2531
        %v2533 = vpop.f32.mrb[0].mxu0
        %2534 = vmatprep.mubr.bf16.mxu0 0
        %2535 = vmatmul.mubr.bf16.gmra.mrb[0].mxu0 %v1795
        %v2536 = vpop.f32.mrb[0].mxu0
        %v2537 = vadd.f32 %v748, %v2536
        %v2538 = vpop.f32.mrb[0].mxu0
        %v2539 = vpop.f32.mrb[0].mxu0
        %v2540 = vadd.f32 %v748, %v2539
        %v2541 = vpop.f32.mrb[0].mxu0
        %2542 = vmatprep.mubr.bf16.mxu0 0
        %2543 = vmatmul.mubr.bf16.gmra.mrb[0].mxu0 %v1796
        %v2544 = vpop.f32.mrb[0].mxu0
        %v2545 = vadd.f32 %v748, %v2544
        %v2546 = vpop.f32.mrb[0].mxu0
        %v2547 = vpop.f32.mrb[0].mxu0
        %v2548 = vadd.f32 %v748, %v2547
        %v2549 = vpop.f32.mrb[0].mxu0
        %2550 = vmatprep.mubr.bf16.mxu0 0
        %2551 = vmatmul.mubr.bf16.gmra.mrb[0].mxu0 %v1797
        %v2552 = vpop.f32.mrb[0].mxu0
        %v2553 = vadd.f32 %v748, %v2552
        %v2554 = vpop.f32.mrb[0].mxu0
        %v2555 = vpop.f32.mrb[0].mxu0
        %v2556 = vadd.f32 %v748, %v2555
        %v2557 = vpop.f32.mrb[0].mxu0
        %2558 = vmatprep.mubr.bf16.mxu0 0
        %2559 = vmatmul.mubr.bf16.gmra.mrb[0].mxu0 %v1798
        %v2560 = vpop.f32.mrb[0].mxu0
        %v2561 = vadd.f32 %v748, %v2560
        %v2562 = vpop.f32.mrb[0].mxu0
        %v2563 = vpop.f32.mrb[0].mxu0
        %v2564 = vadd.f32 %v748, %v2563
        %v2565 = vpop.f32.mrb[0].mxu0
        %2566 = vmatprep.mubr.bf16.mxu0 0
        %2567 = vmatmul.mubr.bf16.gmra.mrb[0].mxu0 %v1799
        %v2568 = vpop.f32.mrb[0].mxu0
        %v2569 = vadd.f32 %v748, %v2568
        %v2570 = vpop.f32.mrb[0].mxu0
        %v2571 = vpop.f32.mrb[0].mxu0
        %v2572 = vadd.f32 %v748, %v2571
        %v2573 = vpop.f32.mrb[0].mxu0
        %2574 = vmatprep.mubr.bf16.mxu0 0
        %2575 = vmatmul.mubr.bf16.gmra.mrb[0].mxu0 %v1800
        %v2576 = vpop.f32.mrb[0].mxu0
        %v2577 = vadd.f32 %v748, %v2576
        %v2578 = vpop.f32.mrb[0].mxu0
        %v2579 = vpop.f32.mrb[0].mxu0
        %v2580 = vadd.f32 %v748, %v2579
        %v2581 = vpop.f32.mrb[0].mxu0
        %2582 = vmatprep.mubr.bf16.mxu0 0
        %2583 = vmatmul.mubr.bf16.gmra.mrb[0].mxu0 %v1801
        %v2584 = vpop.f32.mrb[0].mxu0
        %v2585 = vadd.f32 %v748, %v2584
        %v2586 = vpop.f32.mrb[0].mxu0
        %v2587 = vpop.f32.mrb[0].mxu0
        %v2588 = vadd.f32 %v748, %v2587
        %v2589 = vpop.f32.mrb[0].mxu0
        %2590 = vmatprep.mubr.bf16.mxu0 0
        %2591 = vmatmul.mubr.bf16.gmra.mrb[0].mxu0 %v1802
        %v2592 = vpop.f32.mrb[0].mxu0
        %v2593 = vadd.f32 %v748, %v2592
        %v2594 = vpop.f32.mrb[0].mxu0
        %v2595 = vpop.f32.mrb[0].mxu0
        %v2596 = vadd.f32 %v748, %v2595
        %v2597 = vpop.f32.mrb[0].mxu0
        %2598 = vmatprep.mubr.bf16.mxu0 0
        %2599 = vmatmul.mubr.bf16.gmra.mrb[0].mxu0 %v1803
        %v2600 = vpop.f32.mrb[0].mxu0
        %v2601 = vadd.f32 %v748, %v2600
        %v2602 = vpop.f32.mrb[0].mxu0
        %v2603 = vpop.f32.mrb[0].mxu0
        %v2604 = vadd.f32 %v748, %v2603
        %v2605 = vpop.f32.mrb[0].mxu0
        %2606 = vmatprep.mubr.bf16.mxu0 0
        %2607 = vmatmul.mubr.bf16.gmra.mrb[0].mxu0 %v1804
        %v2608 = vpop.f32.mrb[0].mxu0
        %v2609 = vadd.f32 %v748, %v2608
        %v2610 = vpop.f32.mrb[0].mxu0
        %v2611 = vpop.f32.mrb[0].mxu0
        %v2612 = vadd.f32 %v748, %v2611
        %v2613 = vpop.f32.mrb[0].mxu0
        %2614 = vmatprep.mubr.bf16.mxu0 0
        %2615 = vmatmul.mubr.bf16.gmra.mrb[0].mxu0 %v1805
        %v2616 = vpop.f32.mrb[0].mxu0
        %v2617 = vadd.f32 %v748, %v2616
        %v2618 = vpop.f32.mrb[0].mxu0
        %v2619 = vpop.f32.mrb[0].mxu0
        %v2620 = vadd.f32 %v748, %v2619
        %v2621 = vpop.f32.mrb[0].mxu0
        %2622 = vmatprep.mubr.bf16.mxu0 0
        %2623 = vmatmul.mubr.bf16.gmra.mrb[0].mxu0 %v1806
        %v2624 = vpop.f32.mrb[0].mxu0
        %v2625 = vadd.f32 %v748, %v2624
        %v2626 = vpop.f32.mrb[0].mxu0
        %v2627 = vpop.f32.mrb[0].mxu0
        %v2628 = vadd.f32 %v748, %v2627
        %v2629 = vpop.f32.mrb[0].mxu0
        %2630 = vmatprep.mubr.bf16.mxu0 0
        %2631 = vmatmul.mubr.bf16.gmra.mrb[0].mxu0 %v1807
        %v2632 = vpop.f32.mrb[0].mxu0
        %v2633 = vadd.f32 %v748, %v2632
        %v2634 = vpop.f32.mrb[0].mxu0
        %v2635 = vpop.f32.mrb[0].mxu0
        %v2636 = vadd.f32 %v748, %v2635
        %v2637 = vpop.f32.mrb[0].mxu0
        %2638 = vmatprep.mubr.bf16.mxu0 0
        %2639 = vmatmul.mubr.bf16.gmra.mrb[0].mxu0 %v1808
        %v2640 = vpop.f32.mrb[0].mxu0
        %v2641 = vadd.f32 %v748, %v2640
        %v2642 = vpop.f32.mrb[0].mxu0
        %v2643 = vpop.f32.mrb[0].mxu0
        %v2644 = vadd.f32 %v748, %v2643
        %v2645 = vpop.f32.mrb[0].mxu0
        %2646 = vmatprep.mubr.bf16.mxu0 0
        %2647 = vmatmul.mubr.bf16.gmra.mrb[0].mxu0 %v1809
        %v2648 = vpop.f32.mrb[0].mxu0
        %v2649 = vadd.f32 %v748, %v2648
        %v2650 = vpop.f32.mrb[0].mxu0
        %v2651 = vpop.f32.mrb[0].mxu0
        %v2652 = vadd.f32 %v748, %v2651
        %v2653 = vpop.f32.mrb[0].mxu0
        %2654 = vmatprep.mubr.bf16.mxu0 0
        %2655 = vmatmul.mubr.bf16.gmra.mrb[0].mxu0 %v1810
        %v2656 = vpop.f32.mrb[0].mxu0
        %v2657 = vadd.f32 %v748, %v2656
        %v2658 = vpop.f32.mrb[0].mxu0
        %v2659 = vpop.f32.mrb[0].mxu0
        %v2660 = vadd.f32 %v748, %v2659
        %v2661 = vpop.f32.mrb[0].mxu0
        %2662 = vmatprep.mubr.bf16.mxu0 0
        %2663 = vmatmul.mubr.bf16.gmra.mrb[0].mxu0 %v1811
        %v2664 = vpop.f32.mrb[0].mxu0
        %v2665 = vadd.f32 %v748, %v2664
        %v2666 = vpop.f32.mrb[0].mxu0
        %v2667 = vpop.f32.mrb[0].mxu0
        %v2668 = vadd.f32 %v748, %v2667
        %v2669 = vpop.f32.mrb[0].mxu0
        %2670 = vmatprep.mubr.bf16.mxu0 0
        %2671 = vmatmul.mubr.bf16.gmra.mrb[0].mxu0 %v1812
        %v2672 = vpop.f32.mrb[0].mxu0
        %v2673 = vadd.f32 %v748, %v2672
        %v2674 = vpop.f32.mrb[0].mxu0
        %v2675 = vpop.f32.mrb[0].mxu0
        %v2676 = vadd.f32 %v748, %v2675
        %v2677 = vpop.f32.mrb[0].mxu0
        %2678 = vmatprep.mubr.bf16.mxu0 0
        %2679 = vmatmul.mubr.bf16.gmra.mrb[0].mxu0 %v1813
        %v2680 = vpop.f32.mrb[0].mxu0
        %v2681 = vadd.f32 %v748, %v2680
        %v2682 = vpop.f32.mrb[0].mxu0
        %v2683 = vpop.f32.mrb[0].mxu0
        %v2684 = vadd.f32 %v748, %v2683
        %v2685 = vpop.f32.mrb[0].mxu0
        %2686 = vmatprep.mubr.bf16.mxu0 0
        %2687 = vmatmul.mubr.bf16.gmra.mrb[0].mxu0 %v1814
        %v2688 = vpop.f32.mrb[0].mxu0
        %v2689 = vadd.f32 %v748, %v2688
        %v2690 = vpop.f32.mrb[0].mxu0
        %v2691 = vpop.f32.mrb[0].mxu0
        %v2692 = vadd.f32 %v748, %v2691
        %v2693 = vpop.f32.mrb[0].mxu0
        %2694 = vmatprep.mubr.bf16.mxu0 0
        %2695 = vmatmul.mubr.bf16.gmra.mrb[0].mxu0 %v1815
        %v2696 = vpop.f32.mrb[0].mxu0
        %v2697 = vadd.f32 %v748, %v2696
        %v2698 = vpop.f32.mrb[0].mxu0
        %v2699 = vpop.f32.mrb[0].mxu0
        %v2700 = vadd.f32 %v748, %v2699
        %v2701 = vpop.f32.mrb[0].mxu0
        %2702 = vmatprep.mubr.bf16.mxu0 0
        %2703 = vmatmul.mubr.bf16.gmra.mrb[0].mxu0 %v1816
        %v2704 = vpop.f32.mrb[0].mxu0
        %v2705 = vadd.f32 %v748, %v2704
        %v2706 = vpop.f32.mrb[0].mxu0
        %v2707 = vpop.f32.mrb[0].mxu0
        %v2708 = vadd.f32 %v748, %v2707
        %v2709 = vpop.f32.mrb[0].mxu0
        %2710 = vmatprep.mubr.bf16.mxu0 0
        %2711 = vmatmul.mubr.bf16.gmra.mrb[0].mxu0 %v1817
        %v2712 = vpop.f32.mrb[0].mxu0
        %v2713 = vadd.f32 %v748, %v2712
        %v2714 = vpop.f32.mrb[0].mxu0
        %v2715 = vpop.f32.mrb[0].mxu0
        %v2716 = vadd.f32 %v748, %v2715
        %v2717 = vpop.f32.mrb[0].mxu0
        %2718 = vmatprep.mubr.bf16.mxu0 0
        %2719 = vmatmul.mubr.bf16.gmra.mrb[0].mxu0 %v1818
        %v2720 = vpop.f32.mrb[0].mxu0
        %v2721 = vadd.f32 %v748, %v2720
        %v2722 = vpop.f32.mrb[0].mxu0
        %v2723 = vpop.f32.mrb[0].mxu0
        %v2724 = vadd.f32 %v748, %v2723
        %v2725 = vpop.f32.mrb[0].mxu0
        %2726 = vmatprep.mubr.bf16.mxu0 0
        %2727 = vmatmul.mubr.bf16.gmra.mrb[0].mxu0 %v1819
        %v2728 = vpop.f32.mrb[0].mxu0
        %v2729 = vadd.f32 %v748, %v2728
        %v2730 = vpop.f32.mrb[0].mxu0
        %v2731 = vpop.f32.mrb[0].mxu0
        %v2732 = vadd.f32 %v748, %v2731
        %v2733 = vpop.f32.mrb[0].mxu0
        %2734 = vmatprep.mubr.bf16.mxu0 0
        %2735 = vmatmul.mubr.bf16.gmra.mrb[0].mxu0 %v1820
        %v2736 = vpop.f32.mrb[0].mxu0
        %v2737 = vadd.f32 %v748, %v2736
        %v2738 = vpop.f32.mrb[0].mxu0
        %v2739 = vpop.f32.mrb[0].mxu0
        %v2740 = vadd.f32 %v748, %v2739
        %v2741 = vpop.f32.mrb[0].mxu0
        %2742 = vmatprep.mubr.bf16.mxu0 0
        %2743 = vmatmul.mubr.bf16.gmra.mrb[0].mxu0 %v1821
        %v2744 = vpop.f32.mrb[0].mxu0
        %v2745 = vadd.f32 %v748, %v2744
        %v2746 = vpop.f32.mrb[0].mxu0
        %v2747 = vpop.f32.mrb[0].mxu0
        %v2748 = vadd.f32 %v748, %v2747
        %v2749 = vpop.f32.mrb[0].mxu0
        %2750 = vmatprep.mubr.bf16.mxu0 0
        %2751 = vmatmul.mubr.bf16.gmra.mrb[0].mxu0 %v1822
        %v2752 = vpop.f32.mrb[0].mxu0
        %v2753 = vadd.f32 %v748, %v2752
        %v2754 = vpop.f32.mrb[0].mxu0
        %v2755 = vpop.f32.mrb[0].mxu0
        %v2756 = vadd.f32 %v748, %v2755
        %v2757 = vpop.f32.mrb[0].mxu0
        %2758 = vmatprep.mubr.bf16.mxu0 0
        %2759 = vmatmul.mubr.bf16.gmra.mrb[0].mxu0 %v1823
        %v2760 = vpop.f32.mrb[0].mxu0
        %v2761 = vadd.f32 %v748, %v2760
        %v2762 = vpop.f32.mrb[0].mxu0
        %v2763 = vpop.f32.mrb[0].mxu0
        %v2764 = vadd.f32 %v748, %v2763
        %v2765 = vpop.f32.mrb[0].mxu0
        %2766 = vmatprep.mubr.bf16.mxu0 0
        %2767 = vmatmul.mubr.bf16.gmra.mrb[0].mxu0 %v1824
        %v2768 = vpop.f32.mrb[0].mxu0
        %v2769 = vadd.f32 %v748, %v2768
        %v2770 = vpop.f32.mrb[0].mxu0
        %v2771 = vpop.f32.mrb[0].mxu0
        %v2772 = vadd.f32 %v748, %v2771
        %v2773 = vpop.f32.mrb[0].mxu0
        %2774 = vmatprep.mubr.bf16.mxu0 0
        %2775 = vmatmul.mubr.bf16.gmra.mrb[0].mxu0 %v1825
        %v2776 = vpop.f32.mrb[0].mxu0
        %v2777 = vadd.f32 %v748, %v2776
        %v2778 = vpop.f32.mrb[0].mxu0
        %v2779 = vpop.f32.mrb[0].mxu0
        %v2780 = vadd.f32 %v748, %v2779
        %v2781 = vpop.f32.mrb[0].mxu0
        %2782 = vmatprep.mubr.bf16.mxu0 0
        %2783 = vmatmul.mubr.bf16.gmra.mrb[0].mxu0 %v1826
        %v2784 = vpop.f32.mrb[0].mxu0
        %v2785 = vadd.f32 %v748, %v2784
        %v2786 = vpop.f32.mrb[0].mxu0
        %v2787 = vpop.f32.mrb[0].mxu0
        %v2788 = vadd.f32 %v748, %v2787
        %v2789 = vpop.f32.mrb[0].mxu0
        %2790 = vmatprep.mubr.bf16.mxu0 0
        %2791 = vmatmul.mubr.bf16.gmra.mrb[0].mxu0 %v1827
        %v2792 = vpop.f32.mrb[0].mxu0
        %v2793 = vadd.f32 %v748, %v2792
        %v2794 = vpop.f32.mrb[0].mxu0
        %v2795 = vpop.f32.mrb[0].mxu0
        %v2796 = vadd.f32 %v748, %v2795
        %v2797 = vpop.f32.mrb[0].mxu0
        %2798 = vmatprep.mubr.bf16.mxu0 0
        %2799 = vmatmul.mubr.bf16.gmra.mrb[0].mxu0 %v1828
        %v2800 = vpop.f32.mrb[0].mxu0
        %v2801 = vadd.f32 %v748, %v2800
        %v2802 = vpop.f32.mrb[0].mxu0
        %v2803 = vpop.f32.mrb[0].mxu0
        %v2804 = vadd.f32 %v748, %v2803
        %v2805 = vpop.f32.mrb[0].mxu0
        %2806 = vmatprep.mubr.bf16.mxu0 0
        %2807 = vmatmul.mubr.bf16.gmra.mrb[0].mxu0 %v1829
        %v2808 = vpop.f32.mrb[0].mxu0
        %v2809 = vadd.f32 %v748, %v2808
        %v2810 = vpop.f32.mrb[0].mxu0
        %v2811 = vpop.f32.mrb[0].mxu0
        %v2812 = vadd.f32 %v748, %v2811
        %v2813 = vpop.f32.mrb[0].mxu0
        %2814 = vmatprep.mubr.bf16.mxu0 0
        %2815 = vmatmul.mubr.bf16.gmra.mrb[0].mxu0 %v1830
        %v2816 = vpop.f32.mrb[0].mxu0
        %v2817 = vadd.f32 %v748, %v2816
        %v2818 = vpop.f32.mrb[0].mxu0
        %v2819 = vpop.f32.mrb[0].mxu0
        %v2820 = vadd.f32 %v748, %v2819
        %v2821 = vpop.f32.mrb[0].mxu0
        %2822 = vmatprep.mubr.bf16.mxu0 0
        %2823 = vmatmul.mubr.bf16.gmra.mrb[0].mxu0 %v1831
        %v2824 = vpop.f32.mrb[0].mxu0
        %v2825 = vadd.f32 %v748, %v2824
        %v2826 = vpop.f32.mrb[0].mxu0
        %v2827 = vpop.f32.mrb[0].mxu0
        %v2828 = vadd.f32 %v748, %v2827
        %v2829 = vpop.f32.mrb[0].mxu0
        %2830 = vmatprep.mubr.bf16.mxu0 0
        %2831 = vmatmul.mubr.bf16.gmra.mrb[0].mxu0 %v1832
        %v2832 = vpop.f32.mrb[0].mxu0
        %v2833 = vadd.f32 %v748, %v2832
        %v2834 = vpop.f32.mrb[0].mxu0
        %v2835 = vpop.f32.mrb[0].mxu0
        %v2836 = vadd.f32 %v748, %v2835
        %v2837 = vpop.f32.mrb[0].mxu0
        %2838 = vmatprep.mubr.bf16.mxu0 0
        %2839 = vmatmul.mubr.bf16.gmra.mrb[0].mxu0 %v1833
        %v2840 = vpop.f32.mrb[0].mxu0
        %v2841 = vadd.f32 %v748, %v2840
        %v2842 = vpop.f32.mrb[0].mxu0
        %v2843 = vpop.f32.mrb[0].mxu0
        %v2844 = vadd.f32 %v748, %v2843
        %v2845 = vpop.f32.mrb[0].mxu0
        %2846 = vmatprep.mubr.bf16.mxu0 0
        %2847 = vmatmul.mubr.bf16.gmra.mrb[0].mxu0 %v1834
        %v2848 = vpop.f32.mrb[0].mxu0
        %v2849 = vadd.f32 %v748, %v2848
        %v2850 = vpop.f32.mrb[0].mxu0
        %v2851 = vpop.f32.mrb[0].mxu0
        %v2852 = vadd.f32 %v748, %v2851
        %v2853 = vpop.f32.mrb[0].mxu0
        %2854 = vmatprep.mubr.bf16.mxu0 0
        %2855 = vmatmul.mubr.bf16.gmra.mrb[0].mxu0 %v1835
        %v2856 = vpop.f32.mrb[0].mxu0
        %v2857 = vadd.f32 %v748, %v2856
        %v2858 = vpop.f32.mrb[0].mxu0
        %v2859 = vpop.f32.mrb[0].mxu0
        %v2860 = vadd.f32 %v748, %v2859
        %v2861 = vpop.f32.mrb[0].mxu0
        %2862 = vmatprep.mubr.bf16.mxu0 0
        %2863 = vmatmul.mubr.bf16.gmra.mrb[0].mxu0 %v1836
        %v2864 = vpop.f32.mrb[0].mxu0
        %v2865 = vadd.f32 %v748, %v2864
        %v2866 = vpop.f32.mrb[0].mxu0
        %v2867 = vpop.f32.mrb[0].mxu0
        %v2868 = vadd.f32 %v748, %v2867
        %v2869 = vpop.f32.mrb[0].mxu0
        %2870 = vmatprep.mubr.bf16.mxu0 0
        %2871 = vmatmul.mubr.bf16.gmra.mrb[0].mxu0 %v1837
        %v2872 = vpop.f32.mrb[0].mxu0
        %v2873 = vadd.f32 %v748, %v2872
        %v2874 = vpop.f32.mrb[0].mxu0
        %v2875 = vpop.f32.mrb[0].mxu0
        %v2876 = vadd.f32 %v748, %v2875
        %v2877 = vpop.f32.mrb[0].mxu0
        %2878 = vmatprep.mubr.bf16.mxu0 0
        %2879 = vmatmul.mubr.bf16.gmra.mrb[0].mxu0 %v1838
        %v2880 = vpop.f32.mrb[0].mxu0
        %v2881 = vadd.f32 %v748, %v2880
        %v2882 = vpop.f32.mrb[0].mxu0
        %v2883 = vpop.f32.mrb[0].mxu0
        %v2884 = vadd.f32 %v748, %v2883
        %v2885 = vpop.f32.mrb[0].mxu0
        %2886 = vmatprep.mubr.bf16.mxu0 0
        %2887 = vmatmul.mubr.bf16.gmra.mrb[0].mxu0 %v1839
        %v2888 = vpop.f32.mrb[0].mxu0
        %v2889 = vadd.f32 %v748, %v2888
        %v2890 = vpop.f32.mrb[0].mxu0
        %v2891 = vpop.f32.mrb[0].mxu0
        %v2892 = vadd.f32 %v748, %v2891
        %v2893 = vpop.f32.mrb[0].mxu0
        %2894 = vmatprep.mubr.bf16.mxu0 0
        %2895 = vmatmul.mubr.bf16.gmra.mrb[0].mxu0 %v1840
        %v2896 = vpop.f32.mrb[0].mxu0
        %v2897 = vadd.f32 %v748, %v2896
        %v2898 = vpop.f32.mrb[0].mxu0
        %v2899 = vpop.f32.mrb[0].mxu0
        %v2900 = vadd.f32 %v748, %v2899
        %v2901 = vpop.f32.mrb[0].mxu0
        %2902 = vmatprep.mubr.bf16.mxu0 0
        %2903 = vmatmul.mubr.bf16.gmra.mrb[0].mxu0 %v1841
        %v2904 = vpop.f32.mrb[0].mxu0
        %v2905 = vadd.f32 %v748, %v2904
        %v2906 = vpop.f32.mrb[0].mxu0
        %v2907 = vpop.f32.mrb[0].mxu0
        %v2908 = vadd.f32 %v748, %v2907
        %v2909 = vpop.f32.mrb[0].mxu0
        %2910 = vmatprep.mubr.bf16.mxu0 0
        %2911 = vmatmul.mubr.bf16.gmra.mrb[0].mxu0 %v1842
        %v2912 = vpop.f32.mrb[0].mxu0
        %v2913 = vadd.f32 %v748, %v2912
        %v2914 = vpop.f32.mrb[0].mxu0
        %v2915 = vpop.f32.mrb[0].mxu0
        %v2916 = vadd.f32 %v748, %v2915
        %v2917 = vpop.f32.mrb[0].mxu0
        %2918 = vmatprep.mubr.bf16.mxu0 0
        %2919 = vmatmul.mubr.bf16.gmra.mrb[0].mxu0 %v1843
        %v2920 = vpop.f32.mrb[0].mxu0
        %v2921 = vadd.f32 %v748, %v2920
        %v2922 = vpop.f32.mrb[0].mxu0
        %v2923 = vpop.f32.mrb[0].mxu0
        %v2924 = vadd.f32 %v748, %v2923
        %v2925 = vpop.f32.mrb[0].mxu0
        %2926 = vmatprep.mubr.bf16.mxu0 0
        %2927 = vmatmul.mubr.bf16.gmra.mrb[0].mxu0 %v1844
        %v2928 = vpop.f32.mrb[0].mxu0
        %v2929 = vadd.f32 %v748, %v2928
        %v2930 = vpop.f32.mrb[0].mxu0
        %v2931 = vpop.f32.mrb[0].mxu0
        %v2932 = vadd.f32 %v748, %v2931
        %v2933 = vpop.f32.mrb[0].mxu0
        %2934 = vmatprep.mubr.bf16.mxu0 0
        %2935 = vmatmul.mubr.bf16.gmra.mrb[0].mxu0 %v1845
        %v2936 = vpop.f32.mrb[0].mxu0
        %v2937 = vadd.f32 %v748, %v2936
        %v2938 = vpop.f32.mrb[0].mxu0
        %v2939 = vpop.f32.mrb[0].mxu0
        %v2940 = vadd.f32 %v748, %v2939
        %v2941 = vpop.f32.mrb[0].mxu0
        %2942 = vmatprep.mubr.bf16.mxu0 0
        %2943 = vmatmul.mubr.bf16.gmra.mrb[0].mxu0 %v1846
        %v2944 = vpop.f32.mrb[0].mxu0
        %v2945 = vadd.f32 %v748, %v2944
        %v2946 = vpop.f32.mrb[0].mxu0
        %v2947 = vpop.f32.mrb[0].mxu0
        %v2948 = vadd.f32 %v748, %v2947
        %v2949 = vpop.f32.mrb[0].mxu0
        %2950 = vmatprep.mubr.bf16.mxu0 0
        %2951 = vmatmul.mubr.bf16.gmra.mrb[0].mxu0 %v1847
        %v2952 = vpop.f32.mrb[0].mxu0
        %v2953 = vadd.f32 %v748, %v2952
        %v2954 = vpop.f32.mrb[0].mxu0
        %v2955 = vpop.f32.mrb[0].mxu0
        %v2956 = vadd.f32 %v748, %v2955
        %v2957 = vpop.f32.mrb[0].mxu0
        %2958 = vmatprep.mubr.bf16.mxu0 0
        %2959 = vmatmul.mubr.bf16.gmra.mrb[0].mxu0 %v1848
        %v2960 = vpop.f32.mrb[0].mxu0
        %v2961 = vadd.f32 %v748, %v2960
        %v2962 = vpop.f32.mrb[0].mxu0
        %v2963 = vpop.f32.mrb[0].mxu0
        %v2964 = vadd.f32 %v748, %v2963
        %v2965 = vpop.f32.mrb[0].mxu0
        %2966 = vmatprep.mubr.bf16.mxu0 0
        %2967 = vmatmul.mubr.bf16.gmra.mrb[0].mxu0 %v1849
        %v2968 = vpop.f32.mrb[0].mxu0
        %v2969 = vadd.f32 %v748, %v2968
        %v2970 = vpop.f32.mrb[0].mxu0
        %v2971 = vpop.f32.mrb[0].mxu0
        %v2972 = vadd.f32 %v748, %v2971
        %v2973 = vpop.f32.mrb[0].mxu0
        %2974 = vmatprep.mubr.bf16.mxu0 0
        %2975 = vmatmul.mubr.bf16.gmra.mrb[0].mxu0 %v1850
        %v2976 = vpop.f32.mrb[0].mxu0
        %v2977 = vadd.f32 %v748, %v2976
        %v2978 = vpop.f32.mrb[0].mxu0
        %v2979 = vpop.f32.mrb[0].mxu0
        %v2980 = vadd.f32 %v748, %v2979
        %v2981 = vpop.f32.mrb[0].mxu0
        %2982 = vmatprep.mubr.bf16.mxu0 0
        %2983 = vmatmul.mubr.bf16.gmra.mrb[0].mxu0 %v1851
        %v2984 = vpop.f32.mrb[0].mxu0
        %v2985 = vadd.f32 %v748, %v2984
        %v2986 = vpop.f32.mrb[0].mxu0
        %v2987 = vpop.f32.mrb[0].mxu0
        %v2988 = vadd.f32 %v748, %v2987
        %v2989 = vpop.f32.mrb[0].mxu0
        %2990 = vmatprep.mubr.bf16.mxu0 0
        %2991 = vmatmul.mubr.bf16.gmra.mrb[0].mxu0 %v1852
        %v2992 = vpop.f32.mrb[0].mxu0
        %v2993 = vadd.f32 %v748, %v2992
        %v2994 = vpop.f32.mrb[0].mxu0
        %v2995 = vpop.f32.mrb[0].mxu0
        %v2996 = vadd.f32 %v748, %v2995
        %v2997 = vpop.f32.mrb[0].mxu0
        %2998 = vmatprep.mubr.bf16.mxu0 0
        %2999 = vmatmul.mubr.bf16.gmra.mrb[0].mxu0 %v1853
        %v3000 = vpop.f32.mrb[0].mxu0
        %v3001 = vadd.f32 %v748, %v3000
        %v3002 = vpop.f32.mrb[0].mxu0
        %v3003 = vpop.f32.mrb[0].mxu0
        %v3004 = vadd.f32 %v748, %v3003
        %v3005 = vpop.f32.mrb[0].mxu0
        %3006 = vmatprep.mubr.bf16.mxu0 0
        %3007 = vmatmul.mubr.bf16.gmra.mrb[0].mxu0 %v1854
        %v3008 = vpop.f32.mrb[0].mxu0
        %v3009 = vadd.f32 %v748, %v3008
        %v3010 = vpop.f32.mrb[0].mxu0
        %v3011 = vpop.f32.mrb[0].mxu0
        %v3012 = vadd.f32 %v748, %v3011
        %v3013 = vpop.f32.mrb[0].mxu0
        %3014 = vmatprep.mubr.bf16.mxu0 0
        %3015 = vmatmul.mubr.bf16.gmra.mrb[0].mxu0 %v1855
        %v3016 = vpop.f32.mrb[0].mxu0
        %v3017 = vadd.f32 %v748, %v3016
        %v3018 = vpop.f32.mrb[0].mxu0
        %v3019 = vpop.f32.mrb[0].mxu0
        %v3020 = vadd.f32 %v748, %v3019
        %v3021 = vpop.f32.mrb[0].mxu0
        %3022 = vmatprep.mubr.bf16.mxu0 0
        %3023 = vmatmul.mubr.bf16.gmra.mrb[0].mxu0 %v1856
        %v3024 = vpop.f32.mrb[0].mxu0
        %v3025 = vadd.f32 %v748, %v3024
        %v3026 = vpop.f32.mrb[0].mxu0
        %v3027 = vpop.f32.mrb[0].mxu0
        %v3028 = vadd.f32 %v748, %v3027
        %v3029 = vpop.f32.mrb[0].mxu0
        %3030 = vmatprep.mubr.bf16.mxu0 0
        %3031 = vmatmul.mubr.bf16.gmra.mrb[0].mxu0 %v1857
        %v3032 = vpop.f32.mrb[0].mxu0
        %v3033 = vadd.f32 %v748, %v3032
        %v3034 = vpop.f32.mrb[0].mxu0
        %v3035 = vpop.f32.mrb[0].mxu0
        %v3036 = vadd.f32 %v748, %v3035
        %v3037 = vpop.f32.mrb[0].mxu0
        %3038 = vmatprep.mubr.bf16.mxu0 0
        %3039 = vmatmul.mubr.bf16.gmra.mrb[0].mxu0 %v1858
        %v3040 = vpop.f32.mrb[0].mxu0
        %v3041 = vadd.f32 %v748, %v3040
        %v3042 = vpop.f32.mrb[0].mxu0
        %v3043 = vpop.f32.mrb[0].mxu0
        %v3044 = vadd.f32 %v748, %v3043
        %v3045 = vpop.f32.mrb[0].mxu0
        %3046 = vmatprep.mubr.bf16.mxu0 0
        %3047 = vmatmul.mubr.bf16.gmra.mrb[0].mxu0 %v1859
        %v3048 = vpop.f32.mrb[0].mxu0
        %v3049 = vadd.f32 %v748, %v3048
        %v3050 = vpop.f32.mrb[0].mxu0
        %v3051 = vpop.f32.mrb[0].mxu0
        %v3052 = vadd.f32 %v748, %v3051
        %v3053 = vpop.f32.mrb[0].mxu0
        %3054 = vmatprep.mubr.bf16.mxu0 0
        %3055 = vmatmul.mubr.bf16.gmra.mrb[0].mxu0 %v1860
        %v3056 = vpop.f32.mrb[0].mxu0
        %v3057 = vadd.f32 %v748, %v3056
        %v3058 = vpop.f32.mrb[0].mxu0
        %v3059 = vpop.f32.mrb[0].mxu0
        %v3060 = vadd.f32 %v748, %v3059
        %v3061 = vpop.f32.mrb[0].mxu0
        %3062 = vmatprep.mubr.bf16.mxu0 0
        %3063 = vmatmul.mubr.bf16.gmra.mrb[0].mxu0 %v1861
        %v3064 = vpop.f32.mrb[0].mxu0
        %v3065 = vadd.f32 %v748, %v3064
        %v3066 = vpop.f32.mrb[0].mxu0
        %v3067 = vpop.f32.mrb[0].mxu0
        %v3068 = vadd.f32 %v748, %v3067
        %v3069 = vpop.f32.mrb[0].mxu0
        %3070 = vmatprep.mubr.bf16.mxu0 0
        %3071 = vmatmul.mubr.bf16.gmra.mrb[0].mxu0 %v1862
        %v3072 = vpop.f32.mrb[0].mxu0
        %v3073 = vadd.f32 %v748, %v3072
        %v3074 = vpop.f32.mrb[0].mxu0
        %v3075 = vpop.f32.mrb[0].mxu0
        %v3076 = vadd.f32 %v748, %v3075
        %v3077 = vpop.f32.mrb[0].mxu0
        %3078 = vmatprep.mubr.bf16.mxu0 0
        %3079 = vmatmul.mubr.bf16.gmra.mrb[0].mxu0 %v1863
        %v3080 = vpop.f32.mrb[0].mxu0
        %v3081 = vadd.f32 %v748, %v3080
        %v3082 = vpop.f32.mrb[0].mxu0
        %v3083 = vpop.f32.mrb[0].mxu0
        %v3084 = vadd.f32 %v748, %v3083
        %v3085 = vpop.f32.mrb[0].mxu0
        %3086 = vmatprep.mubr.bf16.mxu0 0
        %3087 = vmatmul.mubr.bf16.gmra.mrb[0].mxu0 %v1864
        %v3088 = vpop.f32.mrb[0].mxu0
        %v3089 = vadd.f32 %v748, %v3088
        %v3090 = vpop.f32.mrb[0].mxu0
        %v3091 = vpop.f32.mrb[0].mxu0
        %v3092 = vadd.f32 %v748, %v3091
        %v3093 = vpop.f32.mrb[0].mxu0
        %3094 = vmatprep.mubr.bf16.mxu0 0
        %3095 = vmatmul.mubr.bf16.gmra.mrb[0].mxu0 %v1865
        %v3096 = vpop.f32.mrb[0].mxu0
        %v3097 = vadd.f32 %v748, %v3096
        %v3098 = vpop.f32.mrb[0].mxu0
        %v3099 = vpop.f32.mrb[0].mxu0
        %v3100 = vadd.f32 %v748, %v3099
        %v3101 = vpop.f32.mrb[0].mxu0
        %3102 = vmatprep.mubr.bf16.mxu0 0
        %3103 = vmatmul.mubr.bf16.gmra.mrb[0].mxu0 %v1866
        %v3104 = vpop.f32.mrb[0].mxu0
        %v3105 = vadd.f32 %v748, %v3104
        %v3106 = vpop.f32.mrb[0].mxu0
        %v3107 = vpop.f32.mrb[0].mxu0
        %v3108 = vadd.f32 %v748, %v3107
        %v3109 = vpop.f32.mrb[0].mxu0
        %3110 = vmatprep.mubr.bf16.mxu0 0
        %3111 = vmatmul.mubr.bf16.gmra.mrb[0].mxu0 %v1867
        %v3112 = vpop.f32.mrb[0].mxu0
        %v3113 = vadd.f32 %v748, %v3112
        %v3114 = vpop.f32.mrb[0].mxu0
        %v3115 = vpop.f32.mrb[0].mxu0
        %v3116 = vadd.f32 %v748, %v3115
        %v3117 = vpop.f32.mrb[0].mxu0
        %3118 = vmatprep.mubr.bf16.mxu0 0
        %3119 = vmatmul.mubr.bf16.gmra.mrb[0].mxu0 %v1868
        %v3120 = vpop.f32.mrb[0].mxu0
        %v3121 = vadd.f32 %v748, %v3120
        %v3122 = vpop.f32.mrb[0].mxu0
        %v3123 = vpop.f32.mrb[0].mxu0
        %v3124 = vadd.f32 %v748, %v3123
        %v3125 = vpop.f32.mrb[0].mxu0
        %3126 = vmatprep.mubr.bf16.mxu0 0
        %3127 = vmatmul.mubr.bf16.gmra.mrb[0].mxu0 %v1869
        %v3128 = vpop.f32.mrb[0].mxu0
        %v3129 = vadd.f32 %v748, %v3128
        %v3130 = vpop.f32.mrb[0].mxu0
        %v3131 = vpop.f32.mrb[0].mxu0
        %v3132 = vadd.f32 %v748, %v3131
        %v3133 = vpop.f32.mrb[0].mxu0
        %3134 = vmatprep.mubr.bf16.mxu0 0
        %3135 = vmatmul.mubr.bf16.gmra.mrb[0].mxu0 %v1870
        %v3136 = vpop.f32.mrb[0].mxu0
        %v3137 = vadd.f32 %v748, %v3136
        %v3138 = vpop.f32.mrb[0].mxu0
        %v3139 = vpop.f32.mrb[0].mxu0
        %v3140 = vadd.f32 %v748, %v3139
        %v3141 = vpop.f32.mrb[0].mxu0
        %3142 = vmatprep.mubr.bf16.mxu0 0
        %3143 = vmatmul.mubr.bf16.gmra.mrb[0].mxu0 %v1871
        %v3144 = vpop.f32.mrb[0].mxu0
        %v3145 = vadd.f32 %v748, %v3144
        %v3146 = vpop.f32.mrb[0].mxu0
        %v3147 = vpop.f32.mrb[0].mxu0
        %v3148 = vadd.f32 %v748, %v3147
        %v3149 = vpop.f32.mrb[0].mxu0
        %3150 = vmatprep.mubr.bf16.mxu0 0
        %3151 = vmatmul.mubr.bf16.gmra.mrb[0].mxu0 %v1872
        %v3152 = vpop.f32.mrb[0].mxu0
        %v3153 = vadd.f32 %v748, %v3152
        %v3154 = vpop.f32.mrb[0].mxu0
        %v3155 = vpop.f32.mrb[0].mxu0
        %v3156 = vadd.f32 %v748, %v3155
        %v3157 = vpop.f32.mrb[0].mxu0
        %3158 = vmatprep.mubr.bf16.mxu0 0
        %3159 = vmatmul.mubr.bf16.gmra.mrb[0].mxu0 %v1873
        %v3160 = vpop.f32.mrb[0].mxu0
        %v3161 = vadd.f32 %v748, %v3160
        %v3162 = vpop.f32.mrb[0].mxu0
        %v3163 = vpop.f32.mrb[0].mxu0
        %v3164 = vadd.f32 %v748, %v3163
        %v3165 = vpop.f32.mrb[0].mxu0
        %3166 = vmatprep.mubr.bf16.mxu0 0
        %3167 = vmatmul.mubr.bf16.gmra.mrb[0].mxu0 %v1874
        %v3168 = vpop.f32.mrb[0].mxu0
        %v3169 = vadd.f32 %v748, %v3168
        %v3170 = vpop.f32.mrb[0].mxu0
        %v3171 = vpop.f32.mrb[0].mxu0
        %v3172 = vadd.f32 %v748, %v3171
        %v3173 = vpop.f32.mrb[0].mxu0
        %3174 = vmatprep.mubr.bf16.mxu0 0
        %3175 = vmatmul.mubr.bf16.gmra.mrb[0].mxu0 %v1875
        %v3176 = vpop.f32.mrb[0].mxu0
        %v3177 = vadd.f32 %v748, %v3176
        %v3178 = vpop.f32.mrb[0].mxu0
        %v3179 = vpop.f32.mrb[0].mxu0
        %v3180 = vadd.f32 %v748, %v3179
        %v3181 = vpop.f32.mrb[0].mxu0
        %3182 = vmatprep.mubr.bf16.mxu0 0
        %3183 = vmatmul.mubr.bf16.gmra.mrb[0].mxu0 %v1876
        %v3184 = vpop.f32.mrb[0].mxu0
        %v3185 = vadd.f32 %v748, %v3184
        %v3186 = vpop.f32.mrb[0].mxu0
        %v3187 = vpop.f32.mrb[0].mxu0
        %v3188 = vadd.f32 %v748, %v3187
        %v3189 = vpop.f32.mrb[0].mxu0
        %3190 = vmatprep.mubr.bf16.mxu0 0
        %3191 = vmatmul.mubr.bf16.gmra.mrb[0].mxu0 %v1877
        %v3192 = vpop.f32.mrb[0].mxu0
        %v3193 = vadd.f32 %v748, %v3192
        %v3194 = vpop.f32.mrb[0].mxu0
        %v3195 = vpop.f32.mrb[0].mxu0
        %v3196 = vadd.f32 %v748, %v3195
        %v3197 = vpop.f32.mrb[0].mxu0
        %3198 = vmatprep.mubr.bf16.mxu0 0
        %3199 = vmatmul.mubr.bf16.gmra.mrb[0].mxu0 %v1878
        %v3200 = vpop.f32.mrb[0].mxu0
        %v3201 = vadd.f32 %v748, %v3200
        %v3202 = vpop.f32.mrb[0].mxu0
        %v3203 = vpop.f32.mrb[0].mxu0
        %v3204 = vadd.f32 %v748, %v3203
        %v3205 = vpop.f32.mrb[0].mxu0
        %3206 = vmatprep.mubr.bf16.mxu0 0
        %3207 = vmatmul.mubr.bf16.gmra.mrb[0].mxu0 %v1879
        %v3208 = vpop.f32.mrb[0].mxu0
        %v3209 = vadd.f32 %v748, %v3208
        %v3210 = vpop.f32.mrb[0].mxu0
        %v3211 = vpop.f32.mrb[0].mxu0
        %v3212 = vadd.f32 %v748, %v3211
        %v3213 = vpop.f32.mrb[0].mxu0
        %3214 = vmatprep.mubr.bf16.mxu0 0
        %3215 = vmatmul.mubr.bf16.gmra.mrb[0].mxu0 %v1880
        %v3216 = vpop.f32.mrb[0].mxu0
        %v3217 = vadd.f32 %v748, %v3216
        %v3218 = vpop.f32.mrb[0].mxu0
        %v3219 = vpop.f32.mrb[0].mxu0
        %v3220 = vadd.f32 %v748, %v3219
        %v3221 = vpop.f32.mrb[0].mxu0
        %3222 = vmatprep.mubr.bf16.mxu0 0
        %3223 = vmatmul.mubr.bf16.gmra.mrb[0].mxu0 %v1881
        %v3224 = vpop.f32.mrb[0].mxu0
        %v3225 = vadd.f32 %v748, %v3224
        %v3226 = vpop.f32.mrb[0].mxu0
        %v3227 = vpop.f32.mrb[0].mxu0
        %v3228 = vadd.f32 %v748, %v3227
        %v3229 = vpop.f32.mrb[0].mxu0
        %3230 = vmatprep.mubr.bf16.mxu0 0
        %3231 = vmatmul.mubr.bf16.gmra.mrb[0].mxu0 %v1882
        %v3232 = vpop.f32.mrb[0].mxu0
        %v3233 = vadd.f32 %v748, %v3232
        %v3234 = vpop.f32.mrb[0].mxu0
        %v3235 = vpop.f32.mrb[0].mxu0
        %v3236 = vadd.f32 %v748, %v3235
        %v3237 = vpop.f32.mrb[0].mxu0
        %3238 = vmatprep.mubr.bf16.mxu0 0
        %3239 = vmatmul.mubr.bf16.gmra.mrb[0].mxu0 %v1883
        %v3240 = vpop.f32.mrb[0].mxu0
        %v3241 = vadd.f32 %v748, %v3240
        %v3242 = vpop.f32.mrb[0].mxu0
        %v3243 = vpop.f32.mrb[0].mxu0
        %v3244 = vadd.f32 %v748, %v3243
        %v3245 = vpop.f32.mrb[0].mxu0
        %3246 = vmatprep.mubr.bf16.mxu0 0
        %3247 = vmatmul.mubr.bf16.gmra.mrb[0].mxu0 %v1884
        %v3248 = vpop.f32.mrb[0].mxu0
        %v3249 = vadd.f32 %v748, %v3248
        %v3250 = vpop.f32.mrb[0].mxu0
        %v3251 = vpop.f32.mrb[0].mxu0
        %v3252 = vadd.f32 %v748, %v3251
        %v3253 = vpop.f32.mrb[0].mxu0
        %3254 = vmatprep.mubr.bf16.mxu0 0
        %3255 = vmatmul.mubr.bf16.gmra.mrb[0].mxu0 %v1885
        %v3256 = vpop.f32.mrb[0].mxu0
        %v3257 = vadd.f32 %v748, %v3256
        %v3258 = vpop.f32.mrb[0].mxu0
        %v3259 = vpop.f32.mrb[0].mxu0
        %v3260 = vadd.f32 %v748, %v3259
        %v3261 = vpop.f32.mrb[0].mxu0
        %3262 = vmatprep.mubr.bf16.mxu0 0
        %3263 = vmatmul.mubr.bf16.gmra.mrb[0].mxu0 %v1886
        %v3264 = vpop.f32.mrb[0].mxu0
        %v3265 = vadd.f32 %v748, %v3264
        %v3266 = vpop.f32.mrb[0].mxu0
        %v3267 = vpop.f32.mrb[0].mxu0
        %v3268 = vadd.f32 %v748, %v3267
        %v3269 = vpop.f32.mrb[0].mxu0
        %3270 = vmatprep.mubr.bf16.mxu0 0
        %3271 = vmatmul.mubr.bf16.gmra.mrb[0].mxu0 %v1887
        %v3272 = vpop.f32.mrb[0].mxu0
        %v3273 = vadd.f32 %v748, %v3272
        %v3274 = vpop.f32.mrb[0].mxu0
        %v3275 = vpop.f32.mrb[0].mxu0
        %v3276 = vadd.f32 %v748, %v3275
        %v3277 = vpop.f32.mrb[0].mxu0
        %3278 = vmatprep.mubr.bf16.mxu0 0
        %3279 = vmatmul.mubr.bf16.gmra.mrb[0].mxu0 %v1888
        %v3280 = vpop.f32.mrb[0].mxu0
        %v3281 = vadd.f32 %v748, %v3280
        %v3282 = vpop.f32.mrb[0].mxu0
        %v3283 = vpop.f32.mrb[0].mxu0
        %v3284 = vadd.f32 %v748, %v3283
        %v3285 = vpop.f32.mrb[0].mxu0
        %3286 = vmatprep.mubr.bf16.mxu0 0
        %3287 = vmatmul.mubr.bf16.gmra.mrb[0].mxu0 %v1889
        %v3288 = vpop.f32.mrb[0].mxu0
        %v3289 = vadd.f32 %v748, %v3288
        %v3290 = vpop.f32.mrb[0].mxu0
        %v3291 = vpop.f32.mrb[0].mxu0
        %v3292 = vadd.f32 %v748, %v3291
        %v3293 = vpop.f32.mrb[0].mxu0
        %3294 = vmatprep.mubr.bf16.mxu0 0
        %3295 = vmatmul.mubr.bf16.gmra.mrb[0].mxu0 %v1890
        %v3296 = vpop.f32.mrb[0].mxu0
        %v3297 = vadd.f32 %v748, %v3296
        %v3298 = vpop.f32.mrb[0].mxu0
        %v3299 = vpop.f32.mrb[0].mxu0
        %v3300 = vadd.f32 %v748, %v3299
        %v3301 = vpop.f32.mrb[0].mxu0
        %3302 = vmatprep.mubr.bf16.mxu0 0
        %3303 = vmatmul.mubr.bf16.gmra.mrb[0].mxu0 %v1891
        %v3304 = vpop.f32.mrb[0].mxu0
        %v3305 = vadd.f32 %v748, %v3304
        %v3306 = vpop.f32.mrb[0].mxu0
        %v3307 = vpop.f32.mrb[0].mxu0
        %v3308 = vadd.f32 %v748, %v3307
        %v3309 = vpop.f32.mrb[0].mxu0
        %3310 = vmatprep.mubr.bf16.mxu0 0
        %3311 = vmatmul.mubr.bf16.gmra.mrb[0].mxu0 %v1892
        %v3312 = vpop.f32.mrb[0].mxu0
        %v3313 = vadd.f32 %v748, %v3312
        %v3314 = vpop.f32.mrb[0].mxu0
        %v3315 = vpop.f32.mrb[0].mxu0
        %v3316 = vadd.f32 %v748, %v3315
        %v3317 = vpop.f32.mrb[0].mxu0
        %3318 = vmatprep.mubr.bf16.mxu0 0
        %3319 = vmatmul.mubr.bf16.gmra.mrb[0].mxu0 %v1893
        %v3320 = vpop.f32.mrb[0].mxu0
        %v3321 = vadd.f32 %v748, %v3320
        %v3322 = vpop.f32.mrb[0].mxu0
        %v3323 = vpop.f32.mrb[0].mxu0
        %v3324 = vadd.f32 %v748, %v3323
        %v3325 = vpop.f32.mrb[0].mxu0
        %3326 = vmatprep.mubr.bf16.mxu0 0
        %3327 = vmatmul.mubr.bf16.gmra.mrb[0].mxu0 %v1894
        %v3328 = vpop.f32.mrb[0].mxu0
        %v3329 = vadd.f32 %v748, %v3328
        %v3330 = vpop.f32.mrb[0].mxu0
        %v3331 = vpop.f32.mrb[0].mxu0
        %v3332 = vadd.f32 %v748, %v3331
        %v3333 = vpop.f32.mrb[0].mxu0
        %3334 = vmatprep.mubr.bf16.mxu0 0
        %3335 = vmatmul.mubr.bf16.gmra.mrb[0].mxu0 %v1895
        %v3336 = vpop.f32.mrb[0].mxu0
        %v3337 = vadd.f32 %v748, %v3336
        %v3338 = vpop.f32.mrb[0].mxu0
        %v3339 = vpop.f32.mrb[0].mxu0
        %v3340 = vadd.f32 %v748, %v3339
        %v3341 = vpop.f32.mrb[0].mxu0
        %3342 = vmatprep.mubr.bf16.mxu0 0
        %3343 = vmatmul.mubr.bf16.gmra.mrb[0].mxu0 %v1896
        %v3344 = vpop.f32.mrb[0].mxu0
        %v3345 = vadd.f32 %v748, %v3344
        %v3346 = vpop.f32.mrb[0].mxu0
        %v3347 = vpop.f32.mrb[0].mxu0
        %v3348 = vadd.f32 %v748, %v3347
        %v3349 = vpop.f32.mrb[0].mxu0
        %3350 = vmatprep.mubr.bf16.mxu0 0
        %3351 = vmatmul.mubr.bf16.gmra.mrb[0].mxu0 %v1897
        %v3352 = vpop.f32.mrb[0].mxu0
        %v3353 = vadd.f32 %v748, %v3352
        %v3354 = vpop.f32.mrb[0].mxu0
        %v3355 = vpop.f32.mrb[0].mxu0
        %v3356 = vadd.f32 %v748, %v3355
        %v3357 = vpop.f32.mrb[0].mxu0
        %3358 = vmatprep.mubr.bf16.mxu0 0
        %3359 = vmatmul.mubr.bf16.gmra.mrb[0].mxu0 %v1898
        %v3360 = vpop.f32.mrb[0].mxu0
        %v3361 = vadd.f32 %v748, %v3360
        %v3362 = vpop.f32.mrb[0].mxu0
        %v3363 = vpop.f32.mrb[0].mxu0
        %v3364 = vadd.f32 %v748, %v3363
        %v3365 = vpop.f32.mrb[0].mxu0
        %3366 = vmatprep.mubr.bf16.mxu0 0
        %3367 = vmatmul.mubr.bf16.gmra.mrb[0].mxu0 %v1899
        %v3368 = vpop.f32.mrb[0].mxu0
        %v3369 = vadd.f32 %v748, %v3368
        %v3370 = vpop.f32.mrb[0].mxu0
        %v3371 = vpop.f32.mrb[0].mxu0
        %v3372 = vadd.f32 %v748, %v3371
        %v3373 = vpop.f32.mrb[0].mxu0
        %3374 = vmatprep.mubr.bf16.mxu0 0
        %3375 = vmatmul.mubr.bf16.gmra.mrb[0].mxu0 %v1900
        %v3376 = vpop.f32.mrb[0].mxu0
        %v3377 = vadd.f32 %v748, %v3376
        %v3378 = vpop.f32.mrb[0].mxu0
        %v3379 = vpop.f32.mrb[0].mxu0
        %v3380 = vadd.f32 %v748, %v3379
        %v3381 = vpop.f32.mrb[0].mxu0
        %3382 = vmatprep.mubr.bf16.mxu0 0
        %3383 = vmatmul.mubr.bf16.gmra.mrb[0].mxu0 %v1901
        %v3384 = vpop.f32.mrb[0].mxu0
        %v3385 = vadd.f32 %v748, %v3384
        %v3386 = vpop.f32.mrb[0].mxu0
        %v3387 = vpop.f32.mrb[0].mxu0
        %v3388 = vadd.f32 %v748, %v3387
        %v3389 = vpop.f32.mrb[0].mxu0
        %3390 = vmatprep.mubr.bf16.mxu0 0
        %3391 = vmatmul.mubr.bf16.gmra.mrb[0].mxu0 %v1902
        %v3392 = vpop.f32.mrb[0].mxu0
        %v3393 = vadd.f32 %v748, %v3392
        %v3394 = vpop.f32.mrb[0].mxu0
        %v3395 = vpop.f32.mrb[0].mxu0
        %v3396 = vadd.f32 %v748, %v3395
        %v3397 = vpop.f32.mrb[0].mxu0
        %3398 = vmatprep.mubr.bf16.mxu0 0
        %3399 = vmatmul.mubr.bf16.gmra.mrb[0].mxu0 %v1903
        %v3400 = vpop.f32.mrb[0].mxu0
        %v3401 = vadd.f32 %v748, %v3400
        %v3402 = vpop.f32.mrb[0].mxu0
        %v3403 = vpop.f32.mrb[0].mxu0
        %v3404 = vadd.f32 %v748, %v3403
        %v3405 = vpop.f32.mrb[0].mxu0
        %3406 = vmatprep.mubr.bf16.mxu0 0
        %3407 = vmatmul.mubr.bf16.gmra.mrb[0].mxu0 %v1904
        %v3408 = vpop.f32.mrb[0].mxu0
        %v3409 = vadd.f32 %v748, %v3408
        %v3410 = vpop.f32.mrb[0].mxu0
        %v3411 = vpop.f32.mrb[0].mxu0
        %v3412 = vadd.f32 %v748, %v3411
        %v3413 = vpop.f32.mrb[0].mxu0
        %3414 = vmatprep.mubr.bf16.mxu0 0
        %3415 = vmatmul.mubr.bf16.gmra.mrb[0].mxu0 %v1905
        %v3416 = vpop.f32.mrb[0].mxu0
        %v3417 = vadd.f32 %v748, %v3416
        %v3418 = vpop.f32.mrb[0].mxu0
        %v3419 = vpop.f32.mrb[0].mxu0
        %v3420 = vadd.f32 %v748, %v3419
        %v3421 = vpop.f32.mrb[0].mxu0
        %3422 = vmatprep.mubr.bf16.mxu0 0
        %3423 = vmatmul.mubr.bf16.gmra.mrb[0].mxu0 %v1906
        %v3424 = vpop.f32.mrb[0].mxu0
        %v3425 = vadd.f32 %v748, %v3424
        %v3426 = vpop.f32.mrb[0].mxu0
        %v3427 = vpop.f32.mrb[0].mxu0
        %v3428 = vadd.f32 %v748, %v3427
        %v3429 = vpop.f32.mrb[0].mxu0
        %3430 = vmatprep.mubr.bf16.mxu0 0
        %3431 = vmatmul.mubr.bf16.gmra.mrb[0].mxu0 %v1907
        %v3432 = vpop.f32.mrb[0].mxu0
        %v3433 = vadd.f32 %v748, %v3432
        %v3434 = vpop.f32.mrb[0].mxu0
        %v3435 = vpop.f32.mrb[0].mxu0
        %v3436 = vadd.f32 %v748, %v3435
        %v3437 = vpop.f32.mrb[0].mxu0
        %3438 = vmatprep.mubr.bf16.mxu0 0
        %3439 = vmatmul.mubr.bf16.gmra.mrb[0].mxu0 %v1908
        %v3440 = vpop.f32.mrb[0].mxu0
        %v3441 = vadd.f32 %v748, %v3440
        %v3442 = vpop.f32.mrb[0].mxu0
        %v3443 = vpop.f32.mrb[0].mxu0
        %v3444 = vadd.f32 %v748, %v3443
        %v3445 = vpop.f32.mrb[0].mxu0
        %3446 = vmatprep.mubr.bf16.mxu0 0
        %3447 = vmatmul.mubr.bf16.gmra.mrb[0].mxu0 %v1909
        %v3448 = vpop.f32.mrb[0].mxu0
        %v3449 = vadd.f32 %v748, %v3448
        %v3450 = vpop.f32.mrb[0].mxu0
        %v3451 = vpop.f32.mrb[0].mxu0
        %v3452 = vadd.f32 %v748, %v3451
        %v3453 = vpop.f32.mrb[0].mxu0
        %3454 = vmatprep.mubr.bf16.mxu0 0
        %3455 = vmatmul.mubr.bf16.gmra.mrb[0].mxu0 %v1910
        %v3456 = vpop.f32.mrb[0].mxu0
        %v3457 = vadd.f32 %v748, %v3456
        %v3458 = vpop.f32.mrb[0].mxu0
        %v3459 = vpop.f32.mrb[0].mxu0
        %v3460 = vadd.f32 %v748, %v3459
        %v3461 = vpop.f32.mrb[0].mxu0
        %3462 = vmatprep.mubr.bf16.mxu0 0
        %3463 = vmatmul.mubr.bf16.gmra.mrb[0].mxu0 %v1911
        %v3464 = vpop.f32.mrb[0].mxu0
        %v3465 = vadd.f32 %v748, %v3464
        %v3466 = vpop.f32.mrb[0].mxu0
        %v3467 = vpop.f32.mrb[0].mxu0
        %v3468 = vadd.f32 %v748, %v3467
        %v3469 = vpop.f32.mrb[0].mxu0
        %3470 = vmatprep.mubr.bf16.mxu0 0
        %3471 = vmatmul.mubr.bf16.gmra.mrb[0].mxu0 %v1912
        %v3472 = vpop.f32.mrb[0].mxu0
        %v3473 = vadd.f32 %v748, %v3472
        %v3474 = vpop.f32.mrb[0].mxu0
        %v3475 = vpop.f32.mrb[0].mxu0
        %v3476 = vadd.f32 %v748, %v3475
        %v3477 = vpop.f32.mrb[0].mxu0
        %3478 = vmatprep.mubr.bf16.mxu0 0
        %3479 = vmatmul.mubr.bf16.gmra.mrb[0].mxu0 %v1913
        %v3480 = vpop.f32.mrb[0].mxu0
        %v3481 = vadd.f32 %v748, %v3480
        %v3482 = vpop.f32.mrb[0].mxu0
        %v3483 = vpop.f32.mrb[0].mxu0
        %v3484 = vadd.f32 %v748, %v3483
        %v3485 = vpop.f32.mrb[0].mxu0
        %3486 = vmatprep.mubr.bf16.mxu0 0
        %3487 = vmatmul.mubr.bf16.gmra.mrb[0].mxu0 %v1914
        %v3488 = vpop.f32.mrb[0].mxu0
        %v3489 = vadd.f32 %v748, %v3488
        %v3490 = vpop.f32.mrb[0].mxu0
        %v3491 = vpop.f32.mrb[0].mxu0
        %v3492 = vadd.f32 %v748, %v3491
        %v3493 = vpop.f32.mrb[0].mxu0
        %3494 = vmatprep.mubr.bf16.mxu0 0
        %3495 = vmatmul.mubr.bf16.gmra.mrb[0].mxu0 %v1915
        %v3496 = vpop.f32.mrb[0].mxu0
        %v3497 = vadd.f32 %v748, %v3496
        %v3498 = vpop.f32.mrb[0].mxu0
        %v3499 = vpop.f32.mrb[0].mxu0
        %v3500 = vadd.f32 %v748, %v3499
        %v3501 = vpop.f32.mrb[0].mxu0
        %3502 = vmatprep.mubr.bf16.mxu0 0
        %3503 = vmatmul.mubr.bf16.gmra.mrb[0].mxu0 %v1916
        %v3504 = vpop.f32.mrb[0].mxu0
        %v3505 = vadd.f32 %v748, %v3504
        %v3506 = vpop.f32.mrb[0].mxu0
        %v3507 = vpop.f32.mrb[0].mxu0
        %v3508 = vadd.f32 %v748, %v3507
        %v3509 = vpop.f32.mrb[0].mxu0
        %3510 = vmatprep.mubr.bf16.mxu0 0
        %3511 = vmatmul.mubr.bf16.gmra.mrb[0].mxu0 %v1917
        %v3512 = vpop.f32.mrb[0].mxu0
        %v3513 = vadd.f32 %v748, %v3512
        %v3514 = vpop.f32.mrb[0].mxu0
        %v3515 = vpop.f32.mrb[0].mxu0
        %v3516 = vadd.f32 %v748, %v3515
        %v3517 = vpop.f32.mrb[0].mxu0
        %3518 = vmatprep.mubr.bf16.mxu0 0
        %3519 = vmatmul.mubr.bf16.gmra.mrb[0].mxu0 %v1918
        %v3520 = vpop.f32.mrb[0].mxu0
        %v3521 = vadd.f32 %v748, %v3520
        %v3522 = vpop.f32.mrb[0].mxu0
        %v3523 = vpop.f32.mrb[0].mxu0
        %v3524 = vadd.f32 %v748, %v3523
        %v3525 = vpop.f32.mrb[0].mxu0
        %3526 = vmatprep.mubr.bf16.mxu0 0
        %3527 = vmatmul.mubr.bf16.gmra.mrb[0].mxu0 %v1919
        %v3528 = vpop.f32.mrb[0].mxu0
        %v3529 = vadd.f32 %v748, %v3528
        %v3530 = vpop.f32.mrb[0].mxu0
        %v3531 = vpop.f32.mrb[0].mxu0
        %v3532 = vadd.f32 %v748, %v3531
        %v3533 = vpop.f32.mrb[0].mxu0
        %3534 = vmatprep.mubr.bf16.mxu0 0
        %3535 = vmatmul.mubr.bf16.gmra.mrb[0].mxu0 %v1920
        %v3536 = vpop.f32.mrb[0].mxu0
        %v3537 = vadd.f32 %v748, %v3536
        %v3538 = vpop.f32.mrb[0].mxu0
        %v3539 = vpop.f32.mrb[0].mxu0
        %v3540 = vadd.f32 %v748, %v3539
        %v3541 = vpop.f32.mrb[0].mxu0
        %3542 = vmatprep.mubr.bf16.mxu0 0
        %3543 = vmatmul.mubr.bf16.gmra.mrb[0].mxu0 %v1921
        %v3544 = vpop.f32.mrb[0].mxu0
        %v3545 = vadd.f32 %v748, %v3544
        %v3546 = vpop.f32.mrb[0].mxu0
        %v3547 = vpop.f32.mrb[0].mxu0
        %v3548 = vadd.f32 %v748, %v3547
        %v3549 = vpop.f32.mrb[0].mxu0
        %3550 = vmatprep.mubr.bf16.mxu0 0
        %3551 = vmatmul.mubr.bf16.gmra.mrb[0].mxu0 %v1922
        %v3552 = vpop.f32.mrb[0].mxu0
        %v3553 = vadd.f32 %v748, %v3552
        %v3554 = vpop.f32.mrb[0].mxu0
        %v3555 = vpop.f32.mrb[0].mxu0
        %v3556 = vadd.f32 %v748, %v3555
        %v3557 = vpop.f32.mrb[0].mxu0
        %3558 = vmatprep.mubr.bf16.mxu0 0
        %3559 = vmatmul.mubr.bf16.gmra.mrb[0].mxu0 %v1923
        %v3560 = vpop.f32.mrb[0].mxu0
        %v3561 = vadd.f32 %v748, %v3560
        %v3562 = vpop.f32.mrb[0].mxu0
        %v3563 = vpop.f32.mrb[0].mxu0
        %v3564 = vadd.f32 %v748, %v3563
        %v3565 = vpop.f32.mrb[0].mxu0
        %3566 = vmatprep.mubr.bf16.mxu0 0
        %3567 = vmatmul.mubr.bf16.gmra.mrb[0].mxu0 %v1924
        %v3568 = vpop.f32.mrb[0].mxu0
        %v3569 = vadd.f32 %v748, %v3568
        %v3570 = vpop.f32.mrb[0].mxu0
        %v3571 = vpop.f32.mrb[0].mxu0
        %v3572 = vadd.f32 %v748, %v3571
        %v3573 = vpop.f32.mrb[0].mxu0
        %3574 = vmatprep.mubr.bf16.mxu0 0
        %3575 = vmatmul.mubr.bf16.gmra.mrb[0].mxu0 %v1925
        %v3576 = vpop.f32.mrb[0].mxu0
        %v3577 = vadd.f32 %v748, %v3576
        %v3578 = vpop.f32.mrb[0].mxu0
        %v3579 = vpop.f32.mrb[0].mxu0
        %v3580 = vadd.f32 %v748, %v3579
        %v3581 = vpop.f32.mrb[0].mxu0
        %3582 = vmatprep.mubr.bf16.mxu0 0
        %3583 = vmatmul.mubr.bf16.gmra.mrb[0].mxu0 %v1926
        %v3584 = vpop.f32.mrb[0].mxu0
        %v3585 = vadd.f32 %v748, %v3584
        %v3586 = vpop.f32.mrb[0].mxu0
        %v3587 = vpop.f32.mrb[0].mxu0
        %v3588 = vadd.f32 %v748, %v3587
        %v3589 = vpop.f32.mrb[0].mxu0
        %3590 = vmatprep.mubr.bf16.mxu0 0
        %3591 = vmatmul.mubr.bf16.gmra.mrb[0].mxu0 %v1927
        %v3592 = vpop.f32.mrb[0].mxu0
        %v3593 = vadd.f32 %v748, %v3592
        %v3594 = vpop.f32.mrb[0].mxu0
        %v3595 = vpop.f32.mrb[0].mxu0
        %v3596 = vadd.f32 %v748, %v3595
        %v3597 = vpop.f32.mrb[0].mxu0
        %3598 = vmatprep.mubr.bf16.mxu0 0
        %3599 = vmatmul.mubr.bf16.gmra.mrb[0].mxu0 %v1928
        %v3600 = vpop.f32.mrb[0].mxu0
        %v3601 = vadd.f32 %v748, %v3600
        %v3602 = vpop.f32.mrb[0].mxu0
        %v3603 = vpop.f32.mrb[0].mxu0
        %v3604 = vadd.f32 %v748, %v3603
        %v3605 = vpop.f32.mrb[0].mxu0
        %3606 = vmatprep.mubr.bf16.mxu0 0
        %3607 = vmatmul.mubr.bf16.gmra.mrb[0].mxu0 %v1929
        %v3608 = vpop.f32.mrb[0].mxu0
        %v3609 = vadd.f32 %v748, %v3608
        %v3610 = vpop.f32.mrb[0].mxu0
        %v3611 = vpop.f32.mrb[0].mxu0
        %v3612 = vadd.f32 %v748, %v3611
        %v3613 = vpop.f32.mrb[0].mxu0
        %3614 = vmatprep.mubr.bf16.mxu0 0
        %3615 = vmatmul.mubr.bf16.gmra.mrb[0].mxu0 %v1930
        %v3616 = vpop.f32.mrb[0].mxu0
        %v3617 = vadd.f32 %v748, %v3616
        %v3618 = vpop.f32.mrb[0].mxu0
        %v3619 = vpop.f32.mrb[0].mxu0
        %v3620 = vadd.f32 %v748, %v3619
        %v3621 = vpop.f32.mrb[0].mxu0
        %3622 = vmatprep.mubr.bf16.mxu0 0
        %3623 = vmatmul.mubr.bf16.gmra.mrb[0].mxu0 %v1931
        %v3624 = vpop.f32.mrb[0].mxu0
        %v3625 = vadd.f32 %v748, %v3624
        %v3626 = vpop.f32.mrb[0].mxu0
        %v3627 = vpop.f32.mrb[0].mxu0
        %v3628 = vadd.f32 %v748, %v3627
        %v3629 = vpop.f32.mrb[0].mxu0
        %3630 = vmatprep.mubr.bf16.mxu0 0
        %3631 = vmatmul.mubr.bf16.gmra.mrb[0].mxu0 %v1932
        %v3632 = vpop.f32.mrb[0].mxu0
        %v3633 = vadd.f32 %v748, %v3632
        %v3634 = vpop.f32.mrb[0].mxu0
        %v3635 = vpop.f32.mrb[0].mxu0
        %v3636 = vadd.f32 %v748, %v3635
        %v3637 = vpop.f32.mrb[0].mxu0
        %3638 = vmatprep.mubr.bf16.mxu0 0
        %3639 = vmatmul.mubr.bf16.gmra.mrb[0].mxu0 %v1933
        %v3640 = vpop.f32.mrb[0].mxu0
        %v3641 = vadd.f32 %v748, %v3640
        %v3642 = vpop.f32.mrb[0].mxu0
        %v3643 = vpop.f32.mrb[0].mxu0
        %v3644 = vadd.f32 %v748, %v3643
        %v3645 = vpop.f32.mrb[0].mxu0
        %3646 = vmatprep.mubr.bf16.mxu0 0
        %3647 = vmatmul.mubr.bf16.gmra.mrb[0].mxu0 %v1934
        %v3648 = vpop.f32.mrb[0].mxu0
        %v3649 = vadd.f32 %v748, %v3648
        %v3650 = vpop.f32.mrb[0].mxu0
        %v3651 = vpop.f32.mrb[0].mxu0
        %v3652 = vadd.f32 %v748, %v3651
        %v3653 = vpop.f32.mrb[0].mxu0
        %3654 = vmatprep.mubr.bf16.mxu0 0
        %3655 = vmatmul.mubr.bf16.gmra.mrb[0].mxu0 %v1935
        %v3656 = vpop.f32.mrb[0].mxu0
        %v3657 = vadd.f32 %v748, %v3656
        %v3658 = vpop.f32.mrb[0].mxu0
        %v3659 = vpop.f32.mrb[0].mxu0
        %v3660 = vadd.f32 %v748, %v3659
        %v3661 = vpop.f32.mrb[0].mxu0
        %3662 = vmatprep.mubr.bf16.mxu0 0
        %3663 = vmatmul.mubr.bf16.gmra.mrb[0].mxu0 %v1936
        %v3664 = vpop.f32.mrb[0].mxu0
        %v3665 = vadd.f32 %v748, %v3664
        %v3666 = vpop.f32.mrb[0].mxu0
        %v3667 = vpop.f32.mrb[0].mxu0
        %v3668 = vadd.f32 %v748, %v3667
        %v3669 = vpop.f32.mrb[0].mxu0
        %3670 = vmatprep.mubr.bf16.mxu0 0
        %3671 = vmatmul.mubr.bf16.gmra.mrb[0].mxu0 %v1937
        %v3672 = vpop.f32.mrb[0].mxu0
        %v3673 = vadd.f32 %v748, %v3672
        %v3674 = vpop.f32.mrb[0].mxu0
        %v3675 = vpop.f32.mrb[0].mxu0
        %v3676 = vadd.f32 %v748, %v3675
        %v3677 = vpop.f32.mrb[0].mxu0
        %3678 = vmatprep.mubr.bf16.mxu0 0
        %3679 = vmatmul.mubr.bf16.gmra.mrb[0].mxu0 %v1938
        %v3680 = vpop.f32.mrb[0].mxu0
        %v3681 = vadd.f32 %v748, %v3680
        %v3682 = vpop.f32.mrb[0].mxu0
        %v3683 = vpop.f32.mrb[0].mxu0
        %v3684 = vadd.f32 %v748, %v3683
        %v3685 = vpop.f32.mrb[0].mxu0
        %3686 = vmatprep.mubr.bf16.mxu0 0
        %3687 = vmatmul.mubr.bf16.gmra.mrb[0].mxu0 %v1939
        %v3688 = vpop.f32.mrb[0].mxu0
        %v3689 = vadd.f32 %v748, %v3688
        %v3690 = vpop.f32.mrb[0].mxu0
        %v3691 = vpop.f32.mrb[0].mxu0
        %v3692 = vadd.f32 %v748, %v3691
        %v3693 = vpop.f32.mrb[0].mxu0
        %3694 = vmatprep.mubr.bf16.mxu0 0
        %3695 = vmatmul.mubr.bf16.gmra.mrb[0].mxu0 %v1940
        %v3696 = vpop.f32.mrb[0].mxu0
        %v3697 = vadd.f32 %v748, %v3696
        %v3698 = vpop.f32.mrb[0].mxu0
        %v3699 = vpop.f32.mrb[0].mxu0
        %v3700 = vadd.f32 %v748, %v3699
        %v3701 = vpop.f32.mrb[0].mxu0
        %3702 = vmatprep.mubr.bf16.mxu0 0
        %3703 = vmatmul.mubr.bf16.gmra.mrb[0].mxu0 %v1941
        %v3704 = vpop.f32.mrb[0].mxu0
        %v3705 = vadd.f32 %v748, %v3704
        %v3706 = vpop.f32.mrb[0].mxu0
        %v3707 = vpop.f32.mrb[0].mxu0
        %v3708 = vadd.f32 %v748, %v3707
        %v3709 = vpop.f32.mrb[0].mxu0
        %3710 = vmatprep.mubr.bf16.mxu0 0
        %3711 = vmatmul.mubr.bf16.gmra.mrb[0].mxu0 %v1942
        %v3712 = vpop.f32.mrb[0].mxu0
        %v3713 = vadd.f32 %v748, %v3712
        %v3714 = vpop.f32.mrb[0].mxu0
        %v3715 = vpop.f32.mrb[0].mxu0
        %v3716 = vadd.f32 %v748, %v3715
        %v3717 = vpop.f32.mrb[0].mxu0
        %3718 = vmatprep.mubr.bf16.mxu0 0
        %3719 = vmatmul.mubr.bf16.gmra.mrb[0].mxu0 %v1943
        %v3720 = vpop.f32.mrb[0].mxu0
        %v3721 = vadd.f32 %v748, %v3720
        %v3722 = vpop.f32.mrb[0].mxu0
        %v3723 = vpop.f32.mrb[0].mxu0
        %v3724 = vadd.f32 %v748, %v3723
        %v3725 = vpop.f32.mrb[0].mxu0
        %3726 = vmatprep.mubr.bf16.mxu0 0
        %3727 = vmatmul.mubr.bf16.gmra.mrb[0].mxu0 %v1944
        %v3728 = vpop.f32.mrb[0].mxu0
        %v3729 = vadd.f32 %v748, %v3728
        %v3730 = vpop.f32.mrb[0].mxu0
        %v3731 = vpop.f32.mrb[0].mxu0
        %v3732 = vadd.f32 %v748, %v3731
        %v3733 = vpop.f32.mrb[0].mxu0
        %3734 = vmatprep.mubr.bf16.mxu0 0
        %3735 = vmatmul.mubr.bf16.gmra.mrb[0].mxu0 %v1945
        %v3736 = vpop.f32.mrb[0].mxu0
        %v3737 = vadd.f32 %v748, %v3736
        %v3738 = vpop.f32.mrb[0].mxu0
        %v3739 = vpop.f32.mrb[0].mxu0
        %v3740 = vadd.f32 %v748, %v3739
        %v3741 = vpop.f32.mrb[0].mxu0
        %3742 = vmatprep.mubr.bf16.mxu0 0
        %3743 = vmatmul.mubr.bf16.gmra.mrb[0].mxu0 %v1946
        %v3744 = vpop.f32.mrb[0].mxu0
        %v3745 = vadd.f32 %v748, %v3744
        %v3746 = vpop.f32.mrb[0].mxu0
        %v3747 = vpop.f32.mrb[0].mxu0
        %v3748 = vadd.f32 %v748, %v3747
        %v3749 = vpop.f32.mrb[0].mxu0
        %3750 = vmatprep.mubr.bf16.mxu0 0
        %3751 = vmatmul.mubr.bf16.gmra.mrb[0].mxu0 %v1947
        %v3752 = vpop.f32.mrb[0].mxu0
        %v3753 = vadd.f32 %v748, %v3752
        %v3754 = vpop.f32.mrb[0].mxu0
        %v3755 = vpop.f32.mrb[0].mxu0
        %v3756 = vadd.f32 %v748, %v3755
        %v3757 = vpop.f32.mrb[0].mxu0
        %3758 = vmatprep.mubr.bf16.mxu0 0
        %3759 = vmatmul.mubr.bf16.gmra.mrb[0].mxu0 %v1948
        %v3760 = vpop.f32.mrb[0].mxu0
        %v3761 = vadd.f32 %v748, %v3760
        %v3762 = vpop.f32.mrb[0].mxu0
        %v3763 = vpop.f32.mrb[0].mxu0
        %v3764 = vadd.f32 %v748, %v3763
        %v3765 = vpop.f32.mrb[0].mxu0
        %3766 = vmatprep.mubr.bf16.mxu0 0
        %3767 = vmatmul.mubr.bf16.gmra.mrb[0].mxu0 %v1949
        %v3768 = vpop.f32.mrb[0].mxu0
        %v3769 = vadd.f32 %v748, %v3768
        %v3770 = vpop.f32.mrb[0].mxu0
        %v3771 = vpop.f32.mrb[0].mxu0
        %v3772 = vadd.f32 %v748, %v3771
        %v3773 = vpop.f32.mrb[0].mxu0
        %3774 = vmatprep.mubr.bf16.mxu0 0
        %3775 = vmatmul.mubr.bf16.gmra.mrb[0].mxu0 %v1950
        %v3776 = vpop.f32.mrb[0].mxu0
        %v3777 = vadd.f32 %v748, %v3776
        %v3778 = vpop.f32.mrb[0].mxu0
        %v3779 = vpop.f32.mrb[0].mxu0
        %v3780 = vadd.f32 %v748, %v3779
        %v3781 = vpop.f32.mrb[0].mxu0
        %3782 = vmatprep.mubr.bf16.mxu0 0
        %3783 = vmatmul.mubr.bf16.gmra.mrb[0].mxu0 %v1951
        %v3784 = vpop.f32.mrb[0].mxu0
        %v3785 = vadd.f32 %v748, %v3784
        %v3786 = vpop.f32.mrb[0].mxu0
        %v3787 = vpop.f32.mrb[0].mxu0
        %v3788 = vadd.f32 %v748, %v3787
        %v3789 = vpop.f32.mrb[0].mxu0
        %3790 = vmatprep.mubr.bf16.mxu0 0
        %3791 = vmatmul.mubr.bf16.gmra.mrb[0].mxu0 %v1952
        %v3792 = vpop.f32.mrb[0].mxu0
        %v3793 = vadd.f32 %v748, %v3792
        %v3794 = vpop.f32.mrb[0].mxu0
        %v3795 = vpop.f32.mrb[0].mxu0
        %v3796 = vadd.f32 %v748, %v3795
        %v3797 = vpop.f32.mrb[0].mxu0
        %3798 = vmatprep.mubr.bf16.mxu0 0
        %3799 = vmatmul.mubr.bf16.gmra.mrb[0].mxu0 %v1953
        %v3800 = vpop.f32.mrb[0].mxu0
        %v3801 = vadd.f32 %v748, %v3800
        %v3802 = vpop.f32.mrb[0].mxu0
        %v3803 = vpop.f32.mrb[0].mxu0
        %v3804 = vadd.f32 %v748, %v3803
        %v3805 = vpop.f32.mrb[0].mxu0
        %3806 = vmatprep.mubr.bf16.mxu0 0
        %3807 = vmatmul.mubr.bf16.gmra.mrb[0].mxu0 %v1954
        %v3808 = vpop.f32.mrb[0].mxu0
        %v3809 = vadd.f32 %v748, %v3808
        %v3810 = vpop.f32.mrb[0].mxu0
        %v3811 = vpop.f32.mrb[0].mxu0
        %v3812 = vadd.f32 %v748, %v3811
        %v3813 = vpop.f32.mrb[0].mxu0
        %3814 = vmatprep.mubr.bf16.mxu0 0
        %3815 = vmatmul.mubr.bf16.gmra.mrb[0].mxu0 %v1955
        %v3816 = vpop.f32.mrb[0].mxu0
        %v3817 = vadd.f32 %v748, %v3816
        %v3818 = vpop.f32.mrb[0].mxu0
        %v3819 = vpop.f32.mrb[0].mxu0
        %v3820 = vadd.f32 %v748, %v3819
        %v3821 = vpop.f32.mrb[0].mxu0
        %3822 = vmatprep.mubr.bf16.mxu0 0
        %3823 = vmatmul.mubr.bf16.gmra.mrb[0].mxu0 %v1956
        %v3824 = vpop.f32.mrb[0].mxu0
        %v3825 = vadd.f32 %v748, %v3824
        %v3826 = vpop.f32.mrb[0].mxu0
        %v3827 = vpop.f32.mrb[0].mxu0
        %v3828 = vadd.f32 %v748, %v3827
        %v3829 = vpop.f32.mrb[0].mxu0
        %3830 = vmatprep.mubr.bf16.mxu0 0
        %3831 = vmatmul.mubr.bf16.gmra.mrb[0].mxu0 %v1957
        %v3832 = vpop.f32.mrb[0].mxu0
        %v3833 = vadd.f32 %v748, %v3832
        %v3834 = vpop.f32.mrb[0].mxu0
        %v3835 = vpop.f32.mrb[0].mxu0
        %v3836 = vadd.f32 %v748, %v3835
        %v3837 = vpop.f32.mrb[0].mxu0
        %3838 = vmatprep.mubr.bf16.mxu0 0
        %3839 = vmatmul.mubr.bf16.gmra.mrb[0].mxu0 %v1958
        %v3840 = vpop.f32.mrb[0].mxu0
        %v3841 = vadd.f32 %v748, %v3840
        %v3842 = vpop.f32.mrb[0].mxu0
        %v3843 = vpop.f32.mrb[0].mxu0
        %v3844 = vadd.f32 %v748, %v3843
        %v3845 = vpop.f32.mrb[0].mxu0
        %3846 = vmatprep.mubr.bf16.mxu0 0
        %3847 = vmatmul.mubr.bf16.gmra.mrb[0].mxu0 %v1959
        %v3848 = vpop.f32.mrb[0].mxu0
        %v3849 = vadd.f32 %v748, %v3848
        %v3850 = vpop.f32.mrb[0].mxu0
        %v3851 = vpop.f32.mrb[0].mxu0
        %v3852 = vadd.f32 %v748, %v3851
        %v3853 = vpop.f32.mrb[0].mxu0
        %3854 = vmatprep.mubr.bf16.mxu0 0
        %3855 = vmatmul.mubr.bf16.gmra.mrb[0].mxu0 %v1960
        %v3856 = vpop.f32.mrb[0].mxu0
        %v3857 = vadd.f32 %v748, %v3856
        %v3858 = vpop.f32.mrb[0].mxu0
        %v3859 = vpop.f32.mrb[0].mxu0
        %v3860 = vadd.f32 %v748, %v3859
        %v3861 = vpop.f32.mrb[0].mxu0
        %3862 = vmatprep.mubr.bf16.mxu0 0
        %3863 = vmatmul.mubr.bf16.gmra.mrb[0].mxu0 %v1961
        %v3864 = vpop.f32.mrb[0].mxu0
        %v3865 = vadd.f32 %v748, %v3864
        %v3866 = vpop.f32.mrb[0].mxu0
        %v3867 = vpop.f32.mrb[0].mxu0
        %v3868 = vadd.f32 %v748, %v3867
        %v3869 = vpop.f32.mrb[0].mxu0
        %3870 = vmatprep.mubr.bf16.mxu0 0
        %3871 = vmatmul.mubr.bf16.gmra.mrb[0].mxu0 %v1962
        %v3872 = vpop.f32.mrb[0].mxu0
        %v3873 = vadd.f32 %v748, %v3872
        %v3874 = vpop.f32.mrb[0].mxu0
        %v3875 = vpop.f32.mrb[0].mxu0
        %v3876 = vadd.f32 %v748, %v3875
        %v3877 = vpop.f32.mrb[0].mxu0
        %3878 = vmatprep.mubr.bf16.mxu0 0
        %3879 = vmatmul.mubr.bf16.gmra.mrb[0].mxu0 %v1963
        %v3880 = vpop.f32.mrb[0].mxu0
        %v3881 = vadd.f32 %v748, %v3880
        %v3882 = vpop.f32.mrb[0].mxu0
        %v3883 = vpop.f32.mrb[0].mxu0
        %v3884 = vadd.f32 %v748, %v3883
        %v3885 = vpop.f32.mrb[0].mxu0
        %3886 = vmatprep.mubr.bf16.mxu0 0
        %3887 = vmatmul.mubr.bf16.gmra.mrb[0].mxu0 %v1964
        %v3888 = vpop.f32.mrb[0].mxu0
        %v3889 = vadd.f32 %v748, %v3888
        %v3890 = vpop.f32.mrb[0].mxu0
        %v3891 = vpop.f32.mrb[0].mxu0
        %v3892 = vadd.f32 %v748, %v3891
        %v3893 = vpop.f32.mrb[0].mxu0
        %3894 = vmatprep.mubr.bf16.mxu0 0
        %3895 = vmatmul.mubr.bf16.gmra.mrb[0].mxu0 %v1965
        %v3896 = vpop.f32.mrb[0].mxu0
        %v3897 = vadd.f32 %v748, %v3896
        %v3898 = vpop.f32.mrb[0].mxu0
        %v3899 = vpop.f32.mrb[0].mxu0
        %v3900 = vadd.f32 %v748, %v3899
        %v3901 = vpop.f32.mrb[0].mxu0
        %3902 = vmatprep.mubr.bf16.mxu0 0
        %3903 = vmatmul.mubr.bf16.gmra.mrb[0].mxu0 %v1966
        %v3904 = vpop.f32.mrb[0].mxu0
        %v3905 = vadd.f32 %v748, %v3904
        %v3906 = vpop.f32.mrb[0].mxu0
        %v3907 = vpop.f32.mrb[0].mxu0
        %v3908 = vadd.f32 %v748, %v3907
        %v3909 = vpop.f32.mrb[0].mxu0
        %3910 = vmatprep.mubr.bf16.mxu0 0
        %3911 = vmatmul.mubr.bf16.gmra.mrb[0].mxu0 %v1967
        %v3912 = vpop.f32.mrb[0].mxu0
        %v3913 = vadd.f32 %v748, %v3912
        %v3914 = vpop.f32.mrb[0].mxu0
        %v3915 = vpop.f32.mrb[0].mxu0
        %v3916 = vadd.f32 %v748, %v3915
        %v3917 = vpop.f32.mrb[0].mxu0
        %3918 = vmatprep.mubr.bf16.mxu0 0
        %3919 = vmatmul.mubr.bf16.gmra.mrb[0].mxu0 %v1968
        %v3920 = vpop.f32.mrb[0].mxu0
        %v3921 = vadd.f32 %v748, %v3920
        %v3922 = vpop.f32.mrb[0].mxu0
        %v3923 = vpop.f32.mrb[0].mxu0
        %v3924 = vadd.f32 %v748, %v3923
        %v3925 = vpop.f32.mrb[0].mxu0
        %3926 = vmatprep.mubr.bf16.mxu0 0
        %3927 = vmatmul.mubr.bf16.gmra.mrb[0].mxu0 %v1969
        %v3928 = vpop.f32.mrb[0].mxu0
        %v3929 = vadd.f32 %v748, %v3928
        %v3930 = vpop.f32.mrb[0].mxu0
        %v3931 = vpop.f32.mrb[0].mxu0
        %v3932 = vadd.f32 %v748, %v3931
        %v3933 = vpop.f32.mrb[0].mxu0
        %3934 = vmatprep.mubr.bf16.mxu0 0
        %3935 = vmatmul.mubr.bf16.gmra.mrb[0].mxu0 %v1970
        %v3936 = vpop.f32.mrb[0].mxu0
        %v3937 = vadd.f32 %v748, %v3936
        %v3938 = vpop.f32.mrb[0].mxu0
        %v3939 = vpop.f32.mrb[0].mxu0
        %v3940 = vadd.f32 %v748, %v3939
        %v3941 = vpop.f32.mrb[0].mxu0
        %3942 = vmatprep.mubr.bf16.mxu0 0
        %3943 = vmatmul.mubr.bf16.gmra.mrb[0].mxu0 %v1971
        %v3944 = vpop.f32.mrb[0].mxu0
        %v3945 = vadd.f32 %v748, %v3944
        %v3946 = vpop.f32.mrb[0].mxu0
        %v3947 = vpop.f32.mrb[0].mxu0
        %v3948 = vadd.f32 %v748, %v3947
        %v3949 = vpop.f32.mrb[0].mxu0
        %3950 = vmatprep.mubr.bf16.mxu0 0
        %3951 = vmatmul.mubr.bf16.gmra.mrb[0].mxu0 %v1972
        %v3952 = vpop.f32.mrb[0].mxu0
        %v3953 = vadd.f32 %v748, %v3952
        %v3954 = vpop.f32.mrb[0].mxu0
        %v3955 = vpop.f32.mrb[0].mxu0
        %v3956 = vadd.f32 %v748, %v3955
        %v3957 = vpop.f32.mrb[0].mxu0
        %3958 = vmatprep.mubr.bf16.mxu0 0
        %3959 = vmatmul.mubr.bf16.gmra.mrb[0].mxu0 %v1973
        %v3960 = vpop.f32.mrb[0].mxu0
        %v3961 = vadd.f32 %v748, %v3960
        %v3962 = vpop.f32.mrb[0].mxu0
        %v3963 = vpop.f32.mrb[0].mxu0
        %v3964 = vadd.f32 %v748, %v3963
        %v3965 = vpop.f32.mrb[0].mxu0
        %3966 = vmatprep.mubr.bf16.mxu0 0
        %3967 = vmatmul.mubr.bf16.gmra.mrb[0].mxu0 %v1974
        %v3968 = vpop.f32.mrb[0].mxu0
        %v3969 = vadd.f32 %v748, %v3968
        %v3970 = vpop.f32.mrb[0].mxu0
        %v3971 = vpop.f32.mrb[0].mxu0
        %v3972 = vadd.f32 %v748, %v3971
        %v3973 = vpop.f32.mrb[0].mxu0
        %3974 = vmatprep.mubr.bf16.mxu0 0
        %3975 = vmatmul.mubr.bf16.gmra.mrb[0].mxu0 %v1975
        %v3976 = vpop.f32.mrb[0].mxu0
        %v3977 = vadd.f32 %v748, %v3976
        %v3978 = vpop.f32.mrb[0].mxu0
        %v3979 = vpop.f32.mrb[0].mxu0
        %v3980 = vadd.f32 %v748, %v3979
        %v3981 = vpop.f32.mrb[0].mxu0
        %3982 = vmatprep.mubr.bf16.mxu0 0
        %3983 = vmatmul.mubr.bf16.gmra.mrb[0].mxu0 %v1976
        %v3984 = vpop.f32.mrb[0].mxu0
        %v3985 = vadd.f32 %v748, %v3984
        %v3986 = vpop.f32.mrb[0].mxu0
        %v3987 = vpop.f32.mrb[0].mxu0
        %v3988 = vadd.f32 %v748, %v3987
        %v3989 = vpop.f32.mrb[0].mxu0
        %3990 = vmatprep.mubr.bf16.mxu0 0
        %3991 = vmatmul.mubr.bf16.gmra.mrb[0].mxu0 %v1977
        %v3992 = vpop.f32.mrb[0].mxu0
        %v3993 = vadd.f32 %v748, %v3992
        %v3994 = vpop.f32.mrb[0].mxu0
        %v3995 = vpop.f32.mrb[0].mxu0
        %v3996 = vadd.f32 %v748, %v3995
        %v3997 = vpop.f32.mrb[0].mxu0
        %3998 = vmatprep.mubr.bf16.mxu0 0
        %3999 = vmatmul.mubr.bf16.gmra.mrb[0].mxu0 %v1978
        %v4000 = vpop.f32.mrb[0].mxu0
        %v4001 = vadd.f32 %v748, %v4000
        %v4002 = vpop.f32.mrb[0].mxu0
        %v4003 = vpop.f32.mrb[0].mxu0
        %v4004 = vadd.f32 %v748, %v4003
        %v4005 = vpop.f32.mrb[0].mxu0
        %4006 = vmatprep.mubr.bf16.mxu0 0
        %4007 = vmatmul.mubr.bf16.gmra.mrb[0].mxu0 %v1979
        %v4008 = vpop.f32.mrb[0].mxu0
        %v4009 = vadd.f32 %v748, %v4008
        %v4010 = vpop.f32.mrb[0].mxu0
        %v4011 = vpop.f32.mrb[0].mxu0
        %v4012 = vadd.f32 %v748, %v4011
        %v4013 = vpop.f32.mrb[0].mxu0
        %4014 = vmatprep.mubr.bf16.mxu0 0
        %4015 = vmatmul.mubr.bf16.gmra.mrb[0].mxu0 %v1980
        %v4016 = vpop.f32.mrb[0].mxu0
        %v4017 = vadd.f32 %v748, %v4016
        %v4018 = vpop.f32.mrb[0].mxu0
        %v4019 = vpop.f32.mrb[0].mxu0
        %v4020 = vadd.f32 %v748, %v4019
        %v4021 = vpop.f32.mrb[0].mxu0
        %4022 = vmatprep.mubr.bf16.mxu0 0
        %4023 = vmatmul.mubr.bf16.gmra.mrb[0].mxu0 %v1981
        %v4024 = vpop.f32.mrb[0].mxu0
        %v4025 = vadd.f32 %v748, %v4024
        %v4026 = vpop.f32.mrb[0].mxu0
        %v4027 = vpop.f32.mrb[0].mxu0
        %v4028 = vadd.f32 %v748, %v4027
        %v4029 = vpop.f32.mrb[0].mxu0
        %4030 = vmatprep.mubr.bf16.mxu0 0
        %4031 = vmatmul.mubr.bf16.gmra.mrb[0].mxu0 %v1982
        %v4032 = vpop.f32.mrb[0].mxu0
        %v4033 = vadd.f32 %v748, %v4032
        %v4034 = vpop.f32.mrb[0].mxu0
        %v4035 = vpop.f32.mrb[0].mxu0
        %v4036 = vadd.f32 %v748, %v4035
        %v4037 = vpop.f32.mrb[0].mxu0
        %4038 = vmatprep.mubr.bf16.mxu0 0
        %4039 = vmatmul.mubr.bf16.gmra.mrb[0].mxu0 %v1983
        %v4040 = vpop.f32.mrb[0].mxu0
        %v4041 = vadd.f32 %v748, %v4040
        %v4042 = vpop.f32.mrb[0].mxu0
        %v4043 = vpop.f32.mrb[0].mxu0
        %v4044 = vadd.f32 %v748, %v4043
        %v4045 = vpop.f32.mrb[0].mxu0
        %4046 = vmatprep.mubr.bf16.mxu0 0
        %4047 = vmatmul.mubr.bf16.gmra.mrb[0].mxu0 %v1984
        %v4048 = vpop.f32.mrb[0].mxu0
        %v4049 = vadd.f32 %v748, %v4048
        %v4050 = vpop.f32.mrb[0].mxu0
        %v4051 = vpop.f32.mrb[0].mxu0
        %v4052 = vadd.f32 %v748, %v4051
        %v4053 = vpop.f32.mrb[0].mxu0
        %4054 = vmatprep.mubr.bf16.mxu0 0
        %4055 = vmatmul.mubr.bf16.gmra.mrb[0].mxu0 %v1985
        %v4056 = vpop.f32.mrb[0].mxu0
        %v4057 = vadd.f32 %v748, %v4056
        %v4058 = vpop.f32.mrb[0].mxu0
        %v4059 = vpop.f32.mrb[0].mxu0
        %v4060 = vadd.f32 %v748, %v4059
        %v4061 = vpop.f32.mrb[0].mxu0
        %4062 = vmatprep.mubr.bf16.mxu0 0
        %4063 = vmatmul.mubr.bf16.gmra.mrb[0].mxu0 %v1986
        %v4064 = vpop.f32.mrb[0].mxu0
        %v4065 = vadd.f32 %v748, %v4064
        %v4066 = vpop.f32.mrb[0].mxu0
        %v4067 = vpop.f32.mrb[0].mxu0
        %v4068 = vadd.f32 %v748, %v4067
        %v4069 = vpop.f32.mrb[0].mxu0
        %4070 = vmatprep.mubr.bf16.mxu0 0
        %4071 = vmatmul.mubr.bf16.gmra.mrb[0].mxu0 %v1987
        %v4072 = vpop.f32.mrb[0].mxu0
        %v4073 = vadd.f32 %v748, %v4072
        %v4074 = vpop.f32.mrb[0].mxu0
        %v4075 = vpop.f32.mrb[0].mxu0
        %v4076 = vadd.f32 %v748, %v4075
        %v4077 = vpop.f32.mrb[0].mxu0
        %4078 = vmatprep.mubr.bf16.mxu0 0
        %4079 = vmatmul.mubr.bf16.gmra.mrb[0].mxu0 %v1988
        %v4080 = vpop.f32.mrb[0].mxu0
        %v4081 = vadd.f32 %v748, %v4080
        %v4082 = vpop.f32.mrb[0].mxu0
        %v4083 = vpop.f32.mrb[0].mxu0
        %v4084 = vadd.f32 %v748, %v4083
        %v4085 = vpop.f32.mrb[0].mxu0
        %4086 = vmatprep.mubr.bf16.mxu0 0
        %4087 = vmatmul.mubr.bf16.gmra.mrb[0].mxu0 %v1989
        %v4088 = vpop.f32.mrb[0].mxu0
        %v4089 = vadd.f32 %v748, %v4088
        %v4090 = vpop.f32.mrb[0].mxu0
        %v4091 = vpop.f32.mrb[0].mxu0
        %v4092 = vadd.f32 %v748, %v4091
        %v4093 = vpop.f32.mrb[0].mxu0
        %4094 = vmatprep.mubr.bf16.mxu0 0
        %4095 = vmatmul.mubr.bf16.gmra.mrb[0].mxu0 %v1990
        %v4096 = vpop.f32.mrb[0].mxu0
        %v4097 = vadd.f32 %v748, %v4096
        %v4098 = vpop.f32.mrb[0].mxu0
        %v4099 = vpop.f32.mrb[0].mxu0
        %v4100 = vadd.f32 %v748, %v4099
        %v4101 = vpop.f32.mrb[0].mxu0
        %4102 = vmatprep.mubr.bf16.mxu0 0
        %4103 = vmatmul.mubr.bf16.gmra.mrb[0].mxu0 %v1991
        %v4104 = vpop.f32.mrb[0].mxu0
        %v4105 = vadd.f32 %v748, %v4104
        %v4106 = vpop.f32.mrb[0].mxu0
        %v4107 = vpop.f32.mrb[0].mxu0
        %v4108 = vadd.f32 %v748, %v4107
        %v4109 = vpop.f32.mrb[0].mxu0
        %4110 = vmatprep.mubr.bf16.mxu0 0
        %4111 = vmatmul.mubr.bf16.gmra.mrb[0].mxu0 %v1992
        %v4112 = vpop.f32.mrb[0].mxu0
        %v4113 = vadd.f32 %v748, %v4112
        %v4114 = vpop.f32.mrb[0].mxu0
        %v4115 = vpop.f32.mrb[0].mxu0
        %v4116 = vadd.f32 %v748, %v4115
        %v4117 = vpop.f32.mrb[0].mxu0
        %4118 = vmatprep.mubr.bf16.mxu0 0
        %4119 = vmatmul.mubr.bf16.gmra.mrb[0].mxu0 %v1993
        %v4120 = vpop.f32.mrb[0].mxu0
        %v4121 = vadd.f32 %v748, %v4120
        %v4122 = vpop.f32.mrb[0].mxu0
        %v4123 = vpop.f32.mrb[0].mxu0
        %v4124 = vadd.f32 %v748, %v4123
        %v4125 = vpop.f32.mrb[0].mxu0
        %4126 = vmatprep.mubr.bf16.mxu0 0
        %4127 = vmatmul.mubr.bf16.gmra.mrb[0].mxu0 %v1994
        %v4128 = vpop.f32.mrb[0].mxu0
        %v4129 = vadd.f32 %v748, %v4128
        %v4130 = vpop.f32.mrb[0].mxu0
        %v4131 = vpop.f32.mrb[0].mxu0
        %v4132 = vadd.f32 %v748, %v4131
        %v4133 = vpop.f32.mrb[0].mxu0
        %4134 = vmatprep.mubr.bf16.mxu0 0
        %4135 = vmatmul.mubr.bf16.gmra.mrb[0].mxu0 %v1995
        %v4136 = vpop.f32.mrb[0].mxu0
        %v4137 = vadd.f32 %v748, %v4136
        %v4138 = vpop.f32.mrb[0].mxu0
        %v4139 = vpop.f32.mrb[0].mxu0
        %v4140 = vadd.f32 %v748, %v4139
        %v4141 = vpop.f32.mrb[0].mxu0
        %4142 = vmatprep.mubr.bf16.mxu0 0
        %4143 = vmatmul.mubr.bf16.gmra.mrb[0].mxu0 %v1996
        %v4144 = vpop.f32.mrb[0].mxu0
        %v4145 = vadd.f32 %v748, %v4144
        %v4146 = vpop.f32.mrb[0].mxu0
        %v4147 = vpop.f32.mrb[0].mxu0
        %v4148 = vadd.f32 %v748, %v4147
        %v4149 = vpop.f32.mrb[0].mxu0
        %4150 = vmatprep.mubr.bf16.mxu0 0
        %4151 = vmatmul.mubr.bf16.gmra.mrb[0].mxu0 %v1997
        %v4152 = vpop.f32.mrb[0].mxu0
        %v4153 = vadd.f32 %v748, %v4152
        %v4154 = vpop.f32.mrb[0].mxu0
        %v4155 = vpop.f32.mrb[0].mxu0
        %v4156 = vadd.f32 %v748, %v4155
        %v4157 = vpop.f32.mrb[0].mxu0
        %4158 = vmatprep.mubr.bf16.mxu0 0
        %4159 = vmatmul.mubr.bf16.gmra.mrb[0].mxu0 %v1998
        %v4160 = vpop.f32.mrb[0].mxu0
        %v4161 = vadd.f32 %v748, %v4160
        %v4162 = vpop.f32.mrb[0].mxu0
        %v4163 = vpop.f32.mrb[0].mxu0
        %v4164 = vadd.f32 %v748, %v4163
        %v4165 = vpop.f32.mrb[0].mxu0
        %4166 = vmatprep.mubr.bf16.mxu0 0
        %4167 = vmatmul.mubr.bf16.gmra.mrb[0].mxu0 %v1999
        %v4168 = vpop.f32.mrb[0].mxu0
        %v4169 = vadd.f32 %v748, %v4168
        %v4170 = vpop.f32.mrb[0].mxu0
        %v4171 = vpop.f32.mrb[0].mxu0
        %v4172 = vadd.f32 %v748, %v4171
        %v4173 = vpop.f32.mrb[0].mxu0
        %4174 = vmatprep.mubr.bf16.mxu0 0
        %4175 = vmatmul.mubr.bf16.gmra.mrb[0].mxu0 %v2000
        %v4176 = vpop.f32.mrb[0].mxu0
        %v4177 = vadd.f32 %v748, %v4176
        %v4178 = vpop.f32.mrb[0].mxu0
        %v4179 = vpop.f32.mrb[0].mxu0
        %v4180 = vadd.f32 %v748, %v4179
        %v4181 = vpop.f32.mrb[0].mxu0
        %4182 = vmatprep.mubr.bf16.mxu0 0
        %4183 = vmatmul.mubr.bf16.gmra.mrb[0].mxu0 %v2001
        %v4184 = vpop.f32.mrb[0].mxu0
        %v4185 = vadd.f32 %v748, %v4184
        %v4186 = vpop.f32.mrb[0].mxu0
        %v4187 = vpop.f32.mrb[0].mxu0
        %v4188 = vadd.f32 %v748, %v4187
        %v4189 = vpop.f32.mrb[0].mxu0
        %4190 = vmatprep.mubr.bf16.mxu0 0
        %4191 = vmatmul.mubr.bf16.gmra.mrb[0].mxu0 %v2002
        %v4192 = vpop.f32.mrb[0].mxu0
        %v4193 = vadd.f32 %v748, %v4192
        %v4194 = vpop.f32.mrb[0].mxu0
        %v4195 = vpop.f32.mrb[0].mxu0
        %v4196 = vadd.f32 %v748, %v4195
        %v4197 = vpop.f32.mrb[0].mxu0
        %4198 = vmatprep.mubr.bf16.mxu0 0
        %4199 = vmatmul.mubr.bf16.gmra.mrb[0].mxu0 %v2003
        %v4200 = vpop.f32.mrb[0].mxu0
        %v4201 = vadd.f32 %v748, %v4200
        %v4202 = vpop.f32.mrb[0].mxu0
        %v4203 = vpop.f32.mrb[0].mxu0
        %v4204 = vadd.f32 %v748, %v4203
        %v4205 = vpop.f32.mrb[0].mxu0
        %4206 = vmatprep.mubr.bf16.mxu0 0
        %4207 = vmatmul.mubr.bf16.gmra.mrb[0].mxu0 %v2004
        %v4208 = vpop.f32.mrb[0].mxu0
        %v4209 = vadd.f32 %v748, %v4208
        %v4210 = vpop.f32.mrb[0].mxu0
        %v4211 = vpop.f32.mrb[0].mxu0
        %v4212 = vadd.f32 %v748, %v4211
        %v4213 = vpop.f32.mrb[0].mxu0
        %4214 = vmatprep.mubr.bf16.mxu0 0
        %4215 = vmatmul.mubr.bf16.gmra.mrb[0].mxu0 %v2005
        %v4216 = vpop.f32.mrb[0].mxu0
        %v4217 = vadd.f32 %v748, %v4216
        %v4218 = vpop.f32.mrb[0].mxu0
        %v4219 = vpop.f32.mrb[0].mxu0
        %v4220 = vadd.f32 %v748, %v4219
        %v4221 = vpop.f32.mrb[0].mxu0
        %4222 = vmatprep.mubr.bf16.mxu0 0
        %4223 = vmatmul.mubr.bf16.gmra.mrb[0].mxu0 %v2006
        %v4224 = vpop.f32.mrb[0].mxu0
        %v4225 = vadd.f32 %v748, %v4224
        %v4226 = vpop.f32.mrb[0].mxu0
        %v4227 = vpop.f32.mrb[0].mxu0
        %v4228 = vadd.f32 %v748, %v4227
        %v4229 = vpop.f32.mrb[0].mxu0
        %4230 = vmatprep.mubr.bf16.mxu0 0
        %4231 = vmatmul.mubr.bf16.gmra.mrb[0].mxu0 %v2007
        %v4232 = vpop.f32.mrb[0].mxu0
        %v4233 = vadd.f32 %v748, %v4232
        %v4234 = vpop.f32.mrb[0].mxu0
        %v4235 = vpop.f32.mrb[0].mxu0
        %v4236 = vadd.f32 %v748, %v4235
        %v4237 = vpop.f32.mrb[0].mxu0
        %4238 = vmatprep.mubr.bf16.mxu0 0
        %4239 = vmatmul.mubr.bf16.gmra.mrb[0].mxu0 %v2008
        %v4240 = vpop.f32.mrb[0].mxu0
        %v4241 = vadd.f32 %v748, %v4240
        %v4242 = vpop.f32.mrb[0].mxu0
        %v4243 = vpop.f32.mrb[0].mxu0
        %v4244 = vadd.f32 %v748, %v4243
        %v4245 = vpop.f32.mrb[0].mxu0
        %4246 = vmatprep.mubr.bf16.mxu0 0
        %4247 = vmatmul.mubr.bf16.gmra.mrb[0].mxu0 %v2009
        %v4248 = vpop.f32.mrb[0].mxu0
        %v4249 = vadd.f32 %v748, %v4248
        %v4250 = vpop.f32.mrb[0].mxu0
        %v4251 = vpop.f32.mrb[0].mxu0
        %v4252 = vadd.f32 %v748, %v4251
        %v4253 = vpop.f32.mrb[0].mxu0
        %4254 = vmatprep.mubr.bf16.mxu0 0
        %4255 = vmatmul.mubr.bf16.gmra.mrb[0].mxu0 %v2010
        %v4256 = vpop.f32.mrb[0].mxu0
        %v4257 = vadd.f32 %v748, %v4256
        %v4258 = vpop.f32.mrb[0].mxu0
        %v4259 = vpop.f32.mrb[0].mxu0
        %v4260 = vadd.f32 %v748, %v4259
        %v4261 = vpop.f32.mrb[0].mxu0
        %4262 = vmatprep.mubr.bf16.mxu0 0
        %4263 = vmatmul.mubr.bf16.gmra.mrb[0].mxu0 %v2011
        %v4264 = vpop.f32.mrb[0].mxu0
        %v4265 = vadd.f32 %v748, %v4264
        %v4266 = vpop.f32.mrb[0].mxu0
        %v4267 = vpop.f32.mrb[0].mxu0
        %v4268 = vadd.f32 %v748, %v4267
        %v4269 = vpop.f32.mrb[0].mxu0
        %4270 = vmatprep.mubr.bf16.mxu0 0
        %4271 = vmatmul.mubr.bf16.gmra.mrb[0].mxu0 %v2012
        %v4272 = vpop.f32.mrb[0].mxu0
        %v4273 = vadd.f32 %v748, %v4272
        %v4274 = vpop.f32.mrb[0].mxu0
        %v4275 = vpop.f32.mrb[0].mxu0
        %v4276 = vadd.f32 %v748, %v4275
        %v4277 = vpop.f32.mrb[0].mxu0
        %4278 = vmatprep.mubr.bf16.mxu0 0
        %4279 = vmatmul.mubr.bf16.gmra.mrb[0].mxu0 %v2013
        %v4280 = vpop.f32.mrb[0].mxu0
        %v4281 = vadd.f32 %v748, %v4280
        %v4282 = vpop.f32.mrb[0].mxu0
        %v4283 = vpop.f32.mrb[0].mxu0
        %v4284 = vadd.f32 %v748, %v4283
        %v4285 = vpop.f32.mrb[0].mxu0
        %4286 = vmatprep.mubr.bf16.mxu0 0
        %4287 = vmatmul.mubr.bf16.gmra.mrb[0].mxu0 %v2014
        %v4288 = vpop.f32.mrb[0].mxu0
        %v4289 = vadd.f32 %v748, %v4288
        %v4290 = vpop.f32.mrb[0].mxu0
        %v4291 = vpop.f32.mrb[0].mxu0
        %v4292 = vadd.f32 %v748, %v4291
        %v4293 = vpop.f32.mrb[0].mxu0
        %4294 = vmatprep.mubr.bf16.mxu0 0
        %4295 = vmatmul.mubr.bf16.gmra.mrb[0].mxu0 %v2015
        %v4296 = vpop.f32.mrb[0].mxu0
        %v4297 = vadd.f32 %v748, %v4296
        %v4298 = vpop.f32.mrb[0].mxu0
        %v4299 = vpop.f32.mrb[0].mxu0
        %v4300 = vadd.f32 %v748, %v4299
        %v4301 = vpop.f32.mrb[0].mxu0
        %4302 = vmatprep.mubr.bf16.mxu0 0
        %4303 = vmatmul.mubr.bf16.gmra.mrb[0].mxu0 %v2016
        %v4304 = vpop.f32.mrb[0].mxu0
        %v4305 = vadd.f32 %v748, %v4304
        %v4306 = vpop.f32.mrb[0].mxu0
        %v4307 = vpop.f32.mrb[0].mxu0
        %v4308 = vadd.f32 %v748, %v4307
        %v4309 = vpop.f32.mrb[0].mxu0
        %4310 = vmatprep.mubr.bf16.mxu0 0
        %4311 = vmatmul.mubr.bf16.gmra.mrb[0].mxu0 %v2017
        %v4312 = vpop.f32.mrb[0].mxu0
        %v4313 = vadd.f32 %v748, %v4312
        %v4314 = vpop.f32.mrb[0].mxu0
        %v4315 = vpop.f32.mrb[0].mxu0
        %v4316 = vadd.f32 %v748, %v4315
        %v4317 = vpop.f32.mrb[0].mxu0
        %4318 = vmatprep.mubr.bf16.mxu0 0
        %4319 = vmatmul.mubr.bf16.gmra.mrb[0].mxu0 %v2018
        %v4320 = vpop.f32.mrb[0].mxu0
        %v4321 = vadd.f32 %v748, %v4320
        %v4322 = vpop.f32.mrb[0].mxu0
        %v4323 = vpop.f32.mrb[0].mxu0
        %v4324 = vadd.f32 %v748, %v4323
        %v4325 = vpop.f32.mrb[0].mxu0
        %4326 = vmatprep.mubr.bf16.mxu0 0
        %4327 = vmatmul.mubr.bf16.gmra.mrb[0].mxu0 %v2019
        %v4328 = vpop.f32.mrb[0].mxu0
        %v4329 = vadd.f32 %v748, %v4328
        %v4330 = vpop.f32.mrb[0].mxu0
        %v4331 = vpop.f32.mrb[0].mxu0
        %v4332 = vadd.f32 %v748, %v4331
        %v4333 = vpop.f32.mrb[0].mxu0
        %4334 = vmatprep.mubr.bf16.mxu0 0
        %4335 = vmatmul.mubr.bf16.gmra.mrb[0].mxu0 %v2020
        %v4336 = vpop.f32.mrb[0].mxu0
        %v4337 = vadd.f32 %v748, %v4336
        %v4338 = vpop.f32.mrb[0].mxu0
        %v4339 = vpop.f32.mrb[0].mxu0
        %v4340 = vadd.f32 %v748, %v4339
        %v4341 = vpop.f32.mrb[0].mxu0
        %4342 = vmatprep.mubr.bf16.mxu0 0
        %4343 = vmatmul.mubr.bf16.gmra.mrb[0].mxu0 %v2021
        %v4344 = vpop.f32.mrb[0].mxu0
        %v4345 = vadd.f32 %v748, %v4344
        %v4346 = vpop.f32.mrb[0].mxu0
        %v4347 = vpop.f32.mrb[0].mxu0
        %v4348 = vadd.f32 %v748, %v4347
        %v4349 = vpop.f32.mrb[0].mxu0
        %4350 = vmatprep.mubr.bf16.mxu0 0
        %4351 = vmatmul.mubr.bf16.gmra.mrb[0].mxu0 %v2022
        %v4352 = vpop.f32.mrb[0].mxu0
        %v4353 = vadd.f32 %v748, %v4352
        %v4354 = vpop.f32.mrb[0].mxu0
        %v4355 = vpop.f32.mrb[0].mxu0
        %v4356 = vadd.f32 %v748, %v4355
        %v4357 = vpop.f32.mrb[0].mxu0
        %4358 = vmatprep.mubr.bf16.mxu0 0
        %4359 = vmatmul.mubr.bf16.gmra.mrb[0].mxu0 %v2023
        %v4360 = vpop.f32.mrb[0].mxu0
        %v4361 = vadd.f32 %v748, %v4360
        %v4362 = vpop.f32.mrb[0].mxu0
        %v4363 = vpop.f32.mrb[0].mxu0
        %v4364 = vadd.f32 %v748, %v4363
        %v4365 = vpop.f32.mrb[0].mxu0
        %4366 = vmatprep.mubr.bf16.mxu0 0
        %4367 = vmatmul.mubr.bf16.gmra.mrb[0].mxu0 %v2024
        %v4368 = vpop.f32.mrb[0].mxu0
        %v4369 = vadd.f32 %v748, %v4368
        %v4370 = vpop.f32.mrb[0].mxu0
        %v4371 = vpop.f32.mrb[0].mxu0
        %v4372 = vadd.f32 %v748, %v4371
        %v4373 = vpop.f32.mrb[0].mxu0
        %4374 = vmatprep.mubr.bf16.mxu0 0
        %4375 = vmatmul.mubr.bf16.gmra.mrb[0].mxu0 %v2025
        %v4376 = vpop.f32.mrb[0].mxu0
        %v4377 = vadd.f32 %v748, %v4376
        %v4378 = vpop.f32.mrb[0].mxu0
        %v4379 = vpop.f32.mrb[0].mxu0
        %v4380 = vadd.f32 %v748, %v4379
        %v4381 = vpop.f32.mrb[0].mxu0
        %4382 = vmatprep.mubr.bf16.mxu0 0
        %4383 = vmatmul.mubr.bf16.gmra.mrb[0].mxu0 %v2026
        %v4384 = vpop.f32.mrb[0].mxu0
        %v4385 = vadd.f32 %v748, %v4384
        %v4386 = vpop.f32.mrb[0].mxu0
        %v4387 = vpop.f32.mrb[0].mxu0
        %v4388 = vadd.f32 %v748, %v4387
        %v4389 = vpop.f32.mrb[0].mxu0
        %4390 = vmatprep.mubr.bf16.mxu0 0
        %4391 = vmatmul.mubr.bf16.gmra.mrb[0].mxu0 %v2027
        %v4392 = vpop.f32.mrb[0].mxu0
        %v4393 = vadd.f32 %v748, %v4392
        %v4394 = vpop.f32.mrb[0].mxu0
        %v4395 = vpop.f32.mrb[0].mxu0
        %v4396 = vadd.f32 %v748, %v4395
        %v4397 = vpop.f32.mrb[0].mxu0
        %4398 = vmatprep.mubr.bf16.mxu0 0
        %4399 = vmatmul.mubr.bf16.gmra.mrb[0].mxu0 %v2028
        %v4400 = vpop.f32.mrb[0].mxu0
        %v4401 = vadd.f32 %v748, %v4400
        %v4402 = vpop.f32.mrb[0].mxu0
        %v4403 = vpop.f32.mrb[0].mxu0
        %v4404 = vadd.f32 %v748, %v4403
        %v4405 = vpop.f32.mrb[0].mxu0
        %4406 = vmatprep.mubr.bf16.mxu0 0
        %4407 = vmatmul.mubr.bf16.gmra.mrb[0].mxu0 %v2029
        %v4408 = vpop.f32.mrb[0].mxu0
        %v4409 = vadd.f32 %v748, %v4408
        %v4410 = vpop.f32.mrb[0].mxu0
        %v4411 = vpop.f32.mrb[0].mxu0
        %v4412 = vadd.f32 %v748, %v4411
        %v4413 = vpop.f32.mrb[0].mxu0
        %4414 = vdwg.mxu0
        %v4415 = vmax.f32 %v2369, 0.0
        %v4416 = vmax.f32 %v2372, 0.0
        %v4417 = vmax.f32 %v2377, 0.0
        %v4418 = vmax.f32 %v2380, 0.0
        %v4419 = vmax.f32 %v2385, 0.0
        %v4420 = vmax.f32 %v2388, 0.0
        %v4421 = vmax.f32 %v2393, 0.0
        %v4422 = vmax.f32 %v2396, 0.0
        %v4423 = vmax.f32 %v2401, 0.0
        %v4424 = vmax.f32 %v2404, 0.0
        %v4425 = vmax.f32 %v2409, 0.0
        %v4426 = vmax.f32 %v2412, 0.0
        %v4427 = vmax.f32 %v2417, 0.0
        %v4428 = vmax.f32 %v2420, 0.0
        %v4429 = vmax.f32 %v2425, 0.0
        %v4430 = vmax.f32 %v2428, 0.0
        %v4431 = vmax.f32 %v2433, 0.0
        %v4432 = vmax.f32 %v2436, 0.0
        %v4433 = vmax.f32 %v2441, 0.0
        %v4434 = vmax.f32 %v2444, 0.0
        %v4435 = vmax.f32 %v2449, 0.0
        %v4436 = vmax.f32 %v2452, 0.0
        %v4437 = vmax.f32 %v2457, 0.0
        %v4438 = vmax.f32 %v2460, 0.0
        %v4439 = vmax.f32 %v2465, 0.0
        %v4440 = vmax.f32 %v2468, 0.0
        %v4441 = vmax.f32 %v2473, 0.0
        %v4442 = vmax.f32 %v2476, 0.0
        %v4443 = vmax.f32 %v2481, 0.0
        %v4444 = vmax.f32 %v2484, 0.0
        %v4445 = vmax.f32 %v2489, 0.0
        %v4446 = vmax.f32 %v2492, 0.0
        %v4447 = vmax.f32 %v2497, 0.0
        %v4448 = vmax.f32 %v2500, 0.0
        %v4449 = vmax.f32 %v2505, 0.0
        %v4450 = vmax.f32 %v2508, 0.0
        %v4451 = vmax.f32 %v2513, 0.0
        %v4452 = vmax.f32 %v2516, 0.0
        %v4453 = vmax.f32 %v2521, 0.0
        %v4454 = vmax.f32 %v2524, 0.0
        %v4455 = vmax.f32 %v2529, 0.0
        %v4456 = vmax.f32 %v2532, 0.0
        %v4457 = vmax.f32 %v2537, 0.0
        %v4458 = vmax.f32 %v2540, 0.0
        %v4459 = vmax.f32 %v2545, 0.0
        %v4460 = vmax.f32 %v2548, 0.0
        %v4461 = vmax.f32 %v2553, 0.0
        %v4462 = vmax.f32 %v2556, 0.0
        %v4463 = vmax.f32 %v2561, 0.0
        %v4464 = vmax.f32 %v2564, 0.0
        %v4465 = vmax.f32 %v2569, 0.0
        %v4466 = vmax.f32 %v2572, 0.0
        %v4467 = vmax.f32 %v2577, 0.0
        %v4468 = vmax.f32 %v2580, 0.0
        %v4469 = vmax.f32 %v2585, 0.0
        %v4470 = vmax.f32 %v2588, 0.0
        %v4471 = vmax.f32 %v2593, 0.0
        %v4472 = vmax.f32 %v2596, 0.0
        %v4473 = vmax.f32 %v2601, 0.0
        %v4474 = vmax.f32 %v2604, 0.0
        %v4475 = vmax.f32 %v2609, 0.0
        %v4476 = vmax.f32 %v2612, 0.0
        %v4477 = vmax.f32 %v2617, 0.0
        %v4478 = vmax.f32 %v2620, 0.0
        %v4479 = vmax.f32 %v2625, 0.0
        %v4480 = vmax.f32 %v2628, 0.0
        %v4481 = vmax.f32 %v2633, 0.0
        %v4482 = vmax.f32 %v2636, 0.0
        %v4483 = vmax.f32 %v2641, 0.0
        %v4484 = vmax.f32 %v2644, 0.0
        %v4485 = vmax.f32 %v2649, 0.0
        %v4486 = vmax.f32 %v2652, 0.0
        %v4487 = vmax.f32 %v2657, 0.0
        %v4488 = vmax.f32 %v2660, 0.0
        %v4489 = vmax.f32 %v2665, 0.0
        %v4490 = vmax.f32 %v2668, 0.0
        %v4491 = vmax.f32 %v2673, 0.0
        %v4492 = vmax.f32 %v2676, 0.0
        %v4493 = vmax.f32 %v2681, 0.0
        %v4494 = vmax.f32 %v2684, 0.0
        %v4495 = vmax.f32 %v2689, 0.0
        %v4496 = vmax.f32 %v2692, 0.0
        %v4497 = vmax.f32 %v2697, 0.0
        %v4498 = vmax.f32 %v2700, 0.0
        %v4499 = vmax.f32 %v2705, 0.0
        %v4500 = vmax.f32 %v2708, 0.0
        %v4501 = vmax.f32 %v2713, 0.0
        %v4502 = vmax.f32 %v2716, 0.0
        %v4503 = vmax.f32 %v2721, 0.0
        %v4504 = vmax.f32 %v2724, 0.0
        %v4505 = vmax.f32 %v2729, 0.0
        %v4506 = vmax.f32 %v2732, 0.0
        %v4507 = vmax.f32 %v2737, 0.0
        %v4508 = vmax.f32 %v2740, 0.0
        %v4509 = vmax.f32 %v2745, 0.0
        %v4510 = vmax.f32 %v2748, 0.0
        %v4511 = vmax.f32 %v2753, 0.0
        %v4512 = vmax.f32 %v2756, 0.0
        %v4513 = vmax.f32 %v2761, 0.0
        %v4514 = vmax.f32 %v2764, 0.0
        %v4515 = vmax.f32 %v2769, 0.0
        %v4516 = vmax.f32 %v2772, 0.0
        %v4517 = vmax.f32 %v2777, 0.0
        %v4518 = vmax.f32 %v2780, 0.0
        %v4519 = vmax.f32 %v2785, 0.0
        %v4520 = vmax.f32 %v2788, 0.0
        %v4521 = vmax.f32 %v2793, 0.0
        %v4522 = vmax.f32 %v2796, 0.0
        %v4523 = vmax.f32 %v2801, 0.0
        %v4524 = vmax.f32 %v2804, 0.0
        %v4525 = vmax.f32 %v2809, 0.0
        %v4526 = vmax.f32 %v2812, 0.0
        %v4527 = vmax.f32 %v2817, 0.0
        %v4528 = vmax.f32 %v2820, 0.0
        %v4529 = vmax.f32 %v2825, 0.0
        %v4530 = vmax.f32 %v2828, 0.0
        %v4531 = vmax.f32 %v2833, 0.0
        %v4532 = vmax.f32 %v2836, 0.0
        %v4533 = vmax.f32 %v2841, 0.0
        %v4534 = vmax.f32 %v2844, 0.0
        %v4535 = vmax.f32 %v2849, 0.0
        %v4536 = vmax.f32 %v2852, 0.0
        %v4537 = vmax.f32 %v2857, 0.0
        %v4538 = vmax.f32 %v2860, 0.0
        %v4539 = vmax.f32 %v2865, 0.0
        %v4540 = vmax.f32 %v2868, 0.0
        %v4541 = vmax.f32 %v2873, 0.0
        %v4542 = vmax.f32 %v2876, 0.0
        %v4543 = vmax.f32 %v2881, 0.0
        %v4544 = vmax.f32 %v2884, 0.0
        %v4545 = vmax.f32 %v2889, 0.0
        %v4546 = vmax.f32 %v2892, 0.0
        %v4547 = vmax.f32 %v2897, 0.0
        %v4548 = vmax.f32 %v2900, 0.0
        %v4549 = vmax.f32 %v2905, 0.0
        %v4550 = vmax.f32 %v2908, 0.0
        %v4551 = vmax.f32 %v2913, 0.0
        %v4552 = vmax.f32 %v2916, 0.0
        %v4553 = vmax.f32 %v2921, 0.0
        %v4554 = vmax.f32 %v2924, 0.0
        %v4555 = vmax.f32 %v2929, 0.0
        %v4556 = vmax.f32 %v2932, 0.0
        %v4557 = vmax.f32 %v2937, 0.0
        %v4558 = vmax.f32 %v2940, 0.0
        %v4559 = vmax.f32 %v2945, 0.0
        %v4560 = vmax.f32 %v2948, 0.0
        %v4561 = vmax.f32 %v2953, 0.0
        %v4562 = vmax.f32 %v2956, 0.0
        %v4563 = vmax.f32 %v2961, 0.0
        %v4564 = vmax.f32 %v2964, 0.0
        %v4565 = vmax.f32 %v2969, 0.0
        %v4566 = vmax.f32 %v2972, 0.0
        %v4567 = vmax.f32 %v2977, 0.0
        %v4568 = vmax.f32 %v2980, 0.0
        %v4569 = vmax.f32 %v2985, 0.0
        %v4570 = vmax.f32 %v2988, 0.0
        %v4571 = vmax.f32 %v2993, 0.0
        %v4572 = vmax.f32 %v2996, 0.0
        %v4573 = vmax.f32 %v3001, 0.0
        %v4574 = vmax.f32 %v3004, 0.0
        %v4575 = vmax.f32 %v3009, 0.0
        %v4576 = vmax.f32 %v3012, 0.0
        %v4577 = vmax.f32 %v3017, 0.0
        %v4578 = vmax.f32 %v3020, 0.0
        %v4579 = vmax.f32 %v3025, 0.0
        %v4580 = vmax.f32 %v3028, 0.0
        %v4581 = vmax.f32 %v3033, 0.0
        %v4582 = vmax.f32 %v3036, 0.0
        %v4583 = vmax.f32 %v3041, 0.0
        %v4584 = vmax.f32 %v3044, 0.0
        %v4585 = vmax.f32 %v3049, 0.0
        %v4586 = vmax.f32 %v3052, 0.0
        %v4587 = vmax.f32 %v3057, 0.0
        %v4588 = vmax.f32 %v3060, 0.0
        %v4589 = vmax.f32 %v3065, 0.0
        %v4590 = vmax.f32 %v3068, 0.0
        %v4591 = vmax.f32 %v3073, 0.0
        %v4592 = vmax.f32 %v3076, 0.0
        %v4593 = vmax.f32 %v3081, 0.0
        %v4594 = vmax.f32 %v3084, 0.0
        %v4595 = vmax.f32 %v3089, 0.0
        %v4596 = vmax.f32 %v3092, 0.0
        %v4597 = vmax.f32 %v3097, 0.0
        %v4598 = vmax.f32 %v3100, 0.0
        %v4599 = vmax.f32 %v3105, 0.0
        %v4600 = vmax.f32 %v3108, 0.0
        %v4601 = vmax.f32 %v3113, 0.0
        %v4602 = vmax.f32 %v3116, 0.0
        %v4603 = vmax.f32 %v3121, 0.0
        %v4604 = vmax.f32 %v3124, 0.0
        %v4605 = vmax.f32 %v3129, 0.0
        %v4606 = vmax.f32 %v3132, 0.0
        %v4607 = vmax.f32 %v3137, 0.0
        %v4608 = vmax.f32 %v3140, 0.0
        %v4609 = vmax.f32 %v3145, 0.0
        %v4610 = vmax.f32 %v3148, 0.0
        %v4611 = vmax.f32 %v3153, 0.0
        %v4612 = vmax.f32 %v3156, 0.0
        %v4613 = vmax.f32 %v3161, 0.0
        %v4614 = vmax.f32 %v3164, 0.0
        %v4615 = vmax.f32 %v3169, 0.0
        %v4616 = vmax.f32 %v3172, 0.0
        %v4617 = vmax.f32 %v3177, 0.0
        %v4618 = vmax.f32 %v3180, 0.0
        %v4619 = vmax.f32 %v3185, 0.0
        %v4620 = vmax.f32 %v3188, 0.0
        %v4621 = vmax.f32 %v3193, 0.0
        %v4622 = vmax.f32 %v3196, 0.0
        %v4623 = vmax.f32 %v3201, 0.0
        %v4624 = vmax.f32 %v3204, 0.0
        %v4625 = vmax.f32 %v3209, 0.0
        %v4626 = vmax.f32 %v3212, 0.0
        %v4627 = vmax.f32 %v3217, 0.0
        %v4628 = vmax.f32 %v3220, 0.0
        %v4629 = vmax.f32 %v3225, 0.0
        %v4630 = vmax.f32 %v3228, 0.0
        %v4631 = vmax.f32 %v3233, 0.0
        %v4632 = vmax.f32 %v3236, 0.0
        %v4633 = vmax.f32 %v3241, 0.0
        %v4634 = vmax.f32 %v3244, 0.0
        %v4635 = vmax.f32 %v3249, 0.0
        %v4636 = vmax.f32 %v3252, 0.0
        %v4637 = vmax.f32 %v3257, 0.0
        %v4638 = vmax.f32 %v3260, 0.0
        %v4639 = vmax.f32 %v3265, 0.0
        %v4640 = vmax.f32 %v3268, 0.0
        %v4641 = vmax.f32 %v3273, 0.0
        %v4642 = vmax.f32 %v3276, 0.0
        %v4643 = vmax.f32 %v3281, 0.0
        %v4644 = vmax.f32 %v3284, 0.0
        %v4645 = vmax.f32 %v3289, 0.0
        %v4646 = vmax.f32 %v3292, 0.0
        %v4647 = vmax.f32 %v3297, 0.0
        %v4648 = vmax.f32 %v3300, 0.0
        %v4649 = vmax.f32 %v3305, 0.0
        %v4650 = vmax.f32 %v3308, 0.0
        %v4651 = vmax.f32 %v3313, 0.0
        %v4652 = vmax.f32 %v3316, 0.0
        %v4653 = vmax.f32 %v3321, 0.0
        %v4654 = vmax.f32 %v3324, 0.0
        %v4655 = vmax.f32 %v3329, 0.0
        %v4656 = vmax.f32 %v3332, 0.0
        %v4657 = vmax.f32 %v3337, 0.0
        %v4658 = vmax.f32 %v3340, 0.0
        %v4659 = vmax.f32 %v3345, 0.0
        %v4660 = vmax.f32 %v3348, 0.0
        %v4661 = vmax.f32 %v3353, 0.0
        %v4662 = vmax.f32 %v3356, 0.0
        %v4663 = vmax.f32 %v3361, 0.0
        %v4664 = vmax.f32 %v3364, 0.0
        %v4665 = vmax.f32 %v3369, 0.0
        %v4666 = vmax.f32 %v3372, 0.0
        %v4667 = vmax.f32 %v3377, 0.0
        %v4668 = vmax.f32 %v3380, 0.0
        %v4669 = vmax.f32 %v3385, 0.0
        %v4670 = vmax.f32 %v3388, 0.0
        %v4671 = vmax.f32 %v3393, 0.0
        %v4672 = vmax.f32 %v3396, 0.0
        %v4673 = vmax.f32 %v3401, 0.0
        %v4674 = vmax.f32 %v3404, 0.0
        %v4675 = vmax.f32 %v3409, 0.0
        %v4676 = vmax.f32 %v3412, 0.0
        %v4677 = vmax.f32 %v3417, 0.0
        %v4678 = vmax.f32 %v3420, 0.0
        %v4679 = vmax.f32 %v3425, 0.0
        %v4680 = vmax.f32 %v3428, 0.0
        %v4681 = vmax.f32 %v3433, 0.0
        %v4682 = vmax.f32 %v3436, 0.0
        %v4683 = vmax.f32 %v3441, 0.0
        %v4684 = vmax.f32 %v3444, 0.0
        %v4685 = vmax.f32 %v3449, 0.0
        %v4686 = vmax.f32 %v3452, 0.0
        %v4687 = vmax.f32 %v3457, 0.0
        %v4688 = vmax.f32 %v3460, 0.0
        %v4689 = vmax.f32 %v3465, 0.0
        %v4690 = vmax.f32 %v3468, 0.0
        %v4691 = vmax.f32 %v3473, 0.0
        %v4692 = vmax.f32 %v3476, 0.0
        %v4693 = vmax.f32 %v3481, 0.0
        %v4694 = vmax.f32 %v3484, 0.0
        %v4695 = vmax.f32 %v3489, 0.0
        %v4696 = vmax.f32 %v3492, 0.0
        %v4697 = vmax.f32 %v3497, 0.0
        %v4698 = vmax.f32 %v3500, 0.0
        %v4699 = vmax.f32 %v3505, 0.0
        %v4700 = vmax.f32 %v3508, 0.0
        %v4701 = vmax.f32 %v3513, 0.0
        %v4702 = vmax.f32 %v3516, 0.0
        %v4703 = vmax.f32 %v3521, 0.0
        %v4704 = vmax.f32 %v3524, 0.0
        %v4705 = vmax.f32 %v3529, 0.0
        %v4706 = vmax.f32 %v3532, 0.0
        %v4707 = vmax.f32 %v3537, 0.0
        %v4708 = vmax.f32 %v3540, 0.0
        %v4709 = vmax.f32 %v3545, 0.0
        %v4710 = vmax.f32 %v3548, 0.0
        %v4711 = vmax.f32 %v3553, 0.0
        %v4712 = vmax.f32 %v3556, 0.0
        %v4713 = vmax.f32 %v3561, 0.0
        %v4714 = vmax.f32 %v3564, 0.0
        %v4715 = vmax.f32 %v3569, 0.0
        %v4716 = vmax.f32 %v3572, 0.0
        %v4717 = vmax.f32 %v3577, 0.0
        %v4718 = vmax.f32 %v3580, 0.0
        %v4719 = vmax.f32 %v3585, 0.0
        %v4720 = vmax.f32 %v3588, 0.0
        %v4721 = vmax.f32 %v3593, 0.0
        %v4722 = vmax.f32 %v3596, 0.0
        %v4723 = vmax.f32 %v3601, 0.0
        %v4724 = vmax.f32 %v3604, 0.0
        %v4725 = vmax.f32 %v3609, 0.0
        %v4726 = vmax.f32 %v3612, 0.0
        %v4727 = vmax.f32 %v3617, 0.0
        %v4728 = vmax.f32 %v3620, 0.0
        %v4729 = vmax.f32 %v3625, 0.0
        %v4730 = vmax.f32 %v3628, 0.0
        %v4731 = vmax.f32 %v3633, 0.0
        %v4732 = vmax.f32 %v3636, 0.0
        %v4733 = vmax.f32 %v3641, 0.0
        %v4734 = vmax.f32 %v3644, 0.0
        %v4735 = vmax.f32 %v3649, 0.0
        %v4736 = vmax.f32 %v3652, 0.0
        %v4737 = vmax.f32 %v3657, 0.0
        %v4738 = vmax.f32 %v3660, 0.0
        %v4739 = vmax.f32 %v3665, 0.0
        %v4740 = vmax.f32 %v3668, 0.0
        %v4741 = vmax.f32 %v3673, 0.0
        %v4742 = vmax.f32 %v3676, 0.0
        %v4743 = vmax.f32 %v3681, 0.0
        %v4744 = vmax.f32 %v3684, 0.0
        %v4745 = vmax.f32 %v3689, 0.0
        %v4746 = vmax.f32 %v3692, 0.0
        %v4747 = vmax.f32 %v3697, 0.0
        %v4748 = vmax.f32 %v3700, 0.0
        %v4749 = vmax.f32 %v3705, 0.0
        %v4750 = vmax.f32 %v3708, 0.0
        %v4751 = vmax.f32 %v3713, 0.0
        %v4752 = vmax.f32 %v3716, 0.0
        %v4753 = vmax.f32 %v3721, 0.0
        %v4754 = vmax.f32 %v3724, 0.0
        %v4755 = vmax.f32 %v3729, 0.0
        %v4756 = vmax.f32 %v3732, 0.0
        %v4757 = vmax.f32 %v3737, 0.0
        %v4758 = vmax.f32 %v3740, 0.0
        %v4759 = vmax.f32 %v3745, 0.0
        %v4760 = vmax.f32 %v3748, 0.0
        %v4761 = vmax.f32 %v3753, 0.0
        %v4762 = vmax.f32 %v3756, 0.0
        %v4763 = vmax.f32 %v3761, 0.0
        %v4764 = vmax.f32 %v3764, 0.0
        %v4765 = vmax.f32 %v3769, 0.0
        %v4766 = vmax.f32 %v3772, 0.0
        %v4767 = vmax.f32 %v3777, 0.0
        %v4768 = vmax.f32 %v3780, 0.0
        %v4769 = vmax.f32 %v3785, 0.0
        %v4770 = vmax.f32 %v3788, 0.0
        %v4771 = vmax.f32 %v3793, 0.0
        %v4772 = vmax.f32 %v3796, 0.0
        %v4773 = vmax.f32 %v3801, 0.0
        %v4774 = vmax.f32 %v3804, 0.0
        %v4775 = vmax.f32 %v3809, 0.0
        %v4776 = vmax.f32 %v3812, 0.0
        %v4777 = vmax.f32 %v3817, 0.0
        %v4778 = vmax.f32 %v3820, 0.0
        %v4779 = vmax.f32 %v3825, 0.0
        %v4780 = vmax.f32 %v3828, 0.0
        %v4781 = vmax.f32 %v3833, 0.0
        %v4782 = vmax.f32 %v3836, 0.0
        %v4783 = vmax.f32 %v3841, 0.0
        %v4784 = vmax.f32 %v3844, 0.0
        %v4785 = vmax.f32 %v3849, 0.0
        %v4786 = vmax.f32 %v3852, 0.0
        %v4787 = vmax.f32 %v3857, 0.0
        %v4788 = vmax.f32 %v3860, 0.0
        %v4789 = vmax.f32 %v3865, 0.0
        %v4790 = vmax.f32 %v3868, 0.0
        %v4791 = vmax.f32 %v3873, 0.0
        %v4792 = vmax.f32 %v3876, 0.0
        %v4793 = vmax.f32 %v3881, 0.0
        %v4794 = vmax.f32 %v3884, 0.0
        %v4795 = vmax.f32 %v3889, 0.0
        %v4796 = vmax.f32 %v3892, 0.0
        %v4797 = vmax.f32 %v3897, 0.0
        %v4798 = vmax.f32 %v3900, 0.0
        %v4799 = vmax.f32 %v3905, 0.0
        %v4800 = vmax.f32 %v3908, 0.0
        %v4801 = vmax.f32 %v3913, 0.0
        %v4802 = vmax.f32 %v3916, 0.0
        %v4803 = vmax.f32 %v3921, 0.0
        %v4804 = vmax.f32 %v3924, 0.0
        %v4805 = vmax.f32 %v3929, 0.0
        %v4806 = vmax.f32 %v3932, 0.0
        %v4807 = vmax.f32 %v3937, 0.0
        %v4808 = vmax.f32 %v3940, 0.0
        %v4809 = vmax.f32 %v3945, 0.0
        %v4810 = vmax.f32 %v3948, 0.0
        %v4811 = vmax.f32 %v3953, 0.0
        %v4812 = vmax.f32 %v3956, 0.0
        %v4813 = vmax.f32 %v3961, 0.0
        %v4814 = vmax.f32 %v3964, 0.0
        %v4815 = vmax.f32 %v3969, 0.0
        %v4816 = vmax.f32 %v3972, 0.0
        %v4817 = vmax.f32 %v3977, 0.0
        %v4818 = vmax.f32 %v3980, 0.0
        %v4819 = vmax.f32 %v3985, 0.0
        %v4820 = vmax.f32 %v3988, 0.0
        %v4821 = vmax.f32 %v3993, 0.0
        %v4822 = vmax.f32 %v3996, 0.0
        %v4823 = vmax.f32 %v4001, 0.0
        %v4824 = vmax.f32 %v4004, 0.0
        %v4825 = vmax.f32 %v4009, 0.0
        %v4826 = vmax.f32 %v4012, 0.0
        %v4827 = vmax.f32 %v4017, 0.0
        %v4828 = vmax.f32 %v4020, 0.0
        %v4829 = vmax.f32 %v4025, 0.0
        %v4830 = vmax.f32 %v4028, 0.0
        %v4831 = vmax.f32 %v4033, 0.0
        %v4832 = vmax.f32 %v4036, 0.0
        %v4833 = vmax.f32 %v4041, 0.0
        %v4834 = vmax.f32 %v4044, 0.0
        %v4835 = vmax.f32 %v4049, 0.0
        %v4836 = vmax.f32 %v4052, 0.0
        %v4837 = vmax.f32 %v4057, 0.0
        %v4838 = vmax.f32 %v4060, 0.0
        %v4839 = vmax.f32 %v4065, 0.0
        %v4840 = vmax.f32 %v4068, 0.0
        %v4841 = vmax.f32 %v4073, 0.0
        %v4842 = vmax.f32 %v4076, 0.0
        %v4843 = vmax.f32 %v4081, 0.0
        %v4844 = vmax.f32 %v4084, 0.0
        %v4845 = vmax.f32 %v4089, 0.0
        %v4846 = vmax.f32 %v4092, 0.0
        %v4847 = vmax.f32 %v4097, 0.0
        %v4848 = vmax.f32 %v4100, 0.0
        %v4849 = vmax.f32 %v4105, 0.0
        %v4850 = vmax.f32 %v4108, 0.0
        %v4851 = vmax.f32 %v4113, 0.0
        %v4852 = vmax.f32 %v4116, 0.0
        %v4853 = vmax.f32 %v4121, 0.0
        %v4854 = vmax.f32 %v4124, 0.0
        %v4855 = vmax.f32 %v4129, 0.0
        %v4856 = vmax.f32 %v4132, 0.0
        %v4857 = vmax.f32 %v4137, 0.0
        %v4858 = vmax.f32 %v4140, 0.0
        %v4859 = vmax.f32 %v4145, 0.0
        %v4860 = vmax.f32 %v4148, 0.0
        %v4861 = vmax.f32 %v4153, 0.0
        %v4862 = vmax.f32 %v4156, 0.0
        %v4863 = vmax.f32 %v4161, 0.0
        %v4864 = vmax.f32 %v4164, 0.0
        %v4865 = vmax.f32 %v4169, 0.0
        %v4866 = vmax.f32 %v4172, 0.0
        %v4867 = vmax.f32 %v4177, 0.0
        %v4868 = vmax.f32 %v4180, 0.0
        %v4869 = vmax.f32 %v4185, 0.0
        %v4870 = vmax.f32 %v4188, 0.0
        %v4871 = vmax.f32 %v4193, 0.0
        %v4872 = vmax.f32 %v4196, 0.0
        %v4873 = vmax.f32 %v4201, 0.0
        %v4874 = vmax.f32 %v4204, 0.0
        %v4875 = vmax.f32 %v4209, 0.0
        %v4876 = vmax.f32 %v4212, 0.0
        %v4877 = vmax.f32 %v4217, 0.0
        %v4878 = vmax.f32 %v4220, 0.0
        %v4879 = vmax.f32 %v4225, 0.0
        %v4880 = vmax.f32 %v4228, 0.0
        %v4881 = vmax.f32 %v4233, 0.0
        %v4882 = vmax.f32 %v4236, 0.0
        %v4883 = vmax.f32 %v4241, 0.0
        %v4884 = vmax.f32 %v4244, 0.0
        %v4885 = vmax.f32 %v4249, 0.0
        %v4886 = vmax.f32 %v4252, 0.0
        %v4887 = vmax.f32 %v4257, 0.0
        %v4888 = vmax.f32 %v4260, 0.0
        %v4889 = vmax.f32 %v4265, 0.0
        %v4890 = vmax.f32 %v4268, 0.0
        %v4891 = vmax.f32 %v4273, 0.0
        %v4892 = vmax.f32 %v4276, 0.0
        %v4893 = vmax.f32 %v4281, 0.0
        %v4894 = vmax.f32 %v4284, 0.0
        %v4895 = vmax.f32 %v4289, 0.0
        %v4896 = vmax.f32 %v4292, 0.0
        %v4897 = vmax.f32 %v4297, 0.0
        %v4898 = vmax.f32 %v4300, 0.0
        %v4899 = vmax.f32 %v4305, 0.0
        %v4900 = vmax.f32 %v4308, 0.0
        %v4901 = vmax.f32 %v4313, 0.0
        %v4902 = vmax.f32 %v4316, 0.0
        %v4903 = vmax.f32 %v4321, 0.0
        %v4904 = vmax.f32 %v4324, 0.0
        %v4905 = vmax.f32 %v4329, 0.0
        %v4906 = vmax.f32 %v4332, 0.0
        %v4907 = vmax.f32 %v4337, 0.0
        %v4908 = vmax.f32 %v4340, 0.0
        %v4909 = vmax.f32 %v4345, 0.0
        %v4910 = vmax.f32 %v4348, 0.0
        %v4911 = vmax.f32 %v4353, 0.0
        %v4912 = vmax.f32 %v4356, 0.0
        %v4913 = vmax.f32 %v4361, 0.0
        %v4914 = vmax.f32 %v4364, 0.0
        %v4915 = vmax.f32 %v4369, 0.0
        %v4916 = vmax.f32 %v4372, 0.0
        %v4917 = vmax.f32 %v4377, 0.0
        %v4918 = vmax.f32 %v4380, 0.0
        %v4919 = vmax.f32 %v4385, 0.0
        %v4920 = vmax.f32 %v4388, 0.0
        %v4921 = vmax.f32 %v4393, 0.0
        %v4922 = vmax.f32 %v4396, 0.0
        %v4923 = vmax.f32 %v4401, 0.0
        %v4924 = vmax.f32 %v4404, 0.0
        %v4925 = vmax.f32 %v4409, 0.0
        %v4926 = vmax.f32 %v4412, 0.0
        %v4927 = vpack.c.bf16 %v4416, %v4415
        %v4928 = vpack.c.bf16 %v4418, %v4417
        %v4929 = vpack.c.bf16 %v4420, %v4419
        %v4930 = vpack.c.bf16 %v4422, %v4421
        %v4931 = vpack.c.bf16 %v4424, %v4423
        %v4932 = vpack.c.bf16 %v4426, %v4425
        %v4933 = vpack.c.bf16 %v4428, %v4427
        %v4934 = vpack.c.bf16 %v4430, %v4429
        %v4935 = vpack.c.bf16 %v4432, %v4431
        %v4936 = vpack.c.bf16 %v4434, %v4433
        %v4937 = vpack.c.bf16 %v4436, %v4435
        %v4938 = vpack.c.bf16 %v4438, %v4437
        %v4939 = vpack.c.bf16 %v4440, %v4439
        %v4940 = vpack.c.bf16 %v4442, %v4441
        %v4941 = vpack.c.bf16 %v4444, %v4443
        %v4942 = vpack.c.bf16 %v4446, %v4445
        %v4943 = vpack.c.bf16 %v4448, %v4447
        %v4944 = vpack.c.bf16 %v4450, %v4449
        %v4945 = vpack.c.bf16 %v4452, %v4451
        %v4946 = vpack.c.bf16 %v4454, %v4453
        %v4947 = vpack.c.bf16 %v4456, %v4455
        %v4948 = vpack.c.bf16 %v4458, %v4457
        %v4949 = vpack.c.bf16 %v4460, %v4459
        %v4950 = vpack.c.bf16 %v4462, %v4461
        %v4951 = vpack.c.bf16 %v4464, %v4463
        %v4952 = vpack.c.bf16 %v4466, %v4465
        %v4953 = vpack.c.bf16 %v4468, %v4467
        %v4954 = vpack.c.bf16 %v4470, %v4469
        %v4955 = vpack.c.bf16 %v4472, %v4471
        %v4956 = vpack.c.bf16 %v4474, %v4473
        %v4957 = vpack.c.bf16 %v4476, %v4475
        %v4958 = vpack.c.bf16 %v4478, %v4477
        %v4959 = vpack.c.bf16 %v4480, %v4479
        %v4960 = vpack.c.bf16 %v4482, %v4481
        %v4961 = vpack.c.bf16 %v4484, %v4483
        %v4962 = vpack.c.bf16 %v4486, %v4485
        %v4963 = vpack.c.bf16 %v4488, %v4487
        %v4964 = vpack.c.bf16 %v4490, %v4489
        %v4965 = vpack.c.bf16 %v4492, %v4491
        %v4966 = vpack.c.bf16 %v4494, %v4493
        %v4967 = vpack.c.bf16 %v4496, %v4495
        %v4968 = vpack.c.bf16 %v4498, %v4497
        %v4969 = vpack.c.bf16 %v4500, %v4499
        %v4970 = vpack.c.bf16 %v4502, %v4501
        %v4971 = vpack.c.bf16 %v4504, %v4503
        %v4972 = vpack.c.bf16 %v4506, %v4505
        %v4973 = vpack.c.bf16 %v4508, %v4507
        %v4974 = vpack.c.bf16 %v4510, %v4509
        %v4975 = vpack.c.bf16 %v4512, %v4511
        %v4976 = vpack.c.bf16 %v4514, %v4513
        %v4977 = vpack.c.bf16 %v4516, %v4515
        %v4978 = vpack.c.bf16 %v4518, %v4517
        %v4979 = vpack.c.bf16 %v4520, %v4519
        %v4980 = vpack.c.bf16 %v4522, %v4521
        %v4981 = vpack.c.bf16 %v4524, %v4523
        %v4982 = vpack.c.bf16 %v4526, %v4525
        %v4983 = vpack.c.bf16 %v4528, %v4527
        %v4984 = vpack.c.bf16 %v4530, %v4529
        %v4985 = vpack.c.bf16 %v4532, %v4531
        %v4986 = vpack.c.bf16 %v4534, %v4533
        %v4987 = vpack.c.bf16 %v4536, %v4535
        %v4988 = vpack.c.bf16 %v4538, %v4537
        %v4989 = vpack.c.bf16 %v4540, %v4539
        %v4990 = vpack.c.bf16 %v4542, %v4541
        %v4991 = vpack.c.bf16 %v4544, %v4543
        %v4992 = vpack.c.bf16 %v4546, %v4545
        %v4993 = vpack.c.bf16 %v4548, %v4547
        %v4994 = vpack.c.bf16 %v4550, %v4549
        %v4995 = vpack.c.bf16 %v4552, %v4551
        %v4996 = vpack.c.bf16 %v4554, %v4553
        %v4997 = vpack.c.bf16 %v4556, %v4555
        %v4998 = vpack.c.bf16 %v4558, %v4557
        %v4999 = vpack.c.bf16 %v4560, %v4559
        %v5000 = vpack.c.bf16 %v4562, %v4561
        %v5001 = vpack.c.bf16 %v4564, %v4563
        %v5002 = vpack.c.bf16 %v4566, %v4565
        %v5003 = vpack.c.bf16 %v4568, %v4567
        %v5004 = vpack.c.bf16 %v4570, %v4569
        %v5005 = vpack.c.bf16 %v4572, %v4571
        %v5006 = vpack.c.bf16 %v4574, %v4573
        %v5007 = vpack.c.bf16 %v4576, %v4575
        %v5008 = vpack.c.bf16 %v4578, %v4577
        %v5009 = vpack.c.bf16 %v4580, %v4579
        %v5010 = vpack.c.bf16 %v4582, %v4581
        %v5011 = vpack.c.bf16 %v4584, %v4583
        %v5012 = vpack.c.bf16 %v4586, %v4585
        %v5013 = vpack.c.bf16 %v4588, %v4587
        %v5014 = vpack.c.bf16 %v4590, %v4589
        %v5015 = vpack.c.bf16 %v4592, %v4591
        %v5016 = vpack.c.bf16 %v4594, %v4593
        %v5017 = vpack.c.bf16 %v4596, %v4595
        %v5018 = vpack.c.bf16 %v4598, %v4597
        %v5019 = vpack.c.bf16 %v4600, %v4599
        %v5020 = vpack.c.bf16 %v4602, %v4601
        %v5021 = vpack.c.bf16 %v4604, %v4603
        %v5022 = vpack.c.bf16 %v4606, %v4605
        %v5023 = vpack.c.bf16 %v4608, %v4607
        %v5024 = vpack.c.bf16 %v4610, %v4609
        %v5025 = vpack.c.bf16 %v4612, %v4611
        %v5026 = vpack.c.bf16 %v4614, %v4613
        %v5027 = vpack.c.bf16 %v4616, %v4615
        %v5028 = vpack.c.bf16 %v4618, %v4617
        %v5029 = vpack.c.bf16 %v4620, %v4619
        %v5030 = vpack.c.bf16 %v4622, %v4621
        %v5031 = vpack.c.bf16 %v4624, %v4623
        %v5032 = vpack.c.bf16 %v4626, %v4625
        %v5033 = vpack.c.bf16 %v4628, %v4627
        %v5034 = vpack.c.bf16 %v4630, %v4629
        %v5035 = vpack.c.bf16 %v4632, %v4631
        %v5036 = vpack.c.bf16 %v4634, %v4633
        %v5037 = vpack.c.bf16 %v4636, %v4635
        %v5038 = vpack.c.bf16 %v4638, %v4637
        %v5039 = vpack.c.bf16 %v4640, %v4639
        %v5040 = vpack.c.bf16 %v4642, %v4641
        %v5041 = vpack.c.bf16 %v4644, %v4643
        %v5042 = vpack.c.bf16 %v4646, %v4645
        %v5043 = vpack.c.bf16 %v4648, %v4647
        %v5044 = vpack.c.bf16 %v4650, %v4649
        %v5045 = vpack.c.bf16 %v4652, %v4651
        %v5046 = vpack.c.bf16 %v4654, %v4653
        %v5047 = vpack.c.bf16 %v4656, %v4655
        %v5048 = vpack.c.bf16 %v4658, %v4657
        %v5049 = vpack.c.bf16 %v4660, %v4659
        %v5050 = vpack.c.bf16 %v4662, %v4661
        %v5051 = vpack.c.bf16 %v4664, %v4663
        %v5052 = vpack.c.bf16 %v4666, %v4665
        %v5053 = vpack.c.bf16 %v4668, %v4667
        %v5054 = vpack.c.bf16 %v4670, %v4669
        %v5055 = vpack.c.bf16 %v4672, %v4671
        %v5056 = vpack.c.bf16 %v4674, %v4673
        %v5057 = vpack.c.bf16 %v4676, %v4675
        %v5058 = vpack.c.bf16 %v4678, %v4677
        %v5059 = vpack.c.bf16 %v4680, %v4679
        %v5060 = vpack.c.bf16 %v4682, %v4681
        %v5061 = vpack.c.bf16 %v4684, %v4683
        %v5062 = vpack.c.bf16 %v4686, %v4685
        %v5063 = vpack.c.bf16 %v4688, %v4687
        %v5064 = vpack.c.bf16 %v4690, %v4689
        %v5065 = vpack.c.bf16 %v4692, %v4691
        %v5066 = vpack.c.bf16 %v4694, %v4693
        %v5067 = vpack.c.bf16 %v4696, %v4695
        %v5068 = vpack.c.bf16 %v4698, %v4697
        %v5069 = vpack.c.bf16 %v4700, %v4699
        %v5070 = vpack.c.bf16 %v4702, %v4701
        %v5071 = vpack.c.bf16 %v4704, %v4703
        %v5072 = vpack.c.bf16 %v4706, %v4705
        %v5073 = vpack.c.bf16 %v4708, %v4707
        %v5074 = vpack.c.bf16 %v4710, %v4709
        %v5075 = vpack.c.bf16 %v4712, %v4711
        %v5076 = vpack.c.bf16 %v4714, %v4713
        %v5077 = vpack.c.bf16 %v4716, %v4715
        %v5078 = vpack.c.bf16 %v4718, %v4717
        %v5079 = vpack.c.bf16 %v4720, %v4719
        %v5080 = vpack.c.bf16 %v4722, %v4721
        %v5081 = vpack.c.bf16 %v4724, %v4723
        %v5082 = vpack.c.bf16 %v4726, %v4725
        %v5083 = vpack.c.bf16 %v4728, %v4727
        %v5084 = vpack.c.bf16 %v4730, %v4729
        %v5085 = vpack.c.bf16 %v4732, %v4731
        %v5086 = vpack.c.bf16 %v4734, %v4733
        %v5087 = vpack.c.bf16 %v4736, %v4735
        %v5088 = vpack.c.bf16 %v4738, %v4737
        %v5089 = vpack.c.bf16 %v4740, %v4739
        %v5090 = vpack.c.bf16 %v4742, %v4741
        %v5091 = vpack.c.bf16 %v4744, %v4743
        %v5092 = vpack.c.bf16 %v4746, %v4745
        %v5093 = vpack.c.bf16 %v4748, %v4747
        %v5094 = vpack.c.bf16 %v4750, %v4749
        %v5095 = vpack.c.bf16 %v4752, %v4751
        %v5096 = vpack.c.bf16 %v4754, %v4753
        %v5097 = vpack.c.bf16 %v4756, %v4755
        %v5098 = vpack.c.bf16 %v4758, %v4757
        %v5099 = vpack.c.bf16 %v4760, %v4759
        %v5100 = vpack.c.bf16 %v4762, %v4761
        %v5101 = vpack.c.bf16 %v4764, %v4763
        %v5102 = vpack.c.bf16 %v4766, %v4765
        %v5103 = vpack.c.bf16 %v4768, %v4767
        %v5104 = vpack.c.bf16 %v4770, %v4769
        %v5105 = vpack.c.bf16 %v4772, %v4771
        %v5106 = vpack.c.bf16 %v4774, %v4773
        %v5107 = vpack.c.bf16 %v4776, %v4775
        %v5108 = vpack.c.bf16 %v4778, %v4777
        %v5109 = vpack.c.bf16 %v4780, %v4779
        %v5110 = vpack.c.bf16 %v4782, %v4781
        %v5111 = vpack.c.bf16 %v4784, %v4783
        %v5112 = vpack.c.bf16 %v4786, %v4785
        %v5113 = vpack.c.bf16 %v4788, %v4787
        %v5114 = vpack.c.bf16 %v4790, %v4789
        %v5115 = vpack.c.bf16 %v4792, %v4791
        %v5116 = vpack.c.bf16 %v4794, %v4793
        %v5117 = vpack.c.bf16 %v4796, %v4795
        %v5118 = vpack.c.bf16 %v4798, %v4797
        %v5119 = vpack.c.bf16 %v4800, %v4799
        %v5120 = vpack.c.bf16 %v4802, %v4801
        %v5121 = vpack.c.bf16 %v4804, %v4803
        %v5122 = vpack.c.bf16 %v4806, %v4805
        %v5123 = vpack.c.bf16 %v4808, %v4807
        %v5124 = vpack.c.bf16 %v4810, %v4809
        %v5125 = vpack.c.bf16 %v4812, %v4811
        %v5126 = vpack.c.bf16 %v4814, %v4813
        %v5127 = vpack.c.bf16 %v4816, %v4815
        %v5128 = vpack.c.bf16 %v4818, %v4817
        %v5129 = vpack.c.bf16 %v4820, %v4819
        %v5130 = vpack.c.bf16 %v4822, %v4821
        %v5131 = vpack.c.bf16 %v4824, %v4823
        %v5132 = vpack.c.bf16 %v4826, %v4825
        %v5133 = vpack.c.bf16 %v4828, %v4827
        %v5134 = vpack.c.bf16 %v4830, %v4829
        %v5135 = vpack.c.bf16 %v4832, %v4831
        %v5136 = vpack.c.bf16 %v4834, %v4833
        %v5137 = vpack.c.bf16 %v4836, %v4835
        %v5138 = vpack.c.bf16 %v4838, %v4837
        %v5139 = vpack.c.bf16 %v4840, %v4839
        %v5140 = vpack.c.bf16 %v4842, %v4841
        %v5141 = vpack.c.bf16 %v4844, %v4843
        %v5142 = vpack.c.bf16 %v4846, %v4845
        %v5143 = vpack.c.bf16 %v4848, %v4847
        %v5144 = vpack.c.bf16 %v4850, %v4849
        %v5145 = vpack.c.bf16 %v4852, %v4851
        %v5146 = vpack.c.bf16 %v4854, %v4853
        %v5147 = vpack.c.bf16 %v4856, %v4855
        %v5148 = vpack.c.bf16 %v4858, %v4857
        %v5149 = vpack.c.bf16 %v4860, %v4859
        %v5150 = vpack.c.bf16 %v4862, %v4861
        %v5151 = vpack.c.bf16 %v4864, %v4863
        %v5152 = vpack.c.bf16 %v4866, %v4865
        %v5153 = vpack.c.bf16 %v4868, %v4867
        %v5154 = vpack.c.bf16 %v4870, %v4869
        %v5155 = vpack.c.bf16 %v4872, %v4871
        %v5156 = vpack.c.bf16 %v4874, %v4873
        %v5157 = vpack.c.bf16 %v4876, %v4875
        %v5158 = vpack.c.bf16 %v4878, %v4877
        %v5159 = vpack.c.bf16 %v4880, %v4879
        %v5160 = vpack.c.bf16 %v4882, %v4881
        %v5161 = vpack.c.bf16 %v4884, %v4883
        %v5162 = vpack.c.bf16 %v4886, %v4885
        %v5163 = vpack.c.bf16 %v4888, %v4887
        %v5164 = vpack.c.bf16 %v4890, %v4889
        %v5165 = vpack.c.bf16 %v4892, %v4891
        %v5166 = vpack.c.bf16 %v4894, %v4893
        %v5167 = vpack.c.bf16 %v4896, %v4895
        %v5168 = vpack.c.bf16 %v4898, %v4897
        %v5169 = vpack.c.bf16 %v4900, %v4899
        %v5170 = vpack.c.bf16 %v4902, %v4901
        %v5171 = vpack.c.bf16 %v4904, %v4903
        %v5172 = vpack.c.bf16 %v4906, %v4905
        %v5173 = vpack.c.bf16 %v4908, %v4907
        %v5174 = vpack.c.bf16 %v4910, %v4909
        %v5175 = vpack.c.bf16 %v4912, %v4911
        %v5176 = vpack.c.bf16 %v4914, %v4913
        %v5177 = vpack.c.bf16 %v4916, %v4915
        %v5178 = vpack.c.bf16 %v4918, %v4917
        %v5179 = vpack.c.bf16 %v4920, %v4919
        %v5180 = vpack.c.bf16 %v4922, %v4921
        %v5181 = vpack.c.bf16 %v4924, %v4923
        %v5182 = vpack.c.bf16 %v4926, %v4925
        %v5439 = vunpack.c.l.b16 %v4927
        %v5440 = vunpack.c.h.b16 %v4927
        %v5441 = vunpack.c.l.b16 %v4928
        %v5442 = vunpack.c.h.b16 %v4928
        %v5443 = vunpack.c.l.b16 %v4929
        %v5444 = vunpack.c.h.b16 %v4929
        %v5445 = vunpack.c.l.b16 %v4930
        %v5446 = vunpack.c.h.b16 %v4930
        %v5447 = vunpack.c.l.b16 %v4931
        %v5448 = vunpack.c.h.b16 %v4931
        %v5449 = vunpack.c.l.b16 %v4932
        %v5450 = vunpack.c.h.b16 %v4932
        %v5451 = vunpack.c.l.b16 %v4933
        %v5452 = vunpack.c.h.b16 %v4933
        %v5453 = vunpack.c.l.b16 %v4934
        %v5454 = vunpack.c.h.b16 %v4934
        %v5455 = vunpack.c.l.b16 %v4935
        %v5456 = vunpack.c.h.b16 %v4935
        %v5457 = vunpack.c.l.b16 %v4936
        %v5458 = vunpack.c.h.b16 %v4936
        %v5459 = vunpack.c.l.b16 %v4937
        %v5460 = vunpack.c.h.b16 %v4937
        %v5461 = vunpack.c.l.b16 %v4938
        %v5462 = vunpack.c.h.b16 %v4938
        %v5463 = vunpack.c.l.b16 %v4939
        %v5464 = vunpack.c.h.b16 %v4939
        %v5465 = vunpack.c.l.b16 %v4940
        %v5466 = vunpack.c.h.b16 %v4940
        %v5467 = vunpack.c.l.b16 %v4941
        %v5468 = vunpack.c.h.b16 %v4941
        %v5469 = vunpack.c.l.b16 %v4942
        %v5470 = vunpack.c.h.b16 %v4942
        %v5471 = vunpack.c.l.b16 %v4943
        %v5472 = vunpack.c.h.b16 %v4943
        %v5473 = vunpack.c.l.b16 %v4944
        %v5474 = vunpack.c.h.b16 %v4944
        %v5475 = vunpack.c.l.b16 %v4945
        %v5476 = vunpack.c.h.b16 %v4945
        %v5477 = vunpack.c.l.b16 %v4946
        %v5478 = vunpack.c.h.b16 %v4946
        %v5479 = vunpack.c.l.b16 %v4947
        %v5480 = vunpack.c.h.b16 %v4947
        %v5481 = vunpack.c.l.b16 %v4948
        %v5482 = vunpack.c.h.b16 %v4948
        %v5483 = vunpack.c.l.b16 %v4949
        %v5484 = vunpack.c.h.b16 %v4949
        %v5485 = vunpack.c.l.b16 %v4950
        %v5486 = vunpack.c.h.b16 %v4950
        %v5487 = vunpack.c.l.b16 %v4951
        %v5488 = vunpack.c.h.b16 %v4951
        %v5489 = vunpack.c.l.b16 %v4952
        %v5490 = vunpack.c.h.b16 %v4952
        %v5491 = vunpack.c.l.b16 %v4953
        %v5492 = vunpack.c.h.b16 %v4953
        %v5493 = vunpack.c.l.b16 %v4954
        %v5494 = vunpack.c.h.b16 %v4954
        %v5495 = vunpack.c.l.b16 %v4955
        %v5496 = vunpack.c.h.b16 %v4955
        %v5497 = vunpack.c.l.b16 %v4956
        %v5498 = vunpack.c.h.b16 %v4956
        %v5499 = vunpack.c.l.b16 %v4957
        %v5500 = vunpack.c.h.b16 %v4957
        %v5501 = vunpack.c.l.b16 %v4958
        %v5502 = vunpack.c.h.b16 %v4958
        %v5503 = vunpack.c.l.b16 %v4959
        %v5504 = vunpack.c.h.b16 %v4959
        %v5505 = vunpack.c.l.b16 %v4960
        %v5506 = vunpack.c.h.b16 %v4960
        %v5507 = vunpack.c.l.b16 %v4961
        %v5508 = vunpack.c.h.b16 %v4961
        %v5509 = vunpack.c.l.b16 %v4962
        %v5510 = vunpack.c.h.b16 %v4962
        %v5511 = vunpack.c.l.b16 %v4963
        %v5512 = vunpack.c.h.b16 %v4963
        %v5513 = vunpack.c.l.b16 %v4964
        %v5514 = vunpack.c.h.b16 %v4964
        %v5515 = vunpack.c.l.b16 %v4965
        %v5516 = vunpack.c.h.b16 %v4965
        %v5517 = vunpack.c.l.b16 %v4966
        %v5518 = vunpack.c.h.b16 %v4966
        %v5519 = vunpack.c.l.b16 %v4967
        %v5520 = vunpack.c.h.b16 %v4967
        %v5521 = vunpack.c.l.b16 %v4968
        %v5522 = vunpack.c.h.b16 %v4968
        %v5523 = vunpack.c.l.b16 %v4969
        %v5524 = vunpack.c.h.b16 %v4969
        %v5525 = vunpack.c.l.b16 %v4970
        %v5526 = vunpack.c.h.b16 %v4970
        %v5527 = vunpack.c.l.b16 %v4971
        %v5528 = vunpack.c.h.b16 %v4971
        %v5529 = vunpack.c.l.b16 %v4972
        %v5530 = vunpack.c.h.b16 %v4972
        %v5531 = vunpack.c.l.b16 %v4973
        %v5532 = vunpack.c.h.b16 %v4973
        %v5533 = vunpack.c.l.b16 %v4974
        %v5534 = vunpack.c.h.b16 %v4974
        %v5535 = vunpack.c.l.b16 %v4975
        %v5536 = vunpack.c.h.b16 %v4975
        %v5537 = vunpack.c.l.b16 %v4976
        %v5538 = vunpack.c.h.b16 %v4976
        %v5539 = vunpack.c.l.b16 %v4977
        %v5540 = vunpack.c.h.b16 %v4977
        %v5541 = vunpack.c.l.b16 %v4978
        %v5542 = vunpack.c.h.b16 %v4978
        %v5543 = vunpack.c.l.b16 %v4979
        %v5544 = vunpack.c.h.b16 %v4979
        %v5545 = vunpack.c.l.b16 %v4980
        %v5546 = vunpack.c.h.b16 %v4980
        %v5547 = vunpack.c.l.b16 %v4981
        %v5548 = vunpack.c.h.b16 %v4981
        %v5549 = vunpack.c.l.b16 %v4982
        %v5550 = vunpack.c.h.b16 %v4982
        %v5551 = vunpack.c.l.b16 %v4983
        %v5552 = vunpack.c.h.b16 %v4983
        %v5553 = vunpack.c.l.b16 %v4984
        %v5554 = vunpack.c.h.b16 %v4984
        %v5555 = vunpack.c.l.b16 %v4985
        %v5556 = vunpack.c.h.b16 %v4985
        %v5557 = vunpack.c.l.b16 %v4986
        %v5558 = vunpack.c.h.b16 %v4986
        %v5559 = vunpack.c.l.b16 %v4987
        %v5560 = vunpack.c.h.b16 %v4987
        %v5561 = vunpack.c.l.b16 %v4988
        %v5562 = vunpack.c.h.b16 %v4988
        %v5563 = vunpack.c.l.b16 %v4989
        %v5564 = vunpack.c.h.b16 %v4989
        %v5565 = vunpack.c.l.b16 %v4990
        %v5566 = vunpack.c.h.b16 %v4990
        %v5567 = vunpack.c.l.b16 %v4991
        %v5568 = vunpack.c.h.b16 %v4991
        %v5569 = vunpack.c.l.b16 %v4992
        %v5570 = vunpack.c.h.b16 %v4992
        %v5571 = vunpack.c.l.b16 %v4993
        %v5572 = vunpack.c.h.b16 %v4993
        %v5573 = vunpack.c.l.b16 %v4994
        %v5574 = vunpack.c.h.b16 %v4994
        %v5575 = vunpack.c.l.b16 %v4995
        %v5576 = vunpack.c.h.b16 %v4995
        %v5577 = vunpack.c.l.b16 %v4996
        %v5578 = vunpack.c.h.b16 %v4996
        %v5579 = vunpack.c.l.b16 %v4997
        %v5580 = vunpack.c.h.b16 %v4997
        %v5581 = vunpack.c.l.b16 %v4998
        %v5582 = vunpack.c.h.b16 %v4998
        %v5583 = vunpack.c.l.b16 %v4999
        %v5584 = vunpack.c.h.b16 %v4999
        %v5585 = vunpack.c.l.b16 %v5000
        %v5586 = vunpack.c.h.b16 %v5000
        %v5587 = vunpack.c.l.b16 %v5001
        %v5588 = vunpack.c.h.b16 %v5001
        %v5589 = vunpack.c.l.b16 %v5002
        %v5590 = vunpack.c.h.b16 %v5002
        %v5591 = vunpack.c.l.b16 %v5003
        %v5592 = vunpack.c.h.b16 %v5003
        %v5593 = vunpack.c.l.b16 %v5004
        %v5594 = vunpack.c.h.b16 %v5004
        %v5595 = vunpack.c.l.b16 %v5005
        %v5596 = vunpack.c.h.b16 %v5005
        %v5597 = vunpack.c.l.b16 %v5006
        %v5598 = vunpack.c.h.b16 %v5006
        %v5599 = vunpack.c.l.b16 %v5007
        %v5600 = vunpack.c.h.b16 %v5007
        %v5601 = vunpack.c.l.b16 %v5008
        %v5602 = vunpack.c.h.b16 %v5008
        %v5603 = vunpack.c.l.b16 %v5009
        %v5604 = vunpack.c.h.b16 %v5009
        %v5605 = vunpack.c.l.b16 %v5010
        %v5606 = vunpack.c.h.b16 %v5010
        %v5607 = vunpack.c.l.b16 %v5011
        %v5608 = vunpack.c.h.b16 %v5011
        %v5609 = vunpack.c.l.b16 %v5012
        %v5610 = vunpack.c.h.b16 %v5012
        %v5611 = vunpack.c.l.b16 %v5013
        %v5612 = vunpack.c.h.b16 %v5013
        %v5613 = vunpack.c.l.b16 %v5014
        %v5614 = vunpack.c.h.b16 %v5014
        %v5615 = vunpack.c.l.b16 %v5015
        %v5616 = vunpack.c.h.b16 %v5015
        %v5617 = vunpack.c.l.b16 %v5016
        %v5618 = vunpack.c.h.b16 %v5016
        %v5619 = vunpack.c.l.b16 %v5017
        %v5620 = vunpack.c.h.b16 %v5017
        %v5621 = vunpack.c.l.b16 %v5018
        %v5622 = vunpack.c.h.b16 %v5018
        %v5623 = vunpack.c.l.b16 %v5019
        %v5624 = vunpack.c.h.b16 %v5019
        %v5625 = vunpack.c.l.b16 %v5020
        %v5626 = vunpack.c.h.b16 %v5020
        %v5627 = vunpack.c.l.b16 %v5021
        %v5628 = vunpack.c.h.b16 %v5021
        %v5629 = vunpack.c.l.b16 %v5022
        %v5630 = vunpack.c.h.b16 %v5022
        %v5631 = vunpack.c.l.b16 %v5023
        %v5632 = vunpack.c.h.b16 %v5023
        %v5633 = vunpack.c.l.b16 %v5024
        %v5634 = vunpack.c.h.b16 %v5024
        %v5635 = vunpack.c.l.b16 %v5025
        %v5636 = vunpack.c.h.b16 %v5025
        %v5637 = vunpack.c.l.b16 %v5026
        %v5638 = vunpack.c.h.b16 %v5026
        %v5639 = vunpack.c.l.b16 %v5027
        %v5640 = vunpack.c.h.b16 %v5027
        %v5641 = vunpack.c.l.b16 %v5028
        %v5642 = vunpack.c.h.b16 %v5028
        %v5643 = vunpack.c.l.b16 %v5029
        %v5644 = vunpack.c.h.b16 %v5029
        %v5645 = vunpack.c.l.b16 %v5030
        %v5646 = vunpack.c.h.b16 %v5030
        %v5647 = vunpack.c.l.b16 %v5031
        %v5648 = vunpack.c.h.b16 %v5031
        %v5649 = vunpack.c.l.b16 %v5032
        %v5650 = vunpack.c.h.b16 %v5032
        %v5651 = vunpack.c.l.b16 %v5033
        %v5652 = vunpack.c.h.b16 %v5033
        %v5653 = vunpack.c.l.b16 %v5034
        %v5654 = vunpack.c.h.b16 %v5034
        %v5655 = vunpack.c.l.b16 %v5035
        %v5656 = vunpack.c.h.b16 %v5035
        %v5657 = vunpack.c.l.b16 %v5036
        %v5658 = vunpack.c.h.b16 %v5036
        %v5659 = vunpack.c.l.b16 %v5037
        %v5660 = vunpack.c.h.b16 %v5037
        %v5661 = vunpack.c.l.b16 %v5038
        %v5662 = vunpack.c.h.b16 %v5038
        %v5663 = vunpack.c.l.b16 %v5039
        %v5664 = vunpack.c.h.b16 %v5039
        %v5665 = vunpack.c.l.b16 %v5040
        %v5666 = vunpack.c.h.b16 %v5040
        %v5667 = vunpack.c.l.b16 %v5041
        %v5668 = vunpack.c.h.b16 %v5041
        %v5669 = vunpack.c.l.b16 %v5042
        %v5670 = vunpack.c.h.b16 %v5042
        %v5671 = vunpack.c.l.b16 %v5043
        %v5672 = vunpack.c.h.b16 %v5043
        %v5673 = vunpack.c.l.b16 %v5044
        %v5674 = vunpack.c.h.b16 %v5044
        %v5675 = vunpack.c.l.b16 %v5045
        %v5676 = vunpack.c.h.b16 %v5045
        %v5677 = vunpack.c.l.b16 %v5046
        %v5678 = vunpack.c.h.b16 %v5046
        %v5679 = vunpack.c.l.b16 %v5047
        %v5680 = vunpack.c.h.b16 %v5047
        %v5681 = vunpack.c.l.b16 %v5048
        %v5682 = vunpack.c.h.b16 %v5048
        %v5683 = vunpack.c.l.b16 %v5049
        %v5684 = vunpack.c.h.b16 %v5049
        %v5685 = vunpack.c.l.b16 %v5050
        %v5686 = vunpack.c.h.b16 %v5050
        %v5687 = vunpack.c.l.b16 %v5051
        %v5688 = vunpack.c.h.b16 %v5051
        %v5689 = vunpack.c.l.b16 %v5052
        %v5690 = vunpack.c.h.b16 %v5052
        %v5691 = vunpack.c.l.b16 %v5053
        %v5692 = vunpack.c.h.b16 %v5053
        %v5693 = vunpack.c.l.b16 %v5054
        %v5694 = vunpack.c.h.b16 %v5054
        %v5695 = vunpack.c.l.b16 %v5055
        %v5696 = vunpack.c.h.b16 %v5055
        %v5697 = vunpack.c.l.b16 %v5056
        %v5698 = vunpack.c.h.b16 %v5056
        %v5699 = vunpack.c.l.b16 %v5057
        %v5700 = vunpack.c.h.b16 %v5057
        %v5701 = vunpack.c.l.b16 %v5058
        %v5702 = vunpack.c.h.b16 %v5058
        %v5703 = vunpack.c.l.b16 %v5059
        %v5704 = vunpack.c.h.b16 %v5059
        %v5705 = vunpack.c.l.b16 %v5060
        %v5706 = vunpack.c.h.b16 %v5060
        %v5707 = vunpack.c.l.b16 %v5061
        %v5708 = vunpack.c.h.b16 %v5061
        %v5709 = vunpack.c.l.b16 %v5062
        %v5710 = vunpack.c.h.b16 %v5062
        %v5711 = vunpack.c.l.b16 %v5063
        %v5712 = vunpack.c.h.b16 %v5063
        %v5713 = vunpack.c.l.b16 %v5064
        %v5714 = vunpack.c.h.b16 %v5064
        %v5715 = vunpack.c.l.b16 %v5065
        %v5716 = vunpack.c.h.b16 %v5065
        %v5717 = vunpack.c.l.b16 %v5066
        %v5718 = vunpack.c.h.b16 %v5066
        %v5719 = vunpack.c.l.b16 %v5067
        %v5720 = vunpack.c.h.b16 %v5067
        %v5721 = vunpack.c.l.b16 %v5068
        %v5722 = vunpack.c.h.b16 %v5068
        %v5723 = vunpack.c.l.b16 %v5069
        %v5724 = vunpack.c.h.b16 %v5069
        %v5725 = vunpack.c.l.b16 %v5070
        %v5726 = vunpack.c.h.b16 %v5070
        %v5727 = vunpack.c.l.b16 %v5071
        %v5728 = vunpack.c.h.b16 %v5071
        %v5729 = vunpack.c.l.b16 %v5072
        %v5730 = vunpack.c.h.b16 %v5072
        %v5731 = vunpack.c.l.b16 %v5073
        %v5732 = vunpack.c.h.b16 %v5073
        %v5733 = vunpack.c.l.b16 %v5074
        %v5734 = vunpack.c.h.b16 %v5074
        %v5735 = vunpack.c.l.b16 %v5075
        %v5736 = vunpack.c.h.b16 %v5075
        %v5737 = vunpack.c.l.b16 %v5076
        %v5738 = vunpack.c.h.b16 %v5076
        %v5739 = vunpack.c.l.b16 %v5077
        %v5740 = vunpack.c.h.b16 %v5077
        %v5741 = vunpack.c.l.b16 %v5078
        %v5742 = vunpack.c.h.b16 %v5078
        %v5743 = vunpack.c.l.b16 %v5079
        %v5744 = vunpack.c.h.b16 %v5079
        %v5745 = vunpack.c.l.b16 %v5080
        %v5746 = vunpack.c.h.b16 %v5080
        %v5747 = vunpack.c.l.b16 %v5081
        %v5748 = vunpack.c.h.b16 %v5081
        %v5749 = vunpack.c.l.b16 %v5082
        %v5750 = vunpack.c.h.b16 %v5082
        %v5751 = vunpack.c.l.b16 %v5083
        %v5752 = vunpack.c.h.b16 %v5083
        %v5753 = vunpack.c.l.b16 %v5084
        %v5754 = vunpack.c.h.b16 %v5084
        %v5755 = vunpack.c.l.b16 %v5085
        %v5756 = vunpack.c.h.b16 %v5085
        %v5757 = vunpack.c.l.b16 %v5086
        %v5758 = vunpack.c.h.b16 %v5086
        %v5759 = vunpack.c.l.b16 %v5087
        %v5760 = vunpack.c.h.b16 %v5087
        %v5761 = vunpack.c.l.b16 %v5088
        %v5762 = vunpack.c.h.b16 %v5088
        %v5763 = vunpack.c.l.b16 %v5089
        %v5764 = vunpack.c.h.b16 %v5089
        %v5765 = vunpack.c.l.b16 %v5090
        %v5766 = vunpack.c.h.b16 %v5090
        %v5767 = vunpack.c.l.b16 %v5091
        %v5768 = vunpack.c.h.b16 %v5091
        %v5769 = vunpack.c.l.b16 %v5092
        %v5770 = vunpack.c.h.b16 %v5092
        %v5771 = vunpack.c.l.b16 %v5093
        %v5772 = vunpack.c.h.b16 %v5093
        %v5773 = vunpack.c.l.b16 %v5094
        %v5774 = vunpack.c.h.b16 %v5094
        %v5775 = vunpack.c.l.b16 %v5095
        %v5776 = vunpack.c.h.b16 %v5095
        %v5777 = vunpack.c.l.b16 %v5096
        %v5778 = vunpack.c.h.b16 %v5096
        %v5779 = vunpack.c.l.b16 %v5097
        %v5780 = vunpack.c.h.b16 %v5097
        %v5781 = vunpack.c.l.b16 %v5098
        %v5782 = vunpack.c.h.b16 %v5098
        %v5783 = vunpack.c.l.b16 %v5099
        %v5784 = vunpack.c.h.b16 %v5099
        %v5785 = vunpack.c.l.b16 %v5100
        %v5786 = vunpack.c.h.b16 %v5100
        %v5787 = vunpack.c.l.b16 %v5101
        %v5788 = vunpack.c.h.b16 %v5101
        %v5789 = vunpack.c.l.b16 %v5102
        %v5790 = vunpack.c.h.b16 %v5102
        %v5791 = vunpack.c.l.b16 %v5103
        %v5792 = vunpack.c.h.b16 %v5103
        %v5793 = vunpack.c.l.b16 %v5104
        %v5794 = vunpack.c.h.b16 %v5104
        %v5795 = vunpack.c.l.b16 %v5105
        %v5796 = vunpack.c.h.b16 %v5105
        %v5797 = vunpack.c.l.b16 %v5106
        %v5798 = vunpack.c.h.b16 %v5106
        %v5799 = vunpack.c.l.b16 %v5107
        %v5800 = vunpack.c.h.b16 %v5107
        %v5801 = vunpack.c.l.b16 %v5108
        %v5802 = vunpack.c.h.b16 %v5108
        %v5803 = vunpack.c.l.b16 %v5109
        %v5804 = vunpack.c.h.b16 %v5109
        %v5805 = vunpack.c.l.b16 %v5110
        %v5806 = vunpack.c.h.b16 %v5110
        %v5807 = vunpack.c.l.b16 %v5111
        %v5808 = vunpack.c.h.b16 %v5111
        %v5809 = vunpack.c.l.b16 %v5112
        %v5810 = vunpack.c.h.b16 %v5112
        %v5811 = vunpack.c.l.b16 %v5113
        %v5812 = vunpack.c.h.b16 %v5113
        %v5813 = vunpack.c.l.b16 %v5114
        %v5814 = vunpack.c.h.b16 %v5114
        %v5815 = vunpack.c.l.b16 %v5115
        %v5816 = vunpack.c.h.b16 %v5115
        %v5817 = vunpack.c.l.b16 %v5116
        %v5818 = vunpack.c.h.b16 %v5116
        %v5819 = vunpack.c.l.b16 %v5117
        %v5820 = vunpack.c.h.b16 %v5117
        %v5821 = vunpack.c.l.b16 %v5118
        %v5822 = vunpack.c.h.b16 %v5118
        %v5823 = vunpack.c.l.b16 %v5119
        %v5824 = vunpack.c.h.b16 %v5119
        %v5825 = vunpack.c.l.b16 %v5120
        %v5826 = vunpack.c.h.b16 %v5120
        %v5827 = vunpack.c.l.b16 %v5121
        %v5828 = vunpack.c.h.b16 %v5121
        %v5829 = vunpack.c.l.b16 %v5122
        %v5830 = vunpack.c.h.b16 %v5122
        %v5831 = vunpack.c.l.b16 %v5123
        %v5832 = vunpack.c.h.b16 %v5123
        %v5833 = vunpack.c.l.b16 %v5124
        %v5834 = vunpack.c.h.b16 %v5124
        %v5835 = vunpack.c.l.b16 %v5125
        %v5836 = vunpack.c.h.b16 %v5125
        %v5837 = vunpack.c.l.b16 %v5126
        %v5838 = vunpack.c.h.b16 %v5126
        %v5839 = vunpack.c.l.b16 %v5127
        %v5840 = vunpack.c.h.b16 %v5127
        %v5841 = vunpack.c.l.b16 %v5128
        %v5842 = vunpack.c.h.b16 %v5128
        %v5843 = vunpack.c.l.b16 %v5129
        %v5844 = vunpack.c.h.b16 %v5129
        %v5845 = vunpack.c.l.b16 %v5130
        %v5846 = vunpack.c.h.b16 %v5130
        %v5847 = vunpack.c.l.b16 %v5131
        %v5848 = vunpack.c.h.b16 %v5131
        %v5849 = vunpack.c.l.b16 %v5132
        %v5850 = vunpack.c.h.b16 %v5132
        %v5851 = vunpack.c.l.b16 %v5133
        %v5852 = vunpack.c.h.b16 %v5133
        %v5853 = vunpack.c.l.b16 %v5134
        %v5854 = vunpack.c.h.b16 %v5134
        %v5855 = vunpack.c.l.b16 %v5135
        %v5856 = vunpack.c.h.b16 %v5135
        %v5857 = vunpack.c.l.b16 %v5136
        %v5858 = vunpack.c.h.b16 %v5136
        %v5859 = vunpack.c.l.b16 %v5137
        %v5860 = vunpack.c.h.b16 %v5137
        %v5861 = vunpack.c.l.b16 %v5138
        %v5862 = vunpack.c.h.b16 %v5138
        %v5863 = vunpack.c.l.b16 %v5139
        %v5864 = vunpack.c.h.b16 %v5139
        %v5865 = vunpack.c.l.b16 %v5140
        %v5866 = vunpack.c.h.b16 %v5140
        %v5867 = vunpack.c.l.b16 %v5141
        %v5868 = vunpack.c.h.b16 %v5141
        %v5869 = vunpack.c.l.b16 %v5142
        %v5870 = vunpack.c.h.b16 %v5142
        %v5871 = vunpack.c.l.b16 %v5143
        %v5872 = vunpack.c.h.b16 %v5143
        %v5873 = vunpack.c.l.b16 %v5144
        %v5874 = vunpack.c.h.b16 %v5144
        %v5875 = vunpack.c.l.b16 %v5145
        %v5876 = vunpack.c.h.b16 %v5145
        %v5877 = vunpack.c.l.b16 %v5146
        %v5878 = vunpack.c.h.b16 %v5146
        %v5879 = vunpack.c.l.b16 %v5147
        %v5880 = vunpack.c.h.b16 %v5147
        %v5881 = vunpack.c.l.b16 %v5148
        %v5882 = vunpack.c.h.b16 %v5148
        %v5883 = vunpack.c.l.b16 %v5149
        %v5884 = vunpack.c.h.b16 %v5149
        %v5885 = vunpack.c.l.b16 %v5150
        %v5886 = vunpack.c.h.b16 %v5150
        %v5887 = vunpack.c.l.b16 %v5151
        %v5888 = vunpack.c.h.b16 %v5151
        %v5889 = vunpack.c.l.b16 %v5152
        %v5890 = vunpack.c.h.b16 %v5152
        %v5891 = vunpack.c.l.b16 %v5153
        %v5892 = vunpack.c.h.b16 %v5153
        %v5893 = vunpack.c.l.b16 %v5154
        %v5894 = vunpack.c.h.b16 %v5154
        %v5895 = vunpack.c.l.b16 %v5155
        %v5896 = vunpack.c.h.b16 %v5155
        %v5897 = vunpack.c.l.b16 %v5156
        %v5898 = vunpack.c.h.b16 %v5156
        %v5899 = vunpack.c.l.b16 %v5157
        %v5900 = vunpack.c.h.b16 %v5157
        %v5901 = vunpack.c.l.b16 %v5158
        %v5902 = vunpack.c.h.b16 %v5158
        %v5903 = vunpack.c.l.b16 %v5159
        %v5904 = vunpack.c.h.b16 %v5159
        %v5905 = vunpack.c.l.b16 %v5160
        %v5906 = vunpack.c.h.b16 %v5160
        %v5907 = vunpack.c.l.b16 %v5161
        %v5908 = vunpack.c.h.b16 %v5161
        %v5909 = vunpack.c.l.b16 %v5162
        %v5910 = vunpack.c.h.b16 %v5162
        %v5911 = vunpack.c.l.b16 %v5163
        %v5912 = vunpack.c.h.b16 %v5163
        %v5913 = vunpack.c.l.b16 %v5164
        %v5914 = vunpack.c.h.b16 %v5164
        %v5915 = vunpack.c.l.b16 %v5165
        %v5916 = vunpack.c.h.b16 %v5165
        %v5917 = vunpack.c.l.b16 %v5166
        %v5918 = vunpack.c.h.b16 %v5166
        %v5919 = vunpack.c.l.b16 %v5167
        %v5920 = vunpack.c.h.b16 %v5167
        %v5921 = vunpack.c.l.b16 %v5168
        %v5922 = vunpack.c.h.b16 %v5168
        %v5923 = vunpack.c.l.b16 %v5169
        %v5924 = vunpack.c.h.b16 %v5169
        %v5925 = vunpack.c.l.b16 %v5170
        %v5926 = vunpack.c.h.b16 %v5170
        %v5927 = vunpack.c.l.b16 %v5171
        %v5928 = vunpack.c.h.b16 %v5171
        %v5929 = vunpack.c.l.b16 %v5172
        %v5930 = vunpack.c.h.b16 %v5172
        %v5931 = vunpack.c.l.b16 %v5173
        %v5932 = vunpack.c.h.b16 %v5173
        %v5933 = vunpack.c.l.b16 %v5174
        %v5934 = vunpack.c.h.b16 %v5174
        %v5935 = vunpack.c.l.b16 %v5175
        %v5936 = vunpack.c.h.b16 %v5175
        %v5937 = vunpack.c.l.b16 %v5176
        %v5938 = vunpack.c.h.b16 %v5176
        %v5939 = vunpack.c.l.b16 %v5177
        %v5940 = vunpack.c.h.b16 %v5177
        %v5941 = vunpack.c.l.b16 %v5178
        %v5942 = vunpack.c.h.b16 %v5178
        %v5943 = vunpack.c.l.b16 %v5179
        %v5944 = vunpack.c.h.b16 %v5179
        %v5945 = vunpack.c.l.b16 %v5180
        %v5946 = vunpack.c.h.b16 %v5180
        %v5947 = vunpack.c.l.b16 %v5181
        %v5948 = vunpack.c.h.b16 %v5181
        %v5949 = vunpack.c.l.b16 %v5182
        %v5950 = vunpack.c.h.b16 %v5182
        %v5951 = vpack.c.b16 %v5439, %v5439
        %v5952 = vpack.c.b16 %v5440, %v5440
        %v5953 = vpack.c.b16 %v5441, %v5441
        %v5954 = vpack.c.b16 %v5442, %v5442
        %v5955 = vpack.c.b16 %v5443, %v5443
        %v5956 = vpack.c.b16 %v5444, %v5444
        %v5957 = vpack.c.b16 %v5445, %v5445
        %v5958 = vpack.c.b16 %v5446, %v5446
        %v5959 = vpack.c.b16 %v5447, %v5447
        %v5960 = vpack.c.b16 %v5448, %v5448
        %v5961 = vpack.c.b16 %v5449, %v5449
        %v5962 = vpack.c.b16 %v5450, %v5450
        %v5963 = vpack.c.b16 %v5451, %v5451
        %v5964 = vpack.c.b16 %v5452, %v5452
        %v5965 = vpack.c.b16 %v5453, %v5453
        %v5966 = vpack.c.b16 %v5454, %v5454
        %v5967 = vpack.c.b16 %v5455, %v5455
        %v5968 = vpack.c.b16 %v5456, %v5456
        %v5969 = vpack.c.b16 %v5457, %v5457
        %v5970 = vpack.c.b16 %v5458, %v5458
        %v5971 = vpack.c.b16 %v5459, %v5459
        %v5972 = vpack.c.b16 %v5460, %v5460
        %v5973 = vpack.c.b16 %v5461, %v5461
        %v5974 = vpack.c.b16 %v5462, %v5462
        %v5975 = vpack.c.b16 %v5463, %v5463
        %v5976 = vpack.c.b16 %v5464, %v5464
        %v5977 = vpack.c.b16 %v5465, %v5465
        %v5978 = vpack.c.b16 %v5466, %v5466
        %v5979 = vpack.c.b16 %v5467, %v5467
        %v5980 = vpack.c.b16 %v5468, %v5468
        %v5981 = vpack.c.b16 %v5469, %v5469
        %v5982 = vpack.c.b16 %v5470, %v5470
        %v5983 = vpack.c.b16 %v5471, %v5471
        %v5984 = vpack.c.b16 %v5472, %v5472
        %v5985 = vpack.c.b16 %v5473, %v5473
        %v5986 = vpack.c.b16 %v5474, %v5474
        %v5987 = vpack.c.b16 %v5475, %v5475
        %v5988 = vpack.c.b16 %v5476, %v5476
        %v5989 = vpack.c.b16 %v5477, %v5477
        %v5990 = vpack.c.b16 %v5478, %v5478
        %v5991 = vpack.c.b16 %v5479, %v5479
        %v5992 = vpack.c.b16 %v5480, %v5480
        %v5993 = vpack.c.b16 %v5481, %v5481
        %v5994 = vpack.c.b16 %v5482, %v5482
        %v5995 = vpack.c.b16 %v5483, %v5483
        %v5996 = vpack.c.b16 %v5484, %v5484
        %v5997 = vpack.c.b16 %v5485, %v5485
        %v5998 = vpack.c.b16 %v5486, %v5486
        %v5999 = vpack.c.b16 %v5487, %v5487
        %v6000 = vpack.c.b16 %v5488, %v5488
        %v6001 = vpack.c.b16 %v5489, %v5489
        %v6002 = vpack.c.b16 %v5490, %v5490
        %v6003 = vpack.c.b16 %v5491, %v5491
        %v6004 = vpack.c.b16 %v5492, %v5492
        %v6005 = vpack.c.b16 %v5493, %v5493
        %v6006 = vpack.c.b16 %v5494, %v5494
        %v6007 = vpack.c.b16 %v5495, %v5495
        %v6008 = vpack.c.b16 %v5496, %v5496
        %v6009 = vpack.c.b16 %v5497, %v5497
        %v6010 = vpack.c.b16 %v5498, %v5498
        %v6011 = vpack.c.b16 %v5499, %v5499
        %v6012 = vpack.c.b16 %v5500, %v5500
        %v6013 = vpack.c.b16 %v5501, %v5501
        %v6014 = vpack.c.b16 %v5502, %v5502
        %v6015 = vpack.c.b16 %v5503, %v5503
        %v6016 = vpack.c.b16 %v5504, %v5504
        %v6017 = vpack.c.b16 %v5505, %v5505
        %v6018 = vpack.c.b16 %v5506, %v5506
        %v6019 = vpack.c.b16 %v5507, %v5507
        %v6020 = vpack.c.b16 %v5508, %v5508
        %v6021 = vpack.c.b16 %v5509, %v5509
        %v6022 = vpack.c.b16 %v5510, %v5510
        %v6023 = vpack.c.b16 %v5511, %v5511
        %v6024 = vpack.c.b16 %v5512, %v5512
        %v6025 = vpack.c.b16 %v5513, %v5513
        %v6026 = vpack.c.b16 %v5514, %v5514
        %v6027 = vpack.c.b16 %v5515, %v5515
        %v6028 = vpack.c.b16 %v5516, %v5516
        %v6029 = vpack.c.b16 %v5517, %v5517
        %v6030 = vpack.c.b16 %v5518, %v5518
        %v6031 = vpack.c.b16 %v5519, %v5519
        %v6032 = vpack.c.b16 %v5520, %v5520
        %v6033 = vpack.c.b16 %v5521, %v5521
        %v6034 = vpack.c.b16 %v5522, %v5522
        %v6035 = vpack.c.b16 %v5523, %v5523
        %v6036 = vpack.c.b16 %v5524, %v5524
        %v6037 = vpack.c.b16 %v5525, %v5525
        %v6038 = vpack.c.b16 %v5526, %v5526
        %v6039 = vpack.c.b16 %v5527, %v5527
        %v6040 = vpack.c.b16 %v5528, %v5528
        %v6041 = vpack.c.b16 %v5529, %v5529
        %v6042 = vpack.c.b16 %v5530, %v5530
        %v6043 = vpack.c.b16 %v5531, %v5531
        %v6044 = vpack.c.b16 %v5532, %v5532
        %v6045 = vpack.c.b16 %v5533, %v5533
        %v6046 = vpack.c.b16 %v5534, %v5534
        %v6047 = vpack.c.b16 %v5535, %v5535
        %v6048 = vpack.c.b16 %v5536, %v5536
        %v6049 = vpack.c.b16 %v5537, %v5537
        %v6050 = vpack.c.b16 %v5538, %v5538
        %v6051 = vpack.c.b16 %v5539, %v5539
        %v6052 = vpack.c.b16 %v5540, %v5540
        %v6053 = vpack.c.b16 %v5541, %v5541
        %v6054 = vpack.c.b16 %v5542, %v5542
        %v6055 = vpack.c.b16 %v5543, %v5543
        %v6056 = vpack.c.b16 %v5544, %v5544
        %v6057 = vpack.c.b16 %v5545, %v5545
        %v6058 = vpack.c.b16 %v5546, %v5546
        %v6059 = vpack.c.b16 %v5547, %v5547
        %v6060 = vpack.c.b16 %v5548, %v5548
        %v6061 = vpack.c.b16 %v5549, %v5549
        %v6062 = vpack.c.b16 %v5550, %v5550
        %v6063 = vpack.c.b16 %v5551, %v5551
        %v6064 = vpack.c.b16 %v5552, %v5552
        %v6065 = vpack.c.b16 %v5553, %v5553
        %v6066 = vpack.c.b16 %v5554, %v5554
        %v6067 = vpack.c.b16 %v5555, %v5555
        %v6068 = vpack.c.b16 %v5556, %v5556
        %v6069 = vpack.c.b16 %v5557, %v5557
        %v6070 = vpack.c.b16 %v5558, %v5558
        %v6071 = vpack.c.b16 %v5559, %v5559
        %v6072 = vpack.c.b16 %v5560, %v5560
        %v6073 = vpack.c.b16 %v5561, %v5561
        %v6074 = vpack.c.b16 %v5562, %v5562
        %v6075 = vpack.c.b16 %v5563, %v5563
        %v6076 = vpack.c.b16 %v5564, %v5564
        %v6077 = vpack.c.b16 %v5565, %v5565
        %v6078 = vpack.c.b16 %v5566, %v5566
        %v6079 = vpack.c.b16 %v5567, %v5567
        %v6080 = vpack.c.b16 %v5568, %v5568
        %v6081 = vpack.c.b16 %v5569, %v5569
        %v6082 = vpack.c.b16 %v5570, %v5570
        %v6083 = vpack.c.b16 %v5571, %v5571
        %v6084 = vpack.c.b16 %v5572, %v5572
        %v6085 = vpack.c.b16 %v5573, %v5573
        %v6086 = vpack.c.b16 %v5574, %v5574
        %v6087 = vpack.c.b16 %v5575, %v5575
        %v6088 = vpack.c.b16 %v5576, %v5576
        %v6089 = vpack.c.b16 %v5577, %v5577
        %v6090 = vpack.c.b16 %v5578, %v5578
        %v6091 = vpack.c.b16 %v5579, %v5579
        %v6092 = vpack.c.b16 %v5580, %v5580
        %v6093 = vpack.c.b16 %v5581, %v5581
        %v6094 = vpack.c.b16 %v5582, %v5582
        %v6095 = vpack.c.b16 %v5583, %v5583
        %v6096 = vpack.c.b16 %v5584, %v5584
        %v6097 = vpack.c.b16 %v5585, %v5585
        %v6098 = vpack.c.b16 %v5586, %v5586
        %v6099 = vpack.c.b16 %v5587, %v5587
        %v6100 = vpack.c.b16 %v5588, %v5588
        %v6101 = vpack.c.b16 %v5589, %v5589
        %v6102 = vpack.c.b16 %v5590, %v5590
        %v6103 = vpack.c.b16 %v5591, %v5591
        %v6104 = vpack.c.b16 %v5592, %v5592
        %v6105 = vpack.c.b16 %v5593, %v5593
        %v6106 = vpack.c.b16 %v5594, %v5594
        %v6107 = vpack.c.b16 %v5595, %v5595
        %v6108 = vpack.c.b16 %v5596, %v5596
        %v6109 = vpack.c.b16 %v5597, %v5597
        %v6110 = vpack.c.b16 %v5598, %v5598
        %v6111 = vpack.c.b16 %v5599, %v5599
        %v6112 = vpack.c.b16 %v5600, %v5600
        %v6113 = vpack.c.b16 %v5601, %v5601
        %v6114 = vpack.c.b16 %v5602, %v5602
        %v6115 = vpack.c.b16 %v5603, %v5603
        %v6116 = vpack.c.b16 %v5604, %v5604
        %v6117 = vpack.c.b16 %v5605, %v5605
        %v6118 = vpack.c.b16 %v5606, %v5606
        %v6119 = vpack.c.b16 %v5607, %v5607
        %v6120 = vpack.c.b16 %v5608, %v5608
        %v6121 = vpack.c.b16 %v5609, %v5609
        %v6122 = vpack.c.b16 %v5610, %v5610
        %v6123 = vpack.c.b16 %v5611, %v5611
        %v6124 = vpack.c.b16 %v5612, %v5612
        %v6125 = vpack.c.b16 %v5613, %v5613
        %v6126 = vpack.c.b16 %v5614, %v5614
        %v6127 = vpack.c.b16 %v5615, %v5615
        %v6128 = vpack.c.b16 %v5616, %v5616
        %v6129 = vpack.c.b16 %v5617, %v5617
        %v6130 = vpack.c.b16 %v5618, %v5618
        %v6131 = vpack.c.b16 %v5619, %v5619
        %v6132 = vpack.c.b16 %v5620, %v5620
        %v6133 = vpack.c.b16 %v5621, %v5621
        %v6134 = vpack.c.b16 %v5622, %v5622
        %v6135 = vpack.c.b16 %v5623, %v5623
        %v6136 = vpack.c.b16 %v5624, %v5624
        %v6137 = vpack.c.b16 %v5625, %v5625
        %v6138 = vpack.c.b16 %v5626, %v5626
        %v6139 = vpack.c.b16 %v5627, %v5627
        %v6140 = vpack.c.b16 %v5628, %v5628
        %v6141 = vpack.c.b16 %v5629, %v5629
        %v6142 = vpack.c.b16 %v5630, %v5630
        %v6143 = vpack.c.b16 %v5631, %v5631
        %v6144 = vpack.c.b16 %v5632, %v5632
        %v6145 = vpack.c.b16 %v5633, %v5633
        %v6146 = vpack.c.b16 %v5634, %v5634
        %v6147 = vpack.c.b16 %v5635, %v5635
        %v6148 = vpack.c.b16 %v5636, %v5636
        %v6149 = vpack.c.b16 %v5637, %v5637
        %v6150 = vpack.c.b16 %v5638, %v5638
        %v6151 = vpack.c.b16 %v5639, %v5639
        %v6152 = vpack.c.b16 %v5640, %v5640
        %v6153 = vpack.c.b16 %v5641, %v5641
        %v6154 = vpack.c.b16 %v5642, %v5642
        %v6155 = vpack.c.b16 %v5643, %v5643
        %v6156 = vpack.c.b16 %v5644, %v5644
        %v6157 = vpack.c.b16 %v5645, %v5645
        %v6158 = vpack.c.b16 %v5646, %v5646
        %v6159 = vpack.c.b16 %v5647, %v5647
        %v6160 = vpack.c.b16 %v5648, %v5648
        %v6161 = vpack.c.b16 %v5649, %v5649
        %v6162 = vpack.c.b16 %v5650, %v5650
        %v6163 = vpack.c.b16 %v5651, %v5651
        %v6164 = vpack.c.b16 %v5652, %v5652
        %v6165 = vpack.c.b16 %v5653, %v5653
        %v6166 = vpack.c.b16 %v5654, %v5654
        %v6167 = vpack.c.b16 %v5655, %v5655
        %v6168 = vpack.c.b16 %v5656, %v5656
        %v6169 = vpack.c.b16 %v5657, %v5657
        %v6170 = vpack.c.b16 %v5658, %v5658
        %v6171 = vpack.c.b16 %v5659, %v5659
        %v6172 = vpack.c.b16 %v5660, %v5660
        %v6173 = vpack.c.b16 %v5661, %v5661
        %v6174 = vpack.c.b16 %v5662, %v5662
        %v6175 = vpack.c.b16 %v5663, %v5663
        %v6176 = vpack.c.b16 %v5664, %v5664
        %v6177 = vpack.c.b16 %v5665, %v5665
        %v6178 = vpack.c.b16 %v5666, %v5666
        %v6179 = vpack.c.b16 %v5667, %v5667
        %v6180 = vpack.c.b16 %v5668, %v5668
        %v6181 = vpack.c.b16 %v5669, %v5669
        %v6182 = vpack.c.b16 %v5670, %v5670
        %v6183 = vpack.c.b16 %v5671, %v5671
        %v6184 = vpack.c.b16 %v5672, %v5672
        %v6185 = vpack.c.b16 %v5673, %v5673
        %v6186 = vpack.c.b16 %v5674, %v5674
        %v6187 = vpack.c.b16 %v5675, %v5675
        %v6188 = vpack.c.b16 %v5676, %v5676
        %v6189 = vpack.c.b16 %v5677, %v5677
        %v6190 = vpack.c.b16 %v5678, %v5678
        %v6191 = vpack.c.b16 %v5679, %v5679
        %v6192 = vpack.c.b16 %v5680, %v5680
        %v6193 = vpack.c.b16 %v5681, %v5681
        %v6194 = vpack.c.b16 %v5682, %v5682
        %v6195 = vpack.c.b16 %v5683, %v5683
        %v6196 = vpack.c.b16 %v5684, %v5684
        %v6197 = vpack.c.b16 %v5685, %v5685
        %v6198 = vpack.c.b16 %v5686, %v5686
        %v6199 = vpack.c.b16 %v5687, %v5687
        %v6200 = vpack.c.b16 %v5688, %v5688
        %v6201 = vpack.c.b16 %v5689, %v5689
        %v6202 = vpack.c.b16 %v5690, %v5690
        %v6203 = vpack.c.b16 %v5691, %v5691
        %v6204 = vpack.c.b16 %v5692, %v5692
        %v6205 = vpack.c.b16 %v5693, %v5693
        %v6206 = vpack.c.b16 %v5694, %v5694
        %v6207 = vpack.c.b16 %v5695, %v5695
        %v6208 = vpack.c.b16 %v5696, %v5696
        %v6209 = vpack.c.b16 %v5697, %v5697
        %v6210 = vpack.c.b16 %v5698, %v5698
        %v6211 = vpack.c.b16 %v5699, %v5699
        %v6212 = vpack.c.b16 %v5700, %v5700
        %v6213 = vpack.c.b16 %v5701, %v5701
        %v6214 = vpack.c.b16 %v5702, %v5702
        %v6215 = vpack.c.b16 %v5703, %v5703
        %v6216 = vpack.c.b16 %v5704, %v5704
        %v6217 = vpack.c.b16 %v5705, %v5705
        %v6218 = vpack.c.b16 %v5706, %v5706
        %v6219 = vpack.c.b16 %v5707, %v5707
        %v6220 = vpack.c.b16 %v5708, %v5708
        %v6221 = vpack.c.b16 %v5709, %v5709
        %v6222 = vpack.c.b16 %v5710, %v5710
        %v6223 = vpack.c.b16 %v5711, %v5711
        %v6224 = vpack.c.b16 %v5712, %v5712
        %v6225 = vpack.c.b16 %v5713, %v5713
        %v6226 = vpack.c.b16 %v5714, %v5714
        %v6227 = vpack.c.b16 %v5715, %v5715
        %v6228 = vpack.c.b16 %v5716, %v5716
        %v6229 = vpack.c.b16 %v5717, %v5717
        %v6230 = vpack.c.b16 %v5718, %v5718
        %v6231 = vpack.c.b16 %v5719, %v5719
        %v6232 = vpack.c.b16 %v5720, %v5720
        %v6233 = vpack.c.b16 %v5721, %v5721
        %v6234 = vpack.c.b16 %v5722, %v5722
        %v6235 = vpack.c.b16 %v5723, %v5723
        %v6236 = vpack.c.b16 %v5724, %v5724
        %v6237 = vpack.c.b16 %v5725, %v5725
        %v6238 = vpack.c.b16 %v5726, %v5726
        %v6239 = vpack.c.b16 %v5727, %v5727
        %v6240 = vpack.c.b16 %v5728, %v5728
        %v6241 = vpack.c.b16 %v5729, %v5729
        %v6242 = vpack.c.b16 %v5730, %v5730
        %v6243 = vpack.c.b16 %v5731, %v5731
        %v6244 = vpack.c.b16 %v5732, %v5732
        %v6245 = vpack.c.b16 %v5733, %v5733
        %v6246 = vpack.c.b16 %v5734, %v5734
        %v6247 = vpack.c.b16 %v5735, %v5735
        %v6248 = vpack.c.b16 %v5736, %v5736
        %v6249 = vpack.c.b16 %v5737, %v5737
        %v6250 = vpack.c.b16 %v5738, %v5738
        %v6251 = vpack.c.b16 %v5739, %v5739
        %v6252 = vpack.c.b16 %v5740, %v5740
        %v6253 = vpack.c.b16 %v5741, %v5741
        %v6254 = vpack.c.b16 %v5742, %v5742
        %v6255 = vpack.c.b16 %v5743, %v5743
        %v6256 = vpack.c.b16 %v5744, %v5744
        %v6257 = vpack.c.b16 %v5745, %v5745
        %v6258 = vpack.c.b16 %v5746, %v5746
        %v6259 = vpack.c.b16 %v5747, %v5747
        %v6260 = vpack.c.b16 %v5748, %v5748
        %v6261 = vpack.c.b16 %v5749, %v5749
        %v6262 = vpack.c.b16 %v5750, %v5750
        %v6263 = vpack.c.b16 %v5751, %v5751
        %v6264 = vpack.c.b16 %v5752, %v5752
        %v6265 = vpack.c.b16 %v5753, %v5753
        %v6266 = vpack.c.b16 %v5754, %v5754
        %v6267 = vpack.c.b16 %v5755, %v5755
        %v6268 = vpack.c.b16 %v5756, %v5756
        %v6269 = vpack.c.b16 %v5757, %v5757
        %v6270 = vpack.c.b16 %v5758, %v5758
        %v6271 = vpack.c.b16 %v5759, %v5759
        %v6272 = vpack.c.b16 %v5760, %v5760
        %v6273 = vpack.c.b16 %v5761, %v5761
        %v6274 = vpack.c.b16 %v5762, %v5762
        %v6275 = vpack.c.b16 %v5763, %v5763
        %v6276 = vpack.c.b16 %v5764, %v5764
        %v6277 = vpack.c.b16 %v5765, %v5765
        %v6278 = vpack.c.b16 %v5766, %v5766
        %v6279 = vpack.c.b16 %v5767, %v5767
        %v6280 = vpack.c.b16 %v5768, %v5768
        %v6281 = vpack.c.b16 %v5769, %v5769
        %v6282 = vpack.c.b16 %v5770, %v5770
        %v6283 = vpack.c.b16 %v5771, %v5771
        %v6284 = vpack.c.b16 %v5772, %v5772
        %v6285 = vpack.c.b16 %v5773, %v5773
        %v6286 = vpack.c.b16 %v5774, %v5774
        %v6287 = vpack.c.b16 %v5775, %v5775
        %v6288 = vpack.c.b16 %v5776, %v5776
        %v6289 = vpack.c.b16 %v5777, %v5777
        %v6290 = vpack.c.b16 %v5778, %v5778
        %v6291 = vpack.c.b16 %v5779, %v5779
        %v6292 = vpack.c.b16 %v5780, %v5780
        %v6293 = vpack.c.b16 %v5781, %v5781
        %v6294 = vpack.c.b16 %v5782, %v5782
        %v6295 = vpack.c.b16 %v5783, %v5783
        %v6296 = vpack.c.b16 %v5784, %v5784
        %v6297 = vpack.c.b16 %v5785, %v5785
        %v6298 = vpack.c.b16 %v5786, %v5786
        %v6299 = vpack.c.b16 %v5787, %v5787
        %v6300 = vpack.c.b16 %v5788, %v5788
        %v6301 = vpack.c.b16 %v5789, %v5789
        %v6302 = vpack.c.b16 %v5790, %v5790
        %v6303 = vpack.c.b16 %v5791, %v5791
        %v6304 = vpack.c.b16 %v5792, %v5792
        %v6305 = vpack.c.b16 %v5793, %v5793
        %v6306 = vpack.c.b16 %v5794, %v5794
        %v6307 = vpack.c.b16 %v5795, %v5795
        %v6308 = vpack.c.b16 %v5796, %v5796
        %v6309 = vpack.c.b16 %v5797, %v5797
        %v6310 = vpack.c.b16 %v5798, %v5798
        %v6311 = vpack.c.b16 %v5799, %v5799
        %v6312 = vpack.c.b16 %v5800, %v5800
        %v6313 = vpack.c.b16 %v5801, %v5801
        %v6314 = vpack.c.b16 %v5802, %v5802
        %v6315 = vpack.c.b16 %v5803, %v5803
        %v6316 = vpack.c.b16 %v5804, %v5804
        %v6317 = vpack.c.b16 %v5805, %v5805
        %v6318 = vpack.c.b16 %v5806, %v5806
        %v6319 = vpack.c.b16 %v5807, %v5807
        %v6320 = vpack.c.b16 %v5808, %v5808
        %v6321 = vpack.c.b16 %v5809, %v5809
        %v6322 = vpack.c.b16 %v5810, %v5810
        %v6323 = vpack.c.b16 %v5811, %v5811
        %v6324 = vpack.c.b16 %v5812, %v5812
        %v6325 = vpack.c.b16 %v5813, %v5813
        %v6326 = vpack.c.b16 %v5814, %v5814
        %v6327 = vpack.c.b16 %v5815, %v5815
        %v6328 = vpack.c.b16 %v5816, %v5816
        %v6329 = vpack.c.b16 %v5817, %v5817
        %v6330 = vpack.c.b16 %v5818, %v5818
        %v6331 = vpack.c.b16 %v5819, %v5819
        %v6332 = vpack.c.b16 %v5820, %v5820
        %v6333 = vpack.c.b16 %v5821, %v5821
        %v6334 = vpack.c.b16 %v5822, %v5822
        %v6335 = vpack.c.b16 %v5823, %v5823
        %v6336 = vpack.c.b16 %v5824, %v5824
        %v6337 = vpack.c.b16 %v5825, %v5825
        %v6338 = vpack.c.b16 %v5826, %v5826
        %v6339 = vpack.c.b16 %v5827, %v5827
        %v6340 = vpack.c.b16 %v5828, %v5828
        %v6341 = vpack.c.b16 %v5829, %v5829
        %v6342 = vpack.c.b16 %v5830, %v5830
        %v6343 = vpack.c.b16 %v5831, %v5831
        %v6344 = vpack.c.b16 %v5832, %v5832
        %v6345 = vpack.c.b16 %v5833, %v5833
        %v6346 = vpack.c.b16 %v5834, %v5834
        %v6347 = vpack.c.b16 %v5835, %v5835
        %v6348 = vpack.c.b16 %v5836, %v5836
        %v6349 = vpack.c.b16 %v5837, %v5837
        %v6350 = vpack.c.b16 %v5838, %v5838
        %v6351 = vpack.c.b16 %v5839, %v5839
        %v6352 = vpack.c.b16 %v5840, %v5840
        %v6353 = vpack.c.b16 %v5841, %v5841
        %v6354 = vpack.c.b16 %v5842, %v5842
        %v6355 = vpack.c.b16 %v5843, %v5843
        %v6356 = vpack.c.b16 %v5844, %v5844
        %v6357 = vpack.c.b16 %v5845, %v5845
        %v6358 = vpack.c.b16 %v5846, %v5846
        %v6359 = vpack.c.b16 %v5847, %v5847
        %v6360 = vpack.c.b16 %v5848, %v5848
        %v6361 = vpack.c.b16 %v5849, %v5849
        %v6362 = vpack.c.b16 %v5850, %v5850
        %v6363 = vpack.c.b16 %v5851, %v5851
        %v6364 = vpack.c.b16 %v5852, %v5852
        %v6365 = vpack.c.b16 %v5853, %v5853
        %v6366 = vpack.c.b16 %v5854, %v5854
        %v6367 = vpack.c.b16 %v5855, %v5855
        %v6368 = vpack.c.b16 %v5856, %v5856
        %v6369 = vpack.c.b16 %v5857, %v5857
        %v6370 = vpack.c.b16 %v5858, %v5858
        %v6371 = vpack.c.b16 %v5859, %v5859
        %v6372 = vpack.c.b16 %v5860, %v5860
        %v6373 = vpack.c.b16 %v5861, %v5861
        %v6374 = vpack.c.b16 %v5862, %v5862
        %v6375 = vpack.c.b16 %v5863, %v5863
        %v6376 = vpack.c.b16 %v5864, %v5864
        %v6377 = vpack.c.b16 %v5865, %v5865
        %v6378 = vpack.c.b16 %v5866, %v5866
        %v6379 = vpack.c.b16 %v5867, %v5867
        %v6380 = vpack.c.b16 %v5868, %v5868
        %v6381 = vpack.c.b16 %v5869, %v5869
        %v6382 = vpack.c.b16 %v5870, %v5870
        %v6383 = vpack.c.b16 %v5871, %v5871
        %v6384 = vpack.c.b16 %v5872, %v5872
        %v6385 = vpack.c.b16 %v5873, %v5873
        %v6386 = vpack.c.b16 %v5874, %v5874
        %v6387 = vpack.c.b16 %v5875, %v5875
        %v6388 = vpack.c.b16 %v5876, %v5876
        %v6389 = vpack.c.b16 %v5877, %v5877
        %v6390 = vpack.c.b16 %v5878, %v5878
        %v6391 = vpack.c.b16 %v5879, %v5879
        %v6392 = vpack.c.b16 %v5880, %v5880
        %v6393 = vpack.c.b16 %v5881, %v5881
        %v6394 = vpack.c.b16 %v5882, %v5882
        %v6395 = vpack.c.b16 %v5883, %v5883
        %v6396 = vpack.c.b16 %v5884, %v5884
        %v6397 = vpack.c.b16 %v5885, %v5885
        %v6398 = vpack.c.b16 %v5886, %v5886
        %v6399 = vpack.c.b16 %v5887, %v5887
        %v6400 = vpack.c.b16 %v5888, %v5888
        %v6401 = vpack.c.b16 %v5889, %v5889
        %v6402 = vpack.c.b16 %v5890, %v5890
        %v6403 = vpack.c.b16 %v5891, %v5891
        %v6404 = vpack.c.b16 %v5892, %v5892
        %v6405 = vpack.c.b16 %v5893, %v5893
        %v6406 = vpack.c.b16 %v5894, %v5894
        %v6407 = vpack.c.b16 %v5895, %v5895
        %v6408 = vpack.c.b16 %v5896, %v5896
        %v6409 = vpack.c.b16 %v5897, %v5897
        %v6410 = vpack.c.b16 %v5898, %v5898
        %v6411 = vpack.c.b16 %v5899, %v5899
        %v6412 = vpack.c.b16 %v5900, %v5900
        %v6413 = vpack.c.b16 %v5901, %v5901
        %v6414 = vpack.c.b16 %v5902, %v5902
        %v6415 = vpack.c.b16 %v5903, %v5903
        %v6416 = vpack.c.b16 %v5904, %v5904
        %v6417 = vpack.c.b16 %v5905, %v5905
        %v6418 = vpack.c.b16 %v5906, %v5906
        %v6419 = vpack.c.b16 %v5907, %v5907
        %v6420 = vpack.c.b16 %v5908, %v5908
        %v6421 = vpack.c.b16 %v5909, %v5909
        %v6422 = vpack.c.b16 %v5910, %v5910
        %v6423 = vpack.c.b16 %v5911, %v5911
        %v6424 = vpack.c.b16 %v5912, %v5912
        %v6425 = vpack.c.b16 %v5913, %v5913
        %v6426 = vpack.c.b16 %v5914, %v5914
        %v6427 = vpack.c.b16 %v5915, %v5915
        %v6428 = vpack.c.b16 %v5916, %v5916
        %v6429 = vpack.c.b16 %v5917, %v5917
        %v6430 = vpack.c.b16 %v5918, %v5918
        %v6431 = vpack.c.b16 %v5919, %v5919
        %v6432 = vpack.c.b16 %v5920, %v5920
        %v6433 = vpack.c.b16 %v5921, %v5921
        %v6434 = vpack.c.b16 %v5922, %v5922
        %v6435 = vpack.c.b16 %v5923, %v5923
        %v6436 = vpack.c.b16 %v5924, %v5924
        %v6437 = vpack.c.b16 %v5925, %v5925
        %v6438 = vpack.c.b16 %v5926, %v5926
        %v6439 = vpack.c.b16 %v5927, %v5927
        %v6440 = vpack.c.b16 %v5928, %v5928
        %v6441 = vpack.c.b16 %v5929, %v5929
        %v6442 = vpack.c.b16 %v5930, %v5930
        %v6443 = vpack.c.b16 %v5931, %v5931
        %v6444 = vpack.c.b16 %v5932, %v5932
        %v6445 = vpack.c.b16 %v5933, %v5933
        %v6446 = vpack.c.b16 %v5934, %v5934
        %v6447 = vpack.c.b16 %v5935, %v5935
        %v6448 = vpack.c.b16 %v5936, %v5936
        %v6449 = vpack.c.b16 %v5937, %v5937
        %v6450 = vpack.c.b16 %v5938, %v5938
        %v6451 = vpack.c.b16 %v5939, %v5939
        %v6452 = vpack.c.b16 %v5940, %v5940
        %v6453 = vpack.c.b16 %v5941, %v5941
        %v6454 = vpack.c.b16 %v5942, %v5942
        %v6455 = vpack.c.b16 %v5943, %v5943
        %v6456 = vpack.c.b16 %v5944, %v5944
        %v6457 = vpack.c.b16 %v5945, %v5945
        %v6458 = vpack.c.b16 %v5946, %v5946
        %v6459 = vpack.c.b16 %v5947, %v5947
        %v6460 = vpack.c.b16 %v5948, %v5948
        %v6461 = vpack.c.b16 %v5949, %v5949
        %v6462 = vpack.c.b16 %v5950, %v5950
        %vm6975 = vcmask 519168
        %6976 = vst.msk [vmem:[%s203] sm:$0xf] %vm6975, %v5951
        %6977 = vst.msk [vmem:[%s203 + $0x4] sm:$0xf] %vm6975, %v5952
        %6978 = vst.msk [vmem:[%s203 + $0x8] sm:$0xf] %vm6975, %v5953
        %6979 = vst.msk [vmem:[%s203 + $0xc] sm:$0xf] %vm6975, %v5954
        %6980 = vst.msk [vmem:[%s203 + $0x10] sm:$0xf] %vm6975, %v5955
        %6981 = vst.msk [vmem:[%s203 + $0x14] sm:$0xf] %vm6975, %v5956
        %6982 = vst.msk [vmem:[%s203 + $0x18] sm:$0xf] %vm6975, %v5957
        %6983 = vst.msk [vmem:[%s203 + $0x1c] sm:$0xf] %vm6975, %v5958
        %6984 = vst.msk [vmem:[%s203 + $0x20] sm:$0xf] %vm6975, %v5959
        %6985 = vst.msk [vmem:[%s203 + $0x24] sm:$0xf] %vm6975, %v5960
        %6986 = vst.msk [vmem:[%s203 + $0x28] sm:$0xf] %vm6975, %v5961
        %6987 = vst.msk [vmem:[%s203 + $0x2c] sm:$0xf] %vm6975, %v5962
        %6988 = vst.msk [vmem:[%s203 + $0x30] sm:$0xf] %vm6975, %v5963
        %6989 = vst.msk [vmem:[%s203 + $0x34] sm:$0xf] %vm6975, %v5964
        %6990 = vst.msk [vmem:[%s203 + $0x38] sm:$0xf] %vm6975, %v5965
        %6991 = vst.msk [vmem:[%s203 + $0x3c] sm:$0xf] %vm6975, %v5966
        %6992 = vst.msk [vmem:[%s203 + $0x40] sm:$0xf] %vm6975, %v5967
        %6993 = vst.msk [vmem:[%s203 + $0x44] sm:$0xf] %vm6975, %v5968
        %6994 = vst.msk [vmem:[%s203 + $0x48] sm:$0xf] %vm6975, %v5969
        %6995 = vst.msk [vmem:[%s203 + $0x4c] sm:$0xf] %vm6975, %v5970
        %6996 = vst.msk [vmem:[%s203 + $0x50] sm:$0xf] %vm6975, %v5971
        %6997 = vst.msk [vmem:[%s203 + $0x54] sm:$0xf] %vm6975, %v5972
        %6998 = vst.msk [vmem:[%s203 + $0x58] sm:$0xf] %vm6975, %v5973
        %6999 = vst.msk [vmem:[%s203 + $0x5c] sm:$0xf] %vm6975, %v5974
        %7000 = vst.msk [vmem:[%s203 + $0x60] sm:$0xf] %vm6975, %v5975
        %7001 = vst.msk [vmem:[%s203 + $0x64] sm:$0xf] %vm6975, %v5976
        %7002 = vst.msk [vmem:[%s203 + $0x68] sm:$0xf] %vm6975, %v5977
        %7003 = vst.msk [vmem:[%s203 + $0x6c] sm:$0xf] %vm6975, %v5978
        %7004 = vst.msk [vmem:[%s203 + $0x70] sm:$0xf] %vm6975, %v5979
        %7005 = vst.msk [vmem:[%s203 + $0x74] sm:$0xf] %vm6975, %v5980
        %7006 = vst.msk [vmem:[%s203 + $0x78] sm:$0xf] %vm6975, %v5981
        %7007 = vst.msk [vmem:[%s203 + $0x7c] sm:$0xf] %vm6975, %v5982
        %7008 = vst.msk [vmem:[%s203 + $0x80] sm:$0xf] %vm6975, %v5983
        %7009 = vst.msk [vmem:[%s203 + $0x84] sm:$0xf] %vm6975, %v5984
        %7010 = vst.msk [vmem:[%s203 + $0x88] sm:$0xf] %vm6975, %v5985
        %7011 = vst.msk [vmem:[%s203 + $0x8c] sm:$0xf] %vm6975, %v5986
        %7012 = vst.msk [vmem:[%s203 + $0x90] sm:$0xf] %vm6975, %v5987
        %7013 = vst.msk [vmem:[%s203 + $0x94] sm:$0xf] %vm6975, %v5988
        %7014 = vst.msk [vmem:[%s203 + $0x98] sm:$0xf] %vm6975, %v5989
        %7015 = vst.msk [vmem:[%s203 + $0x9c] sm:$0xf] %vm6975, %v5990
        %7016 = vst.msk [vmem:[%s203 + $0xa0] sm:$0xf] %vm6975, %v5991
        %7017 = vst.msk [vmem:[%s203 + $0xa4] sm:$0xf] %vm6975, %v5992
        %7018 = vst.msk [vmem:[%s203 + $0xa8] sm:$0xf] %vm6975, %v5993
        %7019 = vst.msk [vmem:[%s203 + $0xac] sm:$0xf] %vm6975, %v5994
        %7020 = vst.msk [vmem:[%s203 + $0xb0] sm:$0xf] %vm6975, %v5995
        %7021 = vst.msk [vmem:[%s203 + $0xb4] sm:$0xf] %vm6975, %v5996
        %7022 = vst.msk [vmem:[%s203 + $0xb8] sm:$0xf] %vm6975, %v5997
        %7023 = vst.msk [vmem:[%s203 + $0xbc] sm:$0xf] %vm6975, %v5998
        %7024 = vst.msk [vmem:[%s203 + $0xc0] sm:$0xf] %vm6975, %v5999
        %7025 = vst.msk [vmem:[%s203 + $0xc4] sm:$0xf] %vm6975, %v6000
        %7026 = vst.msk [vmem:[%s203 + $0xc8] sm:$0xf] %vm6975, %v6001
        %7027 = vst.msk [vmem:[%s203 + $0xcc] sm:$0xf] %vm6975, %v6002
        %7028 = vst.msk [vmem:[%s203 + $0xd0] sm:$0xf] %vm6975, %v6003
        %7029 = vst.msk [vmem:[%s203 + $0xd4] sm:$0xf] %vm6975, %v6004
        %7030 = vst.msk [vmem:[%s203 + $0xd8] sm:$0xf] %vm6975, %v6005
        %7031 = vst.msk [vmem:[%s203 + $0xdc] sm:$0xf] %vm6975, %v6006
        %7032 = vst.msk [vmem:[%s203 + $0xe0] sm:$0xf] %vm6975, %v6007
        %7033 = vst.msk [vmem:[%s203 + $0xe4] sm:$0xf] %vm6975, %v6008
        %7034 = vst.msk [vmem:[%s203 + $0xe8] sm:$0xf] %vm6975, %v6009
        %7035 = vst.msk [vmem:[%s203 + $0xec] sm:$0xf] %vm6975, %v6010
        %7036 = vst.msk [vmem:[%s203 + $0xf0] sm:$0xf] %vm6975, %v6011
        %7037 = vst.msk [vmem:[%s203 + $0xf4] sm:$0xf] %vm6975, %v6012
        %7038 = vst.msk [vmem:[%s203 + $0xf8] sm:$0xf] %vm6975, %v6013
        %7039 = vst.msk [vmem:[%s203 + $0xfc] sm:$0xf] %vm6975, %v6014
        %7040 = vst.msk [vmem:[%s203 + $0x100] sm:$0xf] %vm6975, %v6015
        %7041 = vst.msk [vmem:[%s203 + $0x104] sm:$0xf] %vm6975, %v6016
        %7042 = vst.msk [vmem:[%s203 + $0x108] sm:$0xf] %vm6975, %v6017
        %7043 = vst.msk [vmem:[%s203 + $0x10c] sm:$0xf] %vm6975, %v6018
        %7044 = vst.msk [vmem:[%s203 + $0x110] sm:$0xf] %vm6975, %v6019
        %7045 = vst.msk [vmem:[%s203 + $0x114] sm:$0xf] %vm6975, %v6020
        %7046 = vst.msk [vmem:[%s203 + $0x118] sm:$0xf] %vm6975, %v6021
        %7047 = vst.msk [vmem:[%s203 + $0x11c] sm:$0xf] %vm6975, %v6022
        %7048 = vst.msk [vmem:[%s203 + $0x120] sm:$0xf] %vm6975, %v6023
        %7049 = vst.msk [vmem:[%s203 + $0x124] sm:$0xf] %vm6975, %v6024
        %7050 = vst.msk [vmem:[%s203 + $0x128] sm:$0xf] %vm6975, %v6025
        %7051 = vst.msk [vmem:[%s203 + $0x12c] sm:$0xf] %vm6975, %v6026
        %7052 = vst.msk [vmem:[%s203 + $0x130] sm:$0xf] %vm6975, %v6027
        %7053 = vst.msk [vmem:[%s203 + $0x134] sm:$0xf] %vm6975, %v6028
        %7054 = vst.msk [vmem:[%s203 + $0x138] sm:$0xf] %vm6975, %v6029
        %7055 = vst.msk [vmem:[%s203 + $0x13c] sm:$0xf] %vm6975, %v6030
        %7056 = vst.msk [vmem:[%s203 + $0x140] sm:$0xf] %vm6975, %v6031
        %7057 = vst.msk [vmem:[%s203 + $0x144] sm:$0xf] %vm6975, %v6032
        %7058 = vst.msk [vmem:[%s203 + $0x148] sm:$0xf] %vm6975, %v6033
        %7059 = vst.msk [vmem:[%s203 + $0x14c] sm:$0xf] %vm6975, %v6034
        %7060 = vst.msk [vmem:[%s203 + $0x150] sm:$0xf] %vm6975, %v6035
        %7061 = vst.msk [vmem:[%s203 + $0x154] sm:$0xf] %vm6975, %v6036
        %7062 = vst.msk [vmem:[%s203 + $0x158] sm:$0xf] %vm6975, %v6037
        %7063 = vst.msk [vmem:[%s203 + $0x15c] sm:$0xf] %vm6975, %v6038
        %7064 = vst.msk [vmem:[%s203 + $0x160] sm:$0xf] %vm6975, %v6039
        %7065 = vst.msk [vmem:[%s203 + $0x164] sm:$0xf] %vm6975, %v6040
        %7066 = vst.msk [vmem:[%s203 + $0x168] sm:$0xf] %vm6975, %v6041
        %7067 = vst.msk [vmem:[%s203 + $0x16c] sm:$0xf] %vm6975, %v6042
        %7068 = vst.msk [vmem:[%s203 + $0x170] sm:$0xf] %vm6975, %v6043
        %7069 = vst.msk [vmem:[%s203 + $0x174] sm:$0xf] %vm6975, %v6044
        %7070 = vst.msk [vmem:[%s203 + $0x178] sm:$0xf] %vm6975, %v6045
        %7071 = vst.msk [vmem:[%s203 + $0x17c] sm:$0xf] %vm6975, %v6046
        %7072 = vst.msk [vmem:[%s203 + $0x180] sm:$0xf] %vm6975, %v6047
        %7073 = vst.msk [vmem:[%s203 + $0x184] sm:$0xf] %vm6975, %v6048
        %7074 = vst.msk [vmem:[%s203 + $0x188] sm:$0xf] %vm6975, %v6049
        %7075 = vst.msk [vmem:[%s203 + $0x18c] sm:$0xf] %vm6975, %v6050
        %7076 = vst.msk [vmem:[%s203 + $0x190] sm:$0xf] %vm6975, %v6051
        %7077 = vst.msk [vmem:[%s203 + $0x194] sm:$0xf] %vm6975, %v6052
        %7078 = vst.msk [vmem:[%s203 + $0x198] sm:$0xf] %vm6975, %v6053
        %7079 = vst.msk [vmem:[%s203 + $0x19c] sm:$0xf] %vm6975, %v6054
        %7080 = vst.msk [vmem:[%s203 + $0x1a0] sm:$0xf] %vm6975, %v6055
        %7081 = vst.msk [vmem:[%s203 + $0x1a4] sm:$0xf] %vm6975, %v6056
        %7082 = vst.msk [vmem:[%s203 + $0x1a8] sm:$0xf] %vm6975, %v6057
        %7083 = vst.msk [vmem:[%s203 + $0x1ac] sm:$0xf] %vm6975, %v6058
        %7084 = vst.msk [vmem:[%s203 + $0x1b0] sm:$0xf] %vm6975, %v6059
        %7085 = vst.msk [vmem:[%s203 + $0x1b4] sm:$0xf] %vm6975, %v6060
        %7086 = vst.msk [vmem:[%s203 + $0x1b8] sm:$0xf] %vm6975, %v6061
        %7087 = vst.msk [vmem:[%s203 + $0x1bc] sm:$0xf] %vm6975, %v6062
        %7088 = vst.msk [vmem:[%s203 + $0x1c0] sm:$0xf] %vm6975, %v6063
        %7089 = vst.msk [vmem:[%s203 + $0x1c4] sm:$0xf] %vm6975, %v6064
        %7090 = vst.msk [vmem:[%s203 + $0x1c8] sm:$0xf] %vm6975, %v6065
        %7091 = vst.msk [vmem:[%s203 + $0x1cc] sm:$0xf] %vm6975, %v6066
        %7092 = vst.msk [vmem:[%s203 + $0x1d0] sm:$0xf] %vm6975, %v6067
        %7093 = vst.msk [vmem:[%s203 + $0x1d4] sm:$0xf] %vm6975, %v6068
        %7094 = vst.msk [vmem:[%s203 + $0x1d8] sm:$0xf] %vm6975, %v6069
        %7095 = vst.msk [vmem:[%s203 + $0x1dc] sm:$0xf] %vm6975, %v6070
        %7096 = vst.msk [vmem:[%s203 + $0x1e0] sm:$0xf] %vm6975, %v6071
        %7097 = vst.msk [vmem:[%s203 + $0x1e4] sm:$0xf] %vm6975, %v6072
        %7098 = vst.msk [vmem:[%s203 + $0x1e8] sm:$0xf] %vm6975, %v6073
        %7099 = vst.msk [vmem:[%s203 + $0x1ec] sm:$0xf] %vm6975, %v6074
        %7100 = vst.msk [vmem:[%s203 + $0x1f0] sm:$0xf] %vm6975, %v6075
        %7101 = vst.msk [vmem:[%s203 + $0x1f4] sm:$0xf] %vm6975, %v6076
        %7102 = vst.msk [vmem:[%s203 + $0x1f8] sm:$0xf] %vm6975, %v6077
        %7103 = vst.msk [vmem:[%s203 + $0x1fc] sm:$0xf] %vm6975, %v6078
        %7104 = vst.msk [vmem:[%s203 + $0x200] sm:$0xf] %vm6975, %v6079
        %7105 = vst.msk [vmem:[%s203 + $0x204] sm:$0xf] %vm6975, %v6080
        %7106 = vst.msk [vmem:[%s203 + $0x208] sm:$0xf] %vm6975, %v6081
        %7107 = vst.msk [vmem:[%s203 + $0x20c] sm:$0xf] %vm6975, %v6082
        %7108 = vst.msk [vmem:[%s203 + $0x210] sm:$0xf] %vm6975, %v6083
        %7109 = vst.msk [vmem:[%s203 + $0x214] sm:$0xf] %vm6975, %v6084
        %7110 = vst.msk [vmem:[%s203 + $0x218] sm:$0xf] %vm6975, %v6085
        %7111 = vst.msk [vmem:[%s203 + $0x21c] sm:$0xf] %vm6975, %v6086
        %7112 = vst.msk [vmem:[%s203 + $0x220] sm:$0xf] %vm6975, %v6087
        %7113 = vst.msk [vmem:[%s203 + $0x224] sm:$0xf] %vm6975, %v6088
        %7114 = vst.msk [vmem:[%s203 + $0x228] sm:$0xf] %vm6975, %v6089
        %7115 = vst.msk [vmem:[%s203 + $0x22c] sm:$0xf] %vm6975, %v6090
        %7116 = vst.msk [vmem:[%s203 + $0x230] sm:$0xf] %vm6975, %v6091
        %7117 = vst.msk [vmem:[%s203 + $0x234] sm:$0xf] %vm6975, %v6092
        %7118 = vst.msk [vmem:[%s203 + $0x238] sm:$0xf] %vm6975, %v6093
        %7119 = vst.msk [vmem:[%s203 + $0x23c] sm:$0xf] %vm6975, %v6094
        %7120 = vst.msk [vmem:[%s203 + $0x240] sm:$0xf] %vm6975, %v6095
        %7121 = vst.msk [vmem:[%s203 + $0x244] sm:$0xf] %vm6975, %v6096
        %7122 = vst.msk [vmem:[%s203 + $0x248] sm:$0xf] %vm6975, %v6097
        %7123 = vst.msk [vmem:[%s203 + $0x24c] sm:$0xf] %vm6975, %v6098
        %7124 = vst.msk [vmem:[%s203 + $0x250] sm:$0xf] %vm6975, %v6099
        %7125 = vst.msk [vmem:[%s203 + $0x254] sm:$0xf] %vm6975, %v6100
        %7126 = vst.msk [vmem:[%s203 + $0x258] sm:$0xf] %vm6975, %v6101
        %7127 = vst.msk [vmem:[%s203 + $0x25c] sm:$0xf] %vm6975, %v6102
        %7128 = vst.msk [vmem:[%s203 + $0x260] sm:$0xf] %vm6975, %v6103
        %7129 = vst.msk [vmem:[%s203 + $0x264] sm:$0xf] %vm6975, %v6104
        %7130 = vst.msk [vmem:[%s203 + $0x268] sm:$0xf] %vm6975, %v6105
        %7131 = vst.msk [vmem:[%s203 + $0x26c] sm:$0xf] %vm6975, %v6106
        %7132 = vst.msk [vmem:[%s203 + $0x270] sm:$0xf] %vm6975, %v6107
        %7133 = vst.msk [vmem:[%s203 + $0x274] sm:$0xf] %vm6975, %v6108
        %7134 = vst.msk [vmem:[%s203 + $0x278] sm:$0xf] %vm6975, %v6109
        %7135 = vst.msk [vmem:[%s203 + $0x27c] sm:$0xf] %vm6975, %v6110
        %7136 = vst.msk [vmem:[%s203 + $0x280] sm:$0xf] %vm6975, %v6111
        %7137 = vst.msk [vmem:[%s203 + $0x284] sm:$0xf] %vm6975, %v6112
        %7138 = vst.msk [vmem:[%s203 + $0x288] sm:$0xf] %vm6975, %v6113
        %7139 = vst.msk [vmem:[%s203 + $0x28c] sm:$0xf] %vm6975, %v6114
        %7140 = vst.msk [vmem:[%s203 + $0x290] sm:$0xf] %vm6975, %v6115
        %7141 = vst.msk [vmem:[%s203 + $0x294] sm:$0xf] %vm6975, %v6116
        %7142 = vst.msk [vmem:[%s203 + $0x298] sm:$0xf] %vm6975, %v6117
        %7143 = vst.msk [vmem:[%s203 + $0x29c] sm:$0xf] %vm6975, %v6118
        %7144 = vst.msk [vmem:[%s203 + $0x2a0] sm:$0xf] %vm6975, %v6119
        %7145 = vst.msk [vmem:[%s203 + $0x2a4] sm:$0xf] %vm6975, %v6120
        %7146 = vst.msk [vmem:[%s203 + $0x2a8] sm:$0xf] %vm6975, %v6121
        %7147 = vst.msk [vmem:[%s203 + $0x2ac] sm:$0xf] %vm6975, %v6122
        %7148 = vst.msk [vmem:[%s203 + $0x2b0] sm:$0xf] %vm6975, %v6123
        %7149 = vst.msk [vmem:[%s203 + $0x2b4] sm:$0xf] %vm6975, %v6124
        %7150 = vst.msk [vmem:[%s203 + $0x2b8] sm:$0xf] %vm6975, %v6125
        %7151 = vst.msk [vmem:[%s203 + $0x2bc] sm:$0xf] %vm6975, %v6126
        %7152 = vst.msk [vmem:[%s203 + $0x2c0] sm:$0xf] %vm6975, %v6127
        %7153 = vst.msk [vmem:[%s203 + $0x2c4] sm:$0xf] %vm6975, %v6128
        %7154 = vst.msk [vmem:[%s203 + $0x2c8] sm:$0xf] %vm6975, %v6129
        %7155 = vst.msk [vmem:[%s203 + $0x2cc] sm:$0xf] %vm6975, %v6130
        %7156 = vst.msk [vmem:[%s203 + $0x2d0] sm:$0xf] %vm6975, %v6131
        %7157 = vst.msk [vmem:[%s203 + $0x2d4] sm:$0xf] %vm6975, %v6132
        %7158 = vst.msk [vmem:[%s203 + $0x2d8] sm:$0xf] %vm6975, %v6133
        %7159 = vst.msk [vmem:[%s203 + $0x2dc] sm:$0xf] %vm6975, %v6134
        %7160 = vst.msk [vmem:[%s203 + $0x2e0] sm:$0xf] %vm6975, %v6135
        %7161 = vst.msk [vmem:[%s203 + $0x2e4] sm:$0xf] %vm6975, %v6136
        %7162 = vst.msk [vmem:[%s203 + $0x2e8] sm:$0xf] %vm6975, %v6137
        %7163 = vst.msk [vmem:[%s203 + $0x2ec] sm:$0xf] %vm6975, %v6138
        %7164 = vst.msk [vmem:[%s203 + $0x2f0] sm:$0xf] %vm6975, %v6139
        %7165 = vst.msk [vmem:[%s203 + $0x2f4] sm:$0xf] %vm6975, %v6140
        %7166 = vst.msk [vmem:[%s203 + $0x2f8] sm:$0xf] %vm6975, %v6141
        %7167 = vst.msk [vmem:[%s203 + $0x2fc] sm:$0xf] %vm6975, %v6142
        %7168 = vst.msk [vmem:[%s203 + $0x300] sm:$0xf] %vm6975, %v6143
        %7169 = vst.msk [vmem:[%s203 + $0x304] sm:$0xf] %vm6975, %v6144
        %7170 = vst.msk [vmem:[%s203 + $0x308] sm:$0xf] %vm6975, %v6145
        %7171 = vst.msk [vmem:[%s203 + $0x30c] sm:$0xf] %vm6975, %v6146
        %7172 = vst.msk [vmem:[%s203 + $0x310] sm:$0xf] %vm6975, %v6147
        %7173 = vst.msk [vmem:[%s203 + $0x314] sm:$0xf] %vm6975, %v6148
        %7174 = vst.msk [vmem:[%s203 + $0x318] sm:$0xf] %vm6975, %v6149
        %7175 = vst.msk [vmem:[%s203 + $0x31c] sm:$0xf] %vm6975, %v6150
        %7176 = vst.msk [vmem:[%s203 + $0x320] sm:$0xf] %vm6975, %v6151
        %7177 = vst.msk [vmem:[%s203 + $0x324] sm:$0xf] %vm6975, %v6152
        %7178 = vst.msk [vmem:[%s203 + $0x328] sm:$0xf] %vm6975, %v6153
        %7179 = vst.msk [vmem:[%s203 + $0x32c] sm:$0xf] %vm6975, %v6154
        %7180 = vst.msk [vmem:[%s203 + $0x330] sm:$0xf] %vm6975, %v6155
        %7181 = vst.msk [vmem:[%s203 + $0x334] sm:$0xf] %vm6975, %v6156
        %7182 = vst.msk [vmem:[%s203 + $0x338] sm:$0xf] %vm6975, %v6157
        %7183 = vst.msk [vmem:[%s203 + $0x33c] sm:$0xf] %vm6975, %v6158
        %7184 = vst.msk [vmem:[%s203 + $0x340] sm:$0xf] %vm6975, %v6159
        %7185 = vst.msk [vmem:[%s203 + $0x344] sm:$0xf] %vm6975, %v6160
        %7186 = vst.msk [vmem:[%s203 + $0x348] sm:$0xf] %vm6975, %v6161
        %7187 = vst.msk [vmem:[%s203 + $0x34c] sm:$0xf] %vm6975, %v6162
        %7188 = vst.msk [vmem:[%s203 + $0x350] sm:$0xf] %vm6975, %v6163
        %7189 = vst.msk [vmem:[%s203 + $0x354] sm:$0xf] %vm6975, %v6164
        %7190 = vst.msk [vmem:[%s203 + $0x358] sm:$0xf] %vm6975, %v6165
        %7191 = vst.msk [vmem:[%s203 + $0x35c] sm:$0xf] %vm6975, %v6166
        %7192 = vst.msk [vmem:[%s203 + $0x360] sm:$0xf] %vm6975, %v6167
        %7193 = vst.msk [vmem:[%s203 + $0x364] sm:$0xf] %vm6975, %v6168
        %7194 = vst.msk [vmem:[%s203 + $0x368] sm:$0xf] %vm6975, %v6169
        %7195 = vst.msk [vmem:[%s203 + $0x36c] sm:$0xf] %vm6975, %v6170
        %7196 = vst.msk [vmem:[%s203 + $0x370] sm:$0xf] %vm6975, %v6171
        %7197 = vst.msk [vmem:[%s203 + $0x374] sm:$0xf] %vm6975, %v6172
        %7198 = vst.msk [vmem:[%s203 + $0x378] sm:$0xf] %vm6975, %v6173
        %7199 = vst.msk [vmem:[%s203 + $0x37c] sm:$0xf] %vm6975, %v6174
        %7200 = vst.msk [vmem:[%s203 + $0x380] sm:$0xf] %vm6975, %v6175
        %7201 = vst.msk [vmem:[%s203 + $0x384] sm:$0xf] %vm6975, %v6176
        %7202 = vst.msk [vmem:[%s203 + $0x388] sm:$0xf] %vm6975, %v6177
        %7203 = vst.msk [vmem:[%s203 + $0x38c] sm:$0xf] %vm6975, %v6178
        %7204 = vst.msk [vmem:[%s203 + $0x390] sm:$0xf] %vm6975, %v6179
        %7205 = vst.msk [vmem:[%s203 + $0x394] sm:$0xf] %vm6975, %v6180
        %7206 = vst.msk [vmem:[%s203 + $0x398] sm:$0xf] %vm6975, %v6181
        %7207 = vst.msk [vmem:[%s203 + $0x39c] sm:$0xf] %vm6975, %v6182
        %7208 = vst.msk [vmem:[%s203 + $0x3a0] sm:$0xf] %vm6975, %v6183
        %7209 = vst.msk [vmem:[%s203 + $0x3a4] sm:$0xf] %vm6975, %v6184
        %7210 = vst.msk [vmem:[%s203 + $0x3a8] sm:$0xf] %vm6975, %v6185
        %7211 = vst.msk [vmem:[%s203 + $0x3ac] sm:$0xf] %vm6975, %v6186
        %7212 = vst.msk [vmem:[%s203 + $0x3b0] sm:$0xf] %vm6975, %v6187
        %7213 = vst.msk [vmem:[%s203 + $0x3b4] sm:$0xf] %vm6975, %v6188
        %7214 = vst.msk [vmem:[%s203 + $0x3b8] sm:$0xf] %vm6975, %v6189
        %7215 = vst.msk [vmem:[%s203 + $0x3bc] sm:$0xf] %vm6975, %v6190
        %7216 = vst.msk [vmem:[%s203 + $0x3c0] sm:$0xf] %vm6975, %v6191
        %7217 = vst.msk [vmem:[%s203 + $0x3c4] sm:$0xf] %vm6975, %v6192
        %7218 = vst.msk [vmem:[%s203 + $0x3c8] sm:$0xf] %vm6975, %v6193
        %7219 = vst.msk [vmem:[%s203 + $0x3cc] sm:$0xf] %vm6975, %v6194
        %7220 = vst.msk [vmem:[%s203 + $0x3d0] sm:$0xf] %vm6975, %v6195
        %7221 = vst.msk [vmem:[%s203 + $0x3d4] sm:$0xf] %vm6975, %v6196
        %7222 = vst.msk [vmem:[%s203 + $0x3d8] sm:$0xf] %vm6975, %v6197
        %7223 = vst.msk [vmem:[%s203 + $0x3dc] sm:$0xf] %vm6975, %v6198
        %7224 = vst.msk [vmem:[%s203 + $0x3e0] sm:$0xf] %vm6975, %v6199
        %7225 = vst.msk [vmem:[%s203 + $0x3e4] sm:$0xf] %vm6975, %v6200
        %7226 = vst.msk [vmem:[%s203 + $0x3e8] sm:$0xf] %vm6975, %v6201
        %7227 = vst.msk [vmem:[%s203 + $0x3ec] sm:$0xf] %vm6975, %v6202
        %7228 = vst.msk [vmem:[%s203 + $0x3f0] sm:$0xf] %vm6975, %v6203
        %7229 = vst.msk [vmem:[%s203 + $0x3f4] sm:$0xf] %vm6975, %v6204
        %7230 = vst.msk [vmem:[%s203 + $0x3f8] sm:$0xf] %vm6975, %v6205
        %7231 = vst.msk [vmem:[%s203 + $0x3fc] sm:$0xf] %vm6975, %v6206
        %7232 = vst.msk [vmem:[%s203 + $0x400] sm:$0xf] %vm6975, %v6207
        %7233 = vst.msk [vmem:[%s203 + $0x404] sm:$0xf] %vm6975, %v6208
        %7234 = vst.msk [vmem:[%s203 + $0x408] sm:$0xf] %vm6975, %v6209
        %7235 = vst.msk [vmem:[%s203 + $0x40c] sm:$0xf] %vm6975, %v6210
        %7236 = vst.msk [vmem:[%s203 + $0x410] sm:$0xf] %vm6975, %v6211
        %7237 = vst.msk [vmem:[%s203 + $0x414] sm:$0xf] %vm6975, %v6212
        %7238 = vst.msk [vmem:[%s203 + $0x418] sm:$0xf] %vm6975, %v6213
        %7239 = vst.msk [vmem:[%s203 + $0x41c] sm:$0xf] %vm6975, %v6214
        %7240 = vst.msk [vmem:[%s203 + $0x420] sm:$0xf] %vm6975, %v6215
        %7241 = vst.msk [vmem:[%s203 + $0x424] sm:$0xf] %vm6975, %v6216
        %7242 = vst.msk [vmem:[%s203 + $0x428] sm:$0xf] %vm6975, %v6217
        %7243 = vst.msk [vmem:[%s203 + $0x42c] sm:$0xf] %vm6975, %v6218
        %7244 = vst.msk [vmem:[%s203 + $0x430] sm:$0xf] %vm6975, %v6219
        %7245 = vst.msk [vmem:[%s203 + $0x434] sm:$0xf] %vm6975, %v6220
        %7246 = vst.msk [vmem:[%s203 + $0x438] sm:$0xf] %vm6975, %v6221
        %7247 = vst.msk [vmem:[%s203 + $0x43c] sm:$0xf] %vm6975, %v6222
        %7248 = vst.msk [vmem:[%s203 + $0x440] sm:$0xf] %vm6975, %v6223
        %7249 = vst.msk [vmem:[%s203 + $0x444] sm:$0xf] %vm6975, %v6224
        %7250 = vst.msk [vmem:[%s203 + $0x448] sm:$0xf] %vm6975, %v6225
        %7251 = vst.msk [vmem:[%s203 + $0x44c] sm:$0xf] %vm6975, %v6226
        %7252 = vst.msk [vmem:[%s203 + $0x450] sm:$0xf] %vm6975, %v6227
        %7253 = vst.msk [vmem:[%s203 + $0x454] sm:$0xf] %vm6975, %v6228
        %7254 = vst.msk [vmem:[%s203 + $0x458] sm:$0xf] %vm6975, %v6229
        %7255 = vst.msk [vmem:[%s203 + $0x45c] sm:$0xf] %vm6975, %v6230
        %7256 = vst.msk [vmem:[%s203 + $0x460] sm:$0xf] %vm6975, %v6231
        %7257 = vst.msk [vmem:[%s203 + $0x464] sm:$0xf] %vm6975, %v6232
        %7258 = vst.msk [vmem:[%s203 + $0x468] sm:$0xf] %vm6975, %v6233
        %7259 = vst.msk [vmem:[%s203 + $0x46c] sm:$0xf] %vm6975, %v6234
        %7260 = vst.msk [vmem:[%s203 + $0x470] sm:$0xf] %vm6975, %v6235
        %7261 = vst.msk [vmem:[%s203 + $0x474] sm:$0xf] %vm6975, %v6236
        %7262 = vst.msk [vmem:[%s203 + $0x478] sm:$0xf] %vm6975, %v6237
        %7263 = vst.msk [vmem:[%s203 + $0x47c] sm:$0xf] %vm6975, %v6238
        %7264 = vst.msk [vmem:[%s203 + $0x480] sm:$0xf] %vm6975, %v6239
        %7265 = vst.msk [vmem:[%s203 + $0x484] sm:$0xf] %vm6975, %v6240
        %7266 = vst.msk [vmem:[%s203 + $0x488] sm:$0xf] %vm6975, %v6241
        %7267 = vst.msk [vmem:[%s203 + $0x48c] sm:$0xf] %vm6975, %v6242
        %7268 = vst.msk [vmem:[%s203 + $0x490] sm:$0xf] %vm6975, %v6243
        %7269 = vst.msk [vmem:[%s203 + $0x494] sm:$0xf] %vm6975, %v6244
        %7270 = vst.msk [vmem:[%s203 + $0x498] sm:$0xf] %vm6975, %v6245
        %7271 = vst.msk [vmem:[%s203 + $0x49c] sm:$0xf] %vm6975, %v6246
        %7272 = vst.msk [vmem:[%s203 + $0x4a0] sm:$0xf] %vm6975, %v6247
        %7273 = vst.msk [vmem:[%s203 + $0x4a4] sm:$0xf] %vm6975, %v6248
        %7274 = vst.msk [vmem:[%s203 + $0x4a8] sm:$0xf] %vm6975, %v6249
        %7275 = vst.msk [vmem:[%s203 + $0x4ac] sm:$0xf] %vm6975, %v6250
        %7276 = vst.msk [vmem:[%s203 + $0x4b0] sm:$0xf] %vm6975, %v6251
        %7277 = vst.msk [vmem:[%s203 + $0x4b4] sm:$0xf] %vm6975, %v6252
        %7278 = vst.msk [vmem:[%s203 + $0x4b8] sm:$0xf] %vm6975, %v6253
        %7279 = vst.msk [vmem:[%s203 + $0x4bc] sm:$0xf] %vm6975, %v6254
        %7280 = vst.msk [vmem:[%s203 + $0x4c0] sm:$0xf] %vm6975, %v6255
        %7281 = vst.msk [vmem:[%s203 + $0x4c4] sm:$0xf] %vm6975, %v6256
        %7282 = vst.msk [vmem:[%s203 + $0x4c8] sm:$0xf] %vm6975, %v6257
        %7283 = vst.msk [vmem:[%s203 + $0x4cc] sm:$0xf] %vm6975, %v6258
        %7284 = vst.msk [vmem:[%s203 + $0x4d0] sm:$0xf] %vm6975, %v6259
        %7285 = vst.msk [vmem:[%s203 + $0x4d4] sm:$0xf] %vm6975, %v6260
        %7286 = vst.msk [vmem:[%s203 + $0x4d8] sm:$0xf] %vm6975, %v6261
        %7287 = vst.msk [vmem:[%s203 + $0x4dc] sm:$0xf] %vm6975, %v6262
        %7288 = vst.msk [vmem:[%s203 + $0x4e0] sm:$0xf] %vm6975, %v6263
        %7289 = vst.msk [vmem:[%s203 + $0x4e4] sm:$0xf] %vm6975, %v6264
        %7290 = vst.msk [vmem:[%s203 + $0x4e8] sm:$0xf] %vm6975, %v6265
        %7291 = vst.msk [vmem:[%s203 + $0x4ec] sm:$0xf] %vm6975, %v6266
        %7292 = vst.msk [vmem:[%s203 + $0x4f0] sm:$0xf] %vm6975, %v6267
        %7293 = vst.msk [vmem:[%s203 + $0x4f4] sm:$0xf] %vm6975, %v6268
        %7294 = vst.msk [vmem:[%s203 + $0x4f8] sm:$0xf] %vm6975, %v6269
        %7295 = vst.msk [vmem:[%s203 + $0x4fc] sm:$0xf] %vm6975, %v6270
        %7296 = vst.msk [vmem:[%s203 + $0x500] sm:$0xf] %vm6975, %v6271
        %7297 = vst.msk [vmem:[%s203 + $0x504] sm:$0xf] %vm6975, %v6272
        %7298 = vst.msk [vmem:[%s203 + $0x508] sm:$0xf] %vm6975, %v6273
        %7299 = vst.msk [vmem:[%s203 + $0x50c] sm:$0xf] %vm6975, %v6274
        %7300 = vst.msk [vmem:[%s203 + $0x510] sm:$0xf] %vm6975, %v6275
        %7301 = vst.msk [vmem:[%s203 + $0x514] sm:$0xf] %vm6975, %v6276
        %7302 = vst.msk [vmem:[%s203 + $0x518] sm:$0xf] %vm6975, %v6277
        %7303 = vst.msk [vmem:[%s203 + $0x51c] sm:$0xf] %vm6975, %v6278
        %7304 = vst.msk [vmem:[%s203 + $0x520] sm:$0xf] %vm6975, %v6279
        %7305 = vst.msk [vmem:[%s203 + $0x524] sm:$0xf] %vm6975, %v6280
        %7306 = vst.msk [vmem:[%s203 + $0x528] sm:$0xf] %vm6975, %v6281
        %7307 = vst.msk [vmem:[%s203 + $0x52c] sm:$0xf] %vm6975, %v6282
        %7308 = vst.msk [vmem:[%s203 + $0x530] sm:$0xf] %vm6975, %v6283
        %7309 = vst.msk [vmem:[%s203 + $0x534] sm:$0xf] %vm6975, %v6284
        %7310 = vst.msk [vmem:[%s203 + $0x538] sm:$0xf] %vm6975, %v6285
        %7311 = vst.msk [vmem:[%s203 + $0x53c] sm:$0xf] %vm6975, %v6286
        %7312 = vst.msk [vmem:[%s203 + $0x540] sm:$0xf] %vm6975, %v6287
        %7313 = vst.msk [vmem:[%s203 + $0x544] sm:$0xf] %vm6975, %v6288
        %7314 = vst.msk [vmem:[%s203 + $0x548] sm:$0xf] %vm6975, %v6289
        %7315 = vst.msk [vmem:[%s203 + $0x54c] sm:$0xf] %vm6975, %v6290
        %7316 = vst.msk [vmem:[%s203 + $0x550] sm:$0xf] %vm6975, %v6291
        %7317 = vst.msk [vmem:[%s203 + $0x554] sm:$0xf] %vm6975, %v6292
        %7318 = vst.msk [vmem:[%s203 + $0x558] sm:$0xf] %vm6975, %v6293
        %7319 = vst.msk [vmem:[%s203 + $0x55c] sm:$0xf] %vm6975, %v6294
        %7320 = vst.msk [vmem:[%s203 + $0x560] sm:$0xf] %vm6975, %v6295
        %7321 = vst.msk [vmem:[%s203 + $0x564] sm:$0xf] %vm6975, %v6296
        %7322 = vst.msk [vmem:[%s203 + $0x568] sm:$0xf] %vm6975, %v6297
        %7323 = vst.msk [vmem:[%s203 + $0x56c] sm:$0xf] %vm6975, %v6298
        %7324 = vst.msk [vmem:[%s203 + $0x570] sm:$0xf] %vm6975, %v6299
        %7325 = vst.msk [vmem:[%s203 + $0x574] sm:$0xf] %vm6975, %v6300
        %7326 = vst.msk [vmem:[%s203 + $0x578] sm:$0xf] %vm6975, %v6301
        %7327 = vst.msk [vmem:[%s203 + $0x57c] sm:$0xf] %vm6975, %v6302
        %7328 = vst.msk [vmem:[%s203 + $0x580] sm:$0xf] %vm6975, %v6303
        %7329 = vst.msk [vmem:[%s203 + $0x584] sm:$0xf] %vm6975, %v6304
        %7330 = vst.msk [vmem:[%s203 + $0x588] sm:$0xf] %vm6975, %v6305
        %7331 = vst.msk [vmem:[%s203 + $0x58c] sm:$0xf] %vm6975, %v6306
        %7332 = vst.msk [vmem:[%s203 + $0x590] sm:$0xf] %vm6975, %v6307
        %7333 = vst.msk [vmem:[%s203 + $0x594] sm:$0xf] %vm6975, %v6308
        %7334 = vst.msk [vmem:[%s203 + $0x598] sm:$0xf] %vm6975, %v6309
        %7335 = vst.msk [vmem:[%s203 + $0x59c] sm:$0xf] %vm6975, %v6310
        %7336 = vst.msk [vmem:[%s203 + $0x5a0] sm:$0xf] %vm6975, %v6311
        %7337 = vst.msk [vmem:[%s203 + $0x5a4] sm:$0xf] %vm6975, %v6312
        %7338 = vst.msk [vmem:[%s203 + $0x5a8] sm:$0xf] %vm6975, %v6313
        %7339 = vst.msk [vmem:[%s203 + $0x5ac] sm:$0xf] %vm6975, %v6314
        %7340 = vst.msk [vmem:[%s203 + $0x5b0] sm:$0xf] %vm6975, %v6315
        %7341 = vst.msk [vmem:[%s203 + $0x5b4] sm:$0xf] %vm6975, %v6316
        %7342 = vst.msk [vmem:[%s203 + $0x5b8] sm:$0xf] %vm6975, %v6317
        %7343 = vst.msk [vmem:[%s203 + $0x5bc] sm:$0xf] %vm6975, %v6318
        %7344 = vst.msk [vmem:[%s203 + $0x5c0] sm:$0xf] %vm6975, %v6319
        %7345 = vst.msk [vmem:[%s203 + $0x5c4] sm:$0xf] %vm6975, %v6320
        %7346 = vst.msk [vmem:[%s203 + $0x5c8] sm:$0xf] %vm6975, %v6321
        %7347 = vst.msk [vmem:[%s203 + $0x5cc] sm:$0xf] %vm6975, %v6322
        %7348 = vst.msk [vmem:[%s203 + $0x5d0] sm:$0xf] %vm6975, %v6323
        %7349 = vst.msk [vmem:[%s203 + $0x5d4] sm:$0xf] %vm6975, %v6324
        %7350 = vst.msk [vmem:[%s203 + $0x5d8] sm:$0xf] %vm6975, %v6325
        %7351 = vst.msk [vmem:[%s203 + $0x5dc] sm:$0xf] %vm6975, %v6326
        %7352 = vst.msk [vmem:[%s203 + $0x5e0] sm:$0xf] %vm6975, %v6327
        %7353 = vst.msk [vmem:[%s203 + $0x5e4] sm:$0xf] %vm6975, %v6328
        %7354 = vst.msk [vmem:[%s203 + $0x5e8] sm:$0xf] %vm6975, %v6329
        %7355 = vst.msk [vmem:[%s203 + $0x5ec] sm:$0xf] %vm6975, %v6330
        %7356 = vst.msk [vmem:[%s203 + $0x5f0] sm:$0xf] %vm6975, %v6331
        %7357 = vst.msk [vmem:[%s203 + $0x5f4] sm:$0xf] %vm6975, %v6332
        %7358 = vst.msk [vmem:[%s203 + $0x5f8] sm:$0xf] %vm6975, %v6333
        %7359 = vst.msk [vmem:[%s203 + $0x5fc] sm:$0xf] %vm6975, %v6334
        %7360 = vst.msk [vmem:[%s203 + $0x600] sm:$0xf] %vm6975, %v6335
        %7361 = vst.msk [vmem:[%s203 + $0x604] sm:$0xf] %vm6975, %v6336
        %7362 = vst.msk [vmem:[%s203 + $0x608] sm:$0xf] %vm6975, %v6337
        %7363 = vst.msk [vmem:[%s203 + $0x60c] sm:$0xf] %vm6975, %v6338
        %7364 = vst.msk [vmem:[%s203 + $0x610] sm:$0xf] %vm6975, %v6339
        %7365 = vst.msk [vmem:[%s203 + $0x614] sm:$0xf] %vm6975, %v6340
        %7366 = vst.msk [vmem:[%s203 + $0x618] sm:$0xf] %vm6975, %v6341
        %7367 = vst.msk [vmem:[%s203 + $0x61c] sm:$0xf] %vm6975, %v6342
        %7368 = vst.msk [vmem:[%s203 + $0x620] sm:$0xf] %vm6975, %v6343
        %7369 = vst.msk [vmem:[%s203 + $0x624] sm:$0xf] %vm6975, %v6344
        %7370 = vst.msk [vmem:[%s203 + $0x628] sm:$0xf] %vm6975, %v6345
        %7371 = vst.msk [vmem:[%s203 + $0x62c] sm:$0xf] %vm6975, %v6346
        %7372 = vst.msk [vmem:[%s203 + $0x630] sm:$0xf] %vm6975, %v6347
        %7373 = vst.msk [vmem:[%s203 + $0x634] sm:$0xf] %vm6975, %v6348
        %7374 = vst.msk [vmem:[%s203 + $0x638] sm:$0xf] %vm6975, %v6349
        %7375 = vst.msk [vmem:[%s203 + $0x63c] sm:$0xf] %vm6975, %v6350
        %7376 = vst.msk [vmem:[%s203 + $0x640] sm:$0xf] %vm6975, %v6351
        %7377 = vst.msk [vmem:[%s203 + $0x644] sm:$0xf] %vm6975, %v6352
        %7378 = vst.msk [vmem:[%s203 + $0x648] sm:$0xf] %vm6975, %v6353
        %7379 = vst.msk [vmem:[%s203 + $0x64c] sm:$0xf] %vm6975, %v6354
        %7380 = vst.msk [vmem:[%s203 + $0x650] sm:$0xf] %vm6975, %v6355
        %7381 = vst.msk [vmem:[%s203 + $0x654] sm:$0xf] %vm6975, %v6356
        %7382 = vst.msk [vmem:[%s203 + $0x658] sm:$0xf] %vm6975, %v6357
        %7383 = vst.msk [vmem:[%s203 + $0x65c] sm:$0xf] %vm6975, %v6358
        %7384 = vst.msk [vmem:[%s203 + $0x660] sm:$0xf] %vm6975, %v6359
        %7385 = vst.msk [vmem:[%s203 + $0x664] sm:$0xf] %vm6975, %v6360
        %7386 = vst.msk [vmem:[%s203 + $0x668] sm:$0xf] %vm6975, %v6361
        %7387 = vst.msk [vmem:[%s203 + $0x66c] sm:$0xf] %vm6975, %v6362
        %7388 = vst.msk [vmem:[%s203 + $0x670] sm:$0xf] %vm6975, %v6363
        %7389 = vst.msk [vmem:[%s203 + $0x674] sm:$0xf] %vm6975, %v6364
        %7390 = vst.msk [vmem:[%s203 + $0x678] sm:$0xf] %vm6975, %v6365
        %7391 = vst.msk [vmem:[%s203 + $0x67c] sm:$0xf] %vm6975, %v6366
        %7392 = vst.msk [vmem:[%s203 + $0x680] sm:$0xf] %vm6975, %v6367
        %7393 = vst.msk [vmem:[%s203 + $0x684] sm:$0xf] %vm6975, %v6368
        %7394 = vst.msk [vmem:[%s203 + $0x688] sm:$0xf] %vm6975, %v6369
        %7395 = vst.msk [vmem:[%s203 + $0x68c] sm:$0xf] %vm6975, %v6370
        %7396 = vst.msk [vmem:[%s203 + $0x690] sm:$0xf] %vm6975, %v6371
        %7397 = vst.msk [vmem:[%s203 + $0x694] sm:$0xf] %vm6975, %v6372
        %7398 = vst.msk [vmem:[%s203 + $0x698] sm:$0xf] %vm6975, %v6373
        %7399 = vst.msk [vmem:[%s203 + $0x69c] sm:$0xf] %vm6975, %v6374
        %7400 = vst.msk [vmem:[%s203 + $0x6a0] sm:$0xf] %vm6975, %v6375
        %7401 = vst.msk [vmem:[%s203 + $0x6a4] sm:$0xf] %vm6975, %v6376
        %7402 = vst.msk [vmem:[%s203 + $0x6a8] sm:$0xf] %vm6975, %v6377
        %7403 = vst.msk [vmem:[%s203 + $0x6ac] sm:$0xf] %vm6975, %v6378
        %7404 = vst.msk [vmem:[%s203 + $0x6b0] sm:$0xf] %vm6975, %v6379
        %7405 = vst.msk [vmem:[%s203 + $0x6b4] sm:$0xf] %vm6975, %v6380
        %7406 = vst.msk [vmem:[%s203 + $0x6b8] sm:$0xf] %vm6975, %v6381
        %7407 = vst.msk [vmem:[%s203 + $0x6bc] sm:$0xf] %vm6975, %v6382
        %7408 = vst.msk [vmem:[%s203 + $0x6c0] sm:$0xf] %vm6975, %v6383
        %7409 = vst.msk [vmem:[%s203 + $0x6c4] sm:$0xf] %vm6975, %v6384
        %7410 = vst.msk [vmem:[%s203 + $0x6c8] sm:$0xf] %vm6975, %v6385
        %7411 = vst.msk [vmem:[%s203 + $0x6cc] sm:$0xf] %vm6975, %v6386
        %7412 = vst.msk [vmem:[%s203 + $0x6d0] sm:$0xf] %vm6975, %v6387
        %7413 = vst.msk [vmem:[%s203 + $0x6d4] sm:$0xf] %vm6975, %v6388
        %7414 = vst.msk [vmem:[%s203 + $0x6d8] sm:$0xf] %vm6975, %v6389
        %7415 = vst.msk [vmem:[%s203 + $0x6dc] sm:$0xf] %vm6975, %v6390
        %7416 = vst.msk [vmem:[%s203 + $0x6e0] sm:$0xf] %vm6975, %v6391
        %7417 = vst.msk [vmem:[%s203 + $0x6e4] sm:$0xf] %vm6975, %v6392
        %7418 = vst.msk [vmem:[%s203 + $0x6e8] sm:$0xf] %vm6975, %v6393
        %7419 = vst.msk [vmem:[%s203 + $0x6ec] sm:$0xf] %vm6975, %v6394
        %7420 = vst.msk [vmem:[%s203 + $0x6f0] sm:$0xf] %vm6975, %v6395
        %7421 = vst.msk [vmem:[%s203 + $0x6f4] sm:$0xf] %vm6975, %v6396
        %7422 = vst.msk [vmem:[%s203 + $0x6f8] sm:$0xf] %vm6975, %v6397
        %7423 = vst.msk [vmem:[%s203 + $0x6fc] sm:$0xf] %vm6975, %v6398
        %7424 = vst.msk [vmem:[%s203 + $0x700] sm:$0xf] %vm6975, %v6399
        %7425 = vst.msk [vmem:[%s203 + $0x704] sm:$0xf] %vm6975, %v6400
        %7426 = vst.msk [vmem:[%s203 + $0x708] sm:$0xf] %vm6975, %v6401
        %7427 = vst.msk [vmem:[%s203 + $0x70c] sm:$0xf] %vm6975, %v6402
        %7428 = vst.msk [vmem:[%s203 + $0x710] sm:$0xf] %vm6975, %v6403
        %7429 = vst.msk [vmem:[%s203 + $0x714] sm:$0xf] %vm6975, %v6404
        %7430 = vst.msk [vmem:[%s203 + $0x718] sm:$0xf] %vm6975, %v6405
        %7431 = vst.msk [vmem:[%s203 + $0x71c] sm:$0xf] %vm6975, %v6406
        %7432 = vst.msk [vmem:[%s203 + $0x720] sm:$0xf] %vm6975, %v6407
        %7433 = vst.msk [vmem:[%s203 + $0x724] sm:$0xf] %vm6975, %v6408
        %7434 = vst.msk [vmem:[%s203 + $0x728] sm:$0xf] %vm6975, %v6409
        %7435 = vst.msk [vmem:[%s203 + $0x72c] sm:$0xf] %vm6975, %v6410
        %7436 = vst.msk [vmem:[%s203 + $0x730] sm:$0xf] %vm6975, %v6411
        %7437 = vst.msk [vmem:[%s203 + $0x734] sm:$0xf] %vm6975, %v6412
        %7438 = vst.msk [vmem:[%s203 + $0x738] sm:$0xf] %vm6975, %v6413
        %7439 = vst.msk [vmem:[%s203 + $0x73c] sm:$0xf] %vm6975, %v6414
        %7440 = vst.msk [vmem:[%s203 + $0x740] sm:$0xf] %vm6975, %v6415
        %7441 = vst.msk [vmem:[%s203 + $0x744] sm:$0xf] %vm6975, %v6416
        %7442 = vst.msk [vmem:[%s203 + $0x748] sm:$0xf] %vm6975, %v6417
        %7443 = vst.msk [vmem:[%s203 + $0x74c] sm:$0xf] %vm6975, %v6418
        %7444 = vst.msk [vmem:[%s203 + $0x750] sm:$0xf] %vm6975, %v6419
        %7445 = vst.msk [vmem:[%s203 + $0x754] sm:$0xf] %vm6975, %v6420
        %7446 = vst.msk [vmem:[%s203 + $0x758] sm:$0xf] %vm6975, %v6421
        %7447 = vst.msk [vmem:[%s203 + $0x75c] sm:$0xf] %vm6975, %v6422
        %7448 = vst.msk [vmem:[%s203 + $0x760] sm:$0xf] %vm6975, %v6423
        %7449 = vst.msk [vmem:[%s203 + $0x764] sm:$0xf] %vm6975, %v6424
        %7450 = vst.msk [vmem:[%s203 + $0x768] sm:$0xf] %vm6975, %v6425
        %7451 = vst.msk [vmem:[%s203 + $0x76c] sm:$0xf] %vm6975, %v6426
        %7452 = vst.msk [vmem:[%s203 + $0x770] sm:$0xf] %vm6975, %v6427
        %7453 = vst.msk [vmem:[%s203 + $0x774] sm:$0xf] %vm6975, %v6428
        %7454 = vst.msk [vmem:[%s203 + $0x778] sm:$0xf] %vm6975, %v6429
        %7455 = vst.msk [vmem:[%s203 + $0x77c] sm:$0xf] %vm6975, %v6430
        %7456 = vst.msk [vmem:[%s203 + $0x780] sm:$0xf] %vm6975, %v6431
        %7457 = vst.msk [vmem:[%s203 + $0x784] sm:$0xf] %vm6975, %v6432
        %7458 = vst.msk [vmem:[%s203 + $0x788] sm:$0xf] %vm6975, %v6433
        %7459 = vst.msk [vmem:[%s203 + $0x78c] sm:$0xf] %vm6975, %v6434
        %7460 = vst.msk [vmem:[%s203 + $0x790] sm:$0xf] %vm6975, %v6435
        %7461 = vst.msk [vmem:[%s203 + $0x794] sm:$0xf] %vm6975, %v6436
        %7462 = vst.msk [vmem:[%s203 + $0x798] sm:$0xf] %vm6975, %v6437
        %7463 = vst.msk [vmem:[%s203 + $0x79c] sm:$0xf] %vm6975, %v6438
        %7464 = vst.msk [vmem:[%s203 + $0x7a0] sm:$0xf] %vm6975, %v6439
        %7465 = vst.msk [vmem:[%s203 + $0x7a4] sm:$0xf] %vm6975, %v6440
        %7466 = vst.msk [vmem:[%s203 + $0x7a8] sm:$0xf] %vm6975, %v6441
        %7467 = vst.msk [vmem:[%s203 + $0x7ac] sm:$0xf] %vm6975, %v6442
        %7468 = vst.msk [vmem:[%s203 + $0x7b0] sm:$0xf] %vm6975, %v6443
        %7469 = vst.msk [vmem:[%s203 + $0x7b4] sm:$0xf] %vm6975, %v6444
        %7470 = vst.msk [vmem:[%s203 + $0x7b8] sm:$0xf] %vm6975, %v6445
        %7471 = vst.msk [vmem:[%s203 + $0x7bc] sm:$0xf] %vm6975, %v6446
        %7472 = vst.msk [vmem:[%s203 + $0x7c0] sm:$0xf] %vm6975, %v6447
        %7473 = vst.msk [vmem:[%s203 + $0x7c4] sm:$0xf] %vm6975, %v6448
        %7474 = vst.msk [vmem:[%s203 + $0x7c8] sm:$0xf] %vm6975, %v6449
        %7475 = vst.msk [vmem:[%s203 + $0x7cc] sm:$0xf] %vm6975, %v6450
        %7476 = vst.msk [vmem:[%s203 + $0x7d0] sm:$0xf] %vm6975, %v6451
        %7477 = vst.msk [vmem:[%s203 + $0x7d4] sm:$0xf] %vm6975, %v6452
        %7478 = vst.msk [vmem:[%s203 + $0x7d8] sm:$0xf] %vm6975, %v6453
        %7479 = vst.msk [vmem:[%s203 + $0x7dc] sm:$0xf] %vm6975, %v6454
        %7480 = vst.msk [vmem:[%s203 + $0x7e0] sm:$0xf] %vm6975, %v6455
        %7481 = vst.msk [vmem:[%s203 + $0x7e4] sm:$0xf] %vm6975, %v6456
        %7482 = vst.msk [vmem:[%s203 + $0x7e8] sm:$0xf] %vm6975, %v6457
        %7483 = vst.msk [vmem:[%s203 + $0x7ec] sm:$0xf] %vm6975, %v6458
        %7484 = vst.msk [vmem:[%s203 + $0x7f0] sm:$0xf] %vm6975, %v6459
        %7485 = vst.msk [vmem:[%s203 + $0x7f4] sm:$0xf] %vm6975, %v6460
        %7486 = vst.msk [vmem:[%s203 + $0x7f8] sm:$0xf] %vm6975, %v6461
        %7487 = vst.msk [vmem:[%s203 + $0x7fc] sm:$0xf] %vm6975, %v6462
        %s7488 = sand.u32 %s94, 1
        %s7489 = sand.u32 %s94, 1
        %s7490 = smul.addr %s7489, 2048
        %s7491 = scalar_lea.vmem [#allocation6], %s7490
        // Predicated region
        $region41: #{tpu_custom_call.1} parent=31 // pred_check
          %p7492 = pneg %p104
        $region42: #{tpu_custom_call.1} parent=31 // pred_check_branch
          %7494 = sbr.rel (%p7492) target = $region44
        $region43: #{tpu_custom_call.1} parent=31 // pred_region
          %s7495 = smul.u32 512, %s18
          %s7496 = ssub.s32 4704, %s7495
          %p7497 = scmp.lt.s32.totalorder %s7496, 512
          %s7498 = scalar_select %p7497, %s7496, 512
          %s7499 = smul.u32 64, %s7498
          %p7500 = scmp.ne.s32.totalorder 0, %s7499
          %s7501 = smul.addr %s7495, 4
          %s7502 = scalar_lea.vmem %s3, %s7501
          // Predicated region
          $region45: #{tpu_custom_call.1} parent=43 // pred_check
            %p7503 = pneg %p7500
          $region46: #{tpu_custom_call.1} parent=43 // pred_check_branch
            %7505 = sbr.rel (%p7503) target = $region48
          $region47: #{tpu_custom_call.1} parent=43 // pred_region
            // Predicated region
            $region49: #{tpu_custom_call.1} parent=47 // pred_check
              _
            $region50: #{tpu_custom_call.1} parent=47 // pred_check_branch
              %7507 = sbr.rel target = $region52
            $region51: #{tpu_custom_call.1} parent=47 // pred_region
              // Predicated region
              $region71: #{tpu_custom_call.1} parent=51 // pred_check
                _
              $region72: #{tpu_custom_call.1} parent=51 // pred_check_branch
                %7682 = sbr.rel (0) target = $region74
              $region73: #{tpu_custom_call.1} parent=51 // pred_region
                %s7684 = sshrl.u32 %s7498, 6
                // While loop
                $region75: #{tpu_custom_call.1} parent=73 // loop_pre_header
                  _
                $region76: #{tpu_custom_call.1} parent=73 // loop_header
                  %s7686 = sphi 0, %s7688
                  %p7687 = scmp.ge.s32.totalorder %s7686, %s7684
                  %s7691 = sphi 0, %s7824
                  %s7692 = sphi %s7491, %s7827
                  %s7693 = sphi %s7502, %s7828
                $region77: #{tpu_custom_call.1} parent=73 // loop_header_branch
                  %7690 = sbr.rel (%p7687) target = $region81
                $region78: #{tpu_custom_call.1} parent=73 // loop_body
                  %v7694 = vld [vmem:[%s7692] sm:$0xf]
                  %7695 = vst [vmem:[%s7693] sm:$0xf] %v7694
                  %v7696 = vld [vmem:[%s7692 + $0x4] sm:$0xf]
                  %7697 = vst [vmem:[%s7693 + $0x4] sm:$0xf] %v7696
                  %v7698 = vld [vmem:[%s7692 + $0x8] sm:$0xf]
                  %7699 = vst [vmem:[%s7693 + $0x8] sm:$0xf] %v7698
                  %v7700 = vld [vmem:[%s7692 + $0xc] sm:$0xf]
                  %7701 = vst [vmem:[%s7693 + $0xc] sm:$0xf] %v7700
                  %v7702 = vld [vmem:[%s7692 + $0x10] sm:$0xf]
                  %7703 = vst [vmem:[%s7693 + $0x10] sm:$0xf] %v7702
                  %v7704 = vld [vmem:[%s7692 + $0x14] sm:$0xf]
                  %7705 = vst [vmem:[%s7693 + $0x14] sm:$0xf] %v7704
                  %v7706 = vld [vmem:[%s7692 + $0x18] sm:$0xf]
                  %7707 = vst [vmem:[%s7693 + $0x18] sm:$0xf] %v7706
                  %v7708 = vld [vmem:[%s7692 + $0x1c] sm:$0xf]
                  %7709 = vst [vmem:[%s7693 + $0x1c] sm:$0xf] %v7708
                  %v7710 = vld [vmem:[%s7692 + $0x20] sm:$0xf]
                  %7711 = vst [vmem:[%s7693 + $0x20] sm:$0xf] %v7710
                  %v7712 = vld [vmem:[%s7692 + $0x24] sm:$0xf]
                  %7713 = vst [vmem:[%s7693 + $0x24] sm:$0xf] %v7712
                  %v7714 = vld [vmem:[%s7692 + $0x28] sm:$0xf]
                  %7715 = vst [vmem:[%s7693 + $0x28] sm:$0xf] %v7714
                  %v7716 = vld [vmem:[%s7692 + $0x2c] sm:$0xf]
                  %7717 = vst [vmem:[%s7693 + $0x2c] sm:$0xf] %v7716
                  %v7718 = vld [vmem:[%s7692 + $0x30] sm:$0xf]
                  %7719 = vst [vmem:[%s7693 + $0x30] sm:$0xf] %v7718
                  %v7720 = vld [vmem:[%s7692 + $0x34] sm:$0xf]
                  %7721 = vst [vmem:[%s7693 + $0x34] sm:$0xf] %v7720
                  %v7722 = vld [vmem:[%s7692 + $0x38] sm:$0xf]
                  %7723 = vst [vmem:[%s7693 + $0x38] sm:$0xf] %v7722
                  %v7724 = vld [vmem:[%s7692 + $0x3c] sm:$0xf]
                  %7725 = vst [vmem:[%s7693 + $0x3c] sm:$0xf] %v7724
                  %v7726 = vld [vmem:[%s7692 + $0x40] sm:$0xf]
                  %7727 = vst [vmem:[%s7693 + $0x40] sm:$0xf] %v7726
                  %v7728 = vld [vmem:[%s7692 + $0x44] sm:$0xf]
                  %7729 = vst [vmem:[%s7693 + $0x44] sm:$0xf] %v7728
                  %v7730 = vld [vmem:[%s7692 + $0x48] sm:$0xf]
                  %7731 = vst [vmem:[%s7693 + $0x48] sm:$0xf] %v7730
                  %v7732 = vld [vmem:[%s7692 + $0x4c] sm:$0xf]
                  %7733 = vst [vmem:[%s7693 + $0x4c] sm:$0xf] %v7732
                  %v7734 = vld [vmem:[%s7692 + $0x50] sm:$0xf]
                  %7735 = vst [vmem:[%s7693 + $0x50] sm:$0xf] %v7734
                  %v7736 = vld [vmem:[%s7692 + $0x54] sm:$0xf]
                  %7737 = vst [vmem:[%s7693 + $0x54] sm:$0xf] %v7736
                  %v7738 = vld [vmem:[%s7692 + $0x58] sm:$0xf]
                  %7739 = vst [vmem:[%s7693 + $0x58] sm:$0xf] %v7738
                  %v7740 = vld [vmem:[%s7692 + $0x5c] sm:$0xf]
                  %7741 = vst [vmem:[%s7693 + $0x5c] sm:$0xf] %v7740
                  %v7742 = vld [vmem:[%s7692 + $0x60] sm:$0xf]
                  %7743 = vst [vmem:[%s7693 + $0x60] sm:$0xf] %v7742
                  %v7744 = vld [vmem:[%s7692 + $0x64] sm:$0xf]
                  %7745 = vst [vmem:[%s7693 + $0x64] sm:$0xf] %v7744
                  %v7746 = vld [vmem:[%s7692 + $0x68] sm:$0xf]
                  %7747 = vst [vmem:[%s7693 + $0x68] sm:$0xf] %v7746
                  %v7748 = vld [vmem:[%s7692 + $0x6c] sm:$0xf]
                  %7749 = vst [vmem:[%s7693 + $0x6c] sm:$0xf] %v7748
                  %v7750 = vld [vmem:[%s7692 + $0x70] sm:$0xf]
                  %7751 = vst [vmem:[%s7693 + $0x70] sm:$0xf] %v7750
                  %v7752 = vld [vmem:[%s7692 + $0x74] sm:$0xf]
                  %7753 = vst [vmem:[%s7693 + $0x74] sm:$0xf] %v7752
                  %v7754 = vld [vmem:[%s7692 + $0x78] sm:$0xf]
                  %7755 = vst [vmem:[%s7693 + $0x78] sm:$0xf] %v7754
                  %v7756 = vld [vmem:[%s7692 + $0x7c] sm:$0xf]
                  %7757 = vst [vmem:[%s7693 + $0x7c] sm:$0xf] %v7756
                  %v7758 = vld [vmem:[%s7692 + $0x80] sm:$0xf]
                  %7759 = vst [vmem:[%s7693 + $0x80] sm:$0xf] %v7758
                  %v7760 = vld [vmem:[%s7692 + $0x84] sm:$0xf]
                  %7761 = vst [vmem:[%s7693 + $0x84] sm:$0xf] %v7760
                  %v7762 = vld [vmem:[%s7692 + $0x88] sm:$0xf]
                  %7763 = vst [vmem:[%s7693 + $0x88] sm:$0xf] %v7762
                  %v7764 = vld [vmem:[%s7692 + $0x8c] sm:$0xf]
                  %7765 = vst [vmem:[%s7693 + $0x8c] sm:$0xf] %v7764
                  %v7766 = vld [vmem:[%s7692 + $0x90] sm:$0xf]
                  %7767 = vst [vmem:[%s7693 + $0x90] sm:$0xf] %v7766
                  %v7768 = vld [vmem:[%s7692 + $0x94] sm:$0xf]
                  %7769 = vst [vmem:[%s7693 + $0x94] sm:$0xf] %v7768
                  %v7770 = vld [vmem:[%s7692 + $0x98] sm:$0xf]
                  %7771 = vst [vmem:[%s7693 + $0x98] sm:$0xf] %v7770
                  %v7772 = vld [vmem:[%s7692 + $0x9c] sm:$0xf]
                  %7773 = vst [vmem:[%s7693 + $0x9c] sm:$0xf] %v7772
                  %v7774 = vld [vmem:[%s7692 + $0xa0] sm:$0xf]
                  %7775 = vst [vmem:[%s7693 + $0xa0] sm:$0xf] %v7774
                  %v7776 = vld [vmem:[%s7692 + $0xa4] sm:$0xf]
                  %7777 = vst [vmem:[%s7693 + $0xa4] sm:$0xf] %v7776
                  %v7778 = vld [vmem:[%s7692 + $0xa8] sm:$0xf]
                  %7779 = vst [vmem:[%s7693 + $0xa8] sm:$0xf] %v7778
                  %v7780 = vld [vmem:[%s7692 + $0xac] sm:$0xf]
                  %7781 = vst [vmem:[%s7693 + $0xac] sm:$0xf] %v7780
                  %v7782 = vld [vmem:[%s7692 + $0xb0] sm:$0xf]
                  %7783 = vst [vmem:[%s7693 + $0xb0] sm:$0xf] %v7782
                  %v7784 = vld [vmem:[%s7692 + $0xb4] sm:$0xf]
                  %7785 = vst [vmem:[%s7693 + $0xb4] sm:$0xf] %v7784
                  %v7786 = vld [vmem:[%s7692 + $0xb8] sm:$0xf]
                  %7787 = vst [vmem:[%s7693 + $0xb8] sm:$0xf] %v7786
                  %v7788 = vld [vmem:[%s7692 + $0xbc] sm:$0xf]
                  %7789 = vst [vmem:[%s7693 + $0xbc] sm:$0xf] %v7788
                  %v7790 = vld [vmem:[%s7692 + $0xc0] sm:$0xf]
                  %7791 = vst [vmem:[%s7693 + $0xc0] sm:$0xf] %v7790
                  %v7792 = vld [vmem:[%s7692 + $0xc4] sm:$0xf]
                  %7793 = vst [vmem:[%s7693 + $0xc4] sm:$0xf] %v7792
                  %v7794 = vld [vmem:[%s7692 + $0xc8] sm:$0xf]
                  %7795 = vst [vmem:[%s7693 + $0xc8] sm:$0xf] %v7794
                  %v7796 = vld [vmem:[%s7692 + $0xcc] sm:$0xf]
                  %7797 = vst [vmem:[%s7693 + $0xcc] sm:$0xf] %v7796
                  %v7798 = vld [vmem:[%s7692 + $0xd0] sm:$0xf]
                  %7799 = vst [vmem:[%s7693 + $0xd0] sm:$0xf] %v7798
                  %v7800 = vld [vmem:[%s7692 + $0xd4] sm:$0xf]
                  %7801 = vst [vmem:[%s7693 + $0xd4] sm:$0xf] %v7800
                  %v7802 = vld [vmem:[%s7692 + $0xd8] sm:$0xf]
                  %7803 = vst [vmem:[%s7693 + $0xd8] sm:$0xf] %v7802
                  %v7804 = vld [vmem:[%s7692 + $0xdc] sm:$0xf]
                  %7805 = vst [vmem:[%s7693 + $0xdc] sm:$0xf] %v7804
                  %v7806 = vld [vmem:[%s7692 + $0xe0] sm:$0xf]
                  %7807 = vst [vmem:[%s7693 + $0xe0] sm:$0xf] %v7806
                  %v7808 = vld [vmem:[%s7692 + $0xe4] sm:$0xf]
                  %7809 = vst [vmem:[%s7693 + $0xe4] sm:$0xf] %v7808
                  %v7810 = vld [vmem:[%s7692 + $0xe8] sm:$0xf]
                  %7811 = vst [vmem:[%s7693 + $0xe8] sm:$0xf] %v7810
                  %v7812 = vld [vmem:[%s7692 + $0xec] sm:$0xf]
                  %7813 = vst [vmem:[%s7693 + $0xec] sm:$0xf] %v7812
                  %v7814 = vld [vmem:[%s7692 + $0xf0] sm:$0xf]
                  %7815 = vst [vmem:[%s7693 + $0xf0] sm:$0xf] %v7814
                  %v7816 = vld [vmem:[%s7692 + $0xf4] sm:$0xf]
                  %7817 = vst [vmem:[%s7693 + $0xf4] sm:$0xf] %v7816
                  %v7818 = vld [vmem:[%s7692 + $0xf8] sm:$0xf]
                  %7819 = vst [vmem:[%s7693 + $0xf8] sm:$0xf] %v7818
                  %v7820 = vld [vmem:[%s7692 + $0xfc] sm:$0xf]
                  %7821 = vst [vmem:[%s7693 + $0xfc] sm:$0xf] %v7820
                  %s7822 = sadd.s32 1, %s7691
                  %p7823 = scmp.ge.s32.totalorder %s7822, %s7684
                  %s7824 = scalar_select %p7823, 0, %s7822
                  %s7825 = smul.u32 %s7824, 256
                  %s7826 = smul.u32 %s7824, 256
                  %s7827 = scalar_lea.vmem %s7491, %s7825 [#allocation6]
                  %s7828 = scalar_lea.vmem %s7502, %s7826
                $region79: #{tpu_custom_call.1} parent=73 // loop_footer
                  %s7688 = sadd.s32 %s7686, 1
                $region80: #{tpu_custom_call.1} parent=73 // loop_footer_branch
                  %7685 = sbr.rel target = $region76
                $region81: #{tpu_custom_call.1} parent=73 // loop_exit
                  _
                %s7829 = sshrl.u32 %s7498, 6
                %s7830 = sand.u32 %s7498, 63
                %s7831 = smul.u32 %s7829, 64
                %s7832 = smul.u32 4, %s7831
                %s7833 = scalar_lea.vmem %s7491, %s7832 [#allocation6]
                %s7834 = smul.u32 4, %s7831
                %s7835 = scalar_lea.vmem %s7502, %s7834
                // While loop
                $region82: #{tpu_custom_call.1} parent=73 // loop_pre_header
                  _
                $region83: #{tpu_custom_call.1} parent=73 // loop_header
                  %s7837 = sphi 0, %s7839
                  %p7838 = scmp.ge.s32.totalorder %s7837, %s7830
                  %s7842 = sphi 0, %s7849
                  %s7843 = sphi %s7833, %s7852
                  %s7844 = sphi %s7835, %s7853
                $region84: #{tpu_custom_call.1} parent=73 // loop_header_branch
                  %7841 = sbr.rel (%p7838) target = $region88
                $region85: #{tpu_custom_call.1} parent=73 // loop_body
                  %v7845 = vld [vmem:[%s7843] sm:$0xf]
                  %7846 = vst [vmem:[%s7844] sm:$0xf] %v7845
                  %s7847 = sadd.s32 1, %s7842
                  %p7848 = scmp.ge.s32.totalorder %s7847, %s7830
                  %s7849 = scalar_select %p7848, 0, %s7847
                  %s7850 = smul.u32 %s7849, 4
                  %s7851 = smul.u32 %s7849, 4
                  %s7852 = scalar_lea.vmem %s7833, %s7850 [#allocation6]
                  %s7853 = scalar_lea.vmem %s7835, %s7851
                $region86: #{tpu_custom_call.1} parent=73 // loop_footer
                  %s7839 = sadd.s32 %s7837, 1
                $region87: #{tpu_custom_call.1} parent=73 // loop_footer_branch
                  %7836 = sbr.rel target = $region83
                $region88: #{tpu_custom_call.1} parent=73 // loop_exit
                  _
              $region74: #{tpu_custom_call.1} parent=51 // pred_fallthru
                _
            $region52: #{tpu_custom_call.1} parent=47 // pred_fallthru
              _
            // Predicated region
            $region53: #{tpu_custom_call.1} parent=47 // pred_check
              _
            $region54: #{tpu_custom_call.1} parent=47 // pred_check_branch
              %7509 = sbr.rel (0) target = $region56
            $region55: #{tpu_custom_call.1} parent=47 // pred_region
              %s7511 = sshrl.u32 %s7498, 6
              // While loop
              $region57: #{tpu_custom_call.1} parent=55 // loop_pre_header
                _
              $region58: #{tpu_custom_call.1} parent=55 // loop_header
                %s7513 = sphi 0, %s7515
                %p7514 = scmp.ge.s32.totalorder %s7513, %s7511
                %s7518 = sphi 0, %s7651
                %s7519 = sphi %s7491, %s7654
                %s7520 = sphi %s7502, %s7655
              $region59: #{tpu_custom_call.1} parent=55 // loop_header_branch
                %7517 = sbr.rel (%p7514) target = $region63
              $region60: #{tpu_custom_call.1} parent=55 // loop_body
                %v7521 = vld [vmem:[%s7519] sm:$0xf]
                %7522 = vst [vmem:[%s7520] sm:$0xf] %v7521
                %v7523 = vld [vmem:[%s7519 + $0x4] sm:$0xf]
                %7524 = vst [vmem:[%s7520 + $0x4] sm:$0xf] %v7523
                %v7525 = vld [vmem:[%s7519 + $0x8] sm:$0xf]
                %7526 = vst [vmem:[%s7520 + $0x8] sm:$0xf] %v7525
                %v7527 = vld [vmem:[%s7519 + $0xc] sm:$0xf]
                %7528 = vst [vmem:[%s7520 + $0xc] sm:$0xf] %v7527
                %v7529 = vld [vmem:[%s7519 + $0x10] sm:$0xf]
                %7530 = vst [vmem:[%s7520 + $0x10] sm:$0xf] %v7529
                %v7531 = vld [vmem:[%s7519 + $0x14] sm:$0xf]
                %7532 = vst [vmem:[%s7520 + $0x14] sm:$0xf] %v7531
                %v7533 = vld [vmem:[%s7519 + $0x18] sm:$0xf]
                %7534 = vst [vmem:[%s7520 + $0x18] sm:$0xf] %v7533
                %v7535 = vld [vmem:[%s7519 + $0x1c] sm:$0xf]
                %7536 = vst [vmem:[%s7520 + $0x1c] sm:$0xf] %v7535
                %v7537 = vld [vmem:[%s7519 + $0x20] sm:$0xf]
                %7538 = vst [vmem:[%s7520 + $0x20] sm:$0xf] %v7537
                %v7539 = vld [vmem:[%s7519 + $0x24] sm:$0xf]
                %7540 = vst [vmem:[%s7520 + $0x24] sm:$0xf] %v7539
                %v7541 = vld [vmem:[%s7519 + $0x28] sm:$0xf]
                %7542 = vst [vmem:[%s7520 + $0x28] sm:$0xf] %v7541
                %v7543 = vld [vmem:[%s7519 + $0x2c] sm:$0xf]
                %7544 = vst [vmem:[%s7520 + $0x2c] sm:$0xf] %v7543
                %v7545 = vld [vmem:[%s7519 + $0x30] sm:$0xf]
                %7546 = vst [vmem:[%s7520 + $0x30] sm:$0xf] %v7545
                %v7547 = vld [vmem:[%s7519 + $0x34] sm:$0xf]
                %7548 = vst [vmem:[%s7520 + $0x34] sm:$0xf] %v7547
                %v7549 = vld [vmem:[%s7519 + $0x38] sm:$0xf]
                %7550 = vst [vmem:[%s7520 + $0x38] sm:$0xf] %v7549
                %v7551 = vld [vmem:[%s7519 + $0x3c] sm:$0xf]
                %7552 = vst [vmem:[%s7520 + $0x3c] sm:$0xf] %v7551
                %v7553 = vld [vmem:[%s7519 + $0x40] sm:$0xf]
                %7554 = vst [vmem:[%s7520 + $0x40] sm:$0xf] %v7553
                %v7555 = vld [vmem:[%s7519 + $0x44] sm:$0xf]
                %7556 = vst [vmem:[%s7520 + $0x44] sm:$0xf] %v7555
                %v7557 = vld [vmem:[%s7519 + $0x48] sm:$0xf]
                %7558 = vst [vmem:[%s7520 + $0x48] sm:$0xf] %v7557
                %v7559 = vld [vmem:[%s7519 + $0x4c] sm:$0xf]
                %7560 = vst [vmem:[%s7520 + $0x4c] sm:$0xf] %v7559
                %v7561 = vld [vmem:[%s7519 + $0x50] sm:$0xf]
                %7562 = vst [vmem:[%s7520 + $0x50] sm:$0xf] %v7561
                %v7563 = vld [vmem:[%s7519 + $0x54] sm:$0xf]
                %7564 = vst [vmem:[%s7520 + $0x54] sm:$0xf] %v7563
                %v7565 = vld [vmem:[%s7519 + $0x58] sm:$0xf]
                %7566 = vst [vmem:[%s7520 + $0x58] sm:$0xf] %v7565
                %v7567 = vld [vmem:[%s7519 + $0x5c] sm:$0xf]
                %7568 = vst [vmem:[%s7520 + $0x5c] sm:$0xf] %v7567
                %v7569 = vld [vmem:[%s7519 + $0x60] sm:$0xf]
                %7570 = vst [vmem:[%s7520 + $0x60] sm:$0xf] %v7569
                %v7571 = vld [vmem:[%s7519 + $0x64] sm:$0xf]
                %7572 = vst [vmem:[%s7520 + $0x64] sm:$0xf] %v7571
                %v7573 = vld [vmem:[%s7519 + $0x68] sm:$0xf]
                %7574 = vst [vmem:[%s7520 + $0x68] sm:$0xf] %v7573
                %v7575 = vld [vmem:[%s7519 + $0x6c] sm:$0xf]
                %7576 = vst [vmem:[%s7520 + $0x6c] sm:$0xf] %v7575
                %v7577 = vld [vmem:[%s7519 + $0x70] sm:$0xf]
                %7578 = vst [vmem:[%s7520 + $0x70] sm:$0xf] %v7577
                %v7579 = vld [vmem:[%s7519 + $0x74] sm:$0xf]
                %7580 = vst [vmem:[%s7520 + $0x74] sm:$0xf] %v7579
                %v7581 = vld [vmem:[%s7519 + $0x78] sm:$0xf]
                %7582 = vst [vmem:[%s7520 + $0x78] sm:$0xf] %v7581
                %v7583 = vld [vmem:[%s7519 + $0x7c] sm:$0xf]
                %7584 = vst [vmem:[%s7520 + $0x7c] sm:$0xf] %v7583
                %v7585 = vld [vmem:[%s7519 + $0x80] sm:$0xf]
                %7586 = vst [vmem:[%s7520 + $0x80] sm:$0xf] %v7585
                %v7587 = vld [vmem:[%s7519 + $0x84] sm:$0xf]
                %7588 = vst [vmem:[%s7520 + $0x84] sm:$0xf] %v7587
                %v7589 = vld [vmem:[%s7519 + $0x88] sm:$0xf]
                %7590 = vst [vmem:[%s7520 + $0x88] sm:$0xf] %v7589
                %v7591 = vld [vmem:[%s7519 + $0x8c] sm:$0xf]
                %7592 = vst [vmem:[%s7520 + $0x8c] sm:$0xf] %v7591
                %v7593 = vld [vmem:[%s7519 + $0x90] sm:$0xf]
                %7594 = vst [vmem:[%s7520 + $0x90] sm:$0xf] %v7593
                %v7595 = vld [vmem:[%s7519 + $0x94] sm:$0xf]
                %7596 = vst [vmem:[%s7520 + $0x94] sm:$0xf] %v7595
                %v7597 = vld [vmem:[%s7519 + $0x98] sm:$0xf]
                %7598 = vst [vmem:[%s7520 + $0x98] sm:$0xf] %v7597
                %v7599 = vld [vmem:[%s7519 + $0x9c] sm:$0xf]
                %7600 = vst [vmem:[%s7520 + $0x9c] sm:$0xf] %v7599
                %v7601 = vld [vmem:[%s7519 + $0xa0] sm:$0xf]
                %7602 = vst [vmem:[%s7520 + $0xa0] sm:$0xf] %v7601
                %v7603 = vld [vmem:[%s7519 + $0xa4] sm:$0xf]
                %7604 = vst [vmem:[%s7520 + $0xa4] sm:$0xf] %v7603
                %v7605 = vld [vmem:[%s7519 + $0xa8] sm:$0xf]
                %7606 = vst [vmem:[%s7520 + $0xa8] sm:$0xf] %v7605
                %v7607 = vld [vmem:[%s7519 + $0xac] sm:$0xf]
                %7608 = vst [vmem:[%s7520 + $0xac] sm:$0xf] %v7607
                %v7609 = vld [vmem:[%s7519 + $0xb0] sm:$0xf]
                %7610 = vst [vmem:[%s7520 + $0xb0] sm:$0xf] %v7609
                %v7611 = vld [vmem:[%s7519 + $0xb4] sm:$0xf]
                %7612 = vst [vmem:[%s7520 + $0xb4] sm:$0xf] %v7611
                %v7613 = vld [vmem:[%s7519 + $0xb8] sm:$0xf]
                %7614 = vst [vmem:[%s7520 + $0xb8] sm:$0xf] %v7613
                %v7615 = vld [vmem:[%s7519 + $0xbc] sm:$0xf]
                %7616 = vst [vmem:[%s7520 + $0xbc] sm:$0xf] %v7615
                %v7617 = vld [vmem:[%s7519 + $0xc0] sm:$0xf]
                %7618 = vst [vmem:[%s7520 + $0xc0] sm:$0xf] %v7617
                %v7619 = vld [vmem:[%s7519 + $0xc4] sm:$0xf]
                %7620 = vst [vmem:[%s7520 + $0xc4] sm:$0xf] %v7619
                %v7621 = vld [vmem:[%s7519 + $0xc8] sm:$0xf]
                %7622 = vst [vmem:[%s7520 + $0xc8] sm:$0xf] %v7621
                %v7623 = vld [vmem:[%s7519 + $0xcc] sm:$0xf]
                %7624 = vst [vmem:[%s7520 + $0xcc] sm:$0xf] %v7623
                %v7625 = vld [vmem:[%s7519 + $0xd0] sm:$0xf]
                %7626 = vst [vmem:[%s7520 + $0xd0] sm:$0xf] %v7625
                %v7627 = vld [vmem:[%s7519 + $0xd4] sm:$0xf]
                %7628 = vst [vmem:[%s7520 + $0xd4] sm:$0xf] %v7627
                %v7629 = vld [vmem:[%s7519 + $0xd8] sm:$0xf]
                %7630 = vst [vmem:[%s7520 + $0xd8] sm:$0xf] %v7629
                %v7631 = vld [vmem:[%s7519 + $0xdc] sm:$0xf]
                %7632 = vst [vmem:[%s7520 + $0xdc] sm:$0xf] %v7631
                %v7633 = vld [vmem:[%s7519 + $0xe0] sm:$0xf]
                %7634 = vst [vmem:[%s7520 + $0xe0] sm:$0xf] %v7633
                %v7635 = vld [vmem:[%s7519 + $0xe4] sm:$0xf]
                %7636 = vst [vmem:[%s7520 + $0xe4] sm:$0xf] %v7635
                %v7637 = vld [vmem:[%s7519 + $0xe8] sm:$0xf]
                %7638 = vst [vmem:[%s7520 + $0xe8] sm:$0xf] %v7637
                %v7639 = vld [vmem:[%s7519 + $0xec] sm:$0xf]
                %7640 = vst [vmem:[%s7520 + $0xec] sm:$0xf] %v7639
                %v7641 = vld [vmem:[%s7519 + $0xf0] sm:$0xf]
                %7642 = vst [vmem:[%s7520 + $0xf0] sm:$0xf] %v7641
                %v7643 = vld [vmem:[%s7519 + $0xf4] sm:$0xf]
                %7644 = vst [vmem:[%s7520 + $0xf4] sm:$0xf] %v7643
                %v7645 = vld [vmem:[%s7519 + $0xf8] sm:$0xf]
                %7646 = vst [vmem:[%s7520 + $0xf8] sm:$0xf] %v7645
                %v7647 = vld [vmem:[%s7519 + $0xfc] sm:$0xf]
                %7648 = vst [vmem:[%s7520 + $0xfc] sm:$0xf] %v7647
                %s7649 = sadd.s32 1, %s7518
                %p7650 = scmp.ge.s32.totalorder %s7649, %s7511
                %s7651 = scalar_select %p7650, 0, %s7649
                %s7652 = smul.u32 %s7651, 256
                %s7653 = smul.u32 %s7651, 256
                %s7654 = scalar_lea.vmem %s7491, %s7652 [#allocation6]
                %s7655 = scalar_lea.vmem %s7502, %s7653
              $region61: #{tpu_custom_call.1} parent=55 // loop_footer
                %s7515 = sadd.s32 %s7513, 1
              $region62: #{tpu_custom_call.1} parent=55 // loop_footer_branch
                %7512 = sbr.rel target = $region58
              $region63: #{tpu_custom_call.1} parent=55 // loop_exit
                _
              %s7656 = sshrl.u32 %s7498, 6
              %s7657 = sand.u32 %s7498, 63
              %s7658 = smul.u32 %s7656, 64
              %s7659 = smul.u32 4, %s7658
              %s7660 = scalar_lea.vmem %s7491, %s7659 [#allocation6]
              %s7661 = smul.u32 4, %s7658
              %s7662 = scalar_lea.vmem %s7502, %s7661
              // While loop
              $region64: #{tpu_custom_call.1} parent=55 // loop_pre_header
                _
              $region65: #{tpu_custom_call.1} parent=55 // loop_header
                %s7664 = sphi 0, %s7666
                %p7665 = scmp.ge.s32.totalorder %s7664, %s7657
                %s7669 = sphi 0, %s7676
                %s7670 = sphi %s7660, %s7679
                %s7671 = sphi %s7662, %s7680
              $region66: #{tpu_custom_call.1} parent=55 // loop_header_branch
                %7668 = sbr.rel (%p7665) target = $region70
              $region67: #{tpu_custom_call.1} parent=55 // loop_body
                %v7672 = vld [vmem:[%s7670] sm:$0xf]
                %7673 = vst [vmem:[%s7671] sm:$0xf] %v7672
                %s7674 = sadd.s32 1, %s7669
                %p7675 = scmp.ge.s32.totalorder %s7674, %s7657
                %s7676 = scalar_select %p7675, 0, %s7674
                %s7677 = smul.u32 %s7676, 4
                %s7678 = smul.u32 %s7676, 4
                %s7679 = scalar_lea.vmem %s7660, %s7677 [#allocation6]
                %s7680 = scalar_lea.vmem %s7662, %s7678
              $region68: #{tpu_custom_call.1} parent=55 // loop_footer
                %s7666 = sadd.s32 %s7664, 1
              $region69: #{tpu_custom_call.1} parent=55 // loop_footer_branch
                %7663 = sbr.rel target = $region65
              $region70: #{tpu_custom_call.1} parent=55 // loop_exit
                _
            $region56: #{tpu_custom_call.1} parent=47 // pred_fallthru
              _
          $region48: #{tpu_custom_call.1} parent=43 // pred_fallthru
            _
          %7854 = vnop
        $region44: #{tpu_custom_call.1} parent=31 // pred_fallthru
          _
      $region32: #{tpu_custom_call.1} parent=5 // pred_fallthru
        _
      %p7855 = scmp.le.s32.totalorder 2, %s13
      // Predicated region
      $region89: #{tpu_custom_call.1} parent=5 // pred_check
        %p7856 = pneg %p7855
      $region90: #{tpu_custom_call.1} parent=5 // pred_check_branch
        %7858 = sbr.rel (%p7856) target = $region92
      $region91: #{tpu_custom_call.1} parent=5 // pred_region
        %s7859 = ssub.s32 %s13, 2
        // Predicated region
        $region93: #{tpu_custom_call.1} parent=91 // pred_check
          %p7860 = pneg %p110
        $region94: #{tpu_custom_call.1} parent=91 // pred_check_branch
          %7862 = sbr.rel (%p7860) target = $region96
        $region95: #{tpu_custom_call.1} parent=91 // pred_region
          %s7863 = sand.u32 %s95, 1
          %s7864 = sand.u32 %s95, 1
          %s7865 = smul.addr %s7864, 2048
          %s7866 = scalar_lea.vmem [#allocation6], %s7865
        $region96: #{tpu_custom_call.1} parent=91 // pred_fallthru
          _
      $region92: #{tpu_custom_call.1} parent=5 // pred_fallthru
        _
    $region6: #{tpu_custom_call.1} parent=1 // loop_footer
      %s17 = sadd.s32 1, %s13
    $region7: #{tpu_custom_call.1} parent=1 // loop_footer_branch
      %12 = sbr.rel target = $region3
    $region8: #{tpu_custom_call.1} parent=1 // loop_exit
      _
    %7867 = vsyncpa [#allocation3], 1
    %s7868 = scalar_lea.sflag [#allocation3], 1
    %7869 = vsyncpa %s7868, 1
    %7870 = vsyncpa [#allocation5], 1

</llo_original>
